<compile_context>
chip_gen: v7x
topology: tpu7x:2x2x1
jax: 0.10.0
libtpu: 0.0.40
codegen_flags: <defaults>
</compile_context>

<pallas_src>
import functools

import jax
import jax.numpy as jnp
from jax.experimental import pallas as pl
from jax.experimental.pallas import tpu as pltpu

EPS = 1e-5  # nn.InstanceNorm2d default eps


def resblock_kernel(x_ref, wb1_ref, b1_ref, wb2_ref, b2_ref, p_ref, out_ref,
                    *, H, inv_hw):
    # x_ref   : (TB, H, GWC)   TB image-groups, lanes = [image-in-group, W, C]
    # wb*_ref : (3, GWC, GWC)  block-diag banded conv weights (one band per row tap)
    # b*_ref  : (1, GWC)       conv biases pre-tiled across (group, W)
    # p_ref   : (GWC, GWC)     0/1 projector: 1 iff same (image-in-group, channel)
    # out_ref : (TB, H, GWC)
    TB, _, GWC = out_ref.shape
    M = TB * H
    wdt = wb1_ref.dtype
    prec = jax.lax.Precision.HIGHEST if wdt == jnp.float32 else None

    # Hoisted once per grid step, shared by both convs.
    row = jax.lax.broadcasted_iota(jnp.int32, (M, 1), 0) % H
    top_ok = row >= 1          # dy=0 tap needs row i-1 inside the same image
    bot_ok = row <= H - 2      # dy=2 tap needs row i+1 inside the same image
    pmat = p_ref[...]
    b1 = b1_ref[...].astype(jnp.float32)
    b2 = b2_ref[...].astype(jnp.float32)

    def conv3x3(src, wb_ref, bias):
        # src: (M, GWC) f32 row stack -> f32 (M, GWC); 3 row-tap matmuls,
        # bias folded into the accumulator init.
        acc = jnp.broadcast_to(bias, (M, GWC))
        for dy in range(3):
            shift = (1 - dy) % M          # shifted[i] = src[i + dy - 1]
            s = src if shift == 0 else pltpu.roll(src, shift=shift, axis=0)
            if dy == 0:
                s = jnp.where(top_ok, s, 0.0)
            elif dy == 2:
                s = jnp.where(bot_ok, s, 0.0)
            acc = acc + jnp.dot(s.astype(wdt), wb_ref[dy],
                                preferred_element_type=jnp.float32,
                                precision=prec)
        return acc

    def inorm_relu(z):
        # Per-image, per-channel InstanceNorm over (H, W); one pass E[x^2]-E[x]^2.
        z3 = z.reshape(TB, H, GWC)
        s1 = jnp.sum(z3, axis=1)                       # (TB, GWC)
        s2 = jnp.sum(z3 * z3, axis=1)                  # (TB, GWC)
        mean = jnp.dot(s1, pmat, preferred_element_type=jnp.float32,
                       precision=jax.lax.Precision.HIGHEST) * inv_hw
        ex2 = jnp.dot(s2, pmat, preferred_element_type=jnp.float32,
                      precision=jax.lax.Precision.HIGHEST) * inv_hw
        alpha = jax.lax.rsqrt(ex2 - mean * mean + EPS)  # (TB, GWC)
        beta = -mean * alpha
        zn = z3 * alpha[:, None, :] + beta[:, None, :]
        return jnp.maximum(zn, 0.0).reshape(M, GWC)

    x2 = x_ref[...].astype(jnp.float32).reshape(M, GWC)
    h = inorm_relu(conv3x3(x2, wb1_ref, b1))
    y = conv3x3(h, wb2_ref, b2) + x2                   # residual add
    out_ref[...] = inorm_relu(y).reshape(TB, H, GWC).astype(out_ref.dtype)


def _band_weights(w, W):
    """(3, 3, C, C) HWIO conv weights -> (3, W*C, W*C) banded along W.

    WB[dy, j'*C+ci, j*C+co] = w[dy, j' - j + 1, ci, co] when 0 <= j'-j+1 <= 2,
    else 0 (encodes W-axis zero padding; cross-correlation orientation)."""
    C = w.shape[-1]
    jp = jnp.arange(W)[:, None]          # source column j'
    jo = jnp.arange(W)[None, :]          # output column j
    dx = jp - jo + 1                     # kernel tap index along W
    valid = (dx >= 0) & (dx <= 2)
    wg = w[:, jnp.clip(dx, 0, 2)]        # (3, W, W, C, C) = [dy, j', j, ci, co]
    wg = jnp.where(valid[None, :, :, None, None], wg, 0.0)
    wg = jnp.transpose(wg, (0, 1, 3, 2, 4))   # [dy, j', ci, j, co]
    return wg.reshape(3, W * C, W * C)


def _block_diag(wb, G):
    """(3, K, K) -> (3, G*K, G*K) with wb repeated on the diagonal blocks."""
    if G == 1:
        return wb
    eye = jnp.eye(G, dtype=wb.dtype)
    K = wb.shape[-1]
    out = jnp.einsum("gh,dab->dgahb", eye, wb)
    return out.reshape(wb.shape[0], G * K, G * K)


def _pick_group_batch(num_groups, H):
    """Image-groups per grid step: largest divisor keeping the row stack ~<=512
    rows while leaving >=2 grid steps when possible (v7x: 2 TensorCores/chip)."""
    cap = max(1, 512 // H)
    divs = [t for t in range(1, num_groups + 1)
            if num_groups % t == 0 and t <= cap]
    two_step = [t for t in divs if num_groups // t >= 2]
    return max(two_step) if two_step else max(divs)


@functools.partial(jax.jit, static_argnames=("mxu_dtype",))
def resblock_pallas(x_nhwc, w1, b1, w2, b2, mxu_dtype=jnp.bfloat16):
    N, H, W, C = x_nhwc.shape
    WC = W * C

    # Lane-fold factor: stack G images along lanes so the last dim is 128-dense.
    if WC % 128 == 0:
        G = 1
    elif 128 % WC == 0 and N % (128 // WC) == 0:
        G = 128 // WC
    else:
        G = 1  # TODO(synk): pad lanes / fold row pairs for awkward W*C values.
    GWC = G * WC
    NG = N // G
    TB = _pick_group_batch(NG, H)

    # Input layout: (N,H,W,C) -> (NG, H, G*W*C), lanes = [image-in-group, W, C].
    x_flat = x_nhwc.reshape(N, H, WC)
    if G > 1:
        xg = (x_flat.reshape(NG, G, H, WC)
              .transpose(0, 2, 1, 3).reshape(NG, H, GWC))
    else:
        xg = x_flat

    wb1 = _block_diag(_band_weights(w1, W), G).astype(mxu_dtype)
    wb2 = _block_diag(_band_weights(w2, W), G).astype(mxu_dtype)
    b1f = jnp.tile(b1, G * W).reshape(1, GWC).astype(jnp.float32)
    b2f = jnp.tile(b2, G * W).reshape(1, GWC).astype(jnp.float32)

    # InstanceNorm projector: P[l, l'] = 1 iff same image-in-group and channel.
    lane = jnp.arange(GWC)
    pmat = (((lane[:, None] // WC) == (lane[None, :] // WC))
            & ((lane[:, None] % C) == (lane[None, :] % C))).astype(jnp.float32)

    wsize = jnp.dtype(mxu_dtype).itemsize
    xbytes = jnp.dtype(x_nhwc.dtype).itemsize
    vmem_bytes = (2 * 3 * GWC * GWC * wsize        # resident banded weights
                  + GWC * GWC * 4 + 2 * GWC * 4    # P projector + biases
                  + 2 * 2 * TB * H * GWC * xbytes)  # double-buffered in/out blocks
    vmem_limit = int(min(100 << 20, max(32 << 20, 4 * vmem_bytes)))

    conv_macs = 2 * 3 * NG * H * GWC * GWC
    stats_macs = 2 * 2 * NG * GWC * GWC
    cost = pl.CostEstimate(
        flops=int(2 * (conv_macs + stats_macs)),
        transcendentals=int(2 * NG * GWC),
        bytes_accessed=int(2 * N * H * WC * xbytes
                           + 2 * 3 * GWC * GWC * wsize
                           + GWC * GWC * 4 + 2 * GWC * 4))

    out_g = pl.pallas_call(
        functools.partial(resblock_kernel, H=H, inv_hw=1.0 / float(H * W)),
        out_shape=jax.ShapeDtypeStruct((NG, H, GWC), x_nhwc.dtype),
        grid=(NG // TB,),
        in_specs=[
            pl.BlockSpec((TB, H, GWC), lambda n: (n, 0, 0)),
            pl.BlockSpec((3, GWC, GWC), lambda n: (0, 0, 0)),  # resident weights
            pl.BlockSpec((1, GWC), lambda n: (0, 0)),
            pl.BlockSpec((3, GWC, GWC), lambda n: (0, 0, 0)),
            pl.BlockSpec((1, GWC), lambda n: (0, 0)),
            pl.BlockSpec((GWC, GWC), lambda n: (0, 0)),
        ],
        out_specs=pl.BlockSpec((TB, H, GWC), lambda n: (n, 0, 0)),
        compiler_params=pltpu.CompilerParams(
            dimension_semantics=("parallel",),
            vmem_limit_bytes=vmem_limit),
        cost_estimate=cost,
    )(xg, wb1, b1f, wb2, b2f, pmat)

    if G > 1:
        out = (out_g.reshape(NG, H, G, W, C)
               .transpose(0, 2, 1, 3, 4).reshape(N, H, W, C))
    else:
        out = out_g.reshape(N, H, W, C)
    return out


def resblock_ref(x_nhwc, w1, b1, w2, b2):
    """Pure-JAX reference (matches the PyTorch module semantics)."""
    def conv(x, w, b):
        y = jax.lax.conv_general_dilated(
            x, w, window_strides=(1, 1), padding="SAME",
            dimension_numbers=("NHWC", "HWIO", "NHWC"),
            precision=jax.lax.Precision.HIGHEST)
        return y + b

    def inorm(x):
        m = jnp.mean(x, axis=(1, 2), keepdims=True)
        v = jnp.mean((x - m) ** 2, axis=(1, 2), keepdims=True)
        return (x - m) / jnp.sqrt(v + EPS)

    h = jax.nn.relu(inorm(conv(x_nhwc, w1, b1)))
    y = conv(h, w2, b2) + x_nhwc
    return jax.nn.relu(inorm(y))


if __name__ == "__main__":
    nf = 4          # channels
    N, H, W = 8, 16, 16   # 8 images -> 4 lane-folded groups -> 2 grid steps

    key = jax.random.PRNGKey(0)
    kx, kw1, kb1, kw2, kb2 = jax.random.split(key, 5)

    # Input generated in NCHW (PyTorch convention), transposed to NHWC.
    x_nchw = jax.random.normal(kx, (N, nf, H, W), dtype=jnp.float32)
    x_nhwc = jnp.transpose(x_nchw, (0, 2, 3, 1))

    # Deterministic synthetic parameters (conv weights in HWIO layout).
    w1 = 0.1 * jax.random.normal(kw1, (3, 3, nf, nf), dtype=jnp.float32)
    b1 = 0.1 * jax.random.normal(kb1, (nf,), dtype=jnp.float32)
    w2 = 0.1 * jax.random.normal(kw2, (3, 3, nf, nf), dtype=jnp.float32)
    b2 = 0.1 * jax.random.normal(kb2, (nf,), dtype=jnp.float32)

    ref = resblock_ref(x_nhwc, w1, b1, w2, b2)

    # 1) f32 MXU operands: tight check of the banded / lane-folded math.
    out32 = jax.block_until_ready(
        resblock_pallas(x_nhwc, w1, b1, w2, b2, mxu_dtype=jnp.float32))
    assert out32.shape == (N, H, W, nf)
    err32 = jnp.max(jnp.abs(out32 - ref))
    assert jnp.allclose(out32, ref, atol=2e-3, rtol=2e-3), f"f32 max abs err {err32}"

    # 2) Default bf16 MXU operands (f32 accumulation): looser tolerance.
    out = jax.block_until_ready(resblock_pallas(x_nhwc, w1, b1, w2, b2))
    assert out.shape == (N, H, W, nf)
    err = jnp.max(jnp.abs(out - ref))
    assert jnp.allclose(out, ref, atol=6e-2, rtol=6e-2), f"bf16 max abs err {err}"

    print("KERNEL_OK")
</pallas_src>

<mosaic_0001>
module attributes {stable_mosaic.version = 11 : i64} {
  func.func @resblock_kernel(%arg0: i32, %arg1: memref<2x16x128xf32, #tpu.memory_space<vmem>>, %arg2: memref<3x128x128xf32, #tpu.memory_space<vmem>>, %arg3: memref<1x128xf32, #tpu.memory_space<vmem>>, %arg4: memref<3x128x128xf32, #tpu.memory_space<vmem>>, %arg5: memref<1x128xf32, #tpu.memory_space<vmem>>, %arg6: memref<128x128xf32, #tpu.memory_space<vmem>>, %arg7: memref<2x16x128xf32, #tpu.memory_space<vmem>>) attributes {dimension_semantics = [#tpu.dimension_semantics<parallel>], iteration_bounds = array<i64: 2>, scalar_prefetch = 0 : i64, scratch_operands = 0 : i64, tpu.core_type = #tpu.core_type<tc>, window_params = [{transform_indices = @transform_0, window_bounds = array<i64: 2, 16, 128>}, {pipeline_mode = #tpu.pipeline_mode<synchronous>, transform_indices = @transform_1, window_bounds = array<i64: 3, 128, 128>}, {pipeline_mode = #tpu.pipeline_mode<synchronous>, transform_indices = @transform_2, window_bounds = array<i64: 1, 128>}, {pipeline_mode = #tpu.pipeline_mode<synchronous>, transform_indices = @transform_3, window_bounds = array<i64: 3, 128, 128>}, {pipeline_mode = #tpu.pipeline_mode<synchronous>, transform_indices = @transform_4, window_bounds = array<i64: 1, 128>}, {pipeline_mode = #tpu.pipeline_mode<synchronous>, transform_indices = @transform_5, window_bounds = array<i64: 128, 128>}, {transform_indices = @transform_6, window_bounds = array<i64: 2, 16, 128>}]} {
    %0 = tpu.iota {dimensions = array<i32: 0>} : vector<32x1xi32>
    %c16_i32 = arith.constant 16 : i32
    %c0_i32 = arith.constant 0 : i32
    %1 = arith.cmpi eq, %c16_i32, %c0_i32 : i32
    %c1_i32 = arith.constant 1 : i32
    %2 = arith.select %1, %c1_i32, %c16_i32 : i32
    %3 = vector.broadcast %2 : i32 to vector<32x1xi32>
    %4 = arith.remsi %0, %3 : vector<32x1xi32>
    %c0_i32_0 = arith.constant 0 : i32
    %5 = vector.broadcast %c0_i32_0 : i32 to vector<32x1xi32>
    %6 = arith.cmpi ne, %4, %5 : vector<32x1xi32>
    %c0_i32_1 = arith.constant 0 : i32
    %7 = vector.broadcast %c0_i32_1 : i32 to vector<32x1xi32>
    %8 = arith.cmpi slt, %4, %7 : vector<32x1xi32>
    %c0_i32_2 = arith.constant 0 : i32
    %9 = arith.cmpi slt, %2, %c0_i32_2 : i32
    %10 = vector.broadcast %9 : i1 to vector<32x1xi1>
    %11 = vector.broadcast %10 : vector<32x1xi1> to vector<32x1xi1>
    %12 = arith.xori %8, %11 : vector<32x1xi1>
    %13 = arith.andi %12, %6 : vector<32x1xi1>
    %14 = vector.broadcast %2 : i32 to vector<32x1xi32>
    %15 = arith.addi %4, %14 : vector<32x1xi32>
    %16 = arith.select %13, %15, %4 : vector<32x1xi1>, vector<32x1xi32>
    %c1_i32_3 = arith.constant 1 : i32
    %17 = vector.broadcast %c1_i32_3 : i32 to vector<32x1xi32>
    %18 = arith.cmpi sge, %16, %17 : vector<32x1xi32>
    %c14_i32 = arith.constant 14 : i32
    %19 = vector.broadcast %c14_i32 : i32 to vector<32x1xi32>
    %20 = arith.cmpi sle, %16, %19 : vector<32x1xi32>
    %c0 = arith.constant 0 : index
    %c0_4 = arith.constant 0 : index
    %21 = vector.load %arg6[%c0, %c0_4] : memref<128x128xf32, #tpu.memory_space<vmem>>, vector<128x128xf32>
    %c0_5 = arith.constant 0 : index
    %c0_6 = arith.constant 0 : index
    %22 = vector.load %arg3[%c0_5, %c0_6] : memref<1x128xf32, #tpu.memory_space<vmem>>, vector<1x128xf32>
    %c0_7 = arith.constant 0 : index
    %c0_8 = arith.constant 0 : index
    %23 = vector.load %arg5[%c0_7, %c0_8] : memref<1x128xf32, #tpu.memory_space<vmem>>, vector<1x128xf32>
    %c0_9 = arith.constant 0 : index
    %c0_10 = arith.constant 0 : index
    %c0_11 = arith.constant 0 : index
    %24 = vector.load %arg1[%c0_9, %c0_10, %c0_11] : memref<2x16x128xf32, #tpu.memory_space<vmem>>, vector<2x16x128xf32>
    %25 = vector.shape_cast %24 : vector<2x16x128xf32> to vector<32x128xf32>
    %26 = vector.shape_cast %22 : vector<1x128xf32> to vector<1x128xf32>
    %27 = vector.broadcast %26 : vector<1x128xf32> to vector<32x128xf32>
    %c1_i32_12 = arith.constant 1 : i32
    %28 = tpu.dynamic_rotate %25 by %c1_i32_12 dim 0 : vector<32x128xf32>, i32 -> vector<32x128xf32>
    %cst = arith.constant 0.000000e+00 : f32
    %29 = vector.shape_cast %18 : vector<32x1xi1> to vector<32x1xi1>
    %30 = vector.broadcast %29 : vector<32x1xi1> to vector<32x128xi1>
    %31 = vector.broadcast %cst : f32 to vector<32x128xf32>
    %32 = arith.select %30, %28, %31 : vector<32x128xi1>, vector<32x128xf32>
    %c0_13 = arith.constant 0 : index
    %c0_14 = arith.constant 0 : index
    %c0_15 = arith.constant 0 : index
    %33 = vector.load %arg2[%c0_13, %c0_14, %c0_15] : memref<3x128x128xf32, #tpu.memory_space<vmem>>, vector<1x128x128xf32>
    %34 = vector.shape_cast %33 : vector<1x128x128xf32> to vector<128x128xf32>
    %cst_16 = arith.constant dense<0.000000e+00> : vector<32x128xf32>
    %35 = tpu.matmul %32, %34, %cst_16 {dimension_numbers = #tpu.dot_dimension_numbers<[1], [0], [0], [1], [0, 0, 1, 1], [], []>, precision = #tpu.contract_precision<fp32>} : vector<32x128xf32>, vector<128x128xf32>, vector<32x128xf32> -> vector<32x128xf32>
    %36 = arith.addf %27, %35 : vector<32x128xf32>
    %c1 = arith.constant 1 : index
    %c0_17 = arith.constant 0 : index
    %c0_18 = arith.constant 0 : index
    %37 = vector.load %arg2[%c1, %c0_17, %c0_18] : memref<3x128x128xf32, #tpu.memory_space<vmem>>, vector<1x128x128xf32>
    %38 = vector.shape_cast %37 : vector<1x128x128xf32> to vector<128x128xf32>
    %cst_19 = arith.constant dense<0.000000e+00> : vector<32x128xf32>
    %39 = tpu.matmul %25, %38, %cst_19 {dimension_numbers = #tpu.dot_dimension_numbers<[1], [0], [0], [1], [0, 0, 1, 1], [], []>, precision = #tpu.contract_precision<fp32>} : vector<32x128xf32>, vector<128x128xf32>, vector<32x128xf32> -> vector<32x128xf32>
    %40 = arith.addf %36, %39 : vector<32x128xf32>
    %c31_i32 = arith.constant 31 : i32
    %41 = tpu.dynamic_rotate %25 by %c31_i32 dim 0 : vector<32x128xf32>, i32 -> vector<32x128xf32>
    %cst_20 = arith.constant 0.000000e+00 : f32
    %42 = vector.shape_cast %20 : vector<32x1xi1> to vector<32x1xi1>
    %43 = vector.broadcast %42 : vector<32x1xi1> to vector<32x128xi1>
    %44 = vector.broadcast %cst_20 : f32 to vector<32x128xf32>
    %45 = arith.select %43, %41, %44 : vector<32x128xi1>, vector<32x128xf32>
    %c2 = arith.constant 2 : index
    %c0_21 = arith.constant 0 : index
    %c0_22 = arith.constant 0 : index
    %46 = vector.load %arg2[%c2, %c0_21, %c0_22] : memref<3x128x128xf32, #tpu.memory_space<vmem>>, vector<1x128x128xf32>
    %47 = vector.shape_cast %46 : vector<1x128x128xf32> to vector<128x128xf32>
    %cst_23 = arith.constant dense<0.000000e+00> : vector<32x128xf32>
    %48 = tpu.matmul %45, %47, %cst_23 {dimension_numbers = #tpu.dot_dimension_numbers<[1], [0], [0], [1], [0, 0, 1, 1], [], []>, precision = #tpu.contract_precision<fp32>} : vector<32x128xf32>, vector<128x128xf32>, vector<32x128xf32> -> vector<32x128xf32>
    %49 = arith.addf %40, %48 : vector<32x128xf32>
    %50 = vector.shape_cast %49 : vector<32x128xf32> to vector<2x16x128xf32>
    %cst_24 = arith.constant dense<0.000000e+00> : vector<2x128xf32>
    %51 = vector.multi_reduction <add>, %50, %cst_24 [1] : vector<2x16x128xf32> to vector<2x128xf32>
    %52 = arith.mulf %50, %50 : vector<2x16x128xf32>
    %cst_25 = arith.constant dense<0.000000e+00> : vector<2x128xf32>
    %53 = vector.multi_reduction <add>, %52, %cst_25 [1] : vector<2x16x128xf32> to vector<2x128xf32>
    %cst_26 = arith.constant dense<0.000000e+00> : vector<2x128xf32>
    %54 = tpu.matmul %51, %21, %cst_26 {dimension_numbers = #tpu.dot_dimension_numbers<[1], [0], [0], [1], [0, 0, 1, 1], [], []>, precision = #tpu.contract_precision<fp32>} : vector<2x128xf32>, vector<128x128xf32>, vector<2x128xf32> -> vector<2x128xf32>
    %cst_27 = arith.constant 3.906250e-03 : f32
    %55 = vector.broadcast %cst_27 : f32 to vector<2x128xf32>
    %56 = arith.mulf %54, %55 : vector<2x128xf32>
    %cst_28 = arith.constant dense<0.000000e+00> : vector<2x128xf32>
    %57 = tpu.matmul %53, %21, %cst_28 {dimension_numbers = #tpu.dot_dimension_numbers<[1], [0], [0], [1], [0, 0, 1, 1], [], []>, precision = #tpu.contract_precision<fp32>} : vector<2x128xf32>, vector<128x128xf32>, vector<2x128xf32> -> vector<2x128xf32>
    %cst_29 = arith.constant 3.906250e-03 : f32
    %58 = vector.broadcast %cst_29 : f32 to vector<2x128xf32>
    %59 = arith.mulf %57, %58 : vector<2x128xf32>
    %60 = arith.mulf %56, %56 : vector<2x128xf32>
    %61 = arith.subf %59, %60 : vector<2x128xf32>
    %cst_30 = arith.constant 9.99999974E-6 : f32
    %62 = vector.broadcast %cst_30 : f32 to vector<2x128xf32>
    %63 = arith.addf %61, %62 : vector<2x128xf32>
    %64 = math.rsqrt %63 : vector<2x128xf32>
    %cst_31 = arith.constant 0.000000e+00 : f32
    %65 = vector.broadcast %cst_31 : f32 to vector<2x128xf32>
    %66 = arith.subf %65, %56 : vector<2x128xf32>
    %67 = arith.mulf %66, %64 : vector<2x128xf32>
    %68 = vector.shape_cast %64 : vector<2x128xf32> to vector<2x1x128xf32>
    %69 = vector.broadcast %68 : vector<2x1x128xf32> to vector<2x16x128xf32>
    %70 = arith.mulf %50, %69 : vector<2x16x128xf32>
    %71 = vector.shape_cast %67 : vector<2x128xf32> to vector<2x1x128xf32>
    %72 = vector.broadcast %71 : vector<2x1x128xf32> to vector<2x16x128xf32>
    %73 = arith.addf %70, %72 : vector<2x16x128xf32>
    %cst_32 = arith.constant 0.000000e+00 : f32
    %74 = vector.broadcast %cst_32 : f32 to vector<2x16x128xf32>
    %75 = arith.maximumf %73, %74 : vector<2x16x128xf32>
    %76 = vector.shape_cast %75 : vector<2x16x128xf32> to vector<32x128xf32>
    %77 = vector.shape_cast %23 : vector<1x128xf32> to vector<1x128xf32>
    %78 = vector.broadcast %77 : vector<1x128xf32> to vector<32x128xf32>
    %c1_i32_33 = arith.constant 1 : i32
    %79 = tpu.dynamic_rotate %76 by %c1_i32_33 dim 0 : vector<32x128xf32>, i32 -> vector<32x128xf32>
    %cst_34 = arith.constant 0.000000e+00 : f32
    %80 = vector.shape_cast %18 : vector<32x1xi1> to vector<32x1xi1>
    %81 = vector.broadcast %80 : vector<32x1xi1> to vector<32x128xi1>
    %82 = vector.broadcast %cst_34 : f32 to vector<32x128xf32>
    %83 = arith.select %81, %79, %82 : vector<32x128xi1>, vector<32x128xf32>
    %c0_35 = arith.constant 0 : index
    %c0_36 = arith.constant 0 : index
    %c0_37 = arith.constant 0 : index
    %84 = vector.load %arg4[%c0_35, %c0_36, %c0_37] : memref<3x128x128xf32, #tpu.memory_space<vmem>>, vector<1x128x128xf32>
    %85 = vector.shape_cast %84 : vector<1x128x128xf32> to vector<128x128xf32>
    %cst_38 = arith.constant dense<0.000000e+00> : vector<32x128xf32>
    %86 = tpu.matmul %83, %85, %cst_38 {dimension_numbers = #tpu.dot_dimension_numbers<[1], [0], [0], [1], [0, 0, 1, 1], [], []>, precision = #tpu.contract_precision<fp32>} : vector<32x128xf32>, vector<128x128xf32>, vector<32x128xf32> -> vector<32x128xf32>
    %87 = arith.addf %78, %86 : vector<32x128xf32>
    %c1_39 = arith.constant 1 : index
    %c0_40 = arith.constant 0 : index
    %c0_41 = arith.constant 0 : index
    %88 = vector.load %arg4[%c1_39, %c0_40, %c0_41] : memref<3x128x128xf32, #tpu.memory_space<vmem>>, vector<1x128x128xf32>
    %89 = vector.shape_cast %88 : vector<1x128x128xf32> to vector<128x128xf32>
    %cst_42 = arith.constant dense<0.000000e+00> : vector<32x128xf32>
    %90 = tpu.matmul %76, %89, %cst_42 {dimension_numbers = #tpu.dot_dimension_numbers<[1], [0], [0], [1], [0, 0, 1, 1], [], []>, precision = #tpu.contract_precision<fp32>} : vector<32x128xf32>, vector<128x128xf32>, vector<32x128xf32> -> vector<32x128xf32>
    %91 = arith.addf %87, %90 : vector<32x128xf32>
    %c31_i32_43 = arith.constant 31 : i32
    %92 = tpu.dynamic_rotate %76 by %c31_i32_43 dim 0 : vector<32x128xf32>, i32 -> vector<32x128xf32>
    %cst_44 = arith.constant 0.000000e+00 : f32
    %93 = vector.shape_cast %20 : vector<32x1xi1> to vector<32x1xi1>
    %94 = vector.broadcast %93 : vector<32x1xi1> to vector<32x128xi1>
    %95 = vector.broadcast %cst_44 : f32 to vector<32x128xf32>
    %96 = arith.select %94, %92, %95 : vector<32x128xi1>, vector<32x128xf32>
    %c2_45 = arith.constant 2 : index
    %c0_46 = arith.constant 0 : index
    %c0_47 = arith.constant 0 : index
    %97 = vector.load %arg4[%c2_45, %c0_46, %c0_47] : memref<3x128x128xf32, #tpu.memory_space<vmem>>, vector<1x128x128xf32>
    %98 = vector.shape_cast %97 : vector<1x128x128xf32> to vector<128x128xf32>
    %cst_48 = arith.constant dense<0.000000e+00> : vector<32x128xf32>
    %99 = tpu.matmul %96, %98, %cst_48 {dimension_numbers = #tpu.dot_dimension_numbers<[1], [0], [0], [1], [0, 0, 1, 1], [], []>, precision = #tpu.contract_precision<fp32>} : vector<32x128xf32>, vector<128x128xf32>, vector<32x128xf32> -> vector<32x128xf32>
    %100 = arith.addf %91, %99 : vector<32x128xf32>
    %101 = arith.addf %100, %25 : vector<32x128xf32>
    %102 = vector.shape_cast %101 : vector<32x128xf32> to vector<2x16x128xf32>
    %cst_49 = arith.constant dense<0.000000e+00> : vector<2x128xf32>
    %103 = vector.multi_reduction <add>, %102, %cst_49 [1] : vector<2x16x128xf32> to vector<2x128xf32>
    %104 = arith.mulf %102, %102 : vector<2x16x128xf32>
    %cst_50 = arith.constant dense<0.000000e+00> : vector<2x128xf32>
    %105 = vector.multi_reduction <add>, %104, %cst_50 [1] : vector<2x16x128xf32> to vector<2x128xf32>
    %cst_51 = arith.constant dense<0.000000e+00> : vector<2x128xf32>
    %106 = tpu.matmul %103, %21, %cst_51 {dimension_numbers = #tpu.dot_dimension_numbers<[1], [0], [0], [1], [0, 0, 1, 1], [], []>, precision = #tpu.contract_precision<fp32>} : vector<2x128xf32>, vector<128x128xf32>, vector<2x128xf32> -> vector<2x128xf32>
    %cst_52 = arith.constant 3.906250e-03 : f32
    %107 = vector.broadcast %cst_52 : f32 to vector<2x128xf32>
    %108 = arith.mulf %106, %107 : vector<2x128xf32>
    %cst_53 = arith.constant dense<0.000000e+00> : vector<2x128xf32>
    %109 = tpu.matmul %105, %21, %cst_53 {dimension_numbers = #tpu.dot_dimension_numbers<[1], [0], [0], [1], [0, 0, 1, 1], [], []>, precision = #tpu.contract_precision<fp32>} : vector<2x128xf32>, vector<128x128xf32>, vector<2x128xf32> -> vector<2x128xf32>
    %cst_54 = arith.constant 3.906250e-03 : f32
    %110 = vector.broadcast %cst_54 : f32 to vector<2x128xf32>
    %111 = arith.mulf %109, %110 : vector<2x128xf32>
    %112 = arith.mulf %108, %108 : vector<2x128xf32>
    %113 = arith.subf %111, %112 : vector<2x128xf32>
    %cst_55 = arith.constant 9.99999974E-6 : f32
    %114 = vector.broadcast %cst_55 : f32 to vector<2x128xf32>
    %115 = arith.addf %113, %114 : vector<2x128xf32>
    %116 = math.rsqrt %115 : vector<2x128xf32>
    %cst_56 = arith.constant 0.000000e+00 : f32
    %117 = vector.broadcast %cst_56 : f32 to vector<2x128xf32>
    %118 = arith.subf %117, %108 : vector<2x128xf32>
    %119 = arith.mulf %118, %116 : vector<2x128xf32>
    %120 = vector.shape_cast %116 : vector<2x128xf32> to vector<2x1x128xf32>
    %121 = vector.broadcast %120 : vector<2x1x128xf32> to vector<2x16x128xf32>
    %122 = arith.mulf %102, %121 : vector<2x16x128xf32>
    %123 = vector.shape_cast %119 : vector<2x128xf32> to vector<2x1x128xf32>
    %124 = vector.broadcast %123 : vector<2x1x128xf32> to vector<2x16x128xf32>
    %125 = arith.addf %122, %124 : vector<2x16x128xf32>
    %cst_57 = arith.constant 0.000000e+00 : f32
    %126 = vector.broadcast %cst_57 : f32 to vector<2x16x128xf32>
    %127 = arith.maximumf %125, %126 : vector<2x16x128xf32>
    %128 = vector.shape_cast %127 : vector<2x16x128xf32> to vector<32x128xf32>
    %129 = vector.shape_cast %128 : vector<32x128xf32> to vector<2x16x128xf32>
    %c0_58 = arith.constant 0 : index
    %c0_59 = arith.constant 0 : index
    %c0_60 = arith.constant 0 : index
    %130 = vector.load %arg7[%c0_58, %c0_59, %c0_60] : memref<2x16x128xf32, #tpu.memory_space<vmem>>, vector<2x16x128xf32>
    tpu.vector_store %arg7[%c0_58, %c0_59, %c0_60], %129 {strides = array<i32>} : memref<2x16x128xf32, #tpu.memory_space<vmem>>, vector<2x16x128xf32>,
    return
  }
  func.func @transform_0(%arg0: i32) -> (i32, i32, i32) {
    %c0_i32 = arith.constant 0 : i32
    %c0_i32_0 = arith.constant 0 : i32
    %c0_i32_1 = arith.constant 0 : i32
    return %arg0, %c0_i32, %c0_i32_0 : i32, i32, i32
  }
  func.func @transform_1(%arg0: i32) -> (i32, i32, i32) {
    %c0_i32 = arith.constant 0 : i32
    %c0_i32_0 = arith.constant 0 : i32
    %c0_i32_1 = arith.constant 0 : i32
    %c0_i32_2 = arith.constant 0 : i32
    return %c0_i32, %c0_i32_0, %c0_i32_1 : i32, i32, i32
  }
  func.func @transform_2(%arg0: i32) -> (i32, i32) {
    %c0_i32 = arith.constant 0 : i32
    %c0_i32_0 = arith.constant 0 : i32
    %c0_i32_1 = arith.constant 0 : i32
    return %c0_i32, %c0_i32_0 : i32, i32
  }
  func.func @transform_3(%arg0: i32) -> (i32, i32, i32) {
    %c0_i32 = arith.constant 0 : i32
    %c0_i32_0 = arith.constant 0 : i32
    %c0_i32_1 = arith.constant 0 : i32
    %c0_i32_2 = arith.constant 0 : i32
    return %c0_i32, %c0_i32_0, %c0_i32_1 : i32, i32, i32
  }
  func.func @transform_4(%arg0: i32) -> (i32, i32) {
    %c0_i32 = arith.constant 0 : i32
    %c0_i32_0 = arith.constant 0 : i32
    %c0_i32_1 = arith.constant 0 : i32
    return %c0_i32, %c0_i32_0 : i32, i32
  }
  func.func @transform_5(%arg0: i32) -> (i32, i32) {
    %c0_i32 = arith.constant 0 : i32
    %c0_i32_0 = arith.constant 0 : i32
    %c0_i32_1 = arith.constant 0 : i32
    return %c0_i32, %c0_i32_0 : i32, i32
  }
  func.func @transform_6(%arg0: i32) -> (i32, i32, i32) {
    %c0_i32 = arith.constant 0 : i32
    %c0_i32_0 = arith.constant 0 : i32
    %c0_i32_1 = arith.constant 0 : i32
    return %arg0, %c0_i32, %c0_i32_0 : i32, i32, i32
  }
}

</mosaic_0001>

<llo_original>
// kernel: tile.13
$region0: #{tile.13}
  #allocation0 [shape = 's32[1]{0}', space=sflag, size = 0x4, scoped, tag = 'scoped memory for tile.13']
  %s0 = inlined_call_operand.vmem [shape: f32[4], index: 0, kind: input, shape index: {}]
  %s1 = inlined_call_operand.vmem [shape: f32[32,4], index: 1, kind: output, shape index: {}]
  // Predicated region
  $region2: #{tile.13} parent=0 // pred_check
    _
  $region3: #{tile.13} parent=0 // pred_check_branch
    %3 = sbr.rel (0) target = $region5
  $region4: #{tile.13} parent=0 // pred_region
    _
  $region5: #{tile.13} parent=0 // pred_fallthru
    _
  %v4 = vld [vmem:[%s0] ss:$0 sm:$0xff]
  %5 = vst [vmem:[%s1] sm:$0xff] %v4
  %s6 = scalar_lea.vmem %s1, 8
  %7 = vst [vmem:[%s6] sm:$0xff] %v4
  %s8 = scalar_lea.vmem %s1, 16
  %9 = vst [vmem:[%s8] sm:$0xff] %v4
  %s10 = scalar_lea.vmem %s1, 24
  %11 = vst [vmem:[%s10] sm:$0xff] %v4

// kernel: tile.14
$region0: #{tile.14}
  %s0 = inlined_call_operand.vmem [shape: f32[32,4], index: 0, kind: input, shape index: {}]
  %s1 = inlined_call_operand.vmem [shape: f32[1,128], index: 1, kind: output, shape index: {}]
  $region1: #{tile.14} parent=0
    #allocation0 [shape = 'u8[4096]{0}', space=vmem, size = 0x1000, scoped, tag = 'scoped mem for output reshape']
    %v2 = vld [vmem:[%s0] sm:$0x1]
    %vm3 = vcmask 31744
    %4 = vst.msk [vmem:[#allocation0] sm:$0x1] %vm3, %v2
    %s5 = scalar_lea.vmem %s0, 31
    %v6 = vld [vmem:[%s5] sm:$0x1]
    %7 = vrot.lane.b32.xlu0 %v6, 124
    %v8 = vpop.permute.xlu0 %7
    %vm9 = vcmask 1048544
    %10 = vst.msk [vmem:[#allocation0] sm:$0x1] %vm9, %v8
    %s11 = scalar_lea.vmem %s0, 30
    %v12 = vld [vmem:[%s11] sm:$0x1]
    %13 = vrot.lane.b32.xlu0 %v12, 120
    %v14 = vpop.permute.xlu0 %13
    %vm15 = vcmask 1015744
    %16 = vst.msk [vmem:[#allocation0] sm:$0x1] %vm15, %v14
    %s17 = scalar_lea.vmem %s0, 29
    %v18 = vld [vmem:[%s17] sm:$0x1]
    %19 = vrot.lane.b32.xlu0 %v18, 116
    %v20 = vpop.permute.xlu0 %19
    %vm21 = vcmask 982944
    %22 = vst.msk [vmem:[#allocation0] sm:$0x1] %vm21, %v20
    %s23 = scalar_lea.vmem %s0, 28
    %v24 = vld [vmem:[%s23] sm:$0x1]
    %25 = vrot.lane.b32.xlu0 %v24, 112
    %v26 = vpop.permute.xlu0 %25
    %vm27 = vcmask 950144
    %28 = vst.msk [vmem:[#allocation0] sm:$0x1] %vm27, %v26
    %s29 = scalar_lea.vmem %s0, 27
    %v30 = vld [vmem:[%s29] sm:$0x1]
    %31 = vrot.lane.b32.xlu0 %v30, 108
    %v32 = vpop.permute.xlu0 %31
    %vm33 = vcmask 917344
    %34 = vst.msk [vmem:[#allocation0] sm:$0x1] %vm33, %v32
    %s35 = scalar_lea.vmem %s0, 26
    %v36 = vld [vmem:[%s35] sm:$0x1]
    %37 = vrot.lane.b32.xlu0 %v36, 104
    %v38 = vpop.permute.xlu0 %37
    %vm39 = vcmask 884544
    %40 = vst.msk [vmem:[#allocation0] sm:$0x1] %vm39, %v38
    %s41 = scalar_lea.vmem %s0, 25
    %v42 = vld [vmem:[%s41] sm:$0x1]
    %43 = vrot.lane.b32.xlu0 %v42, 100
    %v44 = vpop.permute.xlu0 %43
    %vm45 = vcmask 851744
    %46 = vst.msk [vmem:[#allocation0] sm:$0x1] %vm45, %v44
    %s47 = scalar_lea.vmem %s0, 24
    %v48 = vld [vmem:[%s47] sm:$0x1]
    %49 = vrot.lane.b32.xlu0 %v48, 96
    %v50 = vpop.permute.xlu0 %49
    %vm51 = vcmask 818944
    %52 = vst.msk [vmem:[#allocation0] sm:$0x1] %vm51, %v50
    %s53 = scalar_lea.vmem %s0, 23
    %v54 = vld [vmem:[%s53] sm:$0x1]
    %55 = vrot.lane.b32.xlu0 %v54, 92
    %v56 = vpop.permute.xlu0 %55
    %vm57 = vcmask 786144
    %58 = vst.msk [vmem:[#allocation0] sm:$0x1] %vm57, %v56
    %s59 = scalar_lea.vmem %s0, 22
    %v60 = vld [vmem:[%s59] sm:$0x1]
    %61 = vrot.lane.b32.xlu0 %v60, 88
    %v62 = vpop.permute.xlu0 %61
    %vm63 = vcmask 753344
    %64 = vst.msk [vmem:[#allocation0] sm:$0x1] %vm63, %v62
    %s65 = scalar_lea.vmem %s0, 21
    %v66 = vld [vmem:[%s65] sm:$0x1]
    %67 = vrot.lane.b32.xlu0 %v66, 84
    %v68 = vpop.permute.xlu0 %67
    %vm69 = vcmask 720544
    %70 = vst.msk [vmem:[#allocation0] sm:$0x1] %vm69, %v68
    %s71 = scalar_lea.vmem %s0, 20
    %v72 = vld [vmem:[%s71] sm:$0x1]
    %73 = vrot.lane.b32.xlu0 %v72, 80
    %v74 = vpop.permute.xlu0 %73
    %vm75 = vcmask 687744
    %76 = vst.msk [vmem:[#allocation0] sm:$0x1] %vm75, %v74
    %s77 = scalar_lea.vmem %s0, 19
    %v78 = vld [vmem:[%s77] sm:$0x1]
    %79 = vrot.lane.b32.xlu0 %v78, 76
    %v80 = vpop.permute.xlu0 %79
    %vm81 = vcmask 654944
    %82 = vst.msk [vmem:[#allocation0] sm:$0x1] %vm81, %v80
    %s83 = scalar_lea.vmem %s0, 18
    %v84 = vld [vmem:[%s83] sm:$0x1]
    %85 = vrot.lane.b32.xlu0 %v84, 72
    %v86 = vpop.permute.xlu0 %85
    %vm87 = vcmask 622144
    %88 = vst.msk [vmem:[#allocation0] sm:$0x1] %vm87, %v86
    %s89 = scalar_lea.vmem %s0, 17
    %v90 = vld [vmem:[%s89] sm:$0x1]
    %91 = vrot.lane.b32.xlu0 %v90, 68
    %v92 = vpop.permute.xlu0 %91
    %vm93 = vcmask 589344
    %94 = vst.msk [vmem:[#allocation0] sm:$0x1] %vm93, %v92
    %s95 = scalar_lea.vmem %s0, 16
    %v96 = vld [vmem:[%s95] sm:$0x1]
    %97 = vrot.lane.b32.xlu0 %v96, 64
    %v98 = vpop.permute.xlu0 %97
    %vm99 = vcmask 556544
    %100 = vst.msk [vmem:[#allocation0] sm:$0x1] %vm99, %v98
    %s101 = scalar_lea.vmem %s0, 15
    %v102 = vld [vmem:[%s101] sm:$0x1]
    %103 = vrot.lane.b32.xlu0 %v102, 60
    %v104 = vpop.permute.xlu0 %103
    %vm105 = vcmask 523744
    %106 = vst.msk [vmem:[#allocation0] sm:$0x1] %vm105, %v104
    %s107 = scalar_lea.vmem %s0, 14
    %v108 = vld [vmem:[%s107] sm:$0x1]
    %109 = vrot.lane.b32.xlu0 %v108, 56
    %v110 = vpop.permute.xlu0 %109
    %vm111 = vcmask 490944
    %112 = vst.msk [vmem:[#allocation0] sm:$0x1] %vm111, %v110
    %s113 = scalar_lea.vmem %s0, 13
    %v114 = vld [vmem:[%s113] sm:$0x1]
    %115 = vrot.lane.b32.xlu0 %v114, 52
    %v116 = vpop.permute.xlu0 %115
    %vm117 = vcmask 458144
    %118 = vst.msk [vmem:[#allocation0] sm:$0x1] %vm117, %v116
    %s119 = scalar_lea.vmem %s0, 12
    %v120 = vld [vmem:[%s119] sm:$0x1]
    %121 = vrot.lane.b32.xlu0 %v120, 48
    %v122 = vpop.permute.xlu0 %121
    %vm123 = vcmask 425344
    %124 = vst.msk [vmem:[#allocation0] sm:$0x1] %vm123, %v122
    %s125 = scalar_lea.vmem %s0, 11
    %v126 = vld [vmem:[%s125] sm:$0x1]
    %127 = vrot.lane.b32.xlu0 %v126, 44
    %v128 = vpop.permute.xlu0 %127
    %vm129 = vcmask 392544
    %130 = vst.msk [vmem:[#allocation0] sm:$0x1] %vm129, %v128
    %s131 = scalar_lea.vmem %s0, 10
    %v132 = vld [vmem:[%s131] sm:$0x1]
    %133 = vrot.lane.b32.xlu0 %v132, 40
    %v134 = vpop.permute.xlu0 %133
    %vm135 = vcmask 359744
    %136 = vst.msk [vmem:[#allocation0] sm:$0x1] %vm135, %v134
    %s137 = scalar_lea.vmem %s0, 9
    %v138 = vld [vmem:[%s137] sm:$0x1]
    %139 = vrot.lane.b32.xlu0 %v138, 36
    %v140 = vpop.permute.xlu0 %139
    %vm141 = vcmask 326944
    %142 = vst.msk [vmem:[#allocation0] sm:$0x1] %vm141, %v140
    %s143 = scalar_lea.vmem %s0, 8
    %v144 = vld [vmem:[%s143] sm:$0x1]
    %145 = vrot.lane.b32.xlu0 %v144, 32
    %v146 = vpop.permute.xlu0 %145
    %vm147 = vcmask 294144
    %148 = vst.msk [vmem:[#allocation0] sm:$0x1] %vm147, %v146
    %s149 = scalar_lea.vmem %s0, 7
    %v150 = vld [vmem:[%s149] sm:$0x1]
    %151 = vrot.lane.b32.xlu0 %v150, 28
    %v152 = vpop.permute.xlu0 %151
    %vm153 = vcmask 261344
    %154 = vst.msk [vmem:[#allocation0] sm:$0x1] %vm153, %v152
    %s155 = scalar_lea.vmem %s0, 6
    %v156 = vld [vmem:[%s155] sm:$0x1]
    %157 = vrot.lane.b32.xlu0 %v156, 24
    %v158 = vpop.permute.xlu0 %157
    %vm159 = vcmask 228544
    %160 = vst.msk [vmem:[#allocation0] sm:$0x1] %vm159, %v158
    %s161 = scalar_lea.vmem %s0, 5
    %v162 = vld [vmem:[%s161] sm:$0x1]
    %163 = vrot.lane.b32.xlu0 %v162, 20
    %v164 = vpop.permute.xlu0 %163
    %vm165 = vcmask 195744
    %166 = vst.msk [vmem:[#allocation0] sm:$0x1] %vm165, %v164
    %s167 = scalar_lea.vmem %s0, 4
    %v168 = vld [vmem:[%s167] sm:$0x1]
    %169 = vrot.lane.b32.xlu0 %v168, 16
    %v170 = vpop.permute.xlu0 %169
    %vm171 = vcmask 162944
    %172 = vst.msk [vmem:[#allocation0] sm:$0x1] %vm171, %v170
    %s173 = scalar_lea.vmem %s0, 3
    %v174 = vld [vmem:[%s173] sm:$0x1]
    %175 = vrot.lane.b32.xlu0 %v174, 12
    %v176 = vpop.permute.xlu0 %175
    %vm177 = vcmask 130144
    %178 = vst.msk [vmem:[#allocation0] sm:$0x1] %vm177, %v176
    %s179 = scalar_lea.vmem %s0, 2
    %v180 = vld [vmem:[%s179] sm:$0x1]
    %181 = vrot.lane.b32.xlu0 %v180, 8
    %v182 = vpop.permute.xlu0 %181
    %vm183 = vcmask 97344
    %184 = vst.msk [vmem:[#allocation0] sm:$0x1] %vm183, %v182
    %s185 = scalar_lea.vmem %s0, 1
    %v186 = vld [vmem:[%s185] sm:$0x1]
    %187 = vrot.lane.b32.xlu0 %v186, 4
    %v188 = vpop.permute.xlu0 %187
    %vm189 = vcmask 64544
    %190 = vst.msk [vmem:[#allocation0] sm:$0x1] %vm189, %v188
    %s192 = sshllo.u32 0, 1
    %v194 = vld [vmem:[#allocation0] sm:%s192]
    %s195 = sshllo.u32 0, 1
    %196 = vst [vmem:[%s1] sm:%s195] %v194

// kernel: resblock_pallas.1
$region0: #{resblock_pallas.1}
  #allocation0 [shape = 'u32[]', space=smem, size = 0x4, offset = 0x4, fixed_abs, tag = 'smem constant byte address 0x4 - core index']
  #allocation1 [shape = 'u32[144,128]{1,0:T(1,128)}', space=vmem, size = 0x12000, scoped, tag = 'internal scratch']
  %s0 = inlined_call_operand.vmem [shape: f32[4,16,128], index: 0, kind: input, shape index: {}]
  %s1 = inlined_call_operand.vmem [shape: f32[3,128,128], index: 1, kind: input, shape index: {}]
  %s2 = inlined_call_operand.vmem [shape: f32[1,128], index: 2, kind: input, shape index: {}]
  %s3 = inlined_call_operand.vmem [shape: f32[3,128,128], index: 3, kind: input, shape index: {}]
  %s4 = inlined_call_operand.vmem [shape: f32[1,128], index: 4, kind: input, shape index: {}]
  %s5 = inlined_call_operand.vmem [shape: f32[128,128], index: 5, kind: input, shape index: {}]
  %s6 = inlined_call_operand.vmem [shape: f32[4,16,128], index: 6, kind: output, shape index: {}]
  %s7 = sld [smem:[#allocation0]]
  $region57: #{resblock_pallas.1} parent=0
    _
  %s9 = ssub.s32 1, %s7
  %s10 = scalar_select 0, %s9, %s7
  loop: start=0, step=1, limit=4
  $region2: #{resblock_pallas.1} parent=0 // loop_pre_header
    _
  $region3: #{resblock_pallas.1} parent=0 // loop_header
    %s12 = sphi 0, %s16
    %p13 = scmp.ge.s32.totalorder %s12, 4
    %s22 = sphi 0, %s24
    %s25 = sphi 0, %s22
    %s26 = sphi 0, %s25
    %s42 = sphi 0, %s26
    %s46 = sphi 0, %s46
    %s48 = sphi 0, %s46
    %s49 = sphi 0, %s48
    %s63 = sphi 0, %s49
    %s67 = sphi 0, %s67
    %s69 = sphi 0, %s67
    %s70 = sphi 0, %s69
    %s84 = sphi 0, %s70
    %s88 = sphi 0, %s88
    %s90 = sphi 0, %s88
    %s91 = sphi 0, %s90
    %s105 = sphi 0, %s91
    %s109 = sphi 0, %s109
    %s111 = sphi 0, %s109
    %s112 = sphi 0, %s111
    %s126 = sphi 0, %s112
    %s130 = sphi 0, %s130
    %s132 = sphi 0, %s130
    %s133 = sphi 0, %s132
    %s147 = sphi 0, %s133
    %s153 = sphi 0, %s155
    %s156 = sphi 0, %s153
    %s157 = sphi 0, %s156
    %s173 = sphi 0, %s157
  $region4: #{resblock_pallas.1} parent=0 // loop_header_branch
    %15 = sbr.rel (%p13) target = $region8
  $region5: #{resblock_pallas.1} parent=0 // loop_body
    %s17 = ssub.s32 %s12, 1
    %s18 = ssub.s32 %s12, 2
    %s19 = sadd.s32 %s12, 1
    %s20 = ssub.s32 %s12, %s19
    %p21 = scmp.eq.s32.totalorder %s20, 0
    %s23 = sadd.s32 %s22, 1
    %s24 = scalar_select %p21, %s22, %s23
    %p27 = pneg %p21
    %p28 = scmp.eq.s32.totalorder %s12, 1
    %p29 = por %p27, %p28
    %p30 = scmp.ne.s32.totalorder %s22, %s25
    %p31 = scmp.eq.s32.totalorder %s12, 0
    %p32 = por %p30, %p31
    %p33 = scmp.ne.s32.totalorder %s22, %s25
    %p34 = scmp.eq.s32.totalorder %s17, 1
    %p35 = por %p33, %p34
    %p36 = scmp.ne.s32.totalorder %s25, %s26
    %p37 = scmp.eq.s32.totalorder %s17, 0
    %p38 = por %p36, %p37
    %p39 = scmp.ne.s32.totalorder %s25, %s26
    %p40 = scmp.eq.s32.totalorder %s18, 1
    %p41 = por %p39, %p40
    %p43 = scmp.ne.s32.totalorder %s26, %s42
    %p44 = scmp.eq.s32.totalorder %s18, 0
    %p45 = por %p43, %p44
    %s47 = sadd.s32 %s46, 1
    %p50 = scmp.eq.s32.totalorder %s12, 1
    %p51 = scmp.ne.s32.totalorder %s46, %s48
    %p52 = scmp.eq.s32.totalorder %s12, 0
    %p53 = por %p51, %p52
    %p54 = scmp.ne.s32.totalorder %s46, %s48
    %p55 = scmp.eq.s32.totalorder %s17, 1
    %p56 = por %p54, %p55
    %p57 = scmp.ne.s32.totalorder %s48, %s49
    %p58 = scmp.eq.s32.totalorder %s17, 0
    %p59 = por %p57, %p58
    %p60 = scmp.ne.s32.totalorder %s48, %s49
    %p61 = scmp.eq.s32.totalorder %s18, 1
    %p62 = por %p60, %p61
    %p64 = scmp.ne.s32.totalorder %s49, %s63
    %p65 = scmp.eq.s32.totalorder %s18, 0
    %p66 = por %p64, %p65
    %s68 = sadd.s32 %s67, 1
    %p71 = scmp.eq.s32.totalorder %s12, 1
    %p72 = scmp.ne.s32.totalorder %s67, %s69
    %p73 = scmp.eq.s32.totalorder %s12, 0
    %p74 = por %p72, %p73
    %p75 = scmp.ne.s32.totalorder %s67, %s69
    %p76 = scmp.eq.s32.totalorder %s17, 1
    %p77 = por %p75, %p76
    %p78 = scmp.ne.s32.totalorder %s69, %s70
    %p79 = scmp.eq.s32.totalorder %s17, 0
    %p80 = por %p78, %p79
    %p81 = scmp.ne.s32.totalorder %s69, %s70
    %p82 = scmp.eq.s32.totalorder %s18, 1
    %p83 = por %p81, %p82
    %p85 = scmp.ne.s32.totalorder %s70, %s84
    %p86 = scmp.eq.s32.totalorder %s18, 0
    %p87 = por %p85, %p86
    %s89 = sadd.s32 %s88, 1
    %p92 = scmp.eq.s32.totalorder %s12, 1
    %p93 = scmp.ne.s32.totalorder %s88, %s90
    %p94 = scmp.eq.s32.totalorder %s12, 0
    %p95 = por %p93, %p94
    %p96 = scmp.ne.s32.totalorder %s88, %s90
    %p97 = scmp.eq.s32.totalorder %s17, 1
    %p98 = por %p96, %p97
    %p99 = scmp.ne.s32.totalorder %s90, %s91
    %p100 = scmp.eq.s32.totalorder %s17, 0
    %p101 = por %p99, %p100
    %p102 = scmp.ne.s32.totalorder %s90, %s91
    %p103 = scmp.eq.s32.totalorder %s18, 1
    %p104 = por %p102, %p103
    %p106 = scmp.ne.s32.totalorder %s91, %s105
    %p107 = scmp.eq.s32.totalorder %s18, 0
    %p108 = por %p106, %p107
    %s110 = sadd.s32 %s109, 1
    %p113 = scmp.eq.s32.totalorder %s12, 1
    %p114 = scmp.ne.s32.totalorder %s109, %s111
    %p115 = scmp.eq.s32.totalorder %s12, 0
    %p116 = por %p114, %p115
    %p117 = scmp.ne.s32.totalorder %s109, %s111
    %p118 = scmp.eq.s32.totalorder %s17, 1
    %p119 = por %p117, %p118
    %p120 = scmp.ne.s32.totalorder %s111, %s112
    %p121 = scmp.eq.s32.totalorder %s17, 0
    %p122 = por %p120, %p121
    %p123 = scmp.ne.s32.totalorder %s111, %s112
    %p124 = scmp.eq.s32.totalorder %s18, 1
    %p125 = por %p123, %p124
    %p127 = scmp.ne.s32.totalorder %s112, %s126
    %p128 = scmp.eq.s32.totalorder %s18, 0
    %p129 = por %p127, %p128
    %s131 = sadd.s32 %s130, 1
    %p134 = scmp.eq.s32.totalorder %s12, 1
    %p135 = scmp.ne.s32.totalorder %s130, %s132
    %p136 = scmp.eq.s32.totalorder %s12, 0
    %p137 = por %p135, %p136
    %p138 = scmp.ne.s32.totalorder %s130, %s132
    %p139 = scmp.eq.s32.totalorder %s17, 1
    %p140 = por %p138, %p139
    %p141 = scmp.ne.s32.totalorder %s132, %s133
    %p142 = scmp.eq.s32.totalorder %s17, 0
    %p143 = por %p141, %p142
    %p144 = scmp.ne.s32.totalorder %s132, %s133
    %p145 = scmp.eq.s32.totalorder %s18, 1
    %p146 = por %p144, %p145
    %p148 = scmp.ne.s32.totalorder %s133, %s147
    %p149 = scmp.eq.s32.totalorder %s18, 0
    %p150 = por %p148, %p149
    %s151 = ssub.s32 %s12, %s19
    %p152 = scmp.eq.s32.totalorder %s151, 0
    %s154 = sadd.s32 %s153, 1
    %s155 = scalar_select %p152, %s153, %s154
    %p158 = pneg %p152
    %p159 = scmp.eq.s32.totalorder %s12, 1
    %p160 = por %p158, %p159
    %p161 = scmp.ne.s32.totalorder %s153, %s156
    %p162 = scmp.eq.s32.totalorder %s12, 0
    %p163 = por %p161, %p162
    %p164 = scmp.ne.s32.totalorder %s153, %s156
    %p165 = scmp.eq.s32.totalorder %s17, 1
    %p166 = por %p164, %p165
    %p167 = scmp.ne.s32.totalorder %s156, %s157
    %p168 = scmp.eq.s32.totalorder %s17, 0
    %p169 = por %p167, %p168
    %p170 = scmp.ne.s32.totalorder %s156, %s157
    %p171 = scmp.eq.s32.totalorder %s18, 1
    %p172 = por %p170, %p171
    %p174 = scmp.ne.s32.totalorder %s157, %s173
    %p175 = scmp.eq.s32.totalorder %s18, 0
    %p176 = por %p174, %p175
    %p177 = scmp.le.s32.totalorder 1, %s12
    %p178 = scmp.lt.s32.totalorder %s12, 3
    %p179 = pnand %p177, %p178
    %p180 = pneg %p179
    // Predicated region
    $region9: #{resblock_pallas.1} parent=5 // pred_check
      _
    $region10: #{resblock_pallas.1} parent=5 // pred_check_branch
      %182 = sbr.rel (%p179) target = $region12
    $region11: #{resblock_pallas.1} parent=5 // pred_region
      %s183 = ssub.s32 %s12, 1
      // Predicated region
      $region13: #{resblock_pallas.1} parent=11 // pred_check
        %p184 = pneg %p59
      $region14: #{resblock_pallas.1} parent=11 // pred_check_branch
        %186 = sbr.rel (%p184) target = $region16
      $region15: #{resblock_pallas.1} parent=11 // pred_region
        _
      $region16: #{resblock_pallas.1} parent=11 // pred_fallthru
        _
      // Predicated region
      $region17: #{resblock_pallas.1} parent=11 // pred_check
        %p187 = pneg %p80
      $region18: #{resblock_pallas.1} parent=11 // pred_check_branch
        %189 = sbr.rel (%p187) target = $region20
      $region19: #{resblock_pallas.1} parent=11 // pred_region
        _
      $region20: #{resblock_pallas.1} parent=11 // pred_fallthru
        _
      // Predicated region
      $region21: #{resblock_pallas.1} parent=11 // pred_check
        %p190 = pneg %p101
      $region22: #{resblock_pallas.1} parent=11 // pred_check_branch
        %192 = sbr.rel (%p190) target = $region24
      $region23: #{resblock_pallas.1} parent=11 // pred_region
        _
      $region24: #{resblock_pallas.1} parent=11 // pred_fallthru
        _
      // Predicated region
      $region25: #{resblock_pallas.1} parent=11 // pred_check
        %p193 = pneg %p122
      $region26: #{resblock_pallas.1} parent=11 // pred_check_branch
        %195 = sbr.rel (%p193) target = $region28
      $region27: #{resblock_pallas.1} parent=11 // pred_region
        _
      $region28: #{resblock_pallas.1} parent=11 // pred_fallthru
        _
      // Predicated region
      $region29: #{resblock_pallas.1} parent=11 // pred_check
        %p196 = pneg %p143
      $region30: #{resblock_pallas.1} parent=11 // pred_check_branch
        %198 = sbr.rel (%p196) target = $region32
      $region31: #{resblock_pallas.1} parent=11 // pred_region
        _
      $region32: #{resblock_pallas.1} parent=11 // pred_fallthru
        _
    $region12: #{resblock_pallas.1} parent=5 // pred_fallthru
      _
    %p199 = scmp.lt.s32.totalorder %s12, 2
    // Predicated region
    $region33: #{resblock_pallas.1} parent=5 // pred_check
      %p200 = pneg %p199
    $region34: #{resblock_pallas.1} parent=5 // pred_check_branch
      %202 = sbr.rel (%p200) target = $region36
    $region35: #{resblock_pallas.1} parent=5 // pred_region
      // Predicated region
      $region37: #{resblock_pallas.1} parent=35 // pred_check
        %p203 = pneg %p32
      $region38: #{resblock_pallas.1} parent=35 // pred_check_branch
        %205 = sbr.rel (%p203) target = $region40
      $region39: #{resblock_pallas.1} parent=35 // pred_region
        %s206 = smul.u32 2, %s12
        %p207 = scmp.lt.s32.totalorder %s206, 3
        %s208 = scalar_select %p207, %s206, 3
        %s209 = smul.addr %s208, 2
        %s210 = smul.addr %s209, 8
        %s211 = scalar_lea.vmem %s0, %s210
        %s212 = smul.u32 2, %s12
      $region40: #{resblock_pallas.1} parent=35 // pred_fallthru
        _
    $region36: #{resblock_pallas.1} parent=5 // pred_fallthru
      _
    %p213 = scmp.le.s32.totalorder 1, %s12
    %p214 = scmp.lt.s32.totalorder %s12, 3
    %p215 = pnand %p213, %p214
    %p216 = pneg %p215
    // Predicated region
    $region41: #{resblock_pallas.1} parent=5 // pred_check
      _
    $region42: #{resblock_pallas.1} parent=5 // pred_check_branch
      %218 = sbr.rel (%p215) target = $region44
    $region43: #{resblock_pallas.1} parent=5 // pred_region
      %s219 = ssub.s32 %s12, 1
      %s220 = smul.u32 2, %s17
      %p221 = scmp.lt.s32.totalorder %s220, 3
      %s222 = scalar_select %p221, %s220, 3
      %s223 = smul.addr %s222, 2
      %s224 = smul.addr %s223, 8
      %s225 = scalar_lea.vmem %s0, %s224
      %p226 = pneg %p38
      %p227 = pneg %p35
      %p228 = pneg %p59
      %p229 = pneg %p56
      %p230 = pneg %p80
      %p231 = pneg %p77
      %p232 = pneg %p101
      %p233 = pneg %p98
      %p234 = pneg %p122
      %p235 = pneg %p119
      %p236 = pneg %p143
      %p237 = pneg %p140
      %p238 = pneg %p169
      %p239 = pneg %p166
      %s240 = smul.u32 2, %s17
      %p241 = scmp.lt.s32.totalorder %s240, 3
      %s242 = scalar_select %p241, %s240, 3
      %s243 = smul.addr %s242, 2
      %s244 = smul.addr %s243, 8
      %s245 = scalar_lea.vmem %s6, %s244
      %s246 = smul.u32 2, %s17
      %p247 = scmp.lt.s32.totalorder %s246, 3
      %s248 = scalar_select %p247, %s246, 3
      %s249 = smul.addr %s248, 2
      %s250 = smul.addr %s249, 8
      %s251 = scalar_lea.vmem %s0, %s250
      %s252 = smul.u32 2, %s17
      %s253 = smul.u32 2, %s17
      %p254 = scmp.lt.s32.totalorder %s253, 3
      %s255 = scalar_select %p254, %s253, 3
      %s256 = smul.addr %s255, 2
      %s257 = smul.addr %s256, 8
      %s258 = scalar_lea.vmem %s6, %s257
      %s259 = smul.u32 2, %s17
      %v260 = vlaneseq
      %v261 = vshrl.u32 %v260, 7
      %v262 = vadd.s32 %v261, 8
      %v263 = vadd.s32 %v261, 16
      %v264 = vadd.s32 %v261, 24
      %vm265 = vcmp.lt.s32.totalorder %v261, 0
      %v266 = vsub.s32 0, %v261
      %v267 = vsel %vm265, %v266, %v261
      %v268 = vshrl.u32 %v267, 4
      %v269 = vand.u32 %v267, 15
      %v270 = vsub.s32 0, %v269
      %v271 = vsel %vm265, %v270, %v269
      %vm272 = vcmp.lt.s32.totalorder %v262, 0
      %v273 = vsub.s32 0, %v262
      %v274 = vsel %vm272, %v273, %v262
      %v275 = vshrl.u32 %v274, 4
      %v276 = vand.u32 %v274, 15
      %v277 = vsub.s32 0, %v276
      %v278 = vsel %vm272, %v277, %v276
      %vm279 = vcmp.lt.s32.totalorder %v263, 0
      %v280 = vsub.s32 0, %v263
      %v281 = vsel %vm279, %v280, %v263
      %v282 = vshrl.u32 %v281, 4
      %v283 = vand.u32 %v281, 15
      %v284 = vsub.s32 0, %v283
      %v285 = vsel %vm279, %v284, %v283
      %vm286 = vcmp.lt.s32.totalorder %v264, 0
      %v287 = vsub.s32 0, %v264
      %v288 = vsel %vm286, %v287, %v264
      %v289 = vshrl.u32 %v288, 4
      %v290 = vand.u32 %v288, 15
      %v291 = vsub.s32 0, %v290
      %v292 = vsel %vm286, %v291, %v290
      %vm293 = vcmp.ne.s32.totalorder %v271, 0
      %vm294 = vcmp.ne.s32.totalorder %v278, 0
      %vm295 = vcmp.ne.s32.totalorder %v285, 0
      %vm296 = vcmp.ne.s32.totalorder %v292, 0
      %vm297 = vcmp.lt.s32.totalorder %v271, 0
      %vm298 = vcmp.lt.s32.totalorder %v278, 0
      %vm299 = vcmp.lt.s32.totalorder %v285, 0
      %vm300 = vcmp.lt.s32.totalorder %v292, 0
      %vm301 = vmand %vm297, %vm293
      %vm302 = vmand %vm298, %vm294
      %vm303 = vmand %vm299, %vm295
      %vm304 = vmand %vm300, %vm296
      %v305 = vadd.s32 %v271, 16
      %v306 = vadd.s32 %v278, 16
      %v307 = vadd.s32 %v285, 16
      %v308 = vadd.s32 %v292, 16
      %v309 = vsel %vm301, %v305, %v271
      %v310 = vsel %vm302, %v306, %v278
      %v311 = vsel %vm303, %v307, %v285
      %v312 = vsel %vm304, %v308, %v292
      %vm313 = vcmp.ge.s32.totalorder %v309, 1
      %vm314 = vcmp.ge.s32.totalorder %v310, 1
      %vm315 = vcmp.ge.s32.totalorder %v311, 1
      %vm316 = vcmp.ge.s32.totalorder %v312, 1
      %vm317 = vcmp.le.s32.totalorder %v309, 14
      %vm318 = vcmp.le.s32.totalorder %v310, 14
      %vm319 = vcmp.le.s32.totalorder %v311, 14
      %vm320 = vcmp.le.s32.totalorder %v312, 14
      %v321 = vld [vmem:[%s5] sm:$0xff]
      %v322 = vld [vmem:[%s5 + $0x8] sm:$0xff]
      %v323 = vld [vmem:[%s5 + $0x10] sm:$0xff]
      %v324 = vld [vmem:[%s5 + $0x18] sm:$0xff]
      %v325 = vld [vmem:[%s5 + $0x20] sm:$0xff]
      %v326 = vld [vmem:[%s5 + $0x28] sm:$0xff]
      %v327 = vld [vmem:[%s5 + $0x30] sm:$0xff]
      %v328 = vld [vmem:[%s5 + $0x38] sm:$0xff]
      %v329 = vld [vmem:[%s5 + $0x40] sm:$0xff]
      %v330 = vld [vmem:[%s5 + $0x48] sm:$0xff]
      %v331 = vld [vmem:[%s5 + $0x50] sm:$0xff]
      %v332 = vld [vmem:[%s5 + $0x58] sm:$0xff]
      %v333 = vld [vmem:[%s5 + $0x60] sm:$0xff]
      %v334 = vld [vmem:[%s5 + $0x68] sm:$0xff]
      %v335 = vld [vmem:[%s5 + $0x70] sm:$0xff]
      %v336 = vld [vmem:[%s5 + $0x78] sm:$0xff]
      %v337 = vld [vmem:[%s2] sm:$0x1]
      %v338 = vld [vmem:[%s4] sm:$0x1]
      %v339 = vld [vmem:[%s251] sm:$0xff]
      %v340 = vld [vmem:[%s251 + $0x8] sm:$0xff]
      %v341 = vld [vmem:[%s251 + $0x10] sm:$0xff]
      %v342 = vld [vmem:[%s251 + $0x18] sm:$0xff]
      %v344 = vlaneseq
      %v345 = vshrl.u32 %v344, 7
      %v346 = vsub.s32 0, %v345
      %v347 = vrot.slane %v337, %v346
      %v349 = vrot.slane %v339, 7
      %v350 = vrot.slane %v340, 7
      %v351 = vrot.slane %v341, 7
      %v352 = vrot.slane %v342, 7
      %vm353 = vcmp.lt.s32.totalorder %v261, 1
      %v354 = vsel %vm353, %v351, %v352
      %v355 = vsel %vm353, %v350, %v351
      %v356 = vsel %vm353, %v349, %v350
      %v357 = vsel %vm353, %v352, %v349
      %v358 = vsel %vm313, 1, 0
      %v359 = vsel %vm314, 1, 0
      %v360 = vsel %vm315, 1, 0
      %v361 = vsel %vm316, 1, 0
      %vm362 = vcmp.eq.s32.totalorder %v358, 1
      %vm363 = vcmp.eq.s32.totalorder %v359, 1
      %vm364 = vcmp.eq.s32.totalorder %v360, 1
      %vm365 = vcmp.eq.s32.totalorder %v361, 1
      %v366 = vsel %vm362, %v357, 0.0
      %v367 = vsel %vm363, %v356, 0.0
      %v368 = vsel %vm364, %v355, 0.0
      %v369 = vsel %vm365, %v354, 0.0
      %v370 = vld [vmem:[%s1] sm:$0xff]
      %v371 = vld [vmem:[%s1 + $0x8] sm:$0xff]
      %v372 = vld [vmem:[%s1 + $0x10] sm:$0xff]
      %v373 = vld [vmem:[%s1 + $0x18] sm:$0xff]
      %v374 = vld [vmem:[%s1 + $0x20] sm:$0xff]
      %v375 = vld [vmem:[%s1 + $0x28] sm:$0xff]
      %v376 = vld [vmem:[%s1 + $0x30] sm:$0xff]
      %v377 = vld [vmem:[%s1 + $0x38] sm:$0xff]
      %v378 = vld [vmem:[%s1 + $0x40] sm:$0xff]
      %v379 = vld [vmem:[%s1 + $0x48] sm:$0xff]
      %v380 = vld [vmem:[%s1 + $0x50] sm:$0xff]
      %v381 = vld [vmem:[%s1 + $0x58] sm:$0xff]
      %v382 = vld [vmem:[%s1 + $0x60] sm:$0xff]
      %v383 = vld [vmem:[%s1 + $0x68] sm:$0xff]
      %v384 = vld [vmem:[%s1 + $0x70] sm:$0xff]
      %v385 = vld [vmem:[%s1 + $0x78] sm:$0xff]
      %386 = vmatprep.subr.mxu0 0.0
      %v387 = vand.u32 %v370, 4294901760
      %388 = vmatpush1.msra.mxu0 %v387
      %389 = vmatprep.subr.mxu0 0.0
      %v390 = vand.u32 %v371, 4294901760
      %391 = vmatpush1.msra.mxu0 %v390
      %392 = vmatprep.subr.mxu0 0.0
      %v393 = vand.u32 %v372, 4294901760
      %394 = vmatpush1.msra.mxu0 %v393
      %395 = vmatprep.subr.mxu0 0.0
      %v396 = vand.u32 %v373, 4294901760
      %397 = vmatpush1.msra.mxu0 %v396
      %398 = vmatprep.subr.mxu0 0.0
      %v399 = vand.u32 %v374, 4294901760
      %400 = vmatpush1.msra.mxu0 %v399
      %401 = vmatprep.subr.mxu0 0.0
      %v402 = vand.u32 %v375, 4294901760
      %403 = vmatpush1.msra.mxu0 %v402
      %404 = vmatprep.subr.mxu0 0.0
      %v405 = vand.u32 %v376, 4294901760
      %406 = vmatpush1.msra.mxu0 %v405
      %407 = vmatprep.subr.mxu0 0.0
      %v408 = vand.u32 %v377, 4294901760
      %409 = vmatpush1.msra.mxu0 %v408
      %410 = vmatprep.subr.mxu0 0.0
      %v411 = vand.u32 %v378, 4294901760
      %412 = vmatpush1.msra.mxu0 %v411
      %413 = vmatprep.subr.mxu0 0.0
      %v414 = vand.u32 %v379, 4294901760
      %415 = vmatpush1.msra.mxu0 %v414
      %416 = vmatprep.subr.mxu0 0.0
      %v417 = vand.u32 %v380, 4294901760
      %418 = vmatpush1.msra.mxu0 %v417
      %419 = vmatprep.subr.mxu0 0.0
      %v420 = vand.u32 %v381, 4294901760
      %421 = vmatpush1.msra.mxu0 %v420
      %422 = vmatprep.subr.mxu0 0.0
      %v423 = vand.u32 %v382, 4294901760
      %424 = vmatpush1.msra.mxu0 %v423
      %425 = vmatprep.subr.mxu0 0.0
      %v426 = vand.u32 %v383, 4294901760
      %427 = vmatpush1.msra.mxu0 %v426
      %428 = vmatprep.subr.mxu0 0.0
      %v429 = vand.u32 %v384, 4294901760
      %430 = vmatpush1.msra.mxu0 %v429
      %431 = vmatprep.subr.mxu0 0.0
      %v432 = vand.u32 %v385, 4294901760
      %433 = vmatpush1.msra.mxu0 %v432
      %434 = vmatprep.subr.mxu0 0.0
      %435 = vmatpush1.msra.mxu0 0.0
      %436 = vmatprep.subr.mxu0 0.0
      %437 = vmatpush1.msra.mxu0 0.0
      %438 = vmatprep.subr.mxu0 0.0
      %439 = vmatpush1.msra.mxu0 0.0
      %440 = vmatprep.subr.mxu0 0.0
      %441 = vmatpush1.msra.mxu0 0.0
      %442 = vmatprep.subr.mxu0 0.0
      %443 = vmatpush1.msra.mxu0 0.0
      %444 = vmatprep.subr.mxu0 0.0
      %445 = vmatpush1.msra.mxu0 0.0
      %446 = vmatprep.subr.mxu0 0.0
      %447 = vmatpush1.msra.mxu0 0.0
      %448 = vmatprep.subr.mxu0 0.0
      %449 = vmatpush1.msra.mxu0 0.0
      %450 = vmatprep.subr.mxu0 0.0
      %451 = vmatpush1.msra.mxu0 0.0
      %452 = vmatprep.subr.mxu0 0.0
      %453 = vmatpush1.msra.mxu0 0.0
      %454 = vmatprep.subr.mxu0 0.0
      %455 = vmatpush1.msra.mxu0 0.0
      %456 = vmatprep.subr.mxu0 0.0
      %457 = vmatpush1.msra.mxu0 0.0
      %458 = vmatprep.subr.mxu0 0.0
      %459 = vmatpush1.msra.mxu0 0.0
      %460 = vmatprep.subr.mxu0 0.0
      %461 = vmatpush1.msra.mxu0 0.0
      %462 = vmatprep.subr.mxu0 0.0
      %463 = vmatpush1.msra.mxu0 0.0
      %464 = vmatprep.subr.mxu0 0.0
      %465 = vmatpush1.msra.mxu0 0.0
      %466 = vmatprep.mubr.f32.mxu0 0.0
      %v467 = vand.u32 %v366, 4294901760
      %v468 = vsub.f32 %v366, %v467
      %v469 = vand.u32 %v468, 4294901760
      %v470 = vsub.f32 %v468, %v469
      %v471 = vand.u32 %v470, 4294901760
      %472 = vmatmul.mubr.f32.gmra.mrb[0].mxu0 %v471
      %v473 = vpop.f32.mrb[0].mxu0
      %v474 = vadd.f32 0.0, %v473
      %v475 = vpop.f32.mrb[0].mxu0
      %476 = vmatprep.mubr.f32.mxu0 0.0
      %v477 = vand.u32 %v367, 4294901760
      %v478 = vsub.f32 %v367, %v477
      %v479 = vand.u32 %v478, 4294901760
      %v480 = vsub.f32 %v478, %v479
      %v481 = vand.u32 %v480, 4294901760
      %482 = vmatmul.mubr.f32.gmra.mrb[0].mxu0 %v481
      %v483 = vpop.f32.mrb[0].mxu0
      %v484 = vadd.f32 0.0, %v483
      %v485 = vpop.f32.mrb[0].mxu0
      %486 = vmatprep.mubr.f32.mxu0 0.0
      %v487 = vand.u32 %v368, 4294901760
      %v488 = vsub.f32 %v368, %v487
      %v489 = vand.u32 %v488, 4294901760
      %v490 = vsub.f32 %v488, %v489
      %v491 = vand.u32 %v490, 4294901760
      %492 = vmatmul.mubr.f32.gmra.mrb[0].mxu0 %v491
      %v493 = vpop.f32.mrb[0].mxu0
      %v494 = vadd.f32 0.0, %v493
      %v495 = vpop.f32.mrb[0].mxu0
      %496 = vmatprep.mubr.f32.mxu0 0.0
      %v497 = vand.u32 %v369, 4294901760
      %v498 = vsub.f32 %v369, %v497
      %v499 = vand.u32 %v498, 4294901760
      %v500 = vsub.f32 %v498, %v499
      %v501 = vand.u32 %v500, 4294901760
      %502 = vmatmul.mubr.f32.gmra.mrb[0].mxu0 %v501
      %v503 = vpop.f32.mrb[0].mxu0
      %v504 = vadd.f32 0.0, %v503
      %v505 = vpop.f32.mrb[0].mxu0
      %506 = vdwg.mxu0
      %507 = vmatprep.subr.mxu0 0.0
      %v508 = vand.u32 %v370, 4294901760
      %v509 = vsub.f32 %v370, %v508
      %v510 = vand.u32 %v509, 4294901760
      %v511 = vsub.f32 %v509, %v510
      %v512 = vand.u32 %v511, 4294901760
      %513 = vmatpush1.msra.mxu0 %v512
      %514 = vmatprep.subr.mxu0 0.0
      %v515 = vand.u32 %v371, 4294901760
      %v516 = vsub.f32 %v371, %v515
      %v517 = vand.u32 %v516, 4294901760
      %v518 = vsub.f32 %v516, %v517
      %v519 = vand.u32 %v518, 4294901760
      %520 = vmatpush1.msra.mxu0 %v519
      %521 = vmatprep.subr.mxu0 0.0
      %v522 = vand.u32 %v372, 4294901760
      %v523 = vsub.f32 %v372, %v522
      %v524 = vand.u32 %v523, 4294901760
      %v525 = vsub.f32 %v523, %v524
      %v526 = vand.u32 %v525, 4294901760
      %527 = vmatpush1.msra.mxu0 %v526
      %528 = vmatprep.subr.mxu0 0.0
      %v529 = vand.u32 %v373, 4294901760
      %v530 = vsub.f32 %v373, %v529
      %v531 = vand.u32 %v530, 4294901760
      %v532 = vsub.f32 %v530, %v531
      %v533 = vand.u32 %v532, 4294901760
      %534 = vmatpush1.msra.mxu0 %v533
      %535 = vmatprep.subr.mxu0 0.0
      %v536 = vand.u32 %v374, 4294901760
      %v537 = vsub.f32 %v374, %v536
      %v538 = vand.u32 %v537, 4294901760
      %v539 = vsub.f32 %v537, %v538
      %v540 = vand.u32 %v539, 4294901760
      %541 = vmatpush1.msra.mxu0 %v540
      %542 = vmatprep.subr.mxu0 0.0
      %v543 = vand.u32 %v375, 4294901760
      %v544 = vsub.f32 %v375, %v543
      %v545 = vand.u32 %v544, 4294901760
      %v546 = vsub.f32 %v544, %v545
      %v547 = vand.u32 %v546, 4294901760
      %548 = vmatpush1.msra.mxu0 %v547
      %549 = vmatprep.subr.mxu0 0.0
      %v550 = vand.u32 %v376, 4294901760
      %v551 = vsub.f32 %v376, %v550
      %v552 = vand.u32 %v551, 4294901760
      %v553 = vsub.f32 %v551, %v552
      %v554 = vand.u32 %v553, 4294901760
      %555 = vmatpush1.msra.mxu0 %v554
      %556 = vmatprep.subr.mxu0 0.0
      %v557 = vand.u32 %v377, 4294901760
      %v558 = vsub.f32 %v377, %v557
      %v559 = vand.u32 %v558, 4294901760
      %v560 = vsub.f32 %v558, %v559
      %v561 = vand.u32 %v560, 4294901760
      %562 = vmatpush1.msra.mxu0 %v561
      %563 = vmatprep.subr.mxu0 0.0
      %v564 = vand.u32 %v378, 4294901760
      %v565 = vsub.f32 %v378, %v564
      %v566 = vand.u32 %v565, 4294901760
      %v567 = vsub.f32 %v565, %v566
      %v568 = vand.u32 %v567, 4294901760
      %569 = vmatpush1.msra.mxu0 %v568
      %570 = vmatprep.subr.mxu0 0.0
      %v571 = vand.u32 %v379, 4294901760
      %v572 = vsub.f32 %v379, %v571
      %v573 = vand.u32 %v572, 4294901760
      %v574 = vsub.f32 %v572, %v573
      %v575 = vand.u32 %v574, 4294901760
      %576 = vmatpush1.msra.mxu0 %v575
      %577 = vmatprep.subr.mxu0 0.0
      %v578 = vand.u32 %v380, 4294901760
      %v579 = vsub.f32 %v380, %v578
      %v580 = vand.u32 %v579, 4294901760
      %v581 = vsub.f32 %v579, %v580
      %v582 = vand.u32 %v581, 4294901760
      %583 = vmatpush1.msra.mxu0 %v582
      %584 = vmatprep.subr.mxu0 0.0
      %v585 = vand.u32 %v381, 4294901760
      %v586 = vsub.f32 %v381, %v585
      %v587 = vand.u32 %v586, 4294901760
      %v588 = vsub.f32 %v586, %v587
      %v589 = vand.u32 %v588, 4294901760
      %590 = vmatpush1.msra.mxu0 %v589
      %591 = vmatprep.subr.mxu0 0.0
      %v592 = vand.u32 %v382, 4294901760
      %v593 = vsub.f32 %v382, %v592
      %v594 = vand.u32 %v593, 4294901760
      %v595 = vsub.f32 %v593, %v594
      %v596 = vand.u32 %v595, 4294901760
      %597 = vmatpush1.msra.mxu0 %v596
      %598 = vmatprep.subr.mxu0 0.0
      %v599 = vand.u32 %v383, 4294901760
      %v600 = vsub.f32 %v383, %v599
      %v601 = vand.u32 %v600, 4294901760
      %v602 = vsub.f32 %v600, %v601
      %v603 = vand.u32 %v602, 4294901760
      %604 = vmatpush1.msra.mxu0 %v603
      %605 = vmatprep.subr.mxu0 0.0
      %v606 = vand.u32 %v384, 4294901760
      %v607 = vsub.f32 %v384, %v606
      %v608 = vand.u32 %v607, 4294901760
      %v609 = vsub.f32 %v607, %v608
      %v610 = vand.u32 %v609, 4294901760
      %611 = vmatpush1.msra.mxu0 %v610
      %612 = vmatprep.subr.mxu0 0.0
      %v613 = vand.u32 %v385, 4294901760
      %v614 = vsub.f32 %v385, %v613
      %v615 = vand.u32 %v614, 4294901760
      %v616 = vsub.f32 %v614, %v615
      %v617 = vand.u32 %v616, 4294901760
      %618 = vmatpush1.msra.mxu0 %v617
      %619 = vmatprep.subr.mxu0 0.0
      %620 = vmatpush1.msra.mxu0 0.0
      %621 = vmatprep.subr.mxu0 0.0
      %622 = vmatpush1.msra.mxu0 0.0
      %623 = vmatprep.subr.mxu0 0.0
      %624 = vmatpush1.msra.mxu0 0.0
      %625 = vmatprep.subr.mxu0 0.0
      %626 = vmatpush1.msra.mxu0 0.0
      %627 = vmatprep.subr.mxu0 0.0
      %628 = vmatpush1.msra.mxu0 0.0
      %629 = vmatprep.subr.mxu0 0.0
      %630 = vmatpush1.msra.mxu0 0.0
      %631 = vmatprep.subr.mxu0 0.0
      %632 = vmatpush1.msra.mxu0 0.0
      %633 = vmatprep.subr.mxu0 0.0
      %634 = vmatpush1.msra.mxu0 0.0
      %635 = vmatprep.subr.mxu0 0.0
      %636 = vmatpush1.msra.mxu0 0.0
      %637 = vmatprep.subr.mxu0 0.0
      %638 = vmatpush1.msra.mxu0 0.0
      %639 = vmatprep.subr.mxu0 0.0
      %640 = vmatpush1.msra.mxu0 0.0
      %641 = vmatprep.subr.mxu0 0.0
      %642 = vmatpush1.msra.mxu0 0.0
      %643 = vmatprep.subr.mxu0 0.0
      %644 = vmatpush1.msra.mxu0 0.0
      %645 = vmatprep.subr.mxu0 0.0
      %646 = vmatpush1.msra.mxu0 0.0
      %647 = vmatprep.subr.mxu0 0.0
      %648 = vmatpush1.msra.mxu0 0.0
      %649 = vmatprep.subr.mxu0 0.0
      %650 = vmatpush1.msra.mxu0 0.0
      %651 = vmatprep.mubr.f32.mxu0 0.0
      %v652 = vand.u32 %v366, 4294901760
      %653 = vmatmul.mubr.f32.gmra.mrb[0].mxu0 %v652
      %v654 = vpop.f32.mrb[0].mxu0
      %v655 = vadd.f32 %v474, %v654
      %v656 = vpop.f32.mrb[0].mxu0
      %657 = vmatprep.mubr.f32.mxu0 0.0
      %v658 = vand.u32 %v367, 4294901760
      %659 = vmatmul.mubr.f32.gmra.mrb[0].mxu0 %v658
      %v660 = vpop.f32.mrb[0].mxu0
      %v661 = vadd.f32 %v484, %v660
      %v662 = vpop.f32.mrb[0].mxu0
      %663 = vmatprep.mubr.f32.mxu0 0.0
      %v664 = vand.u32 %v368, 4294901760
      %665 = vmatmul.mubr.f32.gmra.mrb[0].mxu0 %v664
      %v666 = vpop.f32.mrb[0].mxu0
      %v667 = vadd.f32 %v494, %v666
      %v668 = vpop.f32.mrb[0].mxu0
      %669 = vmatprep.mubr.f32.mxu0 0.0
      %v670 = vand.u32 %v369, 4294901760
      %671 = vmatmul.mubr.f32.gmra.mrb[0].mxu0 %v670
      %v672 = vpop.f32.mrb[0].mxu0
      %v673 = vadd.f32 %v504, %v672
      %v674 = vpop.f32.mrb[0].mxu0
      %675 = vdwg.mxu0
      %676 = vmatprep.subr.mxu0 0.0
      %v677 = vand.u32 %v370, 4294901760
      %v678 = vsub.f32 %v370, %v677
      %679 = vmatpush1.msra.mxu0 %v678
      %680 = vmatprep.subr.mxu0 0.0
      %v681 = vand.u32 %v371, 4294901760
      %v682 = vsub.f32 %v371, %v681
      %683 = vmatpush1.msra.mxu0 %v682
      %684 = vmatprep.subr.mxu0 0.0
      %v685 = vand.u32 %v372, 4294901760
      %v686 = vsub.f32 %v372, %v685
      %687 = vmatpush1.msra.mxu0 %v686
      %688 = vmatprep.subr.mxu0 0.0
      %v689 = vand.u32 %v373, 4294901760
      %v690 = vsub.f32 %v373, %v689
      %691 = vmatpush1.msra.mxu0 %v690
      %692 = vmatprep.subr.mxu0 0.0
      %v693 = vand.u32 %v374, 4294901760
      %v694 = vsub.f32 %v374, %v693
      %695 = vmatpush1.msra.mxu0 %v694
      %696 = vmatprep.subr.mxu0 0.0
      %v697 = vand.u32 %v375, 4294901760
      %v698 = vsub.f32 %v375, %v697
      %699 = vmatpush1.msra.mxu0 %v698
      %700 = vmatprep.subr.mxu0 0.0
      %v701 = vand.u32 %v376, 4294901760
      %v702 = vsub.f32 %v376, %v701
      %703 = vmatpush1.msra.mxu0 %v702
      %704 = vmatprep.subr.mxu0 0.0
      %v705 = vand.u32 %v377, 4294901760
      %v706 = vsub.f32 %v377, %v705
      %707 = vmatpush1.msra.mxu0 %v706
      %708 = vmatprep.subr.mxu0 0.0
      %v709 = vand.u32 %v378, 4294901760
      %v710 = vsub.f32 %v378, %v709
      %711 = vmatpush1.msra.mxu0 %v710
      %712 = vmatprep.subr.mxu0 0.0
      %v713 = vand.u32 %v379, 4294901760
      %v714 = vsub.f32 %v379, %v713
      %715 = vmatpush1.msra.mxu0 %v714
      %716 = vmatprep.subr.mxu0 0.0
      %v717 = vand.u32 %v380, 4294901760
      %v718 = vsub.f32 %v380, %v717
      %719 = vmatpush1.msra.mxu0 %v718
      %720 = vmatprep.subr.mxu0 0.0
      %v721 = vand.u32 %v381, 4294901760
      %v722 = vsub.f32 %v381, %v721
      %723 = vmatpush1.msra.mxu0 %v722
      %724 = vmatprep.subr.mxu0 0.0
      %v725 = vand.u32 %v382, 4294901760
      %v726 = vsub.f32 %v382, %v725
      %727 = vmatpush1.msra.mxu0 %v726
      %728 = vmatprep.subr.mxu0 0.0
      %v729 = vand.u32 %v383, 4294901760
      %v730 = vsub.f32 %v383, %v729
      %731 = vmatpush1.msra.mxu0 %v730
      %732 = vmatprep.subr.mxu0 0.0
      %v733 = vand.u32 %v384, 4294901760
      %v734 = vsub.f32 %v384, %v733
      %735 = vmatpush1.msra.mxu0 %v734
      %736 = vmatprep.subr.mxu0 0.0
      %v737 = vand.u32 %v385, 4294901760
      %v738 = vsub.f32 %v385, %v737
      %739 = vmatpush1.msra.mxu0 %v738
      %740 = vmatprep.subr.mxu0 0.0
      %741 = vmatpush1.msra.mxu0 0.0
      %742 = vmatprep.subr.mxu0 0.0
      %743 = vmatpush1.msra.mxu0 0.0
      %744 = vmatprep.subr.mxu0 0.0
      %745 = vmatpush1.msra.mxu0 0.0
      %746 = vmatprep.subr.mxu0 0.0
      %747 = vmatpush1.msra.mxu0 0.0
      %748 = vmatprep.subr.mxu0 0.0
      %749 = vmatpush1.msra.mxu0 0.0
      %750 = vmatprep.subr.mxu0 0.0
      %751 = vmatpush1.msra.mxu0 0.0
      %752 = vmatprep.subr.mxu0 0.0
      %753 = vmatpush1.msra.mxu0 0.0
      %754 = vmatprep.subr.mxu0 0.0
      %755 = vmatpush1.msra.mxu0 0.0
      %756 = vmatprep.subr.mxu0 0.0
      %757 = vmatpush1.msra.mxu0 0.0
      %758 = vmatprep.subr.mxu0 0.0
      %759 = vmatpush1.msra.mxu0 0.0
      %760 = vmatprep.subr.mxu0 0.0
      %761 = vmatpush1.msra.mxu0 0.0
      %762 = vmatprep.subr.mxu0 0.0
      %763 = vmatpush1.msra.mxu0 0.0
      %764 = vmatprep.subr.mxu0 0.0
      %765 = vmatpush1.msra.mxu0 0.0
      %766 = vmatprep.subr.mxu0 0.0
      %767 = vmatpush1.msra.mxu0 0.0
      %768 = vmatprep.subr.mxu0 0.0
      %769 = vmatpush1.msra.mxu0 0.0
      %770 = vmatprep.subr.mxu0 0.0
      %771 = vmatpush1.msra.mxu0 0.0
      %772 = vmatprep.mubr.f32.mxu0 0.0
      %v773 = vand.u32 %v366, 4294901760
      %v774 = vsub.f32 %v366, %v773
      %775 = vmatmul.mubr.f32.gmra.mrb[0].mxu0 %v774
      %v776 = vpop.f32.mrb[0].mxu0
      %v777 = vadd.f32 %v655, %v776
      %v778 = vpop.f32.mrb[0].mxu0
      %779 = vmatprep.mubr.f32.mxu0 0.0
      %v780 = vand.u32 %v367, 4294901760
      %v781 = vsub.f32 %v367, %v780
      %782 = vmatmul.mubr.f32.gmra.mrb[0].mxu0 %v781
      %v783 = vpop.f32.mrb[0].mxu0
      %v784 = vadd.f32 %v661, %v783
      %v785 = vpop.f32.mrb[0].mxu0
      %786 = vmatprep.mubr.f32.mxu0 0.0
      %v787 = vand.u32 %v368, 4294901760
      %v788 = vsub.f32 %v368, %v787
      %789 = vmatmul.mubr.f32.gmra.mrb[0].mxu0 %v788
      %v790 = vpop.f32.mrb[0].mxu0
      %v791 = vadd.f32 %v667, %v790
      %v792 = vpop.f32.mrb[0].mxu0
      %793 = vmatprep.mubr.f32.mxu0 0.0
      %v794 = vand.u32 %v369, 4294901760
      %v795 = vsub.f32 %v369, %v794
      %796 = vmatmul.mubr.f32.gmra.mrb[0].mxu0 %v795
      %v797 = vpop.f32.mrb[0].mxu0
      %v798 = vadd.f32 %v673, %v797
      %v799 = vpop.f32.mrb[0].mxu0
      %800 = vdwg.mxu0
      %801 = vmatprep.subr.mxu0 0.0
      %v802 = vand.u32 %v370, 4294901760
      %803 = vmatpush1.msra.mxu0 %v802
      %804 = vmatprep.subr.mxu0 0.0
      %v805 = vand.u32 %v371, 4294901760
      %806 = vmatpush1.msra.mxu0 %v805
      %807 = vmatprep.subr.mxu0 0.0
      %v808 = vand.u32 %v372, 4294901760
      %809 = vmatpush1.msra.mxu0 %v808
      %810 = vmatprep.subr.mxu0 0.0
      %v811 = vand.u32 %v373, 4294901760
      %812 = vmatpush1.msra.mxu0 %v811
      %813 = vmatprep.subr.mxu0 0.0
      %v814 = vand.u32 %v374, 4294901760
      %815 = vmatpush1.msra.mxu0 %v814
      %816 = vmatprep.subr.mxu0 0.0
      %v817 = vand.u32 %v375, 4294901760
      %818 = vmatpush1.msra.mxu0 %v817
      %819 = vmatprep.subr.mxu0 0.0
      %v820 = vand.u32 %v376, 4294901760
      %821 = vmatpush1.msra.mxu0 %v820
      %822 = vmatprep.subr.mxu0 0.0
      %v823 = vand.u32 %v377, 4294901760
      %824 = vmatpush1.msra.mxu0 %v823
      %825 = vmatprep.subr.mxu0 0.0
      %v826 = vand.u32 %v378, 4294901760
      %827 = vmatpush1.msra.mxu0 %v826
      %828 = vmatprep.subr.mxu0 0.0
      %v829 = vand.u32 %v379, 4294901760
      %830 = vmatpush1.msra.mxu0 %v829
      %831 = vmatprep.subr.mxu0 0.0
      %v832 = vand.u32 %v380, 4294901760
      %833 = vmatpush1.msra.mxu0 %v832
      %834 = vmatprep.subr.mxu0 0.0
      %v835 = vand.u32 %v381, 4294901760
      %836 = vmatpush1.msra.mxu0 %v835
      %837 = vmatprep.subr.mxu0 0.0
      %v838 = vand.u32 %v382, 4294901760
      %839 = vmatpush1.msra.mxu0 %v838
      %840 = vmatprep.subr.mxu0 0.0
      %v841 = vand.u32 %v383, 4294901760
      %842 = vmatpush1.msra.mxu0 %v841
      %843 = vmatprep.subr.mxu0 0.0
      %v844 = vand.u32 %v384, 4294901760
      %845 = vmatpush1.msra.mxu0 %v844
      %846 = vmatprep.subr.mxu0 0.0
      %v847 = vand.u32 %v385, 4294901760
      %848 = vmatpush1.msra.mxu0 %v847
      %849 = vmatprep.subr.mxu0 0.0
      %850 = vmatpush1.msra.mxu0 0.0
      %851 = vmatprep.subr.mxu0 0.0
      %852 = vmatpush1.msra.mxu0 0.0
      %853 = vmatprep.subr.mxu0 0.0
      %854 = vmatpush1.msra.mxu0 0.0
      %855 = vmatprep.subr.mxu0 0.0
      %856 = vmatpush1.msra.mxu0 0.0
      %857 = vmatprep.subr.mxu0 0.0
      %858 = vmatpush1.msra.mxu0 0.0
      %859 = vmatprep.subr.mxu0 0.0
      %860 = vmatpush1.msra.mxu0 0.0
      %861 = vmatprep.subr.mxu0 0.0
      %862 = vmatpush1.msra.mxu0 0.0
      %863 = vmatprep.subr.mxu0 0.0
      %864 = vmatpush1.msra.mxu0 0.0
      %865 = vmatprep.subr.mxu0 0.0
      %866 = vmatpush1.msra.mxu0 0.0
      %867 = vmatprep.subr.mxu0 0.0
      %868 = vmatpush1.msra.mxu0 0.0
      %869 = vmatprep.subr.mxu0 0.0
      %870 = vmatpush1.msra.mxu0 0.0
      %871 = vmatprep.subr.mxu0 0.0
      %872 = vmatpush1.msra.mxu0 0.0
      %873 = vmatprep.subr.mxu0 0.0
      %874 = vmatpush1.msra.mxu0 0.0
      %875 = vmatprep.subr.mxu0 0.0
      %876 = vmatpush1.msra.mxu0 0.0
      %877 = vmatprep.subr.mxu0 0.0
      %878 = vmatpush1.msra.mxu0 0.0
      %879 = vmatprep.subr.mxu0 0.0
      %880 = vmatpush1.msra.mxu0 0.0
      %881 = vmatprep.mubr.f32.mxu0 0.0
      %v882 = vand.u32 %v366, 4294901760
      %v883 = vsub.f32 %v366, %v882
      %v884 = vand.u32 %v883, 4294901760
      %885 = vmatmul.mubr.f32.gmra.mrb[0].mxu0 %v884
      %v886 = vpop.f32.mrb[0].mxu0
      %v887 = vadd.f32 %v777, %v886
      %v888 = vpop.f32.mrb[0].mxu0
      %889 = vmatprep.mubr.f32.mxu0 0.0
      %v890 = vand.u32 %v367, 4294901760
      %v891 = vsub.f32 %v367, %v890
      %v892 = vand.u32 %v891, 4294901760
      %893 = vmatmul.mubr.f32.gmra.mrb[0].mxu0 %v892
      %v894 = vpop.f32.mrb[0].mxu0
      %v895 = vadd.f32 %v784, %v894
      %v896 = vpop.f32.mrb[0].mxu0
      %897 = vmatprep.mubr.f32.mxu0 0.0
      %v898 = vand.u32 %v368, 4294901760
      %v899 = vsub.f32 %v368, %v898
      %v900 = vand.u32 %v899, 4294901760
      %901 = vmatmul.mubr.f32.gmra.mrb[0].mxu0 %v900
      %v902 = vpop.f32.mrb[0].mxu0
      %v903 = vadd.f32 %v791, %v902
      %v904 = vpop.f32.mrb[0].mxu0
      %905 = vmatprep.mubr.f32.mxu0 0.0
      %v906 = vand.u32 %v369, 4294901760
      %v907 = vsub.f32 %v369, %v906
      %v908 = vand.u32 %v907, 4294901760
      %909 = vmatmul.mubr.f32.gmra.mrb[0].mxu0 %v908
      %v910 = vpop.f32.mrb[0].mxu0
      %v911 = vadd.f32 %v798, %v910
      %v912 = vpop.f32.mrb[0].mxu0
      %913 = vdwg.mxu0
      %914 = vmatprep.subr.mxu0 0.0
      %v915 = vand.u32 %v370, 4294901760
      %v916 = vsub.f32 %v370, %v915
      %v917 = vand.u32 %v916, 4294901760
      %918 = vmatpush1.msra.mxu0 %v917
      %919 = vmatprep.subr.mxu0 0.0
      %v920 = vand.u32 %v371, 4294901760
      %v921 = vsub.f32 %v371, %v920
      %v922 = vand.u32 %v921, 4294901760
      %923 = vmatpush1.msra.mxu0 %v922
      %924 = vmatprep.subr.mxu0 0.0
      %v925 = vand.u32 %v372, 4294901760
      %v926 = vsub.f32 %v372, %v925
      %v927 = vand.u32 %v926, 4294901760
      %928 = vmatpush1.msra.mxu0 %v927
      %929 = vmatprep.subr.mxu0 0.0
      %v930 = vand.u32 %v373, 4294901760
      %v931 = vsub.f32 %v373, %v930
      %v932 = vand.u32 %v931, 4294901760
      %933 = vmatpush1.msra.mxu0 %v932
      %934 = vmatprep.subr.mxu0 0.0
      %v935 = vand.u32 %v374, 4294901760
      %v936 = vsub.f32 %v374, %v935
      %v937 = vand.u32 %v936, 4294901760
      %938 = vmatpush1.msra.mxu0 %v937
      %939 = vmatprep.subr.mxu0 0.0
      %v940 = vand.u32 %v375, 4294901760
      %v941 = vsub.f32 %v375, %v940
      %v942 = vand.u32 %v941, 4294901760
      %943 = vmatpush1.msra.mxu0 %v942
      %944 = vmatprep.subr.mxu0 0.0
      %v945 = vand.u32 %v376, 4294901760
      %v946 = vsub.f32 %v376, %v945
      %v947 = vand.u32 %v946, 4294901760
      %948 = vmatpush1.msra.mxu0 %v947
      %949 = vmatprep.subr.mxu0 0.0
      %v950 = vand.u32 %v377, 4294901760
      %v951 = vsub.f32 %v377, %v950
      %v952 = vand.u32 %v951, 4294901760
      %953 = vmatpush1.msra.mxu0 %v952
      %954 = vmatprep.subr.mxu0 0.0
      %v955 = vand.u32 %v378, 4294901760
      %v956 = vsub.f32 %v378, %v955
      %v957 = vand.u32 %v956, 4294901760
      %958 = vmatpush1.msra.mxu0 %v957
      %959 = vmatprep.subr.mxu0 0.0
      %v960 = vand.u32 %v379, 4294901760
      %v961 = vsub.f32 %v379, %v960
      %v962 = vand.u32 %v961, 4294901760
      %963 = vmatpush1.msra.mxu0 %v962
      %964 = vmatprep.subr.mxu0 0.0
      %v965 = vand.u32 %v380, 4294901760
      %v966 = vsub.f32 %v380, %v965
      %v967 = vand.u32 %v966, 4294901760
      %968 = vmatpush1.msra.mxu0 %v967
      %969 = vmatprep.subr.mxu0 0.0
      %v970 = vand.u32 %v381, 4294901760
      %v971 = vsub.f32 %v381, %v970
      %v972 = vand.u32 %v971, 4294901760
      %973 = vmatpush1.msra.mxu0 %v972
      %974 = vmatprep.subr.mxu0 0.0
      %v975 = vand.u32 %v382, 4294901760
      %v976 = vsub.f32 %v382, %v975
      %v977 = vand.u32 %v976, 4294901760
      %978 = vmatpush1.msra.mxu0 %v977
      %979 = vmatprep.subr.mxu0 0.0
      %v980 = vand.u32 %v383, 4294901760
      %v981 = vsub.f32 %v383, %v980
      %v982 = vand.u32 %v981, 4294901760
      %983 = vmatpush1.msra.mxu0 %v982
      %984 = vmatprep.subr.mxu0 0.0
      %v985 = vand.u32 %v384, 4294901760
      %v986 = vsub.f32 %v384, %v985
      %v987 = vand.u32 %v986, 4294901760
      %988 = vmatpush1.msra.mxu0 %v987
      %989 = vmatprep.subr.mxu0 0.0
      %v990 = vand.u32 %v385, 4294901760
      %v991 = vsub.f32 %v385, %v990
      %v992 = vand.u32 %v991, 4294901760
      %993 = vmatpush1.msra.mxu0 %v992
      %994 = vmatprep.subr.mxu0 0.0
      %995 = vmatpush1.msra.mxu0 0.0
      %996 = vmatprep.subr.mxu0 0.0
      %997 = vmatpush1.msra.mxu0 0.0
      %998 = vmatprep.subr.mxu0 0.0
      %999 = vmatpush1.msra.mxu0 0.0
      %1000 = vmatprep.subr.mxu0 0.0
      %1001 = vmatpush1.msra.mxu0 0.0
      %1002 = vmatprep.subr.mxu0 0.0
      %1003 = vmatpush1.msra.mxu0 0.0
      %1004 = vmatprep.subr.mxu0 0.0
      %1005 = vmatpush1.msra.mxu0 0.0
      %1006 = vmatprep.subr.mxu0 0.0
      %1007 = vmatpush1.msra.mxu0 0.0
      %1008 = vmatprep.subr.mxu0 0.0
      %1009 = vmatpush1.msra.mxu0 0.0
      %1010 = vmatprep.subr.mxu0 0.0
      %1011 = vmatpush1.msra.mxu0 0.0
      %1012 = vmatprep.subr.mxu0 0.0
      %1013 = vmatpush1.msra.mxu0 0.0
      %1014 = vmatprep.subr.mxu0 0.0
      %1015 = vmatpush1.msra.mxu0 0.0
      %1016 = vmatprep.subr.mxu0 0.0
      %1017 = vmatpush1.msra.mxu0 0.0
      %1018 = vmatprep.subr.mxu0 0.0
      %1019 = vmatpush1.msra.mxu0 0.0
      %1020 = vmatprep.subr.mxu0 0.0
      %1021 = vmatpush1.msra.mxu0 0.0
      %1022 = vmatprep.subr.mxu0 0.0
      %1023 = vmatpush1.msra.mxu0 0.0
      %1024 = vmatprep.subr.mxu0 0.0
      %1025 = vmatpush1.msra.mxu0 0.0
      %1026 = vmatprep.mubr.f32.mxu0 0.0
      %v1027 = vand.u32 %v366, 4294901760
      %1028 = vmatmul.mubr.f32.gmra.mrb[0].mxu0 %v1027
      %v1029 = vpop.f32.mrb[0].mxu0
      %v1030 = vadd.f32 %v887, %v1029
      %v1031 = vpop.f32.mrb[0].mxu0
      %1032 = vmatprep.mubr.f32.mxu0 0.0
      %v1033 = vand.u32 %v367, 4294901760
      %1034 = vmatmul.mubr.f32.gmra.mrb[0].mxu0 %v1033
      %v1035 = vpop.f32.mrb[0].mxu0
      %v1036 = vadd.f32 %v895, %v1035
      %v1037 = vpop.f32.mrb[0].mxu0
      %1038 = vmatprep.mubr.f32.mxu0 0.0
      %v1039 = vand.u32 %v368, 4294901760
      %1040 = vmatmul.mubr.f32.gmra.mrb[0].mxu0 %v1039
      %v1041 = vpop.f32.mrb[0].mxu0
      %v1042 = vadd.f32 %v903, %v1041
      %v1043 = vpop.f32.mrb[0].mxu0
      %1044 = vmatprep.mubr.f32.mxu0 0.0
      %v1045 = vand.u32 %v369, 4294901760
      %1046 = vmatmul.mubr.f32.gmra.mrb[0].mxu0 %v1045
      %v1047 = vpop.f32.mrb[0].mxu0
      %v1048 = vadd.f32 %v911, %v1047
      %v1049 = vpop.f32.mrb[0].mxu0
      %1050 = vdwg.mxu0
      %1051 = vmatprep.subr.mxu0 0.0
      %v1052 = vand.u32 %v370, 4294901760
      %1053 = vmatpush1.msra.mxu0 %v1052
      %1054 = vmatprep.subr.mxu0 0.0
      %v1055 = vand.u32 %v371, 4294901760
      %1056 = vmatpush1.msra.mxu0 %v1055
      %1057 = vmatprep.subr.mxu0 0.0
      %v1058 = vand.u32 %v372, 4294901760
      %1059 = vmatpush1.msra.mxu0 %v1058
      %1060 = vmatprep.subr.mxu0 0.0
      %v1061 = vand.u32 %v373, 4294901760
      %1062 = vmatpush1.msra.mxu0 %v1061
      %1063 = vmatprep.subr.mxu0 0.0
      %v1064 = vand.u32 %v374, 4294901760
      %1065 = vmatpush1.msra.mxu0 %v1064
      %1066 = vmatprep.subr.mxu0 0.0
      %v1067 = vand.u32 %v375, 4294901760
      %1068 = vmatpush1.msra.mxu0 %v1067
      %1069 = vmatprep.subr.mxu0 0.0
      %v1070 = vand.u32 %v376, 4294901760
      %1071 = vmatpush1.msra.mxu0 %v1070
      %1072 = vmatprep.subr.mxu0 0.0
      %v1073 = vand.u32 %v377, 4294901760
      %1074 = vmatpush1.msra.mxu0 %v1073
      %1075 = vmatprep.subr.mxu0 0.0
      %v1076 = vand.u32 %v378, 4294901760
      %1077 = vmatpush1.msra.mxu0 %v1076
      %1078 = vmatprep.subr.mxu0 0.0
      %v1079 = vand.u32 %v379, 4294901760
      %1080 = vmatpush1.msra.mxu0 %v1079
      %1081 = vmatprep.subr.mxu0 0.0
      %v1082 = vand.u32 %v380, 4294901760
      %1083 = vmatpush1.msra.mxu0 %v1082
      %1084 = vmatprep.subr.mxu0 0.0
      %v1085 = vand.u32 %v381, 4294901760
      %1086 = vmatpush1.msra.mxu0 %v1085
      %1087 = vmatprep.subr.mxu0 0.0
      %v1088 = vand.u32 %v382, 4294901760
      %1089 = vmatpush1.msra.mxu0 %v1088
      %1090 = vmatprep.subr.mxu0 0.0
      %v1091 = vand.u32 %v383, 4294901760
      %1092 = vmatpush1.msra.mxu0 %v1091
      %1093 = vmatprep.subr.mxu0 0.0
      %v1094 = vand.u32 %v384, 4294901760
      %1095 = vmatpush1.msra.mxu0 %v1094
      %1096 = vmatprep.subr.mxu0 0.0
      %v1097 = vand.u32 %v385, 4294901760
      %1098 = vmatpush1.msra.mxu0 %v1097
      %1099 = vmatprep.subr.mxu0 0.0
      %1100 = vmatpush1.msra.mxu0 0.0
      %1101 = vmatprep.subr.mxu0 0.0
      %1102 = vmatpush1.msra.mxu0 0.0
      %1103 = vmatprep.subr.mxu0 0.0
      %1104 = vmatpush1.msra.mxu0 0.0
      %1105 = vmatprep.subr.mxu0 0.0
      %1106 = vmatpush1.msra.mxu0 0.0
      %1107 = vmatprep.subr.mxu0 0.0
      %1108 = vmatpush1.msra.mxu0 0.0
      %1109 = vmatprep.subr.mxu0 0.0
      %1110 = vmatpush1.msra.mxu0 0.0
      %1111 = vmatprep.subr.mxu0 0.0
      %1112 = vmatpush1.msra.mxu0 0.0
      %1113 = vmatprep.subr.mxu0 0.0
      %1114 = vmatpush1.msra.mxu0 0.0
      %1115 = vmatprep.subr.mxu0 0.0
      %1116 = vmatpush1.msra.mxu0 0.0
      %1117 = vmatprep.subr.mxu0 0.0
      %1118 = vmatpush1.msra.mxu0 0.0
      %1119 = vmatprep.subr.mxu0 0.0
      %1120 = vmatpush1.msra.mxu0 0.0
      %1121 = vmatprep.subr.mxu0 0.0
      %1122 = vmatpush1.msra.mxu0 0.0
      %1123 = vmatprep.subr.mxu0 0.0
      %1124 = vmatpush1.msra.mxu0 0.0
      %1125 = vmatprep.subr.mxu0 0.0
      %1126 = vmatpush1.msra.mxu0 0.0
      %1127 = vmatprep.subr.mxu0 0.0
      %1128 = vmatpush1.msra.mxu0 0.0
      %1129 = vmatprep.subr.mxu0 0.0
      %1130 = vmatpush1.msra.mxu0 0.0
      %1131 = vmatprep.mubr.f32.mxu0 0.0
      %v1132 = vand.u32 %v366, 4294901760
      %1133 = vmatmul.mubr.f32.gmra.mrb[0].mxu0 %v1132
      %v1134 = vpop.f32.mrb[0].mxu0
      %v1135 = vadd.f32 %v1030, %v1134
      %v1136 = vpop.f32.mrb[0].mxu0
      %1137 = vmatprep.mubr.f32.mxu0 0.0
      %v1138 = vand.u32 %v367, 4294901760
      %1139 = vmatmul.mubr.f32.gmra.mrb[0].mxu0 %v1138
      %v1140 = vpop.f32.mrb[0].mxu0
      %v1141 = vadd.f32 %v1036, %v1140
      %v1142 = vpop.f32.mrb[0].mxu0
      %1143 = vmatprep.mubr.f32.mxu0 0.0
      %v1144 = vand.u32 %v368, 4294901760
      %1145 = vmatmul.mubr.f32.gmra.mrb[0].mxu0 %v1144
      %v1146 = vpop.f32.mrb[0].mxu0
      %v1147 = vadd.f32 %v1042, %v1146
      %v1148 = vpop.f32.mrb[0].mxu0
      %1149 = vmatprep.mubr.f32.mxu0 0.0
      %v1150 = vand.u32 %v369, 4294901760
      %1151 = vmatmul.mubr.f32.gmra.mrb[0].mxu0 %v1150
      %v1152 = vpop.f32.mrb[0].mxu0
      %v1153 = vadd.f32 %v1048, %v1152
      %v1154 = vpop.f32.mrb[0].mxu0
      %1155 = vdwg.mxu0
      %v1156 = vadd.f32 %v347, %v1135
      %v1157 = vadd.f32 %v347, %v1141
      %v1158 = vadd.f32 %v347, %v1147
      %v1159 = vadd.f32 %v347, %v1153
      %s1160 = scalar_lea.vmem %s1, 128
      %v1161 = vld [vmem:[%s1160] sm:$0xff]
      %v1162 = vld [vmem:[%s1160 + $0x8] sm:$0xff]
      %v1163 = vld [vmem:[%s1160 + $0x10] sm:$0xff]
      %v1164 = vld [vmem:[%s1160 + $0x18] sm:$0xff]
      %v1165 = vld [vmem:[%s1160 + $0x20] sm:$0xff]
      %v1166 = vld [vmem:[%s1160 + $0x28] sm:$0xff]
      %v1167 = vld [vmem:[%s1160 + $0x30] sm:$0xff]
      %v1168 = vld [vmem:[%s1160 + $0x38] sm:$0xff]
      %v1169 = vld [vmem:[%s1160 + $0x40] sm:$0xff]
      %v1170 = vld [vmem:[%s1160 + $0x48] sm:$0xff]
      %v1171 = vld [vmem:[%s1160 + $0x50] sm:$0xff]
      %v1172 = vld [vmem:[%s1160 + $0x58] sm:$0xff]
      %v1173 = vld [vmem:[%s1160 + $0x60] sm:$0xff]
      %v1174 = vld [vmem:[%s1160 + $0x68] sm:$0xff]
      %v1175 = vld [vmem:[%s1160 + $0x70] sm:$0xff]
      %v1176 = vld [vmem:[%s1160 + $0x78] sm:$0xff]
      %1177 = vmatprep.subr.mxu0 0.0
      %v1178 = vand.u32 %v1161, 4294901760
      %1179 = vmatpush1.msra.mxu0 %v1178
      %1180 = vmatprep.subr.mxu0 0.0
      %v1181 = vand.u32 %v1162, 4294901760
      %1182 = vmatpush1.msra.mxu0 %v1181
      %1183 = vmatprep.subr.mxu0 0.0
      %v1184 = vand.u32 %v1163, 4294901760
      %1185 = vmatpush1.msra.mxu0 %v1184
      %1186 = vmatprep.subr.mxu0 0.0
      %v1187 = vand.u32 %v1164, 4294901760
      %1188 = vmatpush1.msra.mxu0 %v1187
      %1189 = vmatprep.subr.mxu0 0.0
      %v1190 = vand.u32 %v1165, 4294901760
      %1191 = vmatpush1.msra.mxu0 %v1190
      %1192 = vmatprep.subr.mxu0 0.0
      %v1193 = vand.u32 %v1166, 4294901760
      %1194 = vmatpush1.msra.mxu0 %v1193
      %1195 = vmatprep.subr.mxu0 0.0
      %v1196 = vand.u32 %v1167, 4294901760
      %1197 = vmatpush1.msra.mxu0 %v1196
      %1198 = vmatprep.subr.mxu0 0.0
      %v1199 = vand.u32 %v1168, 4294901760
      %1200 = vmatpush1.msra.mxu0 %v1199
      %1201 = vmatprep.subr.mxu0 0.0
      %v1202 = vand.u32 %v1169, 4294901760
      %1203 = vmatpush1.msra.mxu0 %v1202
      %1204 = vmatprep.subr.mxu0 0.0
      %v1205 = vand.u32 %v1170, 4294901760
      %1206 = vmatpush1.msra.mxu0 %v1205
      %1207 = vmatprep.subr.mxu0 0.0
      %v1208 = vand.u32 %v1171, 4294901760
      %1209 = vmatpush1.msra.mxu0 %v1208
      %1210 = vmatprep.subr.mxu0 0.0
      %v1211 = vand.u32 %v1172, 4294901760
      %1212 = vmatpush1.msra.mxu0 %v1211
      %1213 = vmatprep.subr.mxu0 0.0
      %v1214 = vand.u32 %v1173, 4294901760
      %1215 = vmatpush1.msra.mxu0 %v1214
      %1216 = vmatprep.subr.mxu0 0.0
      %v1217 = vand.u32 %v1174, 4294901760
      %1218 = vmatpush1.msra.mxu0 %v1217
      %1219 = vmatprep.subr.mxu0 0.0
      %v1220 = vand.u32 %v1175, 4294901760
      %1221 = vmatpush1.msra.mxu0 %v1220
      %1222 = vmatprep.subr.mxu0 0.0
      %v1223 = vand.u32 %v1176, 4294901760
      %1224 = vmatpush1.msra.mxu0 %v1223
      %1225 = vmatprep.subr.mxu0 0.0
      %1226 = vmatpush1.msra.mxu0 0.0
      %1227 = vmatprep.subr.mxu0 0.0
      %1228 = vmatpush1.msra.mxu0 0.0
      %1229 = vmatprep.subr.mxu0 0.0
      %1230 = vmatpush1.msra.mxu0 0.0
      %1231 = vmatprep.subr.mxu0 0.0
      %1232 = vmatpush1.msra.mxu0 0.0
      %1233 = vmatprep.subr.mxu0 0.0
      %1234 = vmatpush1.msra.mxu0 0.0
      %1235 = vmatprep.subr.mxu0 0.0
      %1236 = vmatpush1.msra.mxu0 0.0
      %1237 = vmatprep.subr.mxu0 0.0
      %1238 = vmatpush1.msra.mxu0 0.0
      %1239 = vmatprep.subr.mxu0 0.0
      %1240 = vmatpush1.msra.mxu0 0.0
      %1241 = vmatprep.subr.mxu0 0.0
      %1242 = vmatpush1.msra.mxu0 0.0
      %1243 = vmatprep.subr.mxu0 0.0
      %1244 = vmatpush1.msra.mxu0 0.0
      %1245 = vmatprep.subr.mxu0 0.0
      %1246 = vmatpush1.msra.mxu0 0.0
      %1247 = vmatprep.subr.mxu0 0.0
      %1248 = vmatpush1.msra.mxu0 0.0
      %1249 = vmatprep.subr.mxu0 0.0
      %1250 = vmatpush1.msra.mxu0 0.0
      %1251 = vmatprep.subr.mxu0 0.0
      %1252 = vmatpush1.msra.mxu0 0.0
      %1253 = vmatprep.subr.mxu0 0.0
      %1254 = vmatpush1.msra.mxu0 0.0
      %1255 = vmatprep.subr.mxu0 0.0
      %1256 = vmatpush1.msra.mxu0 0.0
      %1257 = vmatprep.mubr.f32.mxu0 0.0
      %v1258 = vand.u32 %v339, 4294901760
      %v1259 = vsub.f32 %v339, %v1258
      %v1260 = vand.u32 %v1259, 4294901760
      %v1261 = vsub.f32 %v1259, %v1260
      %v1262 = vand.u32 %v1261, 4294901760
      %1263 = vmatmul.mubr.f32.gmra.mrb[0].mxu0 %v1262
      %v1264 = vpop.f32.mrb[0].mxu0
      %v1265 = vadd.f32 0.0, %v1264
      %v1266 = vpop.f32.mrb[0].mxu0
      %1267 = vmatprep.mubr.f32.mxu0 0.0
      %v1268 = vand.u32 %v340, 4294901760
      %v1269 = vsub.f32 %v340, %v1268
      %v1270 = vand.u32 %v1269, 4294901760
      %v1271 = vsub.f32 %v1269, %v1270
      %v1272 = vand.u32 %v1271, 4294901760
      %1273 = vmatmul.mubr.f32.gmra.mrb[0].mxu0 %v1272
      %v1274 = vpop.f32.mrb[0].mxu0
      %v1275 = vadd.f32 0.0, %v1274
      %v1276 = vpop.f32.mrb[0].mxu0
      %1277 = vmatprep.mubr.f32.mxu0 0.0
      %v1278 = vand.u32 %v341, 4294901760
      %v1279 = vsub.f32 %v341, %v1278
      %v1280 = vand.u32 %v1279, 4294901760
      %v1281 = vsub.f32 %v1279, %v1280
      %v1282 = vand.u32 %v1281, 4294901760
      %1283 = vmatmul.mubr.f32.gmra.mrb[0].mxu0 %v1282
      %v1284 = vpop.f32.mrb[0].mxu0
      %v1285 = vadd.f32 0.0, %v1284
      %v1286 = vpop.f32.mrb[0].mxu0
      %1287 = vmatprep.mubr.f32.mxu0 0.0
      %v1288 = vand.u32 %v342, 4294901760
      %v1289 = vsub.f32 %v342, %v1288
      %v1290 = vand.u32 %v1289, 4294901760
      %v1291 = vsub.f32 %v1289, %v1290
      %v1292 = vand.u32 %v1291, 4294901760
      %1293 = vmatmul.mubr.f32.gmra.mrb[0].mxu0 %v1292
      %v1294 = vpop.f32.mrb[0].mxu0
      %v1295 = vadd.f32 0.0, %v1294
      %v1296 = vpop.f32.mrb[0].mxu0
      %1297 = vdwg.mxu0
      %1298 = vmatprep.subr.mxu0 0.0
      %v1299 = vand.u32 %v1161, 4294901760
      %v1300 = vsub.f32 %v1161, %v1299
      %v1301 = vand.u32 %v1300, 4294901760
      %v1302 = vsub.f32 %v1300, %v1301
      %v1303 = vand.u32 %v1302, 4294901760
      %1304 = vmatpush1.msra.mxu0 %v1303
      %1305 = vmatprep.subr.mxu0 0.0
      %v1306 = vand.u32 %v1162, 4294901760
      %v1307 = vsub.f32 %v1162, %v1306
      %v1308 = vand.u32 %v1307, 4294901760
      %v1309 = vsub.f32 %v1307, %v1308
      %v1310 = vand.u32 %v1309, 4294901760
      %1311 = vmatpush1.msra.mxu0 %v1310
      %1312 = vmatprep.subr.mxu0 0.0
      %v1313 = vand.u32 %v1163, 4294901760
      %v1314 = vsub.f32 %v1163, %v1313
      %v1315 = vand.u32 %v1314, 4294901760
      %v1316 = vsub.f32 %v1314, %v1315
      %v1317 = vand.u32 %v1316, 4294901760
      %1318 = vmatpush1.msra.mxu0 %v1317
      %1319 = vmatprep.subr.mxu0 0.0
      %v1320 = vand.u32 %v1164, 4294901760
      %v1321 = vsub.f32 %v1164, %v1320
      %v1322 = vand.u32 %v1321, 4294901760
      %v1323 = vsub.f32 %v1321, %v1322
      %v1324 = vand.u32 %v1323, 4294901760
      %1325 = vmatpush1.msra.mxu0 %v1324
      %1326 = vmatprep.subr.mxu0 0.0
      %v1327 = vand.u32 %v1165, 4294901760
      %v1328 = vsub.f32 %v1165, %v1327
      %v1329 = vand.u32 %v1328, 4294901760
      %v1330 = vsub.f32 %v1328, %v1329
      %v1331 = vand.u32 %v1330, 4294901760
      %1332 = vmatpush1.msra.mxu0 %v1331
      %1333 = vmatprep.subr.mxu0 0.0
      %v1334 = vand.u32 %v1166, 4294901760
      %v1335 = vsub.f32 %v1166, %v1334
      %v1336 = vand.u32 %v1335, 4294901760
      %v1337 = vsub.f32 %v1335, %v1336
      %v1338 = vand.u32 %v1337, 4294901760
      %1339 = vmatpush1.msra.mxu0 %v1338
      %1340 = vmatprep.subr.mxu0 0.0
      %v1341 = vand.u32 %v1167, 4294901760
      %v1342 = vsub.f32 %v1167, %v1341
      %v1343 = vand.u32 %v1342, 4294901760
      %v1344 = vsub.f32 %v1342, %v1343
      %v1345 = vand.u32 %v1344, 4294901760
      %1346 = vmatpush1.msra.mxu0 %v1345
      %1347 = vmatprep.subr.mxu0 0.0
      %v1348 = vand.u32 %v1168, 4294901760
      %v1349 = vsub.f32 %v1168, %v1348
      %v1350 = vand.u32 %v1349, 4294901760
      %v1351 = vsub.f32 %v1349, %v1350
      %v1352 = vand.u32 %v1351, 4294901760
      %1353 = vmatpush1.msra.mxu0 %v1352
      %1354 = vmatprep.subr.mxu0 0.0
      %v1355 = vand.u32 %v1169, 4294901760
      %v1356 = vsub.f32 %v1169, %v1355
      %v1357 = vand.u32 %v1356, 4294901760
      %v1358 = vsub.f32 %v1356, %v1357
      %v1359 = vand.u32 %v1358, 4294901760
      %1360 = vmatpush1.msra.mxu0 %v1359
      %1361 = vmatprep.subr.mxu0 0.0
      %v1362 = vand.u32 %v1170, 4294901760
      %v1363 = vsub.f32 %v1170, %v1362
      %v1364 = vand.u32 %v1363, 4294901760
      %v1365 = vsub.f32 %v1363, %v1364
      %v1366 = vand.u32 %v1365, 4294901760
      %1367 = vmatpush1.msra.mxu0 %v1366
      %1368 = vmatprep.subr.mxu0 0.0
      %v1369 = vand.u32 %v1171, 4294901760
      %v1370 = vsub.f32 %v1171, %v1369
      %v1371 = vand.u32 %v1370, 4294901760
      %v1372 = vsub.f32 %v1370, %v1371
      %v1373 = vand.u32 %v1372, 4294901760
      %1374 = vmatpush1.msra.mxu0 %v1373
      %1375 = vmatprep.subr.mxu0 0.0
      %v1376 = vand.u32 %v1172, 4294901760
      %v1377 = vsub.f32 %v1172, %v1376
      %v1378 = vand.u32 %v1377, 4294901760
      %v1379 = vsub.f32 %v1377, %v1378
      %v1380 = vand.u32 %v1379, 4294901760
      %1381 = vmatpush1.msra.mxu0 %v1380
      %1382 = vmatprep.subr.mxu0 0.0
      %v1383 = vand.u32 %v1173, 4294901760
      %v1384 = vsub.f32 %v1173, %v1383
      %v1385 = vand.u32 %v1384, 4294901760
      %v1386 = vsub.f32 %v1384, %v1385
      %v1387 = vand.u32 %v1386, 4294901760
      %1388 = vmatpush1.msra.mxu0 %v1387
      %1389 = vmatprep.subr.mxu0 0.0
      %v1390 = vand.u32 %v1174, 4294901760
      %v1391 = vsub.f32 %v1174, %v1390
      %v1392 = vand.u32 %v1391, 4294901760
      %v1393 = vsub.f32 %v1391, %v1392
      %v1394 = vand.u32 %v1393, 4294901760
      %1395 = vmatpush1.msra.mxu0 %v1394
      %1396 = vmatprep.subr.mxu0 0.0
      %v1397 = vand.u32 %v1175, 4294901760
      %v1398 = vsub.f32 %v1175, %v1397
      %v1399 = vand.u32 %v1398, 4294901760
      %v1400 = vsub.f32 %v1398, %v1399
      %v1401 = vand.u32 %v1400, 4294901760
      %1402 = vmatpush1.msra.mxu0 %v1401
      %1403 = vmatprep.subr.mxu0 0.0
      %v1404 = vand.u32 %v1176, 4294901760
      %v1405 = vsub.f32 %v1176, %v1404
      %v1406 = vand.u32 %v1405, 4294901760
      %v1407 = vsub.f32 %v1405, %v1406
      %v1408 = vand.u32 %v1407, 4294901760
      %1409 = vmatpush1.msra.mxu0 %v1408
      %1410 = vmatprep.subr.mxu0 0.0
      %1411 = vmatpush1.msra.mxu0 0.0
      %1412 = vmatprep.subr.mxu0 0.0
      %1413 = vmatpush1.msra.mxu0 0.0
      %1414 = vmatprep.subr.mxu0 0.0
      %1415 = vmatpush1.msra.mxu0 0.0
      %1416 = vmatprep.subr.mxu0 0.0
      %1417 = vmatpush1.msra.mxu0 0.0
      %1418 = vmatprep.subr.mxu0 0.0
      %1419 = vmatpush1.msra.mxu0 0.0
      %1420 = vmatprep.subr.mxu0 0.0
      %1421 = vmatpush1.msra.mxu0 0.0
      %1422 = vmatprep.subr.mxu0 0.0
      %1423 = vmatpush1.msra.mxu0 0.0
      %1424 = vmatprep.subr.mxu0 0.0
      %1425 = vmatpush1.msra.mxu0 0.0
      %1426 = vmatprep.subr.mxu0 0.0
      %1427 = vmatpush1.msra.mxu0 0.0
      %1428 = vmatprep.subr.mxu0 0.0
      %1429 = vmatpush1.msra.mxu0 0.0
      %1430 = vmatprep.subr.mxu0 0.0
      %1431 = vmatpush1.msra.mxu0 0.0
      %1432 = vmatprep.subr.mxu0 0.0
      %1433 = vmatpush1.msra.mxu0 0.0
      %1434 = vmatprep.subr.mxu0 0.0
      %1435 = vmatpush1.msra.mxu0 0.0
      %1436 = vmatprep.subr.mxu0 0.0
      %1437 = vmatpush1.msra.mxu0 0.0
      %1438 = vmatprep.subr.mxu0 0.0
      %1439 = vmatpush1.msra.mxu0 0.0
      %1440 = vmatprep.subr.mxu0 0.0
      %1441 = vmatpush1.msra.mxu0 0.0
      %1442 = vmatprep.mubr.f32.mxu0 0.0
      %v1443 = vand.u32 %v339, 4294901760
      %1444 = vmatmul.mubr.f32.gmra.mrb[0].mxu0 %v1443
      %v1445 = vpop.f32.mrb[0].mxu0
      %v1446 = vadd.f32 %v1265, %v1445
      %v1447 = vpop.f32.mrb[0].mxu0
      %1448 = vmatprep.mubr.f32.mxu0 0.0
      %v1449 = vand.u32 %v340, 4294901760
      %1450 = vmatmul.mubr.f32.gmra.mrb[0].mxu0 %v1449
      %v1451 = vpop.f32.mrb[0].mxu0
      %v1452 = vadd.f32 %v1275, %v1451
      %v1453 = vpop.f32.mrb[0].mxu0
      %1454 = vmatprep.mubr.f32.mxu0 0.0
      %v1455 = vand.u32 %v341, 4294901760
      %1456 = vmatmul.mubr.f32.gmra.mrb[0].mxu0 %v1455
      %v1457 = vpop.f32.mrb[0].mxu0
      %v1458 = vadd.f32 %v1285, %v1457
      %v1459 = vpop.f32.mrb[0].mxu0
      %1460 = vmatprep.mubr.f32.mxu0 0.0
      %v1461 = vand.u32 %v342, 4294901760
      %1462 = vmatmul.mubr.f32.gmra.mrb[0].mxu0 %v1461
      %v1463 = vpop.f32.mrb[0].mxu0
      %v1464 = vadd.f32 %v1295, %v1463
      %v1465 = vpop.f32.mrb[0].mxu0
      %1466 = vdwg.mxu0
      %1467 = vmatprep.subr.mxu0 0.0
      %v1468 = vand.u32 %v1161, 4294901760
      %v1469 = vsub.f32 %v1161, %v1468
      %1470 = vmatpush1.msra.mxu0 %v1469
      %1471 = vmatprep.subr.mxu0 0.0
      %v1472 = vand.u32 %v1162, 4294901760
      %v1473 = vsub.f32 %v1162, %v1472
      %1474 = vmatpush1.msra.mxu0 %v1473
      %1475 = vmatprep.subr.mxu0 0.0
      %v1476 = vand.u32 %v1163, 4294901760
      %v1477 = vsub.f32 %v1163, %v1476
      %1478 = vmatpush1.msra.mxu0 %v1477
      %1479 = vmatprep.subr.mxu0 0.0
      %v1480 = vand.u32 %v1164, 4294901760
      %v1481 = vsub.f32 %v1164, %v1480
      %1482 = vmatpush1.msra.mxu0 %v1481
      %1483 = vmatprep.subr.mxu0 0.0
      %v1484 = vand.u32 %v1165, 4294901760
      %v1485 = vsub.f32 %v1165, %v1484
      %1486 = vmatpush1.msra.mxu0 %v1485
      %1487 = vmatprep.subr.mxu0 0.0
      %v1488 = vand.u32 %v1166, 4294901760
      %v1489 = vsub.f32 %v1166, %v1488
      %1490 = vmatpush1.msra.mxu0 %v1489
      %1491 = vmatprep.subr.mxu0 0.0
      %v1492 = vand.u32 %v1167, 4294901760
      %v1493 = vsub.f32 %v1167, %v1492
      %1494 = vmatpush1.msra.mxu0 %v1493
      %1495 = vmatprep.subr.mxu0 0.0
      %v1496 = vand.u32 %v1168, 4294901760
      %v1497 = vsub.f32 %v1168, %v1496
      %1498 = vmatpush1.msra.mxu0 %v1497
      %1499 = vmatprep.subr.mxu0 0.0
      %v1500 = vand.u32 %v1169, 4294901760
      %v1501 = vsub.f32 %v1169, %v1500
      %1502 = vmatpush1.msra.mxu0 %v1501
      %1503 = vmatprep.subr.mxu0 0.0
      %v1504 = vand.u32 %v1170, 4294901760
      %v1505 = vsub.f32 %v1170, %v1504
      %1506 = vmatpush1.msra.mxu0 %v1505
      %1507 = vmatprep.subr.mxu0 0.0
      %v1508 = vand.u32 %v1171, 4294901760
      %v1509 = vsub.f32 %v1171, %v1508
      %1510 = vmatpush1.msra.mxu0 %v1509
      %1511 = vmatprep.subr.mxu0 0.0
      %v1512 = vand.u32 %v1172, 4294901760
      %v1513 = vsub.f32 %v1172, %v1512
      %1514 = vmatpush1.msra.mxu0 %v1513
      %1515 = vmatprep.subr.mxu0 0.0
      %v1516 = vand.u32 %v1173, 4294901760
      %v1517 = vsub.f32 %v1173, %v1516
      %1518 = vmatpush1.msra.mxu0 %v1517
      %1519 = vmatprep.subr.mxu0 0.0
      %v1520 = vand.u32 %v1174, 4294901760
      %v1521 = vsub.f32 %v1174, %v1520
      %1522 = vmatpush1.msra.mxu0 %v1521
      %1523 = vmatprep.subr.mxu0 0.0
      %v1524 = vand.u32 %v1175, 4294901760
      %v1525 = vsub.f32 %v1175, %v1524
      %1526 = vmatpush1.msra.mxu0 %v1525
      %1527 = vmatprep.subr.mxu0 0.0
      %v1528 = vand.u32 %v1176, 4294901760
      %v1529 = vsub.f32 %v1176, %v1528
      %1530 = vmatpush1.msra.mxu0 %v1529
      %1531 = vmatprep.subr.mxu0 0.0
      %1532 = vmatpush1.msra.mxu0 0.0
      %1533 = vmatprep.subr.mxu0 0.0
      %1534 = vmatpush1.msra.mxu0 0.0
      %1535 = vmatprep.subr.mxu0 0.0
      %1536 = vmatpush1.msra.mxu0 0.0
      %1537 = vmatprep.subr.mxu0 0.0
      %1538 = vmatpush1.msra.mxu0 0.0
      %1539 = vmatprep.subr.mxu0 0.0
      %1540 = vmatpush1.msra.mxu0 0.0
      %1541 = vmatprep.subr.mxu0 0.0
      %1542 = vmatpush1.msra.mxu0 0.0
      %1543 = vmatprep.subr.mxu0 0.0
      %1544 = vmatpush1.msra.mxu0 0.0
      %1545 = vmatprep.subr.mxu0 0.0
      %1546 = vmatpush1.msra.mxu0 0.0
      %1547 = vmatprep.subr.mxu0 0.0
      %1548 = vmatpush1.msra.mxu0 0.0
      %1549 = vmatprep.subr.mxu0 0.0
      %1550 = vmatpush1.msra.mxu0 0.0
      %1551 = vmatprep.subr.mxu0 0.0
      %1552 = vmatpush1.msra.mxu0 0.0
      %1553 = vmatprep.subr.mxu0 0.0
      %1554 = vmatpush1.msra.mxu0 0.0
      %1555 = vmatprep.subr.mxu0 0.0
      %1556 = vmatpush1.msra.mxu0 0.0
      %1557 = vmatprep.subr.mxu0 0.0
      %1558 = vmatpush1.msra.mxu0 0.0
      %1559 = vmatprep.subr.mxu0 0.0
      %1560 = vmatpush1.msra.mxu0 0.0
      %1561 = vmatprep.subr.mxu0 0.0
      %1562 = vmatpush1.msra.mxu0 0.0
      %1563 = vmatprep.mubr.f32.mxu0 0.0
      %v1564 = vand.u32 %v339, 4294901760
      %v1565 = vsub.f32 %v339, %v1564
      %1566 = vmatmul.mubr.f32.gmra.mrb[0].mxu0 %v1565
      %v1567 = vpop.f32.mrb[0].mxu0
      %v1568 = vadd.f32 %v1446, %v1567
      %v1569 = vpop.f32.mrb[0].mxu0
      %1570 = vmatprep.mubr.f32.mxu0 0.0
      %v1571 = vand.u32 %v340, 4294901760
      %v1572 = vsub.f32 %v340, %v1571
      %1573 = vmatmul.mubr.f32.gmra.mrb[0].mxu0 %v1572
      %v1574 = vpop.f32.mrb[0].mxu0
      %v1575 = vadd.f32 %v1452, %v1574
      %v1576 = vpop.f32.mrb[0].mxu0
      %1577 = vmatprep.mubr.f32.mxu0 0.0
      %v1578 = vand.u32 %v341, 4294901760
      %v1579 = vsub.f32 %v341, %v1578
      %1580 = vmatmul.mubr.f32.gmra.mrb[0].mxu0 %v1579
      %v1581 = vpop.f32.mrb[0].mxu0
      %v1582 = vadd.f32 %v1458, %v1581
      %v1583 = vpop.f32.mrb[0].mxu0
      %1584 = vmatprep.mubr.f32.mxu0 0.0
      %v1585 = vand.u32 %v342, 4294901760
      %v1586 = vsub.f32 %v342, %v1585
      %1587 = vmatmul.mubr.f32.gmra.mrb[0].mxu0 %v1586
      %v1588 = vpop.f32.mrb[0].mxu0
      %v1589 = vadd.f32 %v1464, %v1588
      %v1590 = vpop.f32.mrb[0].mxu0
      %1591 = vdwg.mxu0
      %1592 = vmatprep.subr.mxu0 0.0
      %v1593 = vand.u32 %v1161, 4294901760
      %1594 = vmatpush1.msra.mxu0 %v1593
      %1595 = vmatprep.subr.mxu0 0.0
      %v1596 = vand.u32 %v1162, 4294901760
      %1597 = vmatpush1.msra.mxu0 %v1596
      %1598 = vmatprep.subr.mxu0 0.0
      %v1599 = vand.u32 %v1163, 4294901760
      %1600 = vmatpush1.msra.mxu0 %v1599
      %1601 = vmatprep.subr.mxu0 0.0
      %v1602 = vand.u32 %v1164, 4294901760
      %1603 = vmatpush1.msra.mxu0 %v1602
      %1604 = vmatprep.subr.mxu0 0.0
      %v1605 = vand.u32 %v1165, 4294901760
      %1606 = vmatpush1.msra.mxu0 %v1605
      %1607 = vmatprep.subr.mxu0 0.0
      %v1608 = vand.u32 %v1166, 4294901760
      %1609 = vmatpush1.msra.mxu0 %v1608
      %1610 = vmatprep.subr.mxu0 0.0
      %v1611 = vand.u32 %v1167, 4294901760
      %1612 = vmatpush1.msra.mxu0 %v1611
      %1613 = vmatprep.subr.mxu0 0.0
      %v1614 = vand.u32 %v1168, 4294901760
      %1615 = vmatpush1.msra.mxu0 %v1614
      %1616 = vmatprep.subr.mxu0 0.0
      %v1617 = vand.u32 %v1169, 4294901760
      %1618 = vmatpush1.msra.mxu0 %v1617
      %1619 = vmatprep.subr.mxu0 0.0
      %v1620 = vand.u32 %v1170, 4294901760
      %1621 = vmatpush1.msra.mxu0 %v1620
      %1622 = vmatprep.subr.mxu0 0.0
      %v1623 = vand.u32 %v1171, 4294901760
      %1624 = vmatpush1.msra.mxu0 %v1623
      %1625 = vmatprep.subr.mxu0 0.0
      %v1626 = vand.u32 %v1172, 4294901760
      %1627 = vmatpush1.msra.mxu0 %v1626
      %1628 = vmatprep.subr.mxu0 0.0
      %v1629 = vand.u32 %v1173, 4294901760
      %1630 = vmatpush1.msra.mxu0 %v1629
      %1631 = vmatprep.subr.mxu0 0.0
      %v1632 = vand.u32 %v1174, 4294901760
      %1633 = vmatpush1.msra.mxu0 %v1632
      %1634 = vmatprep.subr.mxu0 0.0
      %v1635 = vand.u32 %v1175, 4294901760
      %1636 = vmatpush1.msra.mxu0 %v1635
      %1637 = vmatprep.subr.mxu0 0.0
      %v1638 = vand.u32 %v1176, 4294901760
      %1639 = vmatpush1.msra.mxu0 %v1638
      %1640 = vmatprep.subr.mxu0 0.0
      %1641 = vmatpush1.msra.mxu0 0.0
      %1642 = vmatprep.subr.mxu0 0.0
      %1643 = vmatpush1.msra.mxu0 0.0
      %1644 = vmatprep.subr.mxu0 0.0
      %1645 = vmatpush1.msra.mxu0 0.0
      %1646 = vmatprep.subr.mxu0 0.0
      %1647 = vmatpush1.msra.mxu0 0.0
      %1648 = vmatprep.subr.mxu0 0.0
      %1649 = vmatpush1.msra.mxu0 0.0
      %1650 = vmatprep.subr.mxu0 0.0
      %1651 = vmatpush1.msra.mxu0 0.0
      %1652 = vmatprep.subr.mxu0 0.0
      %1653 = vmatpush1.msra.mxu0 0.0
      %1654 = vmatprep.subr.mxu0 0.0
      %1655 = vmatpush1.msra.mxu0 0.0
      %1656 = vmatprep.subr.mxu0 0.0
      %1657 = vmatpush1.msra.mxu0 0.0
      %1658 = vmatprep.subr.mxu0 0.0
      %1659 = vmatpush1.msra.mxu0 0.0
      %1660 = vmatprep.subr.mxu0 0.0
      %1661 = vmatpush1.msra.mxu0 0.0
      %1662 = vmatprep.subr.mxu0 0.0
      %1663 = vmatpush1.msra.mxu0 0.0
      %1664 = vmatprep.subr.mxu0 0.0
      %1665 = vmatpush1.msra.mxu0 0.0
      %1666 = vmatprep.subr.mxu0 0.0
      %1667 = vmatpush1.msra.mxu0 0.0
      %1668 = vmatprep.subr.mxu0 0.0
      %1669 = vmatpush1.msra.mxu0 0.0
      %1670 = vmatprep.subr.mxu0 0.0
      %1671 = vmatpush1.msra.mxu0 0.0
      %1672 = vmatprep.mubr.f32.mxu0 0.0
      %v1673 = vand.u32 %v339, 4294901760
      %v1674 = vsub.f32 %v339, %v1673
      %v1675 = vand.u32 %v1674, 4294901760
      %1676 = vmatmul.mubr.f32.gmra.mrb[0].mxu0 %v1675
      %v1677 = vpop.f32.mrb[0].mxu0
      %v1678 = vadd.f32 %v1568, %v1677
      %v1679 = vpop.f32.mrb[0].mxu0
      %1680 = vmatprep.mubr.f32.mxu0 0.0
      %v1681 = vand.u32 %v340, 4294901760
      %v1682 = vsub.f32 %v340, %v1681
      %v1683 = vand.u32 %v1682, 4294901760
      %1684 = vmatmul.mubr.f32.gmra.mrb[0].mxu0 %v1683
      %v1685 = vpop.f32.mrb[0].mxu0
      %v1686 = vadd.f32 %v1575, %v1685
      %v1687 = vpop.f32.mrb[0].mxu0
      %1688 = vmatprep.mubr.f32.mxu0 0.0
      %v1689 = vand.u32 %v341, 4294901760
      %v1690 = vsub.f32 %v341, %v1689
      %v1691 = vand.u32 %v1690, 4294901760
      %1692 = vmatmul.mubr.f32.gmra.mrb[0].mxu0 %v1691
      %v1693 = vpop.f32.mrb[0].mxu0
      %v1694 = vadd.f32 %v1582, %v1693
      %v1695 = vpop.f32.mrb[0].mxu0
      %1696 = vmatprep.mubr.f32.mxu0 0.0
      %v1697 = vand.u32 %v342, 4294901760
      %v1698 = vsub.f32 %v342, %v1697
      %v1699 = vand.u32 %v1698, 4294901760
      %1700 = vmatmul.mubr.f32.gmra.mrb[0].mxu0 %v1699
      %v1701 = vpop.f32.mrb[0].mxu0
      %v1702 = vadd.f32 %v1589, %v1701
      %v1703 = vpop.f32.mrb[0].mxu0
      %1704 = vdwg.mxu0
      %1705 = vmatprep.subr.mxu0 0.0
      %v1706 = vand.u32 %v1161, 4294901760
      %v1707 = vsub.f32 %v1161, %v1706
      %v1708 = vand.u32 %v1707, 4294901760
      %1709 = vmatpush1.msra.mxu0 %v1708
      %1710 = vmatprep.subr.mxu0 0.0
      %v1711 = vand.u32 %v1162, 4294901760
      %v1712 = vsub.f32 %v1162, %v1711
      %v1713 = vand.u32 %v1712, 4294901760
      %1714 = vmatpush1.msra.mxu0 %v1713
      %1715 = vmatprep.subr.mxu0 0.0
      %v1716 = vand.u32 %v1163, 4294901760
      %v1717 = vsub.f32 %v1163, %v1716
      %v1718 = vand.u32 %v1717, 4294901760
      %1719 = vmatpush1.msra.mxu0 %v1718
      %1720 = vmatprep.subr.mxu0 0.0
      %v1721 = vand.u32 %v1164, 4294901760
      %v1722 = vsub.f32 %v1164, %v1721
      %v1723 = vand.u32 %v1722, 4294901760
      %1724 = vmatpush1.msra.mxu0 %v1723
      %1725 = vmatprep.subr.mxu0 0.0
      %v1726 = vand.u32 %v1165, 4294901760
      %v1727 = vsub.f32 %v1165, %v1726
      %v1728 = vand.u32 %v1727, 4294901760
      %1729 = vmatpush1.msra.mxu0 %v1728
      %1730 = vmatprep.subr.mxu0 0.0
      %v1731 = vand.u32 %v1166, 4294901760
      %v1732 = vsub.f32 %v1166, %v1731
      %v1733 = vand.u32 %v1732, 4294901760
      %1734 = vmatpush1.msra.mxu0 %v1733
      %1735 = vmatprep.subr.mxu0 0.0
      %v1736 = vand.u32 %v1167, 4294901760
      %v1737 = vsub.f32 %v1167, %v1736
      %v1738 = vand.u32 %v1737, 4294901760
      %1739 = vmatpush1.msra.mxu0 %v1738
      %1740 = vmatprep.subr.mxu0 0.0
      %v1741 = vand.u32 %v1168, 4294901760
      %v1742 = vsub.f32 %v1168, %v1741
      %v1743 = vand.u32 %v1742, 4294901760
      %1744 = vmatpush1.msra.mxu0 %v1743
      %1745 = vmatprep.subr.mxu0 0.0
      %v1746 = vand.u32 %v1169, 4294901760
      %v1747 = vsub.f32 %v1169, %v1746
      %v1748 = vand.u32 %v1747, 4294901760
      %1749 = vmatpush1.msra.mxu0 %v1748
      %1750 = vmatprep.subr.mxu0 0.0
      %v1751 = vand.u32 %v1170, 4294901760
      %v1752 = vsub.f32 %v1170, %v1751
      %v1753 = vand.u32 %v1752, 4294901760
      %1754 = vmatpush1.msra.mxu0 %v1753
      %1755 = vmatprep.subr.mxu0 0.0
      %v1756 = vand.u32 %v1171, 4294901760
      %v1757 = vsub.f32 %v1171, %v1756
      %v1758 = vand.u32 %v1757, 4294901760
      %1759 = vmatpush1.msra.mxu0 %v1758
      %1760 = vmatprep.subr.mxu0 0.0
      %v1761 = vand.u32 %v1172, 4294901760
      %v1762 = vsub.f32 %v1172, %v1761
      %v1763 = vand.u32 %v1762, 4294901760
      %1764 = vmatpush1.msra.mxu0 %v1763
      %1765 = vmatprep.subr.mxu0 0.0
      %v1766 = vand.u32 %v1173, 4294901760
      %v1767 = vsub.f32 %v1173, %v1766
      %v1768 = vand.u32 %v1767, 4294901760
      %1769 = vmatpush1.msra.mxu0 %v1768
      %1770 = vmatprep.subr.mxu0 0.0
      %v1771 = vand.u32 %v1174, 4294901760
      %v1772 = vsub.f32 %v1174, %v1771
      %v1773 = vand.u32 %v1772, 4294901760
      %1774 = vmatpush1.msra.mxu0 %v1773
      %1775 = vmatprep.subr.mxu0 0.0
      %v1776 = vand.u32 %v1175, 4294901760
      %v1777 = vsub.f32 %v1175, %v1776
      %v1778 = vand.u32 %v1777, 4294901760
      %1779 = vmatpush1.msra.mxu0 %v1778
      %1780 = vmatprep.subr.mxu0 0.0
      %v1781 = vand.u32 %v1176, 4294901760
      %v1782 = vsub.f32 %v1176, %v1781
      %v1783 = vand.u32 %v1782, 4294901760
      %1784 = vmatpush1.msra.mxu0 %v1783
      %1785 = vmatprep.subr.mxu0 0.0
      %1786 = vmatpush1.msra.mxu0 0.0
      %1787 = vmatprep.subr.mxu0 0.0
      %1788 = vmatpush1.msra.mxu0 0.0
      %1789 = vmatprep.subr.mxu0 0.0
      %1790 = vmatpush1.msra.mxu0 0.0
      %1791 = vmatprep.subr.mxu0 0.0
      %1792 = vmatpush1.msra.mxu0 0.0
      %1793 = vmatprep.subr.mxu0 0.0
      %1794 = vmatpush1.msra.mxu0 0.0
      %1795 = vmatprep.subr.mxu0 0.0
      %1796 = vmatpush1.msra.mxu0 0.0
      %1797 = vmatprep.subr.mxu0 0.0
      %1798 = vmatpush1.msra.mxu0 0.0
      %1799 = vmatprep.subr.mxu0 0.0
      %1800 = vmatpush1.msra.mxu0 0.0
      %1801 = vmatprep.subr.mxu0 0.0
      %1802 = vmatpush1.msra.mxu0 0.0
      %1803 = vmatprep.subr.mxu0 0.0
      %1804 = vmatpush1.msra.mxu0 0.0
      %1805 = vmatprep.subr.mxu0 0.0
      %1806 = vmatpush1.msra.mxu0 0.0
      %1807 = vmatprep.subr.mxu0 0.0
      %1808 = vmatpush1.msra.mxu0 0.0
      %1809 = vmatprep.subr.mxu0 0.0
      %1810 = vmatpush1.msra.mxu0 0.0
      %1811 = vmatprep.subr.mxu0 0.0
      %1812 = vmatpush1.msra.mxu0 0.0
      %1813 = vmatprep.subr.mxu0 0.0
      %1814 = vmatpush1.msra.mxu0 0.0
      %1815 = vmatprep.subr.mxu0 0.0
      %1816 = vmatpush1.msra.mxu0 0.0
      %1817 = vmatprep.mubr.f32.mxu0 0.0
      %v1818 = vand.u32 %v339, 4294901760
      %1819 = vmatmul.mubr.f32.gmra.mrb[0].mxu0 %v1818
      %v1820 = vpop.f32.mrb[0].mxu0
      %v1821 = vadd.f32 %v1678, %v1820
      %v1822 = vpop.f32.mrb[0].mxu0
      %1823 = vmatprep.mubr.f32.mxu0 0.0
      %v1824 = vand.u32 %v340, 4294901760
      %1825 = vmatmul.mubr.f32.gmra.mrb[0].mxu0 %v1824
      %v1826 = vpop.f32.mrb[0].mxu0
      %v1827 = vadd.f32 %v1686, %v1826
      %v1828 = vpop.f32.mrb[0].mxu0
      %1829 = vmatprep.mubr.f32.mxu0 0.0
      %v1830 = vand.u32 %v341, 4294901760
      %1831 = vmatmul.mubr.f32.gmra.mrb[0].mxu0 %v1830
      %v1832 = vpop.f32.mrb[0].mxu0
      %v1833 = vadd.f32 %v1694, %v1832
      %v1834 = vpop.f32.mrb[0].mxu0
      %1835 = vmatprep.mubr.f32.mxu0 0.0
      %v1836 = vand.u32 %v342, 4294901760
      %1837 = vmatmul.mubr.f32.gmra.mrb[0].mxu0 %v1836
      %v1838 = vpop.f32.mrb[0].mxu0
      %v1839 = vadd.f32 %v1702, %v1838
      %v1840 = vpop.f32.mrb[0].mxu0
      %1841 = vdwg.mxu0
      %1842 = vmatprep.subr.mxu0 0.0
      %v1843 = vand.u32 %v1161, 4294901760
      %1844 = vmatpush1.msra.mxu0 %v1843
      %1845 = vmatprep.subr.mxu0 0.0
      %v1846 = vand.u32 %v1162, 4294901760
      %1847 = vmatpush1.msra.mxu0 %v1846
      %1848 = vmatprep.subr.mxu0 0.0
      %v1849 = vand.u32 %v1163, 4294901760
      %1850 = vmatpush1.msra.mxu0 %v1849
      %1851 = vmatprep.subr.mxu0 0.0
      %v1852 = vand.u32 %v1164, 4294901760
      %1853 = vmatpush1.msra.mxu0 %v1852
      %1854 = vmatprep.subr.mxu0 0.0
      %v1855 = vand.u32 %v1165, 4294901760
      %1856 = vmatpush1.msra.mxu0 %v1855
      %1857 = vmatprep.subr.mxu0 0.0
      %v1858 = vand.u32 %v1166, 4294901760
      %1859 = vmatpush1.msra.mxu0 %v1858
      %1860 = vmatprep.subr.mxu0 0.0
      %v1861 = vand.u32 %v1167, 4294901760
      %1862 = vmatpush1.msra.mxu0 %v1861
      %1863 = vmatprep.subr.mxu0 0.0
      %v1864 = vand.u32 %v1168, 4294901760
      %1865 = vmatpush1.msra.mxu0 %v1864
      %1866 = vmatprep.subr.mxu0 0.0
      %v1867 = vand.u32 %v1169, 4294901760
      %1868 = vmatpush1.msra.mxu0 %v1867
      %1869 = vmatprep.subr.mxu0 0.0
      %v1870 = vand.u32 %v1170, 4294901760
      %1871 = vmatpush1.msra.mxu0 %v1870
      %1872 = vmatprep.subr.mxu0 0.0
      %v1873 = vand.u32 %v1171, 4294901760
      %1874 = vmatpush1.msra.mxu0 %v1873
      %1875 = vmatprep.subr.mxu0 0.0
      %v1876 = vand.u32 %v1172, 4294901760
      %1877 = vmatpush1.msra.mxu0 %v1876
      %1878 = vmatprep.subr.mxu0 0.0
      %v1879 = vand.u32 %v1173, 4294901760
      %1880 = vmatpush1.msra.mxu0 %v1879
      %1881 = vmatprep.subr.mxu0 0.0
      %v1882 = vand.u32 %v1174, 4294901760
      %1883 = vmatpush1.msra.mxu0 %v1882
      %1884 = vmatprep.subr.mxu0 0.0
      %v1885 = vand.u32 %v1175, 4294901760
      %1886 = vmatpush1.msra.mxu0 %v1885
      %1887 = vmatprep.subr.mxu0 0.0
      %v1888 = vand.u32 %v1176, 4294901760
      %1889 = vmatpush1.msra.mxu0 %v1888
      %1890 = vmatprep.subr.mxu0 0.0
      %1891 = vmatpush1.msra.mxu0 0.0
      %1892 = vmatprep.subr.mxu0 0.0
      %1893 = vmatpush1.msra.mxu0 0.0
      %1894 = vmatprep.subr.mxu0 0.0
      %1895 = vmatpush1.msra.mxu0 0.0
      %1896 = vmatprep.subr.mxu0 0.0
      %1897 = vmatpush1.msra.mxu0 0.0
      %1898 = vmatprep.subr.mxu0 0.0
      %1899 = vmatpush1.msra.mxu0 0.0
      %1900 = vmatprep.subr.mxu0 0.0
      %1901 = vmatpush1.msra.mxu0 0.0
      %1902 = vmatprep.subr.mxu0 0.0
      %1903 = vmatpush1.msra.mxu0 0.0
      %1904 = vmatprep.subr.mxu0 0.0
      %1905 = vmatpush1.msra.mxu0 0.0
      %1906 = vmatprep.subr.mxu0 0.0
      %1907 = vmatpush1.msra.mxu0 0.0
      %1908 = vmatprep.subr.mxu0 0.0
      %1909 = vmatpush1.msra.mxu0 0.0
      %1910 = vmatprep.subr.mxu0 0.0
      %1911 = vmatpush1.msra.mxu0 0.0
      %1912 = vmatprep.subr.mxu0 0.0
      %1913 = vmatpush1.msra.mxu0 0.0
      %1914 = vmatprep.subr.mxu0 0.0
      %1915 = vmatpush1.msra.mxu0 0.0
      %1916 = vmatprep.subr.mxu0 0.0
      %1917 = vmatpush1.msra.mxu0 0.0
      %1918 = vmatprep.subr.mxu0 0.0
      %1919 = vmatpush1.msra.mxu0 0.0
      %1920 = vmatprep.subr.mxu0 0.0
      %1921 = vmatpush1.msra.mxu0 0.0
      %1922 = vmatprep.mubr.f32.mxu0 0.0
      %v1923 = vand.u32 %v339, 4294901760
      %1924 = vmatmul.mubr.f32.gmra.mrb[0].mxu0 %v1923
      %v1925 = vpop.f32.mrb[0].mxu0
      %v1926 = vadd.f32 %v1821, %v1925
      %v1927 = vpop.f32.mrb[0].mxu0
      %1928 = vmatprep.mubr.f32.mxu0 0.0
      %v1929 = vand.u32 %v340, 4294901760
      %1930 = vmatmul.mubr.f32.gmra.mrb[0].mxu0 %v1929
      %v1931 = vpop.f32.mrb[0].mxu0
      %v1932 = vadd.f32 %v1827, %v1931
      %v1933 = vpop.f32.mrb[0].mxu0
      %1934 = vmatprep.mubr.f32.mxu0 0.0
      %v1935 = vand.u32 %v341, 4294901760
      %1936 = vmatmul.mubr.f32.gmra.mrb[0].mxu0 %v1935
      %v1937 = vpop.f32.mrb[0].mxu0
      %v1938 = vadd.f32 %v1833, %v1937
      %v1939 = vpop.f32.mrb[0].mxu0
      %1940 = vmatprep.mubr.f32.mxu0 0.0
      %v1941 = vand.u32 %v342, 4294901760
      %1942 = vmatmul.mubr.f32.gmra.mrb[0].mxu0 %v1941
      %v1943 = vpop.f32.mrb[0].mxu0
      %v1944 = vadd.f32 %v1839, %v1943
      %v1945 = vpop.f32.mrb[0].mxu0
      %1946 = vdwg.mxu0
      %v1947 = vadd.f32 %v1156, %v1926
      %v1948 = vadd.f32 %v1157, %v1932
      %v1949 = vadd.f32 %v1158, %v1938
      %v1950 = vadd.f32 %v1159, %v1944
      %v1951 = vrot.slane %v339, 1
      %v1952 = vrot.slane %v340, 1
      %v1953 = vrot.slane %v341, 1
      %v1954 = vrot.slane %v342, 1
      %vm1955 = vcmp.lt.s32.totalorder %v261, 7
      %v1956 = vsel %vm1955, %v1953, %v1954
      %v1957 = vsel %vm1955, %v1952, %v1953
      %v1958 = vsel %vm1955, %v1951, %v1952
      %v1959 = vsel %vm1955, %v1954, %v1951
      %v1960 = vsel %vm317, 1, 0
      %v1961 = vsel %vm318, 1, 0
      %v1962 = vsel %vm319, 1, 0
      %v1963 = vsel %vm320, 1, 0
      %vm1964 = vcmp.eq.s32.totalorder %v1960, 1
      %vm1965 = vcmp.eq.s32.totalorder %v1961, 1
      %vm1966 = vcmp.eq.s32.totalorder %v1962, 1
      %vm1967 = vcmp.eq.s32.totalorder %v1963, 1
      %v1968 = vsel %vm1964, %v1958, 0.0
      %v1969 = vsel %vm1965, %v1957, 0.0
      %v1970 = vsel %vm1966, %v1956, 0.0
      %v1971 = vsel %vm1967, %v1959, 0.0
      %s1972 = scalar_lea.vmem %s1, 256
      %v1973 = vld [vmem:[%s1972] sm:$0xff]
      %v1974 = vld [vmem:[%s1972 + $0x8] sm:$0xff]
      %v1975 = vld [vmem:[%s1972 + $0x10] sm:$0xff]
      %v1976 = vld [vmem:[%s1972 + $0x18] sm:$0xff]
      %v1977 = vld [vmem:[%s1972 + $0x20] sm:$0xff]
      %v1978 = vld [vmem:[%s1972 + $0x28] sm:$0xff]
      %v1979 = vld [vmem:[%s1972 + $0x30] sm:$0xff]
      %v1980 = vld [vmem:[%s1972 + $0x38] sm:$0xff]
      %v1981 = vld [vmem:[%s1972 + $0x40] sm:$0xff]
      %v1982 = vld [vmem:[%s1972 + $0x48] sm:$0xff]
      %v1983 = vld [vmem:[%s1972 + $0x50] sm:$0xff]
      %v1984 = vld [vmem:[%s1972 + $0x58] sm:$0xff]
      %v1985 = vld [vmem:[%s1972 + $0x60] sm:$0xff]
      %v1986 = vld [vmem:[%s1972 + $0x68] sm:$0xff]
      %v1987 = vld [vmem:[%s1972 + $0x70] sm:$0xff]
      %v1988 = vld [vmem:[%s1972 + $0x78] sm:$0xff]
      %1989 = vmatprep.subr.mxu0 0.0
      %v1990 = vand.u32 %v1973, 4294901760
      %1991 = vmatpush1.msra.mxu0 %v1990
      %1992 = vmatprep.subr.mxu0 0.0
      %v1993 = vand.u32 %v1974, 4294901760
      %1994 = vmatpush1.msra.mxu0 %v1993
      %1995 = vmatprep.subr.mxu0 0.0
      %v1996 = vand.u32 %v1975, 4294901760
      %1997 = vmatpush1.msra.mxu0 %v1996
      %1998 = vmatprep.subr.mxu0 0.0
      %v1999 = vand.u32 %v1976, 4294901760
      %2000 = vmatpush1.msra.mxu0 %v1999
      %2001 = vmatprep.subr.mxu0 0.0
      %v2002 = vand.u32 %v1977, 4294901760
      %2003 = vmatpush1.msra.mxu0 %v2002
      %2004 = vmatprep.subr.mxu0 0.0
      %v2005 = vand.u32 %v1978, 4294901760
      %2006 = vmatpush1.msra.mxu0 %v2005
      %2007 = vmatprep.subr.mxu0 0.0
      %v2008 = vand.u32 %v1979, 4294901760
      %2009 = vmatpush1.msra.mxu0 %v2008
      %2010 = vmatprep.subr.mxu0 0.0
      %v2011 = vand.u32 %v1980, 4294901760
      %2012 = vmatpush1.msra.mxu0 %v2011
      %2013 = vmatprep.subr.mxu0 0.0
      %v2014 = vand.u32 %v1981, 4294901760
      %2015 = vmatpush1.msra.mxu0 %v2014
      %2016 = vmatprep.subr.mxu0 0.0
      %v2017 = vand.u32 %v1982, 4294901760
      %2018 = vmatpush1.msra.mxu0 %v2017
      %2019 = vmatprep.subr.mxu0 0.0
      %v2020 = vand.u32 %v1983, 4294901760
      %2021 = vmatpush1.msra.mxu0 %v2020
      %2022 = vmatprep.subr.mxu0 0.0
      %v2023 = vand.u32 %v1984, 4294901760
      %2024 = vmatpush1.msra.mxu0 %v2023
      %2025 = vmatprep.subr.mxu0 0.0
      %v2026 = vand.u32 %v1985, 4294901760
      %2027 = vmatpush1.msra.mxu0 %v2026
      %2028 = vmatprep.subr.mxu0 0.0
      %v2029 = vand.u32 %v1986, 4294901760
      %2030 = vmatpush1.msra.mxu0 %v2029
      %2031 = vmatprep.subr.mxu0 0.0
      %v2032 = vand.u32 %v1987, 4294901760
      %2033 = vmatpush1.msra.mxu0 %v2032
      %2034 = vmatprep.subr.mxu0 0.0
      %v2035 = vand.u32 %v1988, 4294901760
      %2036 = vmatpush1.msra.mxu0 %v2035
      %2037 = vmatprep.subr.mxu0 0.0
      %2038 = vmatpush1.msra.mxu0 0.0
      %2039 = vmatprep.subr.mxu0 0.0
      %2040 = vmatpush1.msra.mxu0 0.0
      %2041 = vmatprep.subr.mxu0 0.0
      %2042 = vmatpush1.msra.mxu0 0.0
      %2043 = vmatprep.subr.mxu0 0.0
      %2044 = vmatpush1.msra.mxu0 0.0
      %2045 = vmatprep.subr.mxu0 0.0
      %2046 = vmatpush1.msra.mxu0 0.0
      %2047 = vmatprep.subr.mxu0 0.0
      %2048 = vmatpush1.msra.mxu0 0.0
      %2049 = vmatprep.subr.mxu0 0.0
      %2050 = vmatpush1.msra.mxu0 0.0
      %2051 = vmatprep.subr.mxu0 0.0
      %2052 = vmatpush1.msra.mxu0 0.0
      %2053 = vmatprep.subr.mxu0 0.0
      %2054 = vmatpush1.msra.mxu0 0.0
      %2055 = vmatprep.subr.mxu0 0.0
      %2056 = vmatpush1.msra.mxu0 0.0
      %2057 = vmatprep.subr.mxu0 0.0
      %2058 = vmatpush1.msra.mxu0 0.0
      %2059 = vmatprep.subr.mxu0 0.0
      %2060 = vmatpush1.msra.mxu0 0.0
      %2061 = vmatprep.subr.mxu0 0.0
      %2062 = vmatpush1.msra.mxu0 0.0
      %2063 = vmatprep.subr.mxu0 0.0
      %2064 = vmatpush1.msra.mxu0 0.0
      %2065 = vmatprep.subr.mxu0 0.0
      %2066 = vmatpush1.msra.mxu0 0.0
      %2067 = vmatprep.subr.mxu0 0.0
      %2068 = vmatpush1.msra.mxu0 0.0
      %2069 = vmatprep.mubr.f32.mxu0 0.0
      %v2070 = vand.u32 %v1968, 4294901760
      %v2071 = vsub.f32 %v1968, %v2070
      %v2072 = vand.u32 %v2071, 4294901760
      %v2073 = vsub.f32 %v2071, %v2072
      %v2074 = vand.u32 %v2073, 4294901760
      %2075 = vmatmul.mubr.f32.gmra.mrb[0].mxu0 %v2074
      %v2076 = vpop.f32.mrb[0].mxu0
      %v2077 = vadd.f32 0.0, %v2076
      %v2078 = vpop.f32.mrb[0].mxu0
      %2079 = vmatprep.mubr.f32.mxu0 0.0
      %v2080 = vand.u32 %v1969, 4294901760
      %v2081 = vsub.f32 %v1969, %v2080
      %v2082 = vand.u32 %v2081, 4294901760
      %v2083 = vsub.f32 %v2081, %v2082
      %v2084 = vand.u32 %v2083, 4294901760
      %2085 = vmatmul.mubr.f32.gmra.mrb[0].mxu0 %v2084
      %v2086 = vpop.f32.mrb[0].mxu0
      %v2087 = vadd.f32 0.0, %v2086
      %v2088 = vpop.f32.mrb[0].mxu0
      %2089 = vmatprep.mubr.f32.mxu0 0.0
      %v2090 = vand.u32 %v1970, 4294901760
      %v2091 = vsub.f32 %v1970, %v2090
      %v2092 = vand.u32 %v2091, 4294901760
      %v2093 = vsub.f32 %v2091, %v2092
      %v2094 = vand.u32 %v2093, 4294901760
      %2095 = vmatmul.mubr.f32.gmra.mrb[0].mxu0 %v2094
      %v2096 = vpop.f32.mrb[0].mxu0
      %v2097 = vadd.f32 0.0, %v2096
      %v2098 = vpop.f32.mrb[0].mxu0
      %2099 = vmatprep.mubr.f32.mxu0 0.0
      %v2100 = vand.u32 %v1971, 4294901760
      %v2101 = vsub.f32 %v1971, %v2100
      %v2102 = vand.u32 %v2101, 4294901760
      %v2103 = vsub.f32 %v2101, %v2102
      %v2104 = vand.u32 %v2103, 4294901760
      %2105 = vmatmul.mubr.f32.gmra.mrb[0].mxu0 %v2104
      %v2106 = vpop.f32.mrb[0].mxu0
      %v2107 = vadd.f32 0.0, %v2106
      %v2108 = vpop.f32.mrb[0].mxu0
      %2109 = vdwg.mxu0
      %2110 = vmatprep.subr.mxu0 0.0
      %v2111 = vand.u32 %v1973, 4294901760
      %v2112 = vsub.f32 %v1973, %v2111
      %v2113 = vand.u32 %v2112, 4294901760
      %v2114 = vsub.f32 %v2112, %v2113
      %v2115 = vand.u32 %v2114, 4294901760
      %2116 = vmatpush1.msra.mxu0 %v2115
      %2117 = vmatprep.subr.mxu0 0.0
      %v2118 = vand.u32 %v1974, 4294901760
      %v2119 = vsub.f32 %v1974, %v2118
      %v2120 = vand.u32 %v2119, 4294901760
      %v2121 = vsub.f32 %v2119, %v2120
      %v2122 = vand.u32 %v2121, 4294901760
      %2123 = vmatpush1.msra.mxu0 %v2122
      %2124 = vmatprep.subr.mxu0 0.0
      %v2125 = vand.u32 %v1975, 4294901760
      %v2126 = vsub.f32 %v1975, %v2125
      %v2127 = vand.u32 %v2126, 4294901760
      %v2128 = vsub.f32 %v2126, %v2127
      %v2129 = vand.u32 %v2128, 4294901760
      %2130 = vmatpush1.msra.mxu0 %v2129
      %2131 = vmatprep.subr.mxu0 0.0
      %v2132 = vand.u32 %v1976, 4294901760
      %v2133 = vsub.f32 %v1976, %v2132
      %v2134 = vand.u32 %v2133, 4294901760
      %v2135 = vsub.f32 %v2133, %v2134
      %v2136 = vand.u32 %v2135, 4294901760
      %2137 = vmatpush1.msra.mxu0 %v2136
      %2138 = vmatprep.subr.mxu0 0.0
      %v2139 = vand.u32 %v1977, 4294901760
      %v2140 = vsub.f32 %v1977, %v2139
      %v2141 = vand.u32 %v2140, 4294901760
      %v2142 = vsub.f32 %v2140, %v2141
      %v2143 = vand.u32 %v2142, 4294901760
      %2144 = vmatpush1.msra.mxu0 %v2143
      %2145 = vmatprep.subr.mxu0 0.0
      %v2146 = vand.u32 %v1978, 4294901760
      %v2147 = vsub.f32 %v1978, %v2146
      %v2148 = vand.u32 %v2147, 4294901760
      %v2149 = vsub.f32 %v2147, %v2148
      %v2150 = vand.u32 %v2149, 4294901760
      %2151 = vmatpush1.msra.mxu0 %v2150
      %2152 = vmatprep.subr.mxu0 0.0
      %v2153 = vand.u32 %v1979, 4294901760
      %v2154 = vsub.f32 %v1979, %v2153
      %v2155 = vand.u32 %v2154, 4294901760
      %v2156 = vsub.f32 %v2154, %v2155
      %v2157 = vand.u32 %v2156, 4294901760
      %2158 = vmatpush1.msra.mxu0 %v2157
      %2159 = vmatprep.subr.mxu0 0.0
      %v2160 = vand.u32 %v1980, 4294901760
      %v2161 = vsub.f32 %v1980, %v2160
      %v2162 = vand.u32 %v2161, 4294901760
      %v2163 = vsub.f32 %v2161, %v2162
      %v2164 = vand.u32 %v2163, 4294901760
      %2165 = vmatpush1.msra.mxu0 %v2164
      %2166 = vmatprep.subr.mxu0 0.0
      %v2167 = vand.u32 %v1981, 4294901760
      %v2168 = vsub.f32 %v1981, %v2167
      %v2169 = vand.u32 %v2168, 4294901760
      %v2170 = vsub.f32 %v2168, %v2169
      %v2171 = vand.u32 %v2170, 4294901760
      %2172 = vmatpush1.msra.mxu0 %v2171
      %2173 = vmatprep.subr.mxu0 0.0
      %v2174 = vand.u32 %v1982, 4294901760
      %v2175 = vsub.f32 %v1982, %v2174
      %v2176 = vand.u32 %v2175, 4294901760
      %v2177 = vsub.f32 %v2175, %v2176
      %v2178 = vand.u32 %v2177, 4294901760
      %2179 = vmatpush1.msra.mxu0 %v2178
      %2180 = vmatprep.subr.mxu0 0.0
      %v2181 = vand.u32 %v1983, 4294901760
      %v2182 = vsub.f32 %v1983, %v2181
      %v2183 = vand.u32 %v2182, 4294901760
      %v2184 = vsub.f32 %v2182, %v2183
      %v2185 = vand.u32 %v2184, 4294901760
      %2186 = vmatpush1.msra.mxu0 %v2185
      %2187 = vmatprep.subr.mxu0 0.0
      %v2188 = vand.u32 %v1984, 4294901760
      %v2189 = vsub.f32 %v1984, %v2188
      %v2190 = vand.u32 %v2189, 4294901760
      %v2191 = vsub.f32 %v2189, %v2190
      %v2192 = vand.u32 %v2191, 4294901760
      %2193 = vmatpush1.msra.mxu0 %v2192
      %2194 = vmatprep.subr.mxu0 0.0
      %v2195 = vand.u32 %v1985, 4294901760
      %v2196 = vsub.f32 %v1985, %v2195
      %v2197 = vand.u32 %v2196, 4294901760
      %v2198 = vsub.f32 %v2196, %v2197
      %v2199 = vand.u32 %v2198, 4294901760
      %2200 = vmatpush1.msra.mxu0 %v2199
      %2201 = vmatprep.subr.mxu0 0.0
      %v2202 = vand.u32 %v1986, 4294901760
      %v2203 = vsub.f32 %v1986, %v2202
      %v2204 = vand.u32 %v2203, 4294901760
      %v2205 = vsub.f32 %v2203, %v2204
      %v2206 = vand.u32 %v2205, 4294901760
      %2207 = vmatpush1.msra.mxu0 %v2206
      %2208 = vmatprep.subr.mxu0 0.0
      %v2209 = vand.u32 %v1987, 4294901760
      %v2210 = vsub.f32 %v1987, %v2209
      %v2211 = vand.u32 %v2210, 4294901760
      %v2212 = vsub.f32 %v2210, %v2211
      %v2213 = vand.u32 %v2212, 4294901760
      %2214 = vmatpush1.msra.mxu0 %v2213
      %2215 = vmatprep.subr.mxu0 0.0
      %v2216 = vand.u32 %v1988, 4294901760
      %v2217 = vsub.f32 %v1988, %v2216
      %v2218 = vand.u32 %v2217, 4294901760
      %v2219 = vsub.f32 %v2217, %v2218
      %v2220 = vand.u32 %v2219, 4294901760
      %2221 = vmatpush1.msra.mxu0 %v2220
      %2222 = vmatprep.subr.mxu0 0.0
      %2223 = vmatpush1.msra.mxu0 0.0
      %2224 = vmatprep.subr.mxu0 0.0
      %2225 = vmatpush1.msra.mxu0 0.0
      %2226 = vmatprep.subr.mxu0 0.0
      %2227 = vmatpush1.msra.mxu0 0.0
      %2228 = vmatprep.subr.mxu0 0.0
      %2229 = vmatpush1.msra.mxu0 0.0
      %2230 = vmatprep.subr.mxu0 0.0
      %2231 = vmatpush1.msra.mxu0 0.0
      %2232 = vmatprep.subr.mxu0 0.0
      %2233 = vmatpush1.msra.mxu0 0.0
      %2234 = vmatprep.subr.mxu0 0.0
      %2235 = vmatpush1.msra.mxu0 0.0
      %2236 = vmatprep.subr.mxu0 0.0
      %2237 = vmatpush1.msra.mxu0 0.0
      %2238 = vmatprep.subr.mxu0 0.0
      %2239 = vmatpush1.msra.mxu0 0.0
      %2240 = vmatprep.subr.mxu0 0.0
      %2241 = vmatpush1.msra.mxu0 0.0
      %2242 = vmatprep.subr.mxu0 0.0
      %2243 = vmatpush1.msra.mxu0 0.0
      %2244 = vmatprep.subr.mxu0 0.0
      %2245 = vmatpush1.msra.mxu0 0.0
      %2246 = vmatprep.subr.mxu0 0.0
      %2247 = vmatpush1.msra.mxu0 0.0
      %2248 = vmatprep.subr.mxu0 0.0
      %2249 = vmatpush1.msra.mxu0 0.0
      %2250 = vmatprep.subr.mxu0 0.0
      %2251 = vmatpush1.msra.mxu0 0.0
      %2252 = vmatprep.subr.mxu0 0.0
      %2253 = vmatpush1.msra.mxu0 0.0
      %2254 = vmatprep.mubr.f32.mxu0 0.0
      %v2255 = vand.u32 %v1968, 4294901760
      %2256 = vmatmul.mubr.f32.gmra.mrb[0].mxu0 %v2255
      %v2257 = vpop.f32.mrb[0].mxu0
      %v2258 = vadd.f32 %v2077, %v2257
      %v2259 = vpop.f32.mrb[0].mxu0
      %2260 = vmatprep.mubr.f32.mxu0 0.0
      %v2261 = vand.u32 %v1969, 4294901760
      %2262 = vmatmul.mubr.f32.gmra.mrb[0].mxu0 %v2261
      %v2263 = vpop.f32.mrb[0].mxu0
      %v2264 = vadd.f32 %v2087, %v2263
      %v2265 = vpop.f32.mrb[0].mxu0
      %2266 = vmatprep.mubr.f32.mxu0 0.0
      %v2267 = vand.u32 %v1970, 4294901760
      %2268 = vmatmul.mubr.f32.gmra.mrb[0].mxu0 %v2267
      %v2269 = vpop.f32.mrb[0].mxu0
      %v2270 = vadd.f32 %v2097, %v2269
      %v2271 = vpop.f32.mrb[0].mxu0
      %2272 = vmatprep.mubr.f32.mxu0 0.0
      %v2273 = vand.u32 %v1971, 4294901760
      %2274 = vmatmul.mubr.f32.gmra.mrb[0].mxu0 %v2273
      %v2275 = vpop.f32.mrb[0].mxu0
      %v2276 = vadd.f32 %v2107, %v2275
      %v2277 = vpop.f32.mrb[0].mxu0
      %2278 = vdwg.mxu0
      %2279 = vmatprep.subr.mxu0 0.0
      %v2280 = vand.u32 %v1973, 4294901760
      %v2281 = vsub.f32 %v1973, %v2280
      %2282 = vmatpush1.msra.mxu0 %v2281
      %2283 = vmatprep.subr.mxu0 0.0
      %v2284 = vand.u32 %v1974, 4294901760
      %v2285 = vsub.f32 %v1974, %v2284
      %2286 = vmatpush1.msra.mxu0 %v2285
      %2287 = vmatprep.subr.mxu0 0.0
      %v2288 = vand.u32 %v1975, 4294901760
      %v2289 = vsub.f32 %v1975, %v2288
      %2290 = vmatpush1.msra.mxu0 %v2289
      %2291 = vmatprep.subr.mxu0 0.0
      %v2292 = vand.u32 %v1976, 4294901760
      %v2293 = vsub.f32 %v1976, %v2292
      %2294 = vmatpush1.msra.mxu0 %v2293
      %2295 = vmatprep.subr.mxu0 0.0
      %v2296 = vand.u32 %v1977, 4294901760
      %v2297 = vsub.f32 %v1977, %v2296
      %2298 = vmatpush1.msra.mxu0 %v2297
      %2299 = vmatprep.subr.mxu0 0.0
      %v2300 = vand.u32 %v1978, 4294901760
      %v2301 = vsub.f32 %v1978, %v2300
      %2302 = vmatpush1.msra.mxu0 %v2301
      %2303 = vmatprep.subr.mxu0 0.0
      %v2304 = vand.u32 %v1979, 4294901760
      %v2305 = vsub.f32 %v1979, %v2304
      %2306 = vmatpush1.msra.mxu0 %v2305
      %2307 = vmatprep.subr.mxu0 0.0
      %v2308 = vand.u32 %v1980, 4294901760
      %v2309 = vsub.f32 %v1980, %v2308
      %2310 = vmatpush1.msra.mxu0 %v2309
      %2311 = vmatprep.subr.mxu0 0.0
      %v2312 = vand.u32 %v1981, 4294901760
      %v2313 = vsub.f32 %v1981, %v2312
      %2314 = vmatpush1.msra.mxu0 %v2313
      %2315 = vmatprep.subr.mxu0 0.0
      %v2316 = vand.u32 %v1982, 4294901760
      %v2317 = vsub.f32 %v1982, %v2316
      %2318 = vmatpush1.msra.mxu0 %v2317
      %2319 = vmatprep.subr.mxu0 0.0
      %v2320 = vand.u32 %v1983, 4294901760
      %v2321 = vsub.f32 %v1983, %v2320
      %2322 = vmatpush1.msra.mxu0 %v2321
      %2323 = vmatprep.subr.mxu0 0.0
      %v2324 = vand.u32 %v1984, 4294901760
      %v2325 = vsub.f32 %v1984, %v2324
      %2326 = vmatpush1.msra.mxu0 %v2325
      %2327 = vmatprep.subr.mxu0 0.0
      %v2328 = vand.u32 %v1985, 4294901760
      %v2329 = vsub.f32 %v1985, %v2328
      %2330 = vmatpush1.msra.mxu0 %v2329
      %2331 = vmatprep.subr.mxu0 0.0
      %v2332 = vand.u32 %v1986, 4294901760
      %v2333 = vsub.f32 %v1986, %v2332
      %2334 = vmatpush1.msra.mxu0 %v2333
      %2335 = vmatprep.subr.mxu0 0.0
      %v2336 = vand.u32 %v1987, 4294901760
      %v2337 = vsub.f32 %v1987, %v2336
      %2338 = vmatpush1.msra.mxu0 %v2337
      %2339 = vmatprep.subr.mxu0 0.0
      %v2340 = vand.u32 %v1988, 4294901760
      %v2341 = vsub.f32 %v1988, %v2340
      %2342 = vmatpush1.msra.mxu0 %v2341
      %2343 = vmatprep.subr.mxu0 0.0
      %2344 = vmatpush1.msra.mxu0 0.0
      %2345 = vmatprep.subr.mxu0 0.0
      %2346 = vmatpush1.msra.mxu0 0.0
      %2347 = vmatprep.subr.mxu0 0.0
      %2348 = vmatpush1.msra.mxu0 0.0
      %2349 = vmatprep.subr.mxu0 0.0
      %2350 = vmatpush1.msra.mxu0 0.0
      %2351 = vmatprep.subr.mxu0 0.0
      %2352 = vmatpush1.msra.mxu0 0.0
      %2353 = vmatprep.subr.mxu0 0.0
      %2354 = vmatpush1.msra.mxu0 0.0
      %2355 = vmatprep.subr.mxu0 0.0
      %2356 = vmatpush1.msra.mxu0 0.0
      %2357 = vmatprep.subr.mxu0 0.0
      %2358 = vmatpush1.msra.mxu0 0.0
      %2359 = vmatprep.subr.mxu0 0.0
      %2360 = vmatpush1.msra.mxu0 0.0
      %2361 = vmatprep.subr.mxu0 0.0
      %2362 = vmatpush1.msra.mxu0 0.0
      %2363 = vmatprep.subr.mxu0 0.0
      %2364 = vmatpush1.msra.mxu0 0.0
      %2365 = vmatprep.subr.mxu0 0.0
      %2366 = vmatpush1.msra.mxu0 0.0
      %2367 = vmatprep.subr.mxu0 0.0
      %2368 = vmatpush1.msra.mxu0 0.0
      %2369 = vmatprep.subr.mxu0 0.0
      %2370 = vmatpush1.msra.mxu0 0.0
      %2371 = vmatprep.subr.mxu0 0.0
      %2372 = vmatpush1.msra.mxu0 0.0
      %2373 = vmatprep.subr.mxu0 0.0
      %2374 = vmatpush1.msra.mxu0 0.0
      %2375 = vmatprep.mubr.f32.mxu0 0.0
      %v2376 = vand.u32 %v1968, 4294901760
      %v2377 = vsub.f32 %v1968, %v2376
      %2378 = vmatmul.mubr.f32.gmra.mrb[0].mxu0 %v2377
      %v2379 = vpop.f32.mrb[0].mxu0
      %v2380 = vadd.f32 %v2258, %v2379
      %v2381 = vpop.f32.mrb[0].mxu0
      %2382 = vmatprep.mubr.f32.mxu0 0.0
      %v2383 = vand.u32 %v1969, 4294901760
      %v2384 = vsub.f32 %v1969, %v2383
      %2385 = vmatmul.mubr.f32.gmra.mrb[0].mxu0 %v2384
      %v2386 = vpop.f32.mrb[0].mxu0
      %v2387 = vadd.f32 %v2264, %v2386
      %v2388 = vpop.f32.mrb[0].mxu0
      %2389 = vmatprep.mubr.f32.mxu0 0.0
      %v2390 = vand.u32 %v1970, 4294901760
      %v2391 = vsub.f32 %v1970, %v2390
      %2392 = vmatmul.mubr.f32.gmra.mrb[0].mxu0 %v2391
      %v2393 = vpop.f32.mrb[0].mxu0
      %v2394 = vadd.f32 %v2270, %v2393
      %v2395 = vpop.f32.mrb[0].mxu0
      %2396 = vmatprep.mubr.f32.mxu0 0.0
      %v2397 = vand.u32 %v1971, 4294901760
      %v2398 = vsub.f32 %v1971, %v2397
      %2399 = vmatmul.mubr.f32.gmra.mrb[0].mxu0 %v2398
      %v2400 = vpop.f32.mrb[0].mxu0
      %v2401 = vadd.f32 %v2276, %v2400
      %v2402 = vpop.f32.mrb[0].mxu0
      %2403 = vdwg.mxu0
      %2404 = vmatprep.subr.mxu0 0.0
      %v2405 = vand.u32 %v1973, 4294901760
      %2406 = vmatpush1.msra.mxu0 %v2405
      %2407 = vmatprep.subr.mxu0 0.0
      %v2408 = vand.u32 %v1974, 4294901760
      %2409 = vmatpush1.msra.mxu0 %v2408
      %2410 = vmatprep.subr.mxu0 0.0
      %v2411 = vand.u32 %v1975, 4294901760
      %2412 = vmatpush1.msra.mxu0 %v2411
      %2413 = vmatprep.subr.mxu0 0.0
      %v2414 = vand.u32 %v1976, 4294901760
      %2415 = vmatpush1.msra.mxu0 %v2414
      %2416 = vmatprep.subr.mxu0 0.0
      %v2417 = vand.u32 %v1977, 4294901760
      %2418 = vmatpush1.msra.mxu0 %v2417
      %2419 = vmatprep.subr.mxu0 0.0
      %v2420 = vand.u32 %v1978, 4294901760
      %2421 = vmatpush1.msra.mxu0 %v2420
      %2422 = vmatprep.subr.mxu0 0.0
      %v2423 = vand.u32 %v1979, 4294901760
      %2424 = vmatpush1.msra.mxu0 %v2423
      %2425 = vmatprep.subr.mxu0 0.0
      %v2426 = vand.u32 %v1980, 4294901760
      %2427 = vmatpush1.msra.mxu0 %v2426
      %2428 = vmatprep.subr.mxu0 0.0
      %v2429 = vand.u32 %v1981, 4294901760
      %2430 = vmatpush1.msra.mxu0 %v2429
      %2431 = vmatprep.subr.mxu0 0.0
      %v2432 = vand.u32 %v1982, 4294901760
      %2433 = vmatpush1.msra.mxu0 %v2432
      %2434 = vmatprep.subr.mxu0 0.0
      %v2435 = vand.u32 %v1983, 4294901760
      %2436 = vmatpush1.msra.mxu0 %v2435
      %2437 = vmatprep.subr.mxu0 0.0
      %v2438 = vand.u32 %v1984, 4294901760
      %2439 = vmatpush1.msra.mxu0 %v2438
      %2440 = vmatprep.subr.mxu0 0.0
      %v2441 = vand.u32 %v1985, 4294901760
      %2442 = vmatpush1.msra.mxu0 %v2441
      %2443 = vmatprep.subr.mxu0 0.0
      %v2444 = vand.u32 %v1986, 4294901760
      %2445 = vmatpush1.msra.mxu0 %v2444
      %2446 = vmatprep.subr.mxu0 0.0
      %v2447 = vand.u32 %v1987, 4294901760
      %2448 = vmatpush1.msra.mxu0 %v2447
      %2449 = vmatprep.subr.mxu0 0.0
      %v2450 = vand.u32 %v1988, 4294901760
      %2451 = vmatpush1.msra.mxu0 %v2450
      %2452 = vmatprep.subr.mxu0 0.0
      %2453 = vmatpush1.msra.mxu0 0.0
      %2454 = vmatprep.subr.mxu0 0.0
      %2455 = vmatpush1.msra.mxu0 0.0
      %2456 = vmatprep.subr.mxu0 0.0
      %2457 = vmatpush1.msra.mxu0 0.0
      %2458 = vmatprep.subr.mxu0 0.0
      %2459 = vmatpush1.msra.mxu0 0.0
      %2460 = vmatprep.subr.mxu0 0.0
      %2461 = vmatpush1.msra.mxu0 0.0
      %2462 = vmatprep.subr.mxu0 0.0
      %2463 = vmatpush1.msra.mxu0 0.0
      %2464 = vmatprep.subr.mxu0 0.0
      %2465 = vmatpush1.msra.mxu0 0.0
      %2466 = vmatprep.subr.mxu0 0.0
      %2467 = vmatpush1.msra.mxu0 0.0
      %2468 = vmatprep.subr.mxu0 0.0
      %2469 = vmatpush1.msra.mxu0 0.0
      %2470 = vmatprep.subr.mxu0 0.0
      %2471 = vmatpush1.msra.mxu0 0.0
      %2472 = vmatprep.subr.mxu0 0.0
      %2473 = vmatpush1.msra.mxu0 0.0
      %2474 = vmatprep.subr.mxu0 0.0
      %2475 = vmatpush1.msra.mxu0 0.0
      %2476 = vmatprep.subr.mxu0 0.0
      %2477 = vmatpush1.msra.mxu0 0.0
      %2478 = vmatprep.subr.mxu0 0.0
      %2479 = vmatpush1.msra.mxu0 0.0
      %2480 = vmatprep.subr.mxu0 0.0
      %2481 = vmatpush1.msra.mxu0 0.0
      %2482 = vmatprep.subr.mxu0 0.0
      %2483 = vmatpush1.msra.mxu0 0.0
      %2484 = vmatprep.mubr.f32.mxu0 0.0
      %v2485 = vand.u32 %v1968, 4294901760
      %v2486 = vsub.f32 %v1968, %v2485
      %v2487 = vand.u32 %v2486, 4294901760
      %2488 = vmatmul.mubr.f32.gmra.mrb[0].mxu0 %v2487
      %v2489 = vpop.f32.mrb[0].mxu0
      %v2490 = vadd.f32 %v2380, %v2489
      %v2491 = vpop.f32.mrb[0].mxu0
      %2492 = vmatprep.mubr.f32.mxu0 0.0
      %v2493 = vand.u32 %v1969, 4294901760
      %v2494 = vsub.f32 %v1969, %v2493
      %v2495 = vand.u32 %v2494, 4294901760
      %2496 = vmatmul.mubr.f32.gmra.mrb[0].mxu0 %v2495
      %v2497 = vpop.f32.mrb[0].mxu0
      %v2498 = vadd.f32 %v2387, %v2497
      %v2499 = vpop.f32.mrb[0].mxu0
      %2500 = vmatprep.mubr.f32.mxu0 0.0
      %v2501 = vand.u32 %v1970, 4294901760
      %v2502 = vsub.f32 %v1970, %v2501
      %v2503 = vand.u32 %v2502, 4294901760
      %2504 = vmatmul.mubr.f32.gmra.mrb[0].mxu0 %v2503
      %v2505 = vpop.f32.mrb[0].mxu0
      %v2506 = vadd.f32 %v2394, %v2505
      %v2507 = vpop.f32.mrb[0].mxu0
      %2508 = vmatprep.mubr.f32.mxu0 0.0
      %v2509 = vand.u32 %v1971, 4294901760
      %v2510 = vsub.f32 %v1971, %v2509
      %v2511 = vand.u32 %v2510, 4294901760
      %2512 = vmatmul.mubr.f32.gmra.mrb[0].mxu0 %v2511
      %v2513 = vpop.f32.mrb[0].mxu0
      %v2514 = vadd.f32 %v2401, %v2513
      %v2515 = vpop.f32.mrb[0].mxu0
      %2516 = vdwg.mxu0
      %2517 = vmatprep.subr.mxu0 0.0
      %v2518 = vand.u32 %v1973, 4294901760
      %v2519 = vsub.f32 %v1973, %v2518
      %v2520 = vand.u32 %v2519, 4294901760
      %2521 = vmatpush1.msra.mxu0 %v2520
      %2522 = vmatprep.subr.mxu0 0.0
      %v2523 = vand.u32 %v1974, 4294901760
      %v2524 = vsub.f32 %v1974, %v2523
      %v2525 = vand.u32 %v2524, 4294901760
      %2526 = vmatpush1.msra.mxu0 %v2525
      %2527 = vmatprep.subr.mxu0 0.0
      %v2528 = vand.u32 %v1975, 4294901760
      %v2529 = vsub.f32 %v1975, %v2528
      %v2530 = vand.u32 %v2529, 4294901760
      %2531 = vmatpush1.msra.mxu0 %v2530
      %2532 = vmatprep.subr.mxu0 0.0
      %v2533 = vand.u32 %v1976, 4294901760
      %v2534 = vsub.f32 %v1976, %v2533
      %v2535 = vand.u32 %v2534, 4294901760
      %2536 = vmatpush1.msra.mxu0 %v2535
      %2537 = vmatprep.subr.mxu0 0.0
      %v2538 = vand.u32 %v1977, 4294901760
      %v2539 = vsub.f32 %v1977, %v2538
      %v2540 = vand.u32 %v2539, 4294901760
      %2541 = vmatpush1.msra.mxu0 %v2540
      %2542 = vmatprep.subr.mxu0 0.0
      %v2543 = vand.u32 %v1978, 4294901760
      %v2544 = vsub.f32 %v1978, %v2543
      %v2545 = vand.u32 %v2544, 4294901760
      %2546 = vmatpush1.msra.mxu0 %v2545
      %2547 = vmatprep.subr.mxu0 0.0
      %v2548 = vand.u32 %v1979, 4294901760
      %v2549 = vsub.f32 %v1979, %v2548
      %v2550 = vand.u32 %v2549, 4294901760
      %2551 = vmatpush1.msra.mxu0 %v2550
      %2552 = vmatprep.subr.mxu0 0.0
      %v2553 = vand.u32 %v1980, 4294901760
      %v2554 = vsub.f32 %v1980, %v2553
      %v2555 = vand.u32 %v2554, 4294901760
      %2556 = vmatpush1.msra.mxu0 %v2555
      %2557 = vmatprep.subr.mxu0 0.0
      %v2558 = vand.u32 %v1981, 4294901760
      %v2559 = vsub.f32 %v1981, %v2558
      %v2560 = vand.u32 %v2559, 4294901760
      %2561 = vmatpush1.msra.mxu0 %v2560
      %2562 = vmatprep.subr.mxu0 0.0
      %v2563 = vand.u32 %v1982, 4294901760
      %v2564 = vsub.f32 %v1982, %v2563
      %v2565 = vand.u32 %v2564, 4294901760
      %2566 = vmatpush1.msra.mxu0 %v2565
      %2567 = vmatprep.subr.mxu0 0.0
      %v2568 = vand.u32 %v1983, 4294901760
      %v2569 = vsub.f32 %v1983, %v2568
      %v2570 = vand.u32 %v2569, 4294901760
      %2571 = vmatpush1.msra.mxu0 %v2570
      %2572 = vmatprep.subr.mxu0 0.0
      %v2573 = vand.u32 %v1984, 4294901760
      %v2574 = vsub.f32 %v1984, %v2573
      %v2575 = vand.u32 %v2574, 4294901760
      %2576 = vmatpush1.msra.mxu0 %v2575
      %2577 = vmatprep.subr.mxu0 0.0
      %v2578 = vand.u32 %v1985, 4294901760
      %v2579 = vsub.f32 %v1985, %v2578
      %v2580 = vand.u32 %v2579, 4294901760
      %2581 = vmatpush1.msra.mxu0 %v2580
      %2582 = vmatprep.subr.mxu0 0.0
      %v2583 = vand.u32 %v1986, 4294901760
      %v2584 = vsub.f32 %v1986, %v2583
      %v2585 = vand.u32 %v2584, 4294901760
      %2586 = vmatpush1.msra.mxu0 %v2585
      %2587 = vmatprep.subr.mxu0 0.0
      %v2588 = vand.u32 %v1987, 4294901760
      %v2589 = vsub.f32 %v1987, %v2588
      %v2590 = vand.u32 %v2589, 4294901760
      %2591 = vmatpush1.msra.mxu0 %v2590
      %2592 = vmatprep.subr.mxu0 0.0
      %v2593 = vand.u32 %v1988, 4294901760
      %v2594 = vsub.f32 %v1988, %v2593
      %v2595 = vand.u32 %v2594, 4294901760
      %2596 = vmatpush1.msra.mxu0 %v2595
      %2597 = vmatprep.subr.mxu0 0.0
      %2598 = vmatpush1.msra.mxu0 0.0
      %2599 = vmatprep.subr.mxu0 0.0
      %2600 = vmatpush1.msra.mxu0 0.0
      %2601 = vmatprep.subr.mxu0 0.0
      %2602 = vmatpush1.msra.mxu0 0.0
      %2603 = vmatprep.subr.mxu0 0.0
      %2604 = vmatpush1.msra.mxu0 0.0
      %2605 = vmatprep.subr.mxu0 0.0
      %2606 = vmatpush1.msra.mxu0 0.0
      %2607 = vmatprep.subr.mxu0 0.0
      %2608 = vmatpush1.msra.mxu0 0.0
      %2609 = vmatprep.subr.mxu0 0.0
      %2610 = vmatpush1.msra.mxu0 0.0
      %2611 = vmatprep.subr.mxu0 0.0
      %2612 = vmatpush1.msra.mxu0 0.0
      %2613 = vmatprep.subr.mxu0 0.0
      %2614 = vmatpush1.msra.mxu0 0.0
      %2615 = vmatprep.subr.mxu0 0.0
      %2616 = vmatpush1.msra.mxu0 0.0
      %2617 = vmatprep.subr.mxu0 0.0
      %2618 = vmatpush1.msra.mxu0 0.0
      %2619 = vmatprep.subr.mxu0 0.0
      %2620 = vmatpush1.msra.mxu0 0.0
      %2621 = vmatprep.subr.mxu0 0.0
      %2622 = vmatpush1.msra.mxu0 0.0
      %2623 = vmatprep.subr.mxu0 0.0
      %2624 = vmatpush1.msra.mxu0 0.0
      %2625 = vmatprep.subr.mxu0 0.0
      %2626 = vmatpush1.msra.mxu0 0.0
      %2627 = vmatprep.subr.mxu0 0.0
      %2628 = vmatpush1.msra.mxu0 0.0
      %2629 = vmatprep.mubr.f32.mxu0 0.0
      %v2630 = vand.u32 %v1968, 4294901760
      %2631 = vmatmul.mubr.f32.gmra.mrb[0].mxu0 %v2630
      %v2632 = vpop.f32.mrb[0].mxu0
      %v2633 = vadd.f32 %v2490, %v2632
      %v2634 = vpop.f32.mrb[0].mxu0
      %2635 = vmatprep.mubr.f32.mxu0 0.0
      %v2636 = vand.u32 %v1969, 4294901760
      %2637 = vmatmul.mubr.f32.gmra.mrb[0].mxu0 %v2636
      %v2638 = vpop.f32.mrb[0].mxu0
      %v2639 = vadd.f32 %v2498, %v2638
      %v2640 = vpop.f32.mrb[0].mxu0
      %2641 = vmatprep.mubr.f32.mxu0 0.0
      %v2642 = vand.u32 %v1970, 4294901760
      %2643 = vmatmul.mubr.f32.gmra.mrb[0].mxu0 %v2642
      %v2644 = vpop.f32.mrb[0].mxu0
      %v2645 = vadd.f32 %v2506, %v2644
      %v2646 = vpop.f32.mrb[0].mxu0
      %2647 = vmatprep.mubr.f32.mxu0 0.0
      %v2648 = vand.u32 %v1971, 4294901760
      %2649 = vmatmul.mubr.f32.gmra.mrb[0].mxu0 %v2648
      %v2650 = vpop.f32.mrb[0].mxu0
      %v2651 = vadd.f32 %v2514, %v2650
      %v2652 = vpop.f32.mrb[0].mxu0
      %2653 = vdwg.mxu0
      %2654 = vmatprep.subr.mxu0 0.0
      %v2655 = vand.u32 %v1973, 4294901760
      %2656 = vmatpush1.msra.mxu0 %v2655
      %2657 = vmatprep.subr.mxu0 0.0
      %v2658 = vand.u32 %v1974, 4294901760
      %2659 = vmatpush1.msra.mxu0 %v2658
      %2660 = vmatprep.subr.mxu0 0.0
      %v2661 = vand.u32 %v1975, 4294901760
      %2662 = vmatpush1.msra.mxu0 %v2661
      %2663 = vmatprep.subr.mxu0 0.0
      %v2664 = vand.u32 %v1976, 4294901760
      %2665 = vmatpush1.msra.mxu0 %v2664
      %2666 = vmatprep.subr.mxu0 0.0
      %v2667 = vand.u32 %v1977, 4294901760
      %2668 = vmatpush1.msra.mxu0 %v2667
      %2669 = vmatprep.subr.mxu0 0.0
      %v2670 = vand.u32 %v1978, 4294901760
      %2671 = vmatpush1.msra.mxu0 %v2670
      %2672 = vmatprep.subr.mxu0 0.0
      %v2673 = vand.u32 %v1979, 4294901760
      %2674 = vmatpush1.msra.mxu0 %v2673
      %2675 = vmatprep.subr.mxu0 0.0
      %v2676 = vand.u32 %v1980, 4294901760
      %2677 = vmatpush1.msra.mxu0 %v2676
      %2678 = vmatprep.subr.mxu0 0.0
      %v2679 = vand.u32 %v1981, 4294901760
      %2680 = vmatpush1.msra.mxu0 %v2679
      %2681 = vmatprep.subr.mxu0 0.0
      %v2682 = vand.u32 %v1982, 4294901760
      %2683 = vmatpush1.msra.mxu0 %v2682
      %2684 = vmatprep.subr.mxu0 0.0
      %v2685 = vand.u32 %v1983, 4294901760
      %2686 = vmatpush1.msra.mxu0 %v2685
      %2687 = vmatprep.subr.mxu0 0.0
      %v2688 = vand.u32 %v1984, 4294901760
      %2689 = vmatpush1.msra.mxu0 %v2688
      %2690 = vmatprep.subr.mxu0 0.0
      %v2691 = vand.u32 %v1985, 4294901760
      %2692 = vmatpush1.msra.mxu0 %v2691
      %2693 = vmatprep.subr.mxu0 0.0
      %v2694 = vand.u32 %v1986, 4294901760
      %2695 = vmatpush1.msra.mxu0 %v2694
      %2696 = vmatprep.subr.mxu0 0.0
      %v2697 = vand.u32 %v1987, 4294901760
      %2698 = vmatpush1.msra.mxu0 %v2697
      %2699 = vmatprep.subr.mxu0 0.0
      %v2700 = vand.u32 %v1988, 4294901760
      %2701 = vmatpush1.msra.mxu0 %v2700
      %2702 = vmatprep.subr.mxu0 0.0
      %2703 = vmatpush1.msra.mxu0 0.0
      %2704 = vmatprep.subr.mxu0 0.0
      %2705 = vmatpush1.msra.mxu0 0.0
      %2706 = vmatprep.subr.mxu0 0.0
      %2707 = vmatpush1.msra.mxu0 0.0
      %2708 = vmatprep.subr.mxu0 0.0
      %2709 = vmatpush1.msra.mxu0 0.0
      %2710 = vmatprep.subr.mxu0 0.0
      %2711 = vmatpush1.msra.mxu0 0.0
      %2712 = vmatprep.subr.mxu0 0.0
      %2713 = vmatpush1.msra.mxu0 0.0
      %2714 = vmatprep.subr.mxu0 0.0
      %2715 = vmatpush1.msra.mxu0 0.0
      %2716 = vmatprep.subr.mxu0 0.0
      %2717 = vmatpush1.msra.mxu0 0.0
      %2718 = vmatprep.subr.mxu0 0.0
      %2719 = vmatpush1.msra.mxu0 0.0
      %2720 = vmatprep.subr.mxu0 0.0
      %2721 = vmatpush1.msra.mxu0 0.0
      %2722 = vmatprep.subr.mxu0 0.0
      %2723 = vmatpush1.msra.mxu0 0.0
      %2724 = vmatprep.subr.mxu0 0.0
      %2725 = vmatpush1.msra.mxu0 0.0
      %2726 = vmatprep.subr.mxu0 0.0
      %2727 = vmatpush1.msra.mxu0 0.0
      %2728 = vmatprep.subr.mxu0 0.0
      %2729 = vmatpush1.msra.mxu0 0.0
      %2730 = vmatprep.subr.mxu0 0.0
      %2731 = vmatpush1.msra.mxu0 0.0
      %2732 = vmatprep.subr.mxu0 0.0
      %2733 = vmatpush1.msra.mxu0 0.0
      %2734 = vmatprep.mubr.f32.mxu0 0.0
      %v2735 = vand.u32 %v1968, 4294901760
      %2736 = vmatmul.mubr.f32.gmra.mrb[0].mxu0 %v2735
      %v2737 = vpop.f32.mrb[0].mxu0
      %v2738 = vadd.f32 %v2633, %v2737
      %v2739 = vpop.f32.mrb[0].mxu0
      %2740 = vmatprep.mubr.f32.mxu0 0.0
      %v2741 = vand.u32 %v1969, 4294901760
      %2742 = vmatmul.mubr.f32.gmra.mrb[0].mxu0 %v2741
      %v2743 = vpop.f32.mrb[0].mxu0
      %v2744 = vadd.f32 %v2639, %v2743
      %v2745 = vpop.f32.mrb[0].mxu0
      %2746 = vmatprep.mubr.f32.mxu0 0.0
      %v2747 = vand.u32 %v1970, 4294901760
      %2748 = vmatmul.mubr.f32.gmra.mrb[0].mxu0 %v2747
      %v2749 = vpop.f32.mrb[0].mxu0
      %v2750 = vadd.f32 %v2645, %v2749
      %v2751 = vpop.f32.mrb[0].mxu0
      %2752 = vmatprep.mubr.f32.mxu0 0.0
      %v2753 = vand.u32 %v1971, 4294901760
      %2754 = vmatmul.mubr.f32.gmra.mrb[0].mxu0 %v2753
      %v2755 = vpop.f32.mrb[0].mxu0
      %v2756 = vadd.f32 %v2651, %v2755
      %v2757 = vpop.f32.mrb[0].mxu0
      %2758 = vdwg.mxu0
      %v2759 = vadd.f32 %v1947, %v2738
      %v2760 = vadd.f32 %v1948, %v2744
      %v2761 = vadd.f32 %v1949, %v2750
      %v2762 = vadd.f32 %v1950, %v2756
      %v2763 = vadd.f32 %v2759, %v2760
      %v2764 = vrot.slane %v2763, 4
      %v2765 = vadd.f32 %v2763, %v2764
      %v2766 = vrot.slane %v2765, 2
      %v2767 = vadd.f32 %v2765, %v2766
      %v2768 = vrot.slane %v2767, 1
      %v2769 = vadd.f32 %v2767, %v2768
      %v2770 = vadd.f32 %v2761, %v2762
      %v2771 = vrot.slane %v2770, 4
      %v2772 = vadd.f32 %v2770, %v2771
      %v2773 = vrot.slane %v2772, 2
      %v2774 = vadd.f32 %v2772, %v2773
      %v2775 = vrot.slane %v2774, 1
      %v2776 = vadd.f32 %v2774, %v2775
      %v2777 = vmul.f32 %v2759, %v2759
      %v2778 = vmul.f32 %v2760, %v2760
      %v2779 = vmul.f32 %v2761, %v2761
      %v2780 = vmul.f32 %v2762, %v2762
      %v2781 = vadd.f32 %v2777, %v2778
      %v2782 = vrot.slane %v2781, 4
      %v2783 = vadd.f32 %v2781, %v2782
      %v2784 = vrot.slane %v2783, 2
      %v2785 = vadd.f32 %v2783, %v2784
      %v2786 = vrot.slane %v2785, 1
      %v2787 = vadd.f32 %v2785, %v2786
      %v2788 = vadd.f32 %v2779, %v2780
      %v2789 = vrot.slane %v2788, 4
      %v2790 = vadd.f32 %v2788, %v2789
      %v2791 = vrot.slane %v2790, 2
      %v2792 = vadd.f32 %v2790, %v2791
      %v2793 = vrot.slane %v2792, 1
      %v2794 = vadd.f32 %v2792, %v2793
      %vm2797 = vcmask 1041409
      %v2798 = vsel %vm2797, %v2776, %v2769
      %2800 = vmatprep.subr.mxu0 0.0
      %v2801 = vand.u32 %v321, 4294901760
      %2802 = vmatpush1.msra.mxu0 %v2801
      %2803 = vmatprep.subr.mxu0 0.0
      %v2804 = vand.u32 %v322, 4294901760
      %2805 = vmatpush1.msra.mxu0 %v2804
      %2806 = vmatprep.subr.mxu0 0.0
      %v2807 = vand.u32 %v323, 4294901760
      %2808 = vmatpush1.msra.mxu0 %v2807
      %2809 = vmatprep.subr.mxu0 0.0
      %v2810 = vand.u32 %v324, 4294901760
      %2811 = vmatpush1.msra.mxu0 %v2810
      %2812 = vmatprep.subr.mxu0 0.0
      %v2813 = vand.u32 %v325, 4294901760
      %2814 = vmatpush1.msra.mxu0 %v2813
      %2815 = vmatprep.subr.mxu0 0.0
      %v2816 = vand.u32 %v326, 4294901760
      %2817 = vmatpush1.msra.mxu0 %v2816
      %2818 = vmatprep.subr.mxu0 0.0
      %v2819 = vand.u32 %v327, 4294901760
      %2820 = vmatpush1.msra.mxu0 %v2819
      %2821 = vmatprep.subr.mxu0 0.0
      %v2822 = vand.u32 %v328, 4294901760
      %2823 = vmatpush1.msra.mxu0 %v2822
      %2824 = vmatprep.subr.mxu0 0.0
      %v2825 = vand.u32 %v329, 4294901760
      %2826 = vmatpush1.msra.mxu0 %v2825
      %2827 = vmatprep.subr.mxu0 0.0
      %v2828 = vand.u32 %v330, 4294901760
      %2829 = vmatpush1.msra.mxu0 %v2828
      %2830 = vmatprep.subr.mxu0 0.0
      %v2831 = vand.u32 %v331, 4294901760
      %2832 = vmatpush1.msra.mxu0 %v2831
      %2833 = vmatprep.subr.mxu0 0.0
      %v2834 = vand.u32 %v332, 4294901760
      %2835 = vmatpush1.msra.mxu0 %v2834
      %2836 = vmatprep.subr.mxu0 0.0
      %v2837 = vand.u32 %v333, 4294901760
      %2838 = vmatpush1.msra.mxu0 %v2837
      %2839 = vmatprep.subr.mxu0 0.0
      %v2840 = vand.u32 %v334, 4294901760
      %2841 = vmatpush1.msra.mxu0 %v2840
      %2842 = vmatprep.subr.mxu0 0.0
      %v2843 = vand.u32 %v335, 4294901760
      %2844 = vmatpush1.msra.mxu0 %v2843
      %2845 = vmatprep.subr.mxu0 0.0
      %v2846 = vand.u32 %v336, 4294901760
      %2847 = vmatpush1.msra.mxu0 %v2846
      %2848 = vmatprep.subr.mxu0 0.0
      %2849 = vmatpush1.msra.mxu0 0.0
      %2850 = vmatprep.subr.mxu0 0.0
      %2851 = vmatpush1.msra.mxu0 0.0
      %2852 = vmatprep.subr.mxu0 0.0
      %2853 = vmatpush1.msra.mxu0 0.0
      %2854 = vmatprep.subr.mxu0 0.0
      %2855 = vmatpush1.msra.mxu0 0.0
      %2856 = vmatprep.subr.mxu0 0.0
      %2857 = vmatpush1.msra.mxu0 0.0
      %2858 = vmatprep.subr.mxu0 0.0
      %2859 = vmatpush1.msra.mxu0 0.0
      %2860 = vmatprep.subr.mxu0 0.0
      %2861 = vmatpush1.msra.mxu0 0.0
      %2862 = vmatprep.subr.mxu0 0.0
      %2863 = vmatpush1.msra.mxu0 0.0
      %2864 = vmatprep.subr.mxu0 0.0
      %2865 = vmatpush1.msra.mxu0 0.0
      %2866 = vmatprep.subr.mxu0 0.0
      %2867 = vmatpush1.msra.mxu0 0.0
      %2868 = vmatprep.subr.mxu0 0.0
      %2869 = vmatpush1.msra.mxu0 0.0
      %2870 = vmatprep.subr.mxu0 0.0
      %2871 = vmatpush1.msra.mxu0 0.0
      %2872 = vmatprep.subr.mxu0 0.0
      %2873 = vmatpush1.msra.mxu0 0.0
      %2874 = vmatprep.subr.mxu0 0.0
      %2875 = vmatpush1.msra.mxu0 0.0
      %2876 = vmatprep.subr.mxu0 0.0
      %2877 = vmatpush1.msra.mxu0 0.0
      %2878 = vmatprep.subr.mxu0 0.0
      %2879 = vmatpush1.msra.mxu0 0.0
      %2880 = vmatprep.mubr.f32.mxu0 0.0
      %v2881 = vand.u32 %v2798, 4294901760
      %v2882 = vsub.f32 %v2798, %v2881
      %v2883 = vand.u32 %v2882, 4294901760
      %v2884 = vsub.f32 %v2882, %v2883
      %v2885 = vand.u32 %v2884, 4294901760
      %2886 = vmatmul.mubr.f32.gmra.mrb[0].mxu0 %v2885
      %v2887 = vpop.f32.mrb[0].mxu0
      %v2888 = vadd.f32 0.0, %v2887
      %v2889 = vpop.f32.mrb[0].mxu0
      %2890 = vdwg.mxu0
      %2891 = vmatprep.subr.mxu0 0.0
      %v2892 = vand.u32 %v321, 4294901760
      %v2893 = vsub.f32 %v321, %v2892
      %v2894 = vand.u32 %v2893, 4294901760
      %v2895 = vsub.f32 %v2893, %v2894
      %v2896 = vand.u32 %v2895, 4294901760
      %2897 = vmatpush1.msra.mxu0 %v2896
      %2898 = vmatprep.subr.mxu0 0.0
      %v2899 = vand.u32 %v322, 4294901760
      %v2900 = vsub.f32 %v322, %v2899
      %v2901 = vand.u32 %v2900, 4294901760
      %v2902 = vsub.f32 %v2900, %v2901
      %v2903 = vand.u32 %v2902, 4294901760
      %2904 = vmatpush1.msra.mxu0 %v2903
      %2905 = vmatprep.subr.mxu0 0.0
      %v2906 = vand.u32 %v323, 4294901760
      %v2907 = vsub.f32 %v323, %v2906
      %v2908 = vand.u32 %v2907, 4294901760
      %v2909 = vsub.f32 %v2907, %v2908
      %v2910 = vand.u32 %v2909, 4294901760
      %2911 = vmatpush1.msra.mxu0 %v2910
      %2912 = vmatprep.subr.mxu0 0.0
      %v2913 = vand.u32 %v324, 4294901760
      %v2914 = vsub.f32 %v324, %v2913
      %v2915 = vand.u32 %v2914, 4294901760
      %v2916 = vsub.f32 %v2914, %v2915
      %v2917 = vand.u32 %v2916, 4294901760
      %2918 = vmatpush1.msra.mxu0 %v2917
      %2919 = vmatprep.subr.mxu0 0.0
      %v2920 = vand.u32 %v325, 4294901760
      %v2921 = vsub.f32 %v325, %v2920
      %v2922 = vand.u32 %v2921, 4294901760
      %v2923 = vsub.f32 %v2921, %v2922
      %v2924 = vand.u32 %v2923, 4294901760
      %2925 = vmatpush1.msra.mxu0 %v2924
      %2926 = vmatprep.subr.mxu0 0.0
      %v2927 = vand.u32 %v326, 4294901760
      %v2928 = vsub.f32 %v326, %v2927
      %v2929 = vand.u32 %v2928, 4294901760
      %v2930 = vsub.f32 %v2928, %v2929
      %v2931 = vand.u32 %v2930, 4294901760
      %2932 = vmatpush1.msra.mxu0 %v2931
      %2933 = vmatprep.subr.mxu0 0.0
      %v2934 = vand.u32 %v327, 4294901760
      %v2935 = vsub.f32 %v327, %v2934
      %v2936 = vand.u32 %v2935, 4294901760
      %v2937 = vsub.f32 %v2935, %v2936
      %v2938 = vand.u32 %v2937, 4294901760
      %2939 = vmatpush1.msra.mxu0 %v2938
      %2940 = vmatprep.subr.mxu0 0.0
      %v2941 = vand.u32 %v328, 4294901760
      %v2942 = vsub.f32 %v328, %v2941
      %v2943 = vand.u32 %v2942, 4294901760
      %v2944 = vsub.f32 %v2942, %v2943
      %v2945 = vand.u32 %v2944, 4294901760
      %2946 = vmatpush1.msra.mxu0 %v2945
      %2947 = vmatprep.subr.mxu0 0.0
      %v2948 = vand.u32 %v329, 4294901760
      %v2949 = vsub.f32 %v329, %v2948
      %v2950 = vand.u32 %v2949, 4294901760
      %v2951 = vsub.f32 %v2949, %v2950
      %v2952 = vand.u32 %v2951, 4294901760
      %2953 = vmatpush1.msra.mxu0 %v2952
      %2954 = vmatprep.subr.mxu0 0.0
      %v2955 = vand.u32 %v330, 4294901760
      %v2956 = vsub.f32 %v330, %v2955
      %v2957 = vand.u32 %v2956, 4294901760
      %v2958 = vsub.f32 %v2956, %v2957
      %v2959 = vand.u32 %v2958, 4294901760
      %2960 = vmatpush1.msra.mxu0 %v2959
      %2961 = vmatprep.subr.mxu0 0.0
      %v2962 = vand.u32 %v331, 4294901760
      %v2963 = vsub.f32 %v331, %v2962
      %v2964 = vand.u32 %v2963, 4294901760
      %v2965 = vsub.f32 %v2963, %v2964
      %v2966 = vand.u32 %v2965, 4294901760
      %2967 = vmatpush1.msra.mxu0 %v2966
      %2968 = vmatprep.subr.mxu0 0.0
      %v2969 = vand.u32 %v332, 4294901760
      %v2970 = vsub.f32 %v332, %v2969
      %v2971 = vand.u32 %v2970, 4294901760
      %v2972 = vsub.f32 %v2970, %v2971
      %v2973 = vand.u32 %v2972, 4294901760
      %2974 = vmatpush1.msra.mxu0 %v2973
      %2975 = vmatprep.subr.mxu0 0.0
      %v2976 = vand.u32 %v333, 4294901760
      %v2977 = vsub.f32 %v333, %v2976
      %v2978 = vand.u32 %v2977, 4294901760
      %v2979 = vsub.f32 %v2977, %v2978
      %v2980 = vand.u32 %v2979, 4294901760
      %2981 = vmatpush1.msra.mxu0 %v2980
      %2982 = vmatprep.subr.mxu0 0.0
      %v2983 = vand.u32 %v334, 4294901760
      %v2984 = vsub.f32 %v334, %v2983
      %v2985 = vand.u32 %v2984, 4294901760
      %v2986 = vsub.f32 %v2984, %v2985
      %v2987 = vand.u32 %v2986, 4294901760
      %2988 = vmatpush1.msra.mxu0 %v2987
      %2989 = vmatprep.subr.mxu0 0.0
      %v2990 = vand.u32 %v335, 4294901760
      %v2991 = vsub.f32 %v335, %v2990
      %v2992 = vand.u32 %v2991, 4294901760
      %v2993 = vsub.f32 %v2991, %v2992
      %v2994 = vand.u32 %v2993, 4294901760
      %2995 = vmatpush1.msra.mxu0 %v2994
      %2996 = vmatprep.subr.mxu0 0.0
      %v2997 = vand.u32 %v336, 4294901760
      %v2998 = vsub.f32 %v336, %v2997
      %v2999 = vand.u32 %v2998, 4294901760
      %v3000 = vsub.f32 %v2998, %v2999
      %v3001 = vand.u32 %v3000, 4294901760
      %3002 = vmatpush1.msra.mxu0 %v3001
      %3003 = vmatprep.subr.mxu0 0.0
      %3004 = vmatpush1.msra.mxu0 0.0
      %3005 = vmatprep.subr.mxu0 0.0
      %3006 = vmatpush1.msra.mxu0 0.0
      %3007 = vmatprep.subr.mxu0 0.0
      %3008 = vmatpush1.msra.mxu0 0.0
      %3009 = vmatprep.subr.mxu0 0.0
      %3010 = vmatpush1.msra.mxu0 0.0
      %3011 = vmatprep.subr.mxu0 0.0
      %3012 = vmatpush1.msra.mxu0 0.0
      %3013 = vmatprep.subr.mxu0 0.0
      %3014 = vmatpush1.msra.mxu0 0.0
      %3015 = vmatprep.subr.mxu0 0.0
      %3016 = vmatpush1.msra.mxu0 0.0
      %3017 = vmatprep.subr.mxu0 0.0
      %3018 = vmatpush1.msra.mxu0 0.0
      %3019 = vmatprep.subr.mxu0 0.0
      %3020 = vmatpush1.msra.mxu0 0.0
      %3021 = vmatprep.subr.mxu0 0.0
      %3022 = vmatpush1.msra.mxu0 0.0
      %3023 = vmatprep.subr.mxu0 0.0
      %3024 = vmatpush1.msra.mxu0 0.0
      %3025 = vmatprep.subr.mxu0 0.0
      %3026 = vmatpush1.msra.mxu0 0.0
      %3027 = vmatprep.subr.mxu0 0.0
      %3028 = vmatpush1.msra.mxu0 0.0
      %3029 = vmatprep.subr.mxu0 0.0
      %3030 = vmatpush1.msra.mxu0 0.0
      %3031 = vmatprep.subr.mxu0 0.0
      %3032 = vmatpush1.msra.mxu0 0.0
      %3033 = vmatprep.subr.mxu0 0.0
      %3034 = vmatpush1.msra.mxu0 0.0
      %3035 = vmatprep.mubr.f32.mxu0 0.0
      %v3036 = vand.u32 %v2798, 4294901760
      %3037 = vmatmul.mubr.f32.gmra.mrb[0].mxu0 %v3036
      %v3038 = vpop.f32.mrb[0].mxu0
      %v3039 = vadd.f32 %v2888, %v3038
      %v3040 = vpop.f32.mrb[0].mxu0
      %3041 = vdwg.mxu0
      %3042 = vmatprep.subr.mxu0 0.0
      %v3043 = vand.u32 %v321, 4294901760
      %v3044 = vsub.f32 %v321, %v3043
      %3045 = vmatpush1.msra.mxu0 %v3044
      %3046 = vmatprep.subr.mxu0 0.0
      %v3047 = vand.u32 %v322, 4294901760
      %v3048 = vsub.f32 %v322, %v3047
      %3049 = vmatpush1.msra.mxu0 %v3048
      %3050 = vmatprep.subr.mxu0 0.0
      %v3051 = vand.u32 %v323, 4294901760
      %v3052 = vsub.f32 %v323, %v3051
      %3053 = vmatpush1.msra.mxu0 %v3052
      %3054 = vmatprep.subr.mxu0 0.0
      %v3055 = vand.u32 %v324, 4294901760
      %v3056 = vsub.f32 %v324, %v3055
      %3057 = vmatpush1.msra.mxu0 %v3056
      %3058 = vmatprep.subr.mxu0 0.0
      %v3059 = vand.u32 %v325, 4294901760
      %v3060 = vsub.f32 %v325, %v3059
      %3061 = vmatpush1.msra.mxu0 %v3060
      %3062 = vmatprep.subr.mxu0 0.0
      %v3063 = vand.u32 %v326, 4294901760
      %v3064 = vsub.f32 %v326, %v3063
      %3065 = vmatpush1.msra.mxu0 %v3064
      %3066 = vmatprep.subr.mxu0 0.0
      %v3067 = vand.u32 %v327, 4294901760
      %v3068 = vsub.f32 %v327, %v3067
      %3069 = vmatpush1.msra.mxu0 %v3068
      %3070 = vmatprep.subr.mxu0 0.0
      %v3071 = vand.u32 %v328, 4294901760
      %v3072 = vsub.f32 %v328, %v3071
      %3073 = vmatpush1.msra.mxu0 %v3072
      %3074 = vmatprep.subr.mxu0 0.0
      %v3075 = vand.u32 %v329, 4294901760
      %v3076 = vsub.f32 %v329, %v3075
      %3077 = vmatpush1.msra.mxu0 %v3076
      %3078 = vmatprep.subr.mxu0 0.0
      %v3079 = vand.u32 %v330, 4294901760
      %v3080 = vsub.f32 %v330, %v3079
      %3081 = vmatpush1.msra.mxu0 %v3080
      %3082 = vmatprep.subr.mxu0 0.0
      %v3083 = vand.u32 %v331, 4294901760
      %v3084 = vsub.f32 %v331, %v3083
      %3085 = vmatpush1.msra.mxu0 %v3084
      %3086 = vmatprep.subr.mxu0 0.0
      %v3087 = vand.u32 %v332, 4294901760
      %v3088 = vsub.f32 %v332, %v3087
      %3089 = vmatpush1.msra.mxu0 %v3088
      %3090 = vmatprep.subr.mxu0 0.0
      %v3091 = vand.u32 %v333, 4294901760
      %v3092 = vsub.f32 %v333, %v3091
      %3093 = vmatpush1.msra.mxu0 %v3092
      %3094 = vmatprep.subr.mxu0 0.0
      %v3095 = vand.u32 %v334, 4294901760
      %v3096 = vsub.f32 %v334, %v3095
      %3097 = vmatpush1.msra.mxu0 %v3096
      %3098 = vmatprep.subr.mxu0 0.0
      %v3099 = vand.u32 %v335, 4294901760
      %v3100 = vsub.f32 %v335, %v3099
      %3101 = vmatpush1.msra.mxu0 %v3100
      %3102 = vmatprep.subr.mxu0 0.0
      %v3103 = vand.u32 %v336, 4294901760
      %v3104 = vsub.f32 %v336, %v3103
      %3105 = vmatpush1.msra.mxu0 %v3104
      %3106 = vmatprep.subr.mxu0 0.0
      %3107 = vmatpush1.msra.mxu0 0.0
      %3108 = vmatprep.subr.mxu0 0.0
      %3109 = vmatpush1.msra.mxu0 0.0
      %3110 = vmatprep.subr.mxu0 0.0
      %3111 = vmatpush1.msra.mxu0 0.0
      %3112 = vmatprep.subr.mxu0 0.0
      %3113 = vmatpush1.msra.mxu0 0.0
      %3114 = vmatprep.subr.mxu0 0.0
      %3115 = vmatpush1.msra.mxu0 0.0
      %3116 = vmatprep.subr.mxu0 0.0
      %3117 = vmatpush1.msra.mxu0 0.0
      %3118 = vmatprep.subr.mxu0 0.0
      %3119 = vmatpush1.msra.mxu0 0.0
      %3120 = vmatprep.subr.mxu0 0.0
      %3121 = vmatpush1.msra.mxu0 0.0
      %3122 = vmatprep.subr.mxu0 0.0
      %3123 = vmatpush1.msra.mxu0 0.0
      %3124 = vmatprep.subr.mxu0 0.0
      %3125 = vmatpush1.msra.mxu0 0.0
      %3126 = vmatprep.subr.mxu0 0.0
      %3127 = vmatpush1.msra.mxu0 0.0
      %3128 = vmatprep.subr.mxu0 0.0
      %3129 = vmatpush1.msra.mxu0 0.0
      %3130 = vmatprep.subr.mxu0 0.0
      %3131 = vmatpush1.msra.mxu0 0.0
      %3132 = vmatprep.subr.mxu0 0.0
      %3133 = vmatpush1.msra.mxu0 0.0
      %3134 = vmatprep.subr.mxu0 0.0
      %3135 = vmatpush1.msra.mxu0 0.0
      %3136 = vmatprep.subr.mxu0 0.0
      %3137 = vmatpush1.msra.mxu0 0.0
      %3138 = vmatprep.mubr.f32.mxu0 0.0
      %v3139 = vand.u32 %v2798, 4294901760
      %v3140 = vsub.f32 %v2798, %v3139
      %3141 = vmatmul.mubr.f32.gmra.mrb[0].mxu0 %v3140
      %v3142 = vpop.f32.mrb[0].mxu0
      %v3143 = vadd.f32 %v3039, %v3142
      %v3144 = vpop.f32.mrb[0].mxu0
      %3145 = vdwg.mxu0
      %3146 = vmatprep.subr.mxu0 0.0
      %v3147 = vand.u32 %v321, 4294901760
      %3148 = vmatpush1.msra.mxu0 %v3147
      %3149 = vmatprep.subr.mxu0 0.0
      %v3150 = vand.u32 %v322, 4294901760
      %3151 = vmatpush1.msra.mxu0 %v3150
      %3152 = vmatprep.subr.mxu0 0.0
      %v3153 = vand.u32 %v323, 4294901760
      %3154 = vmatpush1.msra.mxu0 %v3153
      %3155 = vmatprep.subr.mxu0 0.0
      %v3156 = vand.u32 %v324, 4294901760
      %3157 = vmatpush1.msra.mxu0 %v3156
      %3158 = vmatprep.subr.mxu0 0.0
      %v3159 = vand.u32 %v325, 4294901760
      %3160 = vmatpush1.msra.mxu0 %v3159
      %3161 = vmatprep.subr.mxu0 0.0
      %v3162 = vand.u32 %v326, 4294901760
      %3163 = vmatpush1.msra.mxu0 %v3162
      %3164 = vmatprep.subr.mxu0 0.0
      %v3165 = vand.u32 %v327, 4294901760
      %3166 = vmatpush1.msra.mxu0 %v3165
      %3167 = vmatprep.subr.mxu0 0.0
      %v3168 = vand.u32 %v328, 4294901760
      %3169 = vmatpush1.msra.mxu0 %v3168
      %3170 = vmatprep.subr.mxu0 0.0
      %v3171 = vand.u32 %v329, 4294901760
      %3172 = vmatpush1.msra.mxu0 %v3171
      %3173 = vmatprep.subr.mxu0 0.0
      %v3174 = vand.u32 %v330, 4294901760
      %3175 = vmatpush1.msra.mxu0 %v3174
      %3176 = vmatprep.subr.mxu0 0.0
      %v3177 = vand.u32 %v331, 4294901760
      %3178 = vmatpush1.msra.mxu0 %v3177
      %3179 = vmatprep.subr.mxu0 0.0
      %v3180 = vand.u32 %v332, 4294901760
      %3181 = vmatpush1.msra.mxu0 %v3180
      %3182 = vmatprep.subr.mxu0 0.0
      %v3183 = vand.u32 %v333, 4294901760
      %3184 = vmatpush1.msra.mxu0 %v3183
      %3185 = vmatprep.subr.mxu0 0.0
      %v3186 = vand.u32 %v334, 4294901760
      %3187 = vmatpush1.msra.mxu0 %v3186
      %3188 = vmatprep.subr.mxu0 0.0
      %v3189 = vand.u32 %v335, 4294901760
      %3190 = vmatpush1.msra.mxu0 %v3189
      %3191 = vmatprep.subr.mxu0 0.0
      %v3192 = vand.u32 %v336, 4294901760
      %3193 = vmatpush1.msra.mxu0 %v3192
      %3194 = vmatprep.subr.mxu0 0.0
      %3195 = vmatpush1.msra.mxu0 0.0
      %3196 = vmatprep.subr.mxu0 0.0
      %3197 = vmatpush1.msra.mxu0 0.0
      %3198 = vmatprep.subr.mxu0 0.0
      %3199 = vmatpush1.msra.mxu0 0.0
      %3200 = vmatprep.subr.mxu0 0.0
      %3201 = vmatpush1.msra.mxu0 0.0
      %3202 = vmatprep.subr.mxu0 0.0
      %3203 = vmatpush1.msra.mxu0 0.0
      %3204 = vmatprep.subr.mxu0 0.0
      %3205 = vmatpush1.msra.mxu0 0.0
      %3206 = vmatprep.subr.mxu0 0.0
      %3207 = vmatpush1.msra.mxu0 0.0
      %3208 = vmatprep.subr.mxu0 0.0
      %3209 = vmatpush1.msra.mxu0 0.0
      %3210 = vmatprep.subr.mxu0 0.0
      %3211 = vmatpush1.msra.mxu0 0.0
      %3212 = vmatprep.subr.mxu0 0.0
      %3213 = vmatpush1.msra.mxu0 0.0
      %3214 = vmatprep.subr.mxu0 0.0
      %3215 = vmatpush1.msra.mxu0 0.0
      %3216 = vmatprep.subr.mxu0 0.0
      %3217 = vmatpush1.msra.mxu0 0.0
      %3218 = vmatprep.subr.mxu0 0.0
      %3219 = vmatpush1.msra.mxu0 0.0
      %3220 = vmatprep.subr.mxu0 0.0
      %3221 = vmatpush1.msra.mxu0 0.0
      %3222 = vmatprep.subr.mxu0 0.0
      %3223 = vmatpush1.msra.mxu0 0.0
      %3224 = vmatprep.subr.mxu0 0.0
      %3225 = vmatpush1.msra.mxu0 0.0
      %3226 = vmatprep.mubr.f32.mxu0 0.0
      %v3227 = vand.u32 %v2798, 4294901760
      %v3228 = vsub.f32 %v2798, %v3227
      %v3229 = vand.u32 %v3228, 4294901760
      %3230 = vmatmul.mubr.f32.gmra.mrb[0].mxu0 %v3229
      %v3231 = vpop.f32.mrb[0].mxu0
      %v3232 = vadd.f32 %v3143, %v3231
      %v3233 = vpop.f32.mrb[0].mxu0
      %3234 = vdwg.mxu0
      %3235 = vmatprep.subr.mxu0 0.0
      %v3236 = vand.u32 %v321, 4294901760
      %v3237 = vsub.f32 %v321, %v3236
      %v3238 = vand.u32 %v3237, 4294901760
      %3239 = vmatpush1.msra.mxu0 %v3238
      %3240 = vmatprep.subr.mxu0 0.0
      %v3241 = vand.u32 %v322, 4294901760
      %v3242 = vsub.f32 %v322, %v3241
      %v3243 = vand.u32 %v3242, 4294901760
      %3244 = vmatpush1.msra.mxu0 %v3243
      %3245 = vmatprep.subr.mxu0 0.0
      %v3246 = vand.u32 %v323, 4294901760
      %v3247 = vsub.f32 %v323, %v3246
      %v3248 = vand.u32 %v3247, 4294901760
      %3249 = vmatpush1.msra.mxu0 %v3248
      %3250 = vmatprep.subr.mxu0 0.0
      %v3251 = vand.u32 %v324, 4294901760
      %v3252 = vsub.f32 %v324, %v3251
      %v3253 = vand.u32 %v3252, 4294901760
      %3254 = vmatpush1.msra.mxu0 %v3253
      %3255 = vmatprep.subr.mxu0 0.0
      %v3256 = vand.u32 %v325, 4294901760
      %v3257 = vsub.f32 %v325, %v3256
      %v3258 = vand.u32 %v3257, 4294901760
      %3259 = vmatpush1.msra.mxu0 %v3258
      %3260 = vmatprep.subr.mxu0 0.0
      %v3261 = vand.u32 %v326, 4294901760
      %v3262 = vsub.f32 %v326, %v3261
      %v3263 = vand.u32 %v3262, 4294901760
      %3264 = vmatpush1.msra.mxu0 %v3263
      %3265 = vmatprep.subr.mxu0 0.0
      %v3266 = vand.u32 %v327, 4294901760
      %v3267 = vsub.f32 %v327, %v3266
      %v3268 = vand.u32 %v3267, 4294901760
      %3269 = vmatpush1.msra.mxu0 %v3268
      %3270 = vmatprep.subr.mxu0 0.0
      %v3271 = vand.u32 %v328, 4294901760
      %v3272 = vsub.f32 %v328, %v3271
      %v3273 = vand.u32 %v3272, 4294901760
      %3274 = vmatpush1.msra.mxu0 %v3273
      %3275 = vmatprep.subr.mxu0 0.0
      %v3276 = vand.u32 %v329, 4294901760
      %v3277 = vsub.f32 %v329, %v3276
      %v3278 = vand.u32 %v3277, 4294901760
      %3279 = vmatpush1.msra.mxu0 %v3278
      %3280 = vmatprep.subr.mxu0 0.0
      %v3281 = vand.u32 %v330, 4294901760
      %v3282 = vsub.f32 %v330, %v3281
      %v3283 = vand.u32 %v3282, 4294901760
      %3284 = vmatpush1.msra.mxu0 %v3283
      %3285 = vmatprep.subr.mxu0 0.0
      %v3286 = vand.u32 %v331, 4294901760
      %v3287 = vsub.f32 %v331, %v3286
      %v3288 = vand.u32 %v3287, 4294901760
      %3289 = vmatpush1.msra.mxu0 %v3288
      %3290 = vmatprep.subr.mxu0 0.0
      %v3291 = vand.u32 %v332, 4294901760
      %v3292 = vsub.f32 %v332, %v3291
      %v3293 = vand.u32 %v3292, 4294901760
      %3294 = vmatpush1.msra.mxu0 %v3293
      %3295 = vmatprep.subr.mxu0 0.0
      %v3296 = vand.u32 %v333, 4294901760
      %v3297 = vsub.f32 %v333, %v3296
      %v3298 = vand.u32 %v3297, 4294901760
      %3299 = vmatpush1.msra.mxu0 %v3298
      %3300 = vmatprep.subr.mxu0 0.0
      %v3301 = vand.u32 %v334, 4294901760
      %v3302 = vsub.f32 %v334, %v3301
      %v3303 = vand.u32 %v3302, 4294901760
      %3304 = vmatpush1.msra.mxu0 %v3303
      %3305 = vmatprep.subr.mxu0 0.0
      %v3306 = vand.u32 %v335, 4294901760
      %v3307 = vsub.f32 %v335, %v3306
      %v3308 = vand.u32 %v3307, 4294901760
      %3309 = vmatpush1.msra.mxu0 %v3308
      %3310 = vmatprep.subr.mxu0 0.0
      %v3311 = vand.u32 %v336, 4294901760
      %v3312 = vsub.f32 %v336, %v3311
      %v3313 = vand.u32 %v3312, 4294901760
      %3314 = vmatpush1.msra.mxu0 %v3313
      %3315 = vmatprep.subr.mxu0 0.0
      %3316 = vmatpush1.msra.mxu0 0.0
      %3317 = vmatprep.subr.mxu0 0.0
      %3318 = vmatpush1.msra.mxu0 0.0
      %3319 = vmatprep.subr.mxu0 0.0
      %3320 = vmatpush1.msra.mxu0 0.0
      %3321 = vmatprep.subr.mxu0 0.0
      %3322 = vmatpush1.msra.mxu0 0.0
      %3323 = vmatprep.subr.mxu0 0.0
      %3324 = vmatpush1.msra.mxu0 0.0
      %3325 = vmatprep.subr.mxu0 0.0
      %3326 = vmatpush1.msra.mxu0 0.0
      %3327 = vmatprep.subr.mxu0 0.0
      %3328 = vmatpush1.msra.mxu0 0.0
      %3329 = vmatprep.subr.mxu0 0.0
      %3330 = vmatpush1.msra.mxu0 0.0
      %3331 = vmatprep.subr.mxu0 0.0
      %3332 = vmatpush1.msra.mxu0 0.0
      %3333 = vmatprep.subr.mxu0 0.0
      %3334 = vmatpush1.msra.mxu0 0.0
      %3335 = vmatprep.subr.mxu0 0.0
      %3336 = vmatpush1.msra.mxu0 0.0
      %3337 = vmatprep.subr.mxu0 0.0
      %3338 = vmatpush1.msra.mxu0 0.0
      %3339 = vmatprep.subr.mxu0 0.0
      %3340 = vmatpush1.msra.mxu0 0.0
      %3341 = vmatprep.subr.mxu0 0.0
      %3342 = vmatpush1.msra.mxu0 0.0
      %3343 = vmatprep.subr.mxu0 0.0
      %3344 = vmatpush1.msra.mxu0 0.0
      %3345 = vmatprep.subr.mxu0 0.0
      %3346 = vmatpush1.msra.mxu0 0.0
      %3347 = vmatprep.mubr.f32.mxu0 0.0
      %v3348 = vand.u32 %v2798, 4294901760
      %3349 = vmatmul.mubr.f32.gmra.mrb[0].mxu0 %v3348
      %v3350 = vpop.f32.mrb[0].mxu0
      %v3351 = vadd.f32 %v3232, %v3350
      %v3352 = vpop.f32.mrb[0].mxu0
      %3353 = vdwg.mxu0
      %3354 = vmatprep.subr.mxu0 0.0
      %v3355 = vand.u32 %v321, 4294901760
      %3356 = vmatpush1.msra.mxu0 %v3355
      %3357 = vmatprep.subr.mxu0 0.0
      %v3358 = vand.u32 %v322, 4294901760
      %3359 = vmatpush1.msra.mxu0 %v3358
      %3360 = vmatprep.subr.mxu0 0.0
      %v3361 = vand.u32 %v323, 4294901760
      %3362 = vmatpush1.msra.mxu0 %v3361
      %3363 = vmatprep.subr.mxu0 0.0
      %v3364 = vand.u32 %v324, 4294901760
      %3365 = vmatpush1.msra.mxu0 %v3364
      %3366 = vmatprep.subr.mxu0 0.0
      %v3367 = vand.u32 %v325, 4294901760
      %3368 = vmatpush1.msra.mxu0 %v3367
      %3369 = vmatprep.subr.mxu0 0.0
      %v3370 = vand.u32 %v326, 4294901760
      %3371 = vmatpush1.msra.mxu0 %v3370
      %3372 = vmatprep.subr.mxu0 0.0
      %v3373 = vand.u32 %v327, 4294901760
      %3374 = vmatpush1.msra.mxu0 %v3373
      %3375 = vmatprep.subr.mxu0 0.0
      %v3376 = vand.u32 %v328, 4294901760
      %3377 = vmatpush1.msra.mxu0 %v3376
      %3378 = vmatprep.subr.mxu0 0.0
      %v3379 = vand.u32 %v329, 4294901760
      %3380 = vmatpush1.msra.mxu0 %v3379
      %3381 = vmatprep.subr.mxu0 0.0
      %v3382 = vand.u32 %v330, 4294901760
      %3383 = vmatpush1.msra.mxu0 %v3382
      %3384 = vmatprep.subr.mxu0 0.0
      %v3385 = vand.u32 %v331, 4294901760
      %3386 = vmatpush1.msra.mxu0 %v3385
      %3387 = vmatprep.subr.mxu0 0.0
      %v3388 = vand.u32 %v332, 4294901760
      %3389 = vmatpush1.msra.mxu0 %v3388
      %3390 = vmatprep.subr.mxu0 0.0
      %v3391 = vand.u32 %v333, 4294901760
      %3392 = vmatpush1.msra.mxu0 %v3391
      %3393 = vmatprep.subr.mxu0 0.0
      %v3394 = vand.u32 %v334, 4294901760
      %3395 = vmatpush1.msra.mxu0 %v3394
      %3396 = vmatprep.subr.mxu0 0.0
      %v3397 = vand.u32 %v335, 4294901760
      %3398 = vmatpush1.msra.mxu0 %v3397
      %3399 = vmatprep.subr.mxu0 0.0
      %v3400 = vand.u32 %v336, 4294901760
      %3401 = vmatpush1.msra.mxu0 %v3400
      %3402 = vmatprep.subr.mxu0 0.0
      %3403 = vmatpush1.msra.mxu0 0.0
      %3404 = vmatprep.subr.mxu0 0.0
      %3405 = vmatpush1.msra.mxu0 0.0
      %3406 = vmatprep.subr.mxu0 0.0
      %3407 = vmatpush1.msra.mxu0 0.0
      %3408 = vmatprep.subr.mxu0 0.0
      %3409 = vmatpush1.msra.mxu0 0.0
      %3410 = vmatprep.subr.mxu0 0.0
      %3411 = vmatpush1.msra.mxu0 0.0
      %3412 = vmatprep.subr.mxu0 0.0
      %3413 = vmatpush1.msra.mxu0 0.0
      %3414 = vmatprep.subr.mxu0 0.0
      %3415 = vmatpush1.msra.mxu0 0.0
      %3416 = vmatprep.subr.mxu0 0.0
      %3417 = vmatpush1.msra.mxu0 0.0
      %3418 = vmatprep.subr.mxu0 0.0
      %3419 = vmatpush1.msra.mxu0 0.0
      %3420 = vmatprep.subr.mxu0 0.0
      %3421 = vmatpush1.msra.mxu0 0.0
      %3422 = vmatprep.subr.mxu0 0.0
      %3423 = vmatpush1.msra.mxu0 0.0
      %3424 = vmatprep.subr.mxu0 0.0
      %3425 = vmatpush1.msra.mxu0 0.0
      %3426 = vmatprep.subr.mxu0 0.0
      %3427 = vmatpush1.msra.mxu0 0.0
      %3428 = vmatprep.subr.mxu0 0.0
      %3429 = vmatpush1.msra.mxu0 0.0
      %3430 = vmatprep.subr.mxu0 0.0
      %3431 = vmatpush1.msra.mxu0 0.0
      %3432 = vmatprep.subr.mxu0 0.0
      %3433 = vmatpush1.msra.mxu0 0.0
      %3434 = vmatprep.mubr.f32.mxu0 0.0
      %v3435 = vand.u32 %v2798, 4294901760
      %3436 = vmatmul.mubr.f32.gmra.mrb[0].mxu0 %v3435
      %v3437 = vpop.f32.mrb[0].mxu0
      %v3438 = vadd.f32 %v3351, %v3437
      %v3439 = vpop.f32.mrb[0].mxu0
      %3440 = vdwg.mxu0
      %v3441 = vmul.f32 %v3438, 0.00390625
      %v3444 = vsel %vm2797, %v2794, %v2787
      %3446 = vmatprep.subr.mxu0 0.0
      %v3447 = vand.u32 %v321, 4294901760
      %3448 = vmatpush1.msra.mxu0 %v3447
      %3449 = vmatprep.subr.mxu0 0.0
      %v3450 = vand.u32 %v322, 4294901760
      %3451 = vmatpush1.msra.mxu0 %v3450
      %3452 = vmatprep.subr.mxu0 0.0
      %v3453 = vand.u32 %v323, 4294901760
      %3454 = vmatpush1.msra.mxu0 %v3453
      %3455 = vmatprep.subr.mxu0 0.0
      %v3456 = vand.u32 %v324, 4294901760
      %3457 = vmatpush1.msra.mxu0 %v3456
      %3458 = vmatprep.subr.mxu0 0.0
      %v3459 = vand.u32 %v325, 4294901760
      %3460 = vmatpush1.msra.mxu0 %v3459
      %3461 = vmatprep.subr.mxu0 0.0
      %v3462 = vand.u32 %v326, 4294901760
      %3463 = vmatpush1.msra.mxu0 %v3462
      %3464 = vmatprep.subr.mxu0 0.0
      %v3465 = vand.u32 %v327, 4294901760
      %3466 = vmatpush1.msra.mxu0 %v3465
      %3467 = vmatprep.subr.mxu0 0.0
      %v3468 = vand.u32 %v328, 4294901760
      %3469 = vmatpush1.msra.mxu0 %v3468
      %3470 = vmatprep.subr.mxu0 0.0
      %v3471 = vand.u32 %v329, 4294901760
      %3472 = vmatpush1.msra.mxu0 %v3471
      %3473 = vmatprep.subr.mxu0 0.0
      %v3474 = vand.u32 %v330, 4294901760
      %3475 = vmatpush1.msra.mxu0 %v3474
      %3476 = vmatprep.subr.mxu0 0.0
      %v3477 = vand.u32 %v331, 4294901760
      %3478 = vmatpush1.msra.mxu0 %v3477
      %3479 = vmatprep.subr.mxu0 0.0
      %v3480 = vand.u32 %v332, 4294901760
      %3481 = vmatpush1.msra.mxu0 %v3480
      %3482 = vmatprep.subr.mxu0 0.0
      %v3483 = vand.u32 %v333, 4294901760
      %3484 = vmatpush1.msra.mxu0 %v3483
      %3485 = vmatprep.subr.mxu0 0.0
      %v3486 = vand.u32 %v334, 4294901760
      %3487 = vmatpush1.msra.mxu0 %v3486
      %3488 = vmatprep.subr.mxu0 0.0
      %v3489 = vand.u32 %v335, 4294901760
      %3490 = vmatpush1.msra.mxu0 %v3489
      %3491 = vmatprep.subr.mxu0 0.0
      %v3492 = vand.u32 %v336, 4294901760
      %3493 = vmatpush1.msra.mxu0 %v3492
      %3494 = vmatprep.subr.mxu0 0.0
      %3495 = vmatpush1.msra.mxu0 0.0
      %3496 = vmatprep.subr.mxu0 0.0
      %3497 = vmatpush1.msra.mxu0 0.0
      %3498 = vmatprep.subr.mxu0 0.0
      %3499 = vmatpush1.msra.mxu0 0.0
      %3500 = vmatprep.subr.mxu0 0.0
      %3501 = vmatpush1.msra.mxu0 0.0
      %3502 = vmatprep.subr.mxu0 0.0
      %3503 = vmatpush1.msra.mxu0 0.0
      %3504 = vmatprep.subr.mxu0 0.0
      %3505 = vmatpush1.msra.mxu0 0.0
      %3506 = vmatprep.subr.mxu0 0.0
      %3507 = vmatpush1.msra.mxu0 0.0
      %3508 = vmatprep.subr.mxu0 0.0
      %3509 = vmatpush1.msra.mxu0 0.0
      %3510 = vmatprep.subr.mxu0 0.0
      %3511 = vmatpush1.msra.mxu0 0.0
      %3512 = vmatprep.subr.mxu0 0.0
      %3513 = vmatpush1.msra.mxu0 0.0
      %3514 = vmatprep.subr.mxu0 0.0
      %3515 = vmatpush1.msra.mxu0 0.0
      %3516 = vmatprep.subr.mxu0 0.0
      %3517 = vmatpush1.msra.mxu0 0.0
      %3518 = vmatprep.subr.mxu0 0.0
      %3519 = vmatpush1.msra.mxu0 0.0
      %3520 = vmatprep.subr.mxu0 0.0
      %3521 = vmatpush1.msra.mxu0 0.0
      %3522 = vmatprep.subr.mxu0 0.0
      %3523 = vmatpush1.msra.mxu0 0.0
      %3524 = vmatprep.subr.mxu0 0.0
      %3525 = vmatpush1.msra.mxu0 0.0
      %3526 = vmatprep.mubr.f32.mxu0 0.0
      %v3527 = vand.u32 %v3444, 4294901760
      %v3528 = vsub.f32 %v3444, %v3527
      %v3529 = vand.u32 %v3528, 4294901760
      %v3530 = vsub.f32 %v3528, %v3529
      %v3531 = vand.u32 %v3530, 4294901760
      %3532 = vmatmul.mubr.f32.gmra.mrb[0].mxu0 %v3531
      %v3533 = vpop.f32.mrb[0].mxu0
      %v3534 = vadd.f32 0.0, %v3533
      %v3535 = vpop.f32.mrb[0].mxu0
      %3536 = vdwg.mxu0
      %3537 = vmatprep.subr.mxu0 0.0
      %v3538 = vand.u32 %v321, 4294901760
      %v3539 = vsub.f32 %v321, %v3538
      %v3540 = vand.u32 %v3539, 4294901760
      %v3541 = vsub.f32 %v3539, %v3540
      %v3542 = vand.u32 %v3541, 4294901760
      %3543 = vmatpush1.msra.mxu0 %v3542
      %3544 = vmatprep.subr.mxu0 0.0
      %v3545 = vand.u32 %v322, 4294901760
      %v3546 = vsub.f32 %v322, %v3545
      %v3547 = vand.u32 %v3546, 4294901760
      %v3548 = vsub.f32 %v3546, %v3547
      %v3549 = vand.u32 %v3548, 4294901760
      %3550 = vmatpush1.msra.mxu0 %v3549
      %3551 = vmatprep.subr.mxu0 0.0
      %v3552 = vand.u32 %v323, 4294901760
      %v3553 = vsub.f32 %v323, %v3552
      %v3554 = vand.u32 %v3553, 4294901760
      %v3555 = vsub.f32 %v3553, %v3554
      %v3556 = vand.u32 %v3555, 4294901760
      %3557 = vmatpush1.msra.mxu0 %v3556
      %3558 = vmatprep.subr.mxu0 0.0
      %v3559 = vand.u32 %v324, 4294901760
      %v3560 = vsub.f32 %v324, %v3559
      %v3561 = vand.u32 %v3560, 4294901760
      %v3562 = vsub.f32 %v3560, %v3561
      %v3563 = vand.u32 %v3562, 4294901760
      %3564 = vmatpush1.msra.mxu0 %v3563
      %3565 = vmatprep.subr.mxu0 0.0
      %v3566 = vand.u32 %v325, 4294901760
      %v3567 = vsub.f32 %v325, %v3566
      %v3568 = vand.u32 %v3567, 4294901760
      %v3569 = vsub.f32 %v3567, %v3568
      %v3570 = vand.u32 %v3569, 4294901760
      %3571 = vmatpush1.msra.mxu0 %v3570
      %3572 = vmatprep.subr.mxu0 0.0
      %v3573 = vand.u32 %v326, 4294901760
      %v3574 = vsub.f32 %v326, %v3573
      %v3575 = vand.u32 %v3574, 4294901760
      %v3576 = vsub.f32 %v3574, %v3575
      %v3577 = vand.u32 %v3576, 4294901760
      %3578 = vmatpush1.msra.mxu0 %v3577
      %3579 = vmatprep.subr.mxu0 0.0
      %v3580 = vand.u32 %v327, 4294901760
      %v3581 = vsub.f32 %v327, %v3580
      %v3582 = vand.u32 %v3581, 4294901760
      %v3583 = vsub.f32 %v3581, %v3582
      %v3584 = vand.u32 %v3583, 4294901760
      %3585 = vmatpush1.msra.mxu0 %v3584
      %3586 = vmatprep.subr.mxu0 0.0
      %v3587 = vand.u32 %v328, 4294901760
      %v3588 = vsub.f32 %v328, %v3587
      %v3589 = vand.u32 %v3588, 4294901760
      %v3590 = vsub.f32 %v3588, %v3589
      %v3591 = vand.u32 %v3590, 4294901760
      %3592 = vmatpush1.msra.mxu0 %v3591
      %3593 = vmatprep.subr.mxu0 0.0
      %v3594 = vand.u32 %v329, 4294901760
      %v3595 = vsub.f32 %v329, %v3594
      %v3596 = vand.u32 %v3595, 4294901760
      %v3597 = vsub.f32 %v3595, %v3596
      %v3598 = vand.u32 %v3597, 4294901760
      %3599 = vmatpush1.msra.mxu0 %v3598
      %3600 = vmatprep.subr.mxu0 0.0
      %v3601 = vand.u32 %v330, 4294901760
      %v3602 = vsub.f32 %v330, %v3601
      %v3603 = vand.u32 %v3602, 4294901760
      %v3604 = vsub.f32 %v3602, %v3603
      %v3605 = vand.u32 %v3604, 4294901760
      %3606 = vmatpush1.msra.mxu0 %v3605
      %3607 = vmatprep.subr.mxu0 0.0
      %v3608 = vand.u32 %v331, 4294901760
      %v3609 = vsub.f32 %v331, %v3608
      %v3610 = vand.u32 %v3609, 4294901760
      %v3611 = vsub.f32 %v3609, %v3610
      %v3612 = vand.u32 %v3611, 4294901760
      %3613 = vmatpush1.msra.mxu0 %v3612
      %3614 = vmatprep.subr.mxu0 0.0
      %v3615 = vand.u32 %v332, 4294901760
      %v3616 = vsub.f32 %v332, %v3615
      %v3617 = vand.u32 %v3616, 4294901760
      %v3618 = vsub.f32 %v3616, %v3617
      %v3619 = vand.u32 %v3618, 4294901760
      %3620 = vmatpush1.msra.mxu0 %v3619
      %3621 = vmatprep.subr.mxu0 0.0
      %v3622 = vand.u32 %v333, 4294901760
      %v3623 = vsub.f32 %v333, %v3622
      %v3624 = vand.u32 %v3623, 4294901760
      %v3625 = vsub.f32 %v3623, %v3624
      %v3626 = vand.u32 %v3625, 4294901760
      %3627 = vmatpush1.msra.mxu0 %v3626
      %3628 = vmatprep.subr.mxu0 0.0
      %v3629 = vand.u32 %v334, 4294901760
      %v3630 = vsub.f32 %v334, %v3629
      %v3631 = vand.u32 %v3630, 4294901760
      %v3632 = vsub.f32 %v3630, %v3631
      %v3633 = vand.u32 %v3632, 4294901760
      %3634 = vmatpush1.msra.mxu0 %v3633
      %3635 = vmatprep.subr.mxu0 0.0
      %v3636 = vand.u32 %v335, 4294901760
      %v3637 = vsub.f32 %v335, %v3636
      %v3638 = vand.u32 %v3637, 4294901760
      %v3639 = vsub.f32 %v3637, %v3638
      %v3640 = vand.u32 %v3639, 4294901760
      %3641 = vmatpush1.msra.mxu0 %v3640
      %3642 = vmatprep.subr.mxu0 0.0
      %v3643 = vand.u32 %v336, 4294901760
      %v3644 = vsub.f32 %v336, %v3643
      %v3645 = vand.u32 %v3644, 4294901760
      %v3646 = vsub.f32 %v3644, %v3645
      %v3647 = vand.u32 %v3646, 4294901760
      %3648 = vmatpush1.msra.mxu0 %v3647
      %3649 = vmatprep.subr.mxu0 0.0
      %3650 = vmatpush1.msra.mxu0 0.0
      %3651 = vmatprep.subr.mxu0 0.0
      %3652 = vmatpush1.msra.mxu0 0.0
      %3653 = vmatprep.subr.mxu0 0.0
      %3654 = vmatpush1.msra.mxu0 0.0
      %3655 = vmatprep.subr.mxu0 0.0
      %3656 = vmatpush1.msra.mxu0 0.0
      %3657 = vmatprep.subr.mxu0 0.0
      %3658 = vmatpush1.msra.mxu0 0.0
      %3659 = vmatprep.subr.mxu0 0.0
      %3660 = vmatpush1.msra.mxu0 0.0
      %3661 = vmatprep.subr.mxu0 0.0
      %3662 = vmatpush1.msra.mxu0 0.0
      %3663 = vmatprep.subr.mxu0 0.0
      %3664 = vmatpush1.msra.mxu0 0.0
      %3665 = vmatprep.subr.mxu0 0.0
      %3666 = vmatpush1.msra.mxu0 0.0
      %3667 = vmatprep.subr.mxu0 0.0
      %3668 = vmatpush1.msra.mxu0 0.0
      %3669 = vmatprep.subr.mxu0 0.0
      %3670 = vmatpush1.msra.mxu0 0.0
      %3671 = vmatprep.subr.mxu0 0.0
      %3672 = vmatpush1.msra.mxu0 0.0
      %3673 = vmatprep.subr.mxu0 0.0
      %3674 = vmatpush1.msra.mxu0 0.0
      %3675 = vmatprep.subr.mxu0 0.0
      %3676 = vmatpush1.msra.mxu0 0.0
      %3677 = vmatprep.subr.mxu0 0.0
      %3678 = vmatpush1.msra.mxu0 0.0
      %3679 = vmatprep.subr.mxu0 0.0
      %3680 = vmatpush1.msra.mxu0 0.0
      %3681 = vmatprep.mubr.f32.mxu0 0.0
      %v3682 = vand.u32 %v3444, 4294901760
      %3683 = vmatmul.mubr.f32.gmra.mrb[0].mxu0 %v3682
      %v3684 = vpop.f32.mrb[0].mxu0
      %v3685 = vadd.f32 %v3534, %v3684
      %v3686 = vpop.f32.mrb[0].mxu0
      %3687 = vdwg.mxu0
      %3688 = vmatprep.subr.mxu0 0.0
      %v3689 = vand.u32 %v321, 4294901760
      %v3690 = vsub.f32 %v321, %v3689
      %3691 = vmatpush1.msra.mxu0 %v3690
      %3692 = vmatprep.subr.mxu0 0.0
      %v3693 = vand.u32 %v322, 4294901760
      %v3694 = vsub.f32 %v322, %v3693
      %3695 = vmatpush1.msra.mxu0 %v3694
      %3696 = vmatprep.subr.mxu0 0.0
      %v3697 = vand.u32 %v323, 4294901760
      %v3698 = vsub.f32 %v323, %v3697
      %3699 = vmatpush1.msra.mxu0 %v3698
      %3700 = vmatprep.subr.mxu0 0.0
      %v3701 = vand.u32 %v324, 4294901760
      %v3702 = vsub.f32 %v324, %v3701
      %3703 = vmatpush1.msra.mxu0 %v3702
      %3704 = vmatprep.subr.mxu0 0.0
      %v3705 = vand.u32 %v325, 4294901760
      %v3706 = vsub.f32 %v325, %v3705
      %3707 = vmatpush1.msra.mxu0 %v3706
      %3708 = vmatprep.subr.mxu0 0.0
      %v3709 = vand.u32 %v326, 4294901760
      %v3710 = vsub.f32 %v326, %v3709
      %3711 = vmatpush1.msra.mxu0 %v3710
      %3712 = vmatprep.subr.mxu0 0.0
      %v3713 = vand.u32 %v327, 4294901760
      %v3714 = vsub.f32 %v327, %v3713
      %3715 = vmatpush1.msra.mxu0 %v3714
      %3716 = vmatprep.subr.mxu0 0.0
      %v3717 = vand.u32 %v328, 4294901760
      %v3718 = vsub.f32 %v328, %v3717
      %3719 = vmatpush1.msra.mxu0 %v3718
      %3720 = vmatprep.subr.mxu0 0.0
      %v3721 = vand.u32 %v329, 4294901760
      %v3722 = vsub.f32 %v329, %v3721
      %3723 = vmatpush1.msra.mxu0 %v3722
      %3724 = vmatprep.subr.mxu0 0.0
      %v3725 = vand.u32 %v330, 4294901760
      %v3726 = vsub.f32 %v330, %v3725
      %3727 = vmatpush1.msra.mxu0 %v3726
      %3728 = vmatprep.subr.mxu0 0.0
      %v3729 = vand.u32 %v331, 4294901760
      %v3730 = vsub.f32 %v331, %v3729
      %3731 = vmatpush1.msra.mxu0 %v3730
      %3732 = vmatprep.subr.mxu0 0.0
      %v3733 = vand.u32 %v332, 4294901760
      %v3734 = vsub.f32 %v332, %v3733
      %3735 = vmatpush1.msra.mxu0 %v3734
      %3736 = vmatprep.subr.mxu0 0.0
      %v3737 = vand.u32 %v333, 4294901760
      %v3738 = vsub.f32 %v333, %v3737
      %3739 = vmatpush1.msra.mxu0 %v3738
      %3740 = vmatprep.subr.mxu0 0.0
      %v3741 = vand.u32 %v334, 4294901760
      %v3742 = vsub.f32 %v334, %v3741
      %3743 = vmatpush1.msra.mxu0 %v3742
      %3744 = vmatprep.subr.mxu0 0.0
      %v3745 = vand.u32 %v335, 4294901760
      %v3746 = vsub.f32 %v335, %v3745
      %3747 = vmatpush1.msra.mxu0 %v3746
      %3748 = vmatprep.subr.mxu0 0.0
      %v3749 = vand.u32 %v336, 4294901760
      %v3750 = vsub.f32 %v336, %v3749
      %3751 = vmatpush1.msra.mxu0 %v3750
      %3752 = vmatprep.subr.mxu0 0.0
      %3753 = vmatpush1.msra.mxu0 0.0
      %3754 = vmatprep.subr.mxu0 0.0
      %3755 = vmatpush1.msra.mxu0 0.0
      %3756 = vmatprep.subr.mxu0 0.0
      %3757 = vmatpush1.msra.mxu0 0.0
      %3758 = vmatprep.subr.mxu0 0.0
      %3759 = vmatpush1.msra.mxu0 0.0
      %3760 = vmatprep.subr.mxu0 0.0
      %3761 = vmatpush1.msra.mxu0 0.0
      %3762 = vmatprep.subr.mxu0 0.0
      %3763 = vmatpush1.msra.mxu0 0.0
      %3764 = vmatprep.subr.mxu0 0.0
      %3765 = vmatpush1.msra.mxu0 0.0
      %3766 = vmatprep.subr.mxu0 0.0
      %3767 = vmatpush1.msra.mxu0 0.0
      %3768 = vmatprep.subr.mxu0 0.0
      %3769 = vmatpush1.msra.mxu0 0.0
      %3770 = vmatprep.subr.mxu0 0.0
      %3771 = vmatpush1.msra.mxu0 0.0
      %3772 = vmatprep.subr.mxu0 0.0
      %3773 = vmatpush1.msra.mxu0 0.0
      %3774 = vmatprep.subr.mxu0 0.0
      %3775 = vmatpush1.msra.mxu0 0.0
      %3776 = vmatprep.subr.mxu0 0.0
      %3777 = vmatpush1.msra.mxu0 0.0
      %3778 = vmatprep.subr.mxu0 0.0
      %3779 = vmatpush1.msra.mxu0 0.0
      %3780 = vmatprep.subr.mxu0 0.0
      %3781 = vmatpush1.msra.mxu0 0.0
      %3782 = vmatprep.subr.mxu0 0.0
      %3783 = vmatpush1.msra.mxu0 0.0
      %3784 = vmatprep.mubr.f32.mxu0 0.0
      %v3785 = vand.u32 %v3444, 4294901760
      %v3786 = vsub.f32 %v3444, %v3785
      %3787 = vmatmul.mubr.f32.gmra.mrb[0].mxu0 %v3786
      %v3788 = vpop.f32.mrb[0].mxu0
      %v3789 = vadd.f32 %v3685, %v3788
      %v3790 = vpop.f32.mrb[0].mxu0
      %3791 = vdwg.mxu0
      %3792 = vmatprep.subr.mxu0 0.0
      %v3793 = vand.u32 %v321, 4294901760
      %3794 = vmatpush1.msra.mxu0 %v3793
      %3795 = vmatprep.subr.mxu0 0.0
      %v3796 = vand.u32 %v322, 4294901760
      %3797 = vmatpush1.msra.mxu0 %v3796
      %3798 = vmatprep.subr.mxu0 0.0
      %v3799 = vand.u32 %v323, 4294901760
      %3800 = vmatpush1.msra.mxu0 %v3799
      %3801 = vmatprep.subr.mxu0 0.0
      %v3802 = vand.u32 %v324, 4294901760
      %3803 = vmatpush1.msra.mxu0 %v3802
      %3804 = vmatprep.subr.mxu0 0.0
      %v3805 = vand.u32 %v325, 4294901760
      %3806 = vmatpush1.msra.mxu0 %v3805
      %3807 = vmatprep.subr.mxu0 0.0
      %v3808 = vand.u32 %v326, 4294901760
      %3809 = vmatpush1.msra.mxu0 %v3808
      %3810 = vmatprep.subr.mxu0 0.0
      %v3811 = vand.u32 %v327, 4294901760
      %3812 = vmatpush1.msra.mxu0 %v3811
      %3813 = vmatprep.subr.mxu0 0.0
      %v3814 = vand.u32 %v328, 4294901760
      %3815 = vmatpush1.msra.mxu0 %v3814
      %3816 = vmatprep.subr.mxu0 0.0
      %v3817 = vand.u32 %v329, 4294901760
      %3818 = vmatpush1.msra.mxu0 %v3817
      %3819 = vmatprep.subr.mxu0 0.0
      %v3820 = vand.u32 %v330, 4294901760
      %3821 = vmatpush1.msra.mxu0 %v3820
      %3822 = vmatprep.subr.mxu0 0.0
      %v3823 = vand.u32 %v331, 4294901760
      %3824 = vmatpush1.msra.mxu0 %v3823
      %3825 = vmatprep.subr.mxu0 0.0
      %v3826 = vand.u32 %v332, 4294901760
      %3827 = vmatpush1.msra.mxu0 %v3826
      %3828 = vmatprep.subr.mxu0 0.0
      %v3829 = vand.u32 %v333, 4294901760
      %3830 = vmatpush1.msra.mxu0 %v3829
      %3831 = vmatprep.subr.mxu0 0.0
      %v3832 = vand.u32 %v334, 4294901760
      %3833 = vmatpush1.msra.mxu0 %v3832
      %3834 = vmatprep.subr.mxu0 0.0
      %v3835 = vand.u32 %v335, 4294901760
      %3836 = vmatpush1.msra.mxu0 %v3835
      %3837 = vmatprep.subr.mxu0 0.0
      %v3838 = vand.u32 %v336, 4294901760
      %3839 = vmatpush1.msra.mxu0 %v3838
      %3840 = vmatprep.subr.mxu0 0.0
      %3841 = vmatpush1.msra.mxu0 0.0
      %3842 = vmatprep.subr.mxu0 0.0
      %3843 = vmatpush1.msra.mxu0 0.0
      %3844 = vmatprep.subr.mxu0 0.0
      %3845 = vmatpush1.msra.mxu0 0.0
      %3846 = vmatprep.subr.mxu0 0.0
      %3847 = vmatpush1.msra.mxu0 0.0
      %3848 = vmatprep.subr.mxu0 0.0
      %3849 = vmatpush1.msra.mxu0 0.0
      %3850 = vmatprep.subr.mxu0 0.0
      %3851 = vmatpush1.msra.mxu0 0.0
      %3852 = vmatprep.subr.mxu0 0.0
      %3853 = vmatpush1.msra.mxu0 0.0
      %3854 = vmatprep.subr.mxu0 0.0
      %3855 = vmatpush1.msra.mxu0 0.0
      %3856 = vmatprep.subr.mxu0 0.0
      %3857 = vmatpush1.msra.mxu0 0.0
      %3858 = vmatprep.subr.mxu0 0.0
      %3859 = vmatpush1.msra.mxu0 0.0
      %3860 = vmatprep.subr.mxu0 0.0
      %3861 = vmatpush1.msra.mxu0 0.0
      %3862 = vmatprep.subr.mxu0 0.0
      %3863 = vmatpush1.msra.mxu0 0.0
      %3864 = vmatprep.subr.mxu0 0.0
      %3865 = vmatpush1.msra.mxu0 0.0
      %3866 = vmatprep.subr.mxu0 0.0
      %3867 = vmatpush1.msra.mxu0 0.0
      %3868 = vmatprep.subr.mxu0 0.0
      %3869 = vmatpush1.msra.mxu0 0.0
      %3870 = vmatprep.subr.mxu0 0.0
      %3871 = vmatpush1.msra.mxu0 0.0
      %3872 = vmatprep.mubr.f32.mxu0 0.0
      %v3873 = vand.u32 %v3444, 4294901760
      %v3874 = vsub.f32 %v3444, %v3873
      %v3875 = vand.u32 %v3874, 4294901760
      %3876 = vmatmul.mubr.f32.gmra.mrb[0].mxu0 %v3875
      %v3877 = vpop.f32.mrb[0].mxu0
      %v3878 = vadd.f32 %v3789, %v3877
      %v3879 = vpop.f32.mrb[0].mxu0
      %3880 = vdwg.mxu0
      %3881 = vmatprep.subr.mxu0 0.0
      %v3882 = vand.u32 %v321, 4294901760
      %v3883 = vsub.f32 %v321, %v3882
      %v3884 = vand.u32 %v3883, 4294901760
      %3885 = vmatpush1.msra.mxu0 %v3884
      %3886 = vmatprep.subr.mxu0 0.0
      %v3887 = vand.u32 %v322, 4294901760
      %v3888 = vsub.f32 %v322, %v3887
      %v3889 = vand.u32 %v3888, 4294901760
      %3890 = vmatpush1.msra.mxu0 %v3889
      %3891 = vmatprep.subr.mxu0 0.0
      %v3892 = vand.u32 %v323, 4294901760
      %v3893 = vsub.f32 %v323, %v3892
      %v3894 = vand.u32 %v3893, 4294901760
      %3895 = vmatpush1.msra.mxu0 %v3894
      %3896 = vmatprep.subr.mxu0 0.0
      %v3897 = vand.u32 %v324, 4294901760
      %v3898 = vsub.f32 %v324, %v3897
      %v3899 = vand.u32 %v3898, 4294901760
      %3900 = vmatpush1.msra.mxu0 %v3899
      %3901 = vmatprep.subr.mxu0 0.0
      %v3902 = vand.u32 %v325, 4294901760
      %v3903 = vsub.f32 %v325, %v3902
      %v3904 = vand.u32 %v3903, 4294901760
      %3905 = vmatpush1.msra.mxu0 %v3904
      %3906 = vmatprep.subr.mxu0 0.0
      %v3907 = vand.u32 %v326, 4294901760
      %v3908 = vsub.f32 %v326, %v3907
      %v3909 = vand.u32 %v3908, 4294901760
      %3910 = vmatpush1.msra.mxu0 %v3909
      %3911 = vmatprep.subr.mxu0 0.0
      %v3912 = vand.u32 %v327, 4294901760
      %v3913 = vsub.f32 %v327, %v3912
      %v3914 = vand.u32 %v3913, 4294901760
      %3915 = vmatpush1.msra.mxu0 %v3914
      %3916 = vmatprep.subr.mxu0 0.0
      %v3917 = vand.u32 %v328, 4294901760
      %v3918 = vsub.f32 %v328, %v3917
      %v3919 = vand.u32 %v3918, 4294901760
      %3920 = vmatpush1.msra.mxu0 %v3919
      %3921 = vmatprep.subr.mxu0 0.0
      %v3922 = vand.u32 %v329, 4294901760
      %v3923 = vsub.f32 %v329, %v3922
      %v3924 = vand.u32 %v3923, 4294901760
      %3925 = vmatpush1.msra.mxu0 %v3924
      %3926 = vmatprep.subr.mxu0 0.0
      %v3927 = vand.u32 %v330, 4294901760
      %v3928 = vsub.f32 %v330, %v3927
      %v3929 = vand.u32 %v3928, 4294901760
      %3930 = vmatpush1.msra.mxu0 %v3929
      %3931 = vmatprep.subr.mxu0 0.0
      %v3932 = vand.u32 %v331, 4294901760
      %v3933 = vsub.f32 %v331, %v3932
      %v3934 = vand.u32 %v3933, 4294901760
      %3935 = vmatpush1.msra.mxu0 %v3934
      %3936 = vmatprep.subr.mxu0 0.0
      %v3937 = vand.u32 %v332, 4294901760
      %v3938 = vsub.f32 %v332, %v3937
      %v3939 = vand.u32 %v3938, 4294901760
      %3940 = vmatpush1.msra.mxu0 %v3939
      %3941 = vmatprep.subr.mxu0 0.0
      %v3942 = vand.u32 %v333, 4294901760
      %v3943 = vsub.f32 %v333, %v3942
      %v3944 = vand.u32 %v3943, 4294901760
      %3945 = vmatpush1.msra.mxu0 %v3944
      %3946 = vmatprep.subr.mxu0 0.0
      %v3947 = vand.u32 %v334, 4294901760
      %v3948 = vsub.f32 %v334, %v3947
      %v3949 = vand.u32 %v3948, 4294901760
      %3950 = vmatpush1.msra.mxu0 %v3949
      %3951 = vmatprep.subr.mxu0 0.0
      %v3952 = vand.u32 %v335, 4294901760
      %v3953 = vsub.f32 %v335, %v3952
      %v3954 = vand.u32 %v3953, 4294901760
      %3955 = vmatpush1.msra.mxu0 %v3954
      %3956 = vmatprep.subr.mxu0 0.0
      %v3957 = vand.u32 %v336, 4294901760
      %v3958 = vsub.f32 %v336, %v3957
      %v3959 = vand.u32 %v3958, 4294901760
      %3960 = vmatpush1.msra.mxu0 %v3959
      %3961 = vmatprep.subr.mxu0 0.0
      %3962 = vmatpush1.msra.mxu0 0.0
      %3963 = vmatprep.subr.mxu0 0.0
      %3964 = vmatpush1.msra.mxu0 0.0
      %3965 = vmatprep.subr.mxu0 0.0
      %3966 = vmatpush1.msra.mxu0 0.0
      %3967 = vmatprep.subr.mxu0 0.0
      %3968 = vmatpush1.msra.mxu0 0.0
      %3969 = vmatprep.subr.mxu0 0.0
      %3970 = vmatpush1.msra.mxu0 0.0
      %3971 = vmatprep.subr.mxu0 0.0
      %3972 = vmatpush1.msra.mxu0 0.0
      %3973 = vmatprep.subr.mxu0 0.0
      %3974 = vmatpush1.msra.mxu0 0.0
      %3975 = vmatprep.subr.mxu0 0.0
      %3976 = vmatpush1.msra.mxu0 0.0
      %3977 = vmatprep.subr.mxu0 0.0
      %3978 = vmatpush1.msra.mxu0 0.0
      %3979 = vmatprep.subr.mxu0 0.0
      %3980 = vmatpush1.msra.mxu0 0.0
      %3981 = vmatprep.subr.mxu0 0.0
      %3982 = vmatpush1.msra.mxu0 0.0
      %3983 = vmatprep.subr.mxu0 0.0
      %3984 = vmatpush1.msra.mxu0 0.0
      %3985 = vmatprep.subr.mxu0 0.0
      %3986 = vmatpush1.msra.mxu0 0.0
      %3987 = vmatprep.subr.mxu0 0.0
      %3988 = vmatpush1.msra.mxu0 0.0
      %3989 = vmatprep.subr.mxu0 0.0
      %3990 = vmatpush1.msra.mxu0 0.0
      %3991 = vmatprep.subr.mxu0 0.0
      %3992 = vmatpush1.msra.mxu0 0.0
      %3993 = vmatprep.mubr.f32.mxu0 0.0
      %v3994 = vand.u32 %v3444, 4294901760
      %3995 = vmatmul.mubr.f32.gmra.mrb[0].mxu0 %v3994
      %v3996 = vpop.f32.mrb[0].mxu0
      %v3997 = vadd.f32 %v3878, %v3996
      %v3998 = vpop.f32.mrb[0].mxu0
      %3999 = vdwg.mxu0
      %4000 = vmatprep.subr.mxu0 0.0
      %v4001 = vand.u32 %v321, 4294901760
      %4002 = vmatpush1.msra.mxu0 %v4001
      %4003 = vmatprep.subr.mxu0 0.0
      %v4004 = vand.u32 %v322, 4294901760
      %4005 = vmatpush1.msra.mxu0 %v4004
      %4006 = vmatprep.subr.mxu0 0.0
      %v4007 = vand.u32 %v323, 4294901760
      %4008 = vmatpush1.msra.mxu0 %v4007
      %4009 = vmatprep.subr.mxu0 0.0
      %v4010 = vand.u32 %v324, 4294901760
      %4011 = vmatpush1.msra.mxu0 %v4010
      %4012 = vmatprep.subr.mxu0 0.0
      %v4013 = vand.u32 %v325, 4294901760
      %4014 = vmatpush1.msra.mxu0 %v4013
      %4015 = vmatprep.subr.mxu0 0.0
      %v4016 = vand.u32 %v326, 4294901760
      %4017 = vmatpush1.msra.mxu0 %v4016
      %4018 = vmatprep.subr.mxu0 0.0
      %v4019 = vand.u32 %v327, 4294901760
      %4020 = vmatpush1.msra.mxu0 %v4019
      %4021 = vmatprep.subr.mxu0 0.0
      %v4022 = vand.u32 %v328, 4294901760
      %4023 = vmatpush1.msra.mxu0 %v4022
      %4024 = vmatprep.subr.mxu0 0.0
      %v4025 = vand.u32 %v329, 4294901760
      %4026 = vmatpush1.msra.mxu0 %v4025
      %4027 = vmatprep.subr.mxu0 0.0
      %v4028 = vand.u32 %v330, 4294901760
      %4029 = vmatpush1.msra.mxu0 %v4028
      %4030 = vmatprep.subr.mxu0 0.0
      %v4031 = vand.u32 %v331, 4294901760
      %4032 = vmatpush1.msra.mxu0 %v4031
      %4033 = vmatprep.subr.mxu0 0.0
      %v4034 = vand.u32 %v332, 4294901760
      %4035 = vmatpush1.msra.mxu0 %v4034
      %4036 = vmatprep.subr.mxu0 0.0
      %v4037 = vand.u32 %v333, 4294901760
      %4038 = vmatpush1.msra.mxu0 %v4037
      %4039 = vmatprep.subr.mxu0 0.0
      %v4040 = vand.u32 %v334, 4294901760
      %4041 = vmatpush1.msra.mxu0 %v4040
      %4042 = vmatprep.subr.mxu0 0.0
      %v4043 = vand.u32 %v335, 4294901760
      %4044 = vmatpush1.msra.mxu0 %v4043
      %4045 = vmatprep.subr.mxu0 0.0
      %v4046 = vand.u32 %v336, 4294901760
      %4047 = vmatpush1.msra.mxu0 %v4046
      %4048 = vmatprep.subr.mxu0 0.0
      %4049 = vmatpush1.msra.mxu0 0.0
      %4050 = vmatprep.subr.mxu0 0.0
      %4051 = vmatpush1.msra.mxu0 0.0
      %4052 = vmatprep.subr.mxu0 0.0
      %4053 = vmatpush1.msra.mxu0 0.0
      %4054 = vmatprep.subr.mxu0 0.0
      %4055 = vmatpush1.msra.mxu0 0.0
      %4056 = vmatprep.subr.mxu0 0.0
      %4057 = vmatpush1.msra.mxu0 0.0
      %4058 = vmatprep.subr.mxu0 0.0
      %4059 = vmatpush1.msra.mxu0 0.0
      %4060 = vmatprep.subr.mxu0 0.0
      %4061 = vmatpush1.msra.mxu0 0.0
      %4062 = vmatprep.subr.mxu0 0.0
      %4063 = vmatpush1.msra.mxu0 0.0
      %4064 = vmatprep.subr.mxu0 0.0
      %4065 = vmatpush1.msra.mxu0 0.0
      %4066 = vmatprep.subr.mxu0 0.0
      %4067 = vmatpush1.msra.mxu0 0.0
      %4068 = vmatprep.subr.mxu0 0.0
      %4069 = vmatpush1.msra.mxu0 0.0
      %4070 = vmatprep.subr.mxu0 0.0
      %4071 = vmatpush1.msra.mxu0 0.0
      %4072 = vmatprep.subr.mxu0 0.0
      %4073 = vmatpush1.msra.mxu0 0.0
      %4074 = vmatprep.subr.mxu0 0.0
      %4075 = vmatpush1.msra.mxu0 0.0
      %4076 = vmatprep.subr.mxu0 0.0
      %4077 = vmatpush1.msra.mxu0 0.0
      %4078 = vmatprep.subr.mxu0 0.0
      %4079 = vmatpush1.msra.mxu0 0.0
      %4080 = vmatprep.mubr.f32.mxu0 0.0
      %v4081 = vand.u32 %v3444, 4294901760
      %4082 = vmatmul.mubr.f32.gmra.mrb[0].mxu0 %v4081
      %v4083 = vpop.f32.mrb[0].mxu0
      %v4084 = vadd.f32 %v3997, %v4083
      %v4085 = vpop.f32.mrb[0].mxu0
      %4086 = vdwg.mxu0
      %v4087 = vmul.f32 %v4084, 0.00390625
      %v4088 = vmul.f32 %v3441, %v3441
      %v4089 = vsub.f32 %v4087, %v4088
      %v4090 = vadd.f32 %v4089, 1e-05
      %v4091 = vrsqrt.pop %v4090
      %v4092 = vsub.f32 0.0, %v3441
      %v4093 = vmul.f32 %v4092, %v4091
      %v4096 = vunpack.c.l.s4 1966171168
      %v4097 = vunpack.c.0.s8 %v4096
      %v4098 = vlaneseq
      %v4099 = vshrl.u32 %v4098, 7
      %v4100 = vsub.s32 %v4097, %v4099
      %v4101 = vrot.slane %v4091, %v4100
      %v4102 = vcombine.high %v4101, %v4101
      %v4104 = vunpack.c.l.s4 1966171168
      %v4105 = vunpack.c.0.s8 %v4104
      %v4106 = vlaneseq
      %v4107 = vshrl.u32 %v4106, 7
      %v4108 = vsub.s32 %v4105, %v4107
      %v4109 = vrot.slane %v4101, %v4108
      %v4111 = vunpack.c.l.s4 1966171168
      %v4112 = vunpack.c.0.s8 %v4111
      %v4113 = vlaneseq
      %v4114 = vshrl.u32 %v4113, 7
      %v4115 = vsub.s32 %v4112, %v4114
      %v4116 = vrot.slane %v4102, %v4115
      %v4117 = vlaneseq
      %v4118 = vshrl.u32 %v4117, 7
      %v4119 = vsub.s32 0, %v4118
      %v4120 = vrot.slane %v4109, %v4119
      %v4121 = vlaneseq
      %v4122 = vshrl.u32 %v4121, 7
      %v4123 = vsub.s32 0, %v4122
      %v4124 = vrot.slane %v4116, %v4123
      %v4127 = vmul.f32 %v2759, %v4120
      %v4128 = vmul.f32 %v2760, %v4120
      %v4129 = vmul.f32 %v2761, %v4124
      %v4130 = vmul.f32 %v2762, %v4124
      %v4133 = vunpack.c.l.s4 1966171168
      %v4134 = vunpack.c.0.s8 %v4133
      %v4135 = vlaneseq
      %v4136 = vshrl.u32 %v4135, 7
      %v4137 = vsub.s32 %v4134, %v4136
      %v4138 = vrot.slane %v4093, %v4137
      %v4139 = vcombine.high %v4138, %v4138
      %v4141 = vunpack.c.l.s4 1966171168
      %v4142 = vunpack.c.0.s8 %v4141
      %v4143 = vlaneseq
      %v4144 = vshrl.u32 %v4143, 7
      %v4145 = vsub.s32 %v4142, %v4144
      %v4146 = vrot.slane %v4138, %v4145
      %v4148 = vunpack.c.l.s4 1966171168
      %v4149 = vunpack.c.0.s8 %v4148
      %v4150 = vlaneseq
      %v4151 = vshrl.u32 %v4150, 7
      %v4152 = vsub.s32 %v4149, %v4151
      %v4153 = vrot.slane %v4139, %v4152
      %v4154 = vlaneseq
      %v4155 = vshrl.u32 %v4154, 7
      %v4156 = vsub.s32 0, %v4155
      %v4157 = vrot.slane %v4146, %v4156
      %v4158 = vlaneseq
      %v4159 = vshrl.u32 %v4158, 7
      %v4160 = vsub.s32 0, %v4159
      %v4161 = vrot.slane %v4153, %v4160
      %v4164 = vadd.f32 %v4127, %v4157
      %v4165 = vadd.f32 %v4128, %v4157
      %v4166 = vadd.f32 %v4129, %v4161
      %v4167 = vadd.f32 %v4130, %v4161
      %v4168 = vmax.f32 %v4164, 0.0
      %v4169 = vmax.f32 %v4165, 0.0
      %v4170 = vmax.f32 %v4166, 0.0
      %v4171 = vmax.f32 %v4167, 0.0
      %v4173 = vlaneseq
      %v4174 = vshrl.u32 %v4173, 7
      %v4175 = vsub.s32 0, %v4174
      %v4176 = vrot.slane %v338, %v4175
      %v4178 = vrot.slane %v4168, 7
      %v4179 = vrot.slane %v4169, 7
      %v4180 = vrot.slane %v4170, 7
      %v4181 = vrot.slane %v4171, 7
      %v4182 = vsel %vm353, %v4180, %v4181
      %v4183 = vsel %vm353, %v4179, %v4180
      %v4184 = vsel %vm353, %v4178, %v4179
      %v4185 = vsel %vm353, %v4181, %v4178
      %v4186 = vsel %vm362, %v4185, 0.0
      %v4187 = vsel %vm363, %v4184, 0.0
      %v4188 = vsel %vm364, %v4183, 0.0
      %v4189 = vsel %vm365, %v4182, 0.0
      %v4190 = vld [vmem:[%s3] sm:$0xff]
      %v4191 = vld [vmem:[%s3 + $0x8] sm:$0xff]
      %v4192 = vld [vmem:[%s3 + $0x10] sm:$0xff]
      %v4193 = vld [vmem:[%s3 + $0x18] sm:$0xff]
      %v4194 = vld [vmem:[%s3 + $0x20] sm:$0xff]
      %v4195 = vld [vmem:[%s3 + $0x28] sm:$0xff]
      %v4196 = vld [vmem:[%s3 + $0x30] sm:$0xff]
      %v4197 = vld [vmem:[%s3 + $0x38] sm:$0xff]
      %v4198 = vld [vmem:[%s3 + $0x40] sm:$0xff]
      %v4199 = vld [vmem:[%s3 + $0x48] sm:$0xff]
      %v4200 = vld [vmem:[%s3 + $0x50] sm:$0xff]
      %v4201 = vld [vmem:[%s3 + $0x58] sm:$0xff]
      %v4202 = vld [vmem:[%s3 + $0x60] sm:$0xff]
      %v4203 = vld [vmem:[%s3 + $0x68] sm:$0xff]
      %v4204 = vld [vmem:[%s3 + $0x70] sm:$0xff]
      %v4205 = vld [vmem:[%s3 + $0x78] sm:$0xff]
      %4206 = vmatprep.subr.mxu0 0.0
      %v4207 = vand.u32 %v4190, 4294901760
      %4208 = vmatpush1.msra.mxu0 %v4207
      %4209 = vmatprep.subr.mxu0 0.0
      %v4210 = vand.u32 %v4191, 4294901760
      %4211 = vmatpush1.msra.mxu0 %v4210
      %4212 = vmatprep.subr.mxu0 0.0
      %v4213 = vand.u32 %v4192, 4294901760
      %4214 = vmatpush1.msra.mxu0 %v4213
      %4215 = vmatprep.subr.mxu0 0.0
      %v4216 = vand.u32 %v4193, 4294901760
      %4217 = vmatpush1.msra.mxu0 %v4216
      %4218 = vmatprep.subr.mxu0 0.0
      %v4219 = vand.u32 %v4194, 4294901760
      %4220 = vmatpush1.msra.mxu0 %v4219
      %4221 = vmatprep.subr.mxu0 0.0
      %v4222 = vand.u32 %v4195, 4294901760
      %4223 = vmatpush1.msra.mxu0 %v4222
      %4224 = vmatprep.subr.mxu0 0.0
      %v4225 = vand.u32 %v4196, 4294901760
      %4226 = vmatpush1.msra.mxu0 %v4225
      %4227 = vmatprep.subr.mxu0 0.0
      %v4228 = vand.u32 %v4197, 4294901760
      %4229 = vmatpush1.msra.mxu0 %v4228
      %4230 = vmatprep.subr.mxu0 0.0
      %v4231 = vand.u32 %v4198, 4294901760
      %4232 = vmatpush1.msra.mxu0 %v4231
      %4233 = vmatprep.subr.mxu0 0.0
      %v4234 = vand.u32 %v4199, 4294901760
      %4235 = vmatpush1.msra.mxu0 %v4234
      %4236 = vmatprep.subr.mxu0 0.0
      %v4237 = vand.u32 %v4200, 4294901760
      %4238 = vmatpush1.msra.mxu0 %v4237
      %4239 = vmatprep.subr.mxu0 0.0
      %v4240 = vand.u32 %v4201, 4294901760
      %4241 = vmatpush1.msra.mxu0 %v4240
      %4242 = vmatprep.subr.mxu0 0.0
      %v4243 = vand.u32 %v4202, 4294901760
      %4244 = vmatpush1.msra.mxu0 %v4243
      %4245 = vmatprep.subr.mxu0 0.0
      %v4246 = vand.u32 %v4203, 4294901760
      %4247 = vmatpush1.msra.mxu0 %v4246
      %4248 = vmatprep.subr.mxu0 0.0
      %v4249 = vand.u32 %v4204, 4294901760
      %4250 = vmatpush1.msra.mxu0 %v4249
      %4251 = vmatprep.subr.mxu0 0.0
      %v4252 = vand.u32 %v4205, 4294901760
      %4253 = vmatpush1.msra.mxu0 %v4252
      %4254 = vmatprep.subr.mxu0 0.0
      %4255 = vmatpush1.msra.mxu0 0.0
      %4256 = vmatprep.subr.mxu0 0.0
      %4257 = vmatpush1.msra.mxu0 0.0
      %4258 = vmatprep.subr.mxu0 0.0
      %4259 = vmatpush1.msra.mxu0 0.0
      %4260 = vmatprep.subr.mxu0 0.0
      %4261 = vmatpush1.msra.mxu0 0.0
      %4262 = vmatprep.subr.mxu0 0.0
      %4263 = vmatpush1.msra.mxu0 0.0
      %4264 = vmatprep.subr.mxu0 0.0
      %4265 = vmatpush1.msra.mxu0 0.0
      %4266 = vmatprep.subr.mxu0 0.0
      %4267 = vmatpush1.msra.mxu0 0.0
      %4268 = vmatprep.subr.mxu0 0.0
      %4269 = vmatpush1.msra.mxu0 0.0
      %4270 = vmatprep.subr.mxu0 0.0
      %4271 = vmatpush1.msra.mxu0 0.0
      %4272 = vmatprep.subr.mxu0 0.0
      %4273 = vmatpush1.msra.mxu0 0.0
      %4274 = vmatprep.subr.mxu0 0.0
      %4275 = vmatpush1.msra.mxu0 0.0
      %4276 = vmatprep.subr.mxu0 0.0
      %4277 = vmatpush1.msra.mxu0 0.0
      %4278 = vmatprep.subr.mxu0 0.0
      %4279 = vmatpush1.msra.mxu0 0.0
      %4280 = vmatprep.subr.mxu0 0.0
      %4281 = vmatpush1.msra.mxu0 0.0
      %4282 = vmatprep.subr.mxu0 0.0
      %4283 = vmatpush1.msra.mxu0 0.0
      %4284 = vmatprep.subr.mxu0 0.0
      %4285 = vmatpush1.msra.mxu0 0.0
      %4286 = vmatprep.mubr.f32.mxu0 0.0
      %v4287 = vand.u32 %v4186, 4294901760
      %v4288 = vsub.f32 %v4186, %v4287
      %v4289 = vand.u32 %v4288, 4294901760
      %v4290 = vsub.f32 %v4288, %v4289
      %v4291 = vand.u32 %v4290, 4294901760
      %4292 = vmatmul.mubr.f32.gmra.mrb[0].mxu0 %v4291
      %v4293 = vpop.f32.mrb[0].mxu0
      %v4294 = vadd.f32 0.0, %v4293
      %v4295 = vpop.f32.mrb[0].mxu0
      %4296 = vmatprep.mubr.f32.mxu0 0.0
      %v4297 = vand.u32 %v4187, 4294901760
      %v4298 = vsub.f32 %v4187, %v4297
      %v4299 = vand.u32 %v4298, 4294901760
      %v4300 = vsub.f32 %v4298, %v4299
      %v4301 = vand.u32 %v4300, 4294901760
      %4302 = vmatmul.mubr.f32.gmra.mrb[0].mxu0 %v4301
      %v4303 = vpop.f32.mrb[0].mxu0
      %v4304 = vadd.f32 0.0, %v4303
      %v4305 = vpop.f32.mrb[0].mxu0
      %4306 = vmatprep.mubr.f32.mxu0 0.0
      %v4307 = vand.u32 %v4188, 4294901760
      %v4308 = vsub.f32 %v4188, %v4307
      %v4309 = vand.u32 %v4308, 4294901760
      %v4310 = vsub.f32 %v4308, %v4309
      %v4311 = vand.u32 %v4310, 4294901760
      %4312 = vmatmul.mubr.f32.gmra.mrb[0].mxu0 %v4311
      %v4313 = vpop.f32.mrb[0].mxu0
      %v4314 = vadd.f32 0.0, %v4313
      %v4315 = vpop.f32.mrb[0].mxu0
      %4316 = vmatprep.mubr.f32.mxu0 0.0
      %v4317 = vand.u32 %v4189, 4294901760
      %v4318 = vsub.f32 %v4189, %v4317
      %v4319 = vand.u32 %v4318, 4294901760
      %v4320 = vsub.f32 %v4318, %v4319
      %v4321 = vand.u32 %v4320, 4294901760
      %4322 = vmatmul.mubr.f32.gmra.mrb[0].mxu0 %v4321
      %v4323 = vpop.f32.mrb[0].mxu0
      %v4324 = vadd.f32 0.0, %v4323
      %v4325 = vpop.f32.mrb[0].mxu0
      %4326 = vdwg.mxu0
      %4327 = vmatprep.subr.mxu0 0.0
      %v4328 = vand.u32 %v4190, 4294901760
      %v4329 = vsub.f32 %v4190, %v4328
      %v4330 = vand.u32 %v4329, 4294901760
      %v4331 = vsub.f32 %v4329, %v4330
      %v4332 = vand.u32 %v4331, 4294901760
      %4333 = vmatpush1.msra.mxu0 %v4332
      %4334 = vmatprep.subr.mxu0 0.0
      %v4335 = vand.u32 %v4191, 4294901760
      %v4336 = vsub.f32 %v4191, %v4335
      %v4337 = vand.u32 %v4336, 4294901760
      %v4338 = vsub.f32 %v4336, %v4337
      %v4339 = vand.u32 %v4338, 4294901760
      %4340 = vmatpush1.msra.mxu0 %v4339
      %4341 = vmatprep.subr.mxu0 0.0
      %v4342 = vand.u32 %v4192, 4294901760
      %v4343 = vsub.f32 %v4192, %v4342
      %v4344 = vand.u32 %v4343, 4294901760
      %v4345 = vsub.f32 %v4343, %v4344
      %v4346 = vand.u32 %v4345, 4294901760
      %4347 = vmatpush1.msra.mxu0 %v4346
      %4348 = vmatprep.subr.mxu0 0.0
      %v4349 = vand.u32 %v4193, 4294901760
      %v4350 = vsub.f32 %v4193, %v4349
      %v4351 = vand.u32 %v4350, 4294901760
      %v4352 = vsub.f32 %v4350, %v4351
      %v4353 = vand.u32 %v4352, 4294901760
      %4354 = vmatpush1.msra.mxu0 %v4353
      %4355 = vmatprep.subr.mxu0 0.0
      %v4356 = vand.u32 %v4194, 4294901760
      %v4357 = vsub.f32 %v4194, %v4356
      %v4358 = vand.u32 %v4357, 4294901760
      %v4359 = vsub.f32 %v4357, %v4358
      %v4360 = vand.u32 %v4359, 4294901760
      %4361 = vmatpush1.msra.mxu0 %v4360
      %4362 = vmatprep.subr.mxu0 0.0
      %v4363 = vand.u32 %v4195, 4294901760
      %v4364 = vsub.f32 %v4195, %v4363
      %v4365 = vand.u32 %v4364, 4294901760
      %v4366 = vsub.f32 %v4364, %v4365
      %v4367 = vand.u32 %v4366, 4294901760
      %4368 = vmatpush1.msra.mxu0 %v4367
      %4369 = vmatprep.subr.mxu0 0.0
      %v4370 = vand.u32 %v4196, 4294901760
      %v4371 = vsub.f32 %v4196, %v4370
      %v4372 = vand.u32 %v4371, 4294901760
      %v4373 = vsub.f32 %v4371, %v4372
      %v4374 = vand.u32 %v4373, 4294901760
      %4375 = vmatpush1.msra.mxu0 %v4374
      %4376 = vmatprep.subr.mxu0 0.0
      %v4377 = vand.u32 %v4197, 4294901760
      %v4378 = vsub.f32 %v4197, %v4377
      %v4379 = vand.u32 %v4378, 4294901760
      %v4380 = vsub.f32 %v4378, %v4379
      %v4381 = vand.u32 %v4380, 4294901760
      %4382 = vmatpush1.msra.mxu0 %v4381
      %4383 = vmatprep.subr.mxu0 0.0
      %v4384 = vand.u32 %v4198, 4294901760
      %v4385 = vsub.f32 %v4198, %v4384
      %v4386 = vand.u32 %v4385, 4294901760
      %v4387 = vsub.f32 %v4385, %v4386
      %v4388 = vand.u32 %v4387, 4294901760
      %4389 = vmatpush1.msra.mxu0 %v4388
      %4390 = vmatprep.subr.mxu0 0.0
      %v4391 = vand.u32 %v4199, 4294901760
      %v4392 = vsub.f32 %v4199, %v4391
      %v4393 = vand.u32 %v4392, 4294901760
      %v4394 = vsub.f32 %v4392, %v4393
      %v4395 = vand.u32 %v4394, 4294901760
      %4396 = vmatpush1.msra.mxu0 %v4395
      %4397 = vmatprep.subr.mxu0 0.0
      %v4398 = vand.u32 %v4200, 4294901760
      %v4399 = vsub.f32 %v4200, %v4398
      %v4400 = vand.u32 %v4399, 4294901760
      %v4401 = vsub.f32 %v4399, %v4400
      %v4402 = vand.u32 %v4401, 4294901760
      %4403 = vmatpush1.msra.mxu0 %v4402
      %4404 = vmatprep.subr.mxu0 0.0
      %v4405 = vand.u32 %v4201, 4294901760
      %v4406 = vsub.f32 %v4201, %v4405
      %v4407 = vand.u32 %v4406, 4294901760
      %v4408 = vsub.f32 %v4406, %v4407
      %v4409 = vand.u32 %v4408, 4294901760
      %4410 = vmatpush1.msra.mxu0 %v4409
      %4411 = vmatprep.subr.mxu0 0.0
      %v4412 = vand.u32 %v4202, 4294901760
      %v4413 = vsub.f32 %v4202, %v4412
      %v4414 = vand.u32 %v4413, 4294901760
      %v4415 = vsub.f32 %v4413, %v4414
      %v4416 = vand.u32 %v4415, 4294901760
      %4417 = vmatpush1.msra.mxu0 %v4416
      %4418 = vmatprep.subr.mxu0 0.0
      %v4419 = vand.u32 %v4203, 4294901760
      %v4420 = vsub.f32 %v4203, %v4419
      %v4421 = vand.u32 %v4420, 4294901760
      %v4422 = vsub.f32 %v4420, %v4421
      %v4423 = vand.u32 %v4422, 4294901760
      %4424 = vmatpush1.msra.mxu0 %v4423
      %4425 = vmatprep.subr.mxu0 0.0
      %v4426 = vand.u32 %v4204, 4294901760
      %v4427 = vsub.f32 %v4204, %v4426
      %v4428 = vand.u32 %v4427, 4294901760
      %v4429 = vsub.f32 %v4427, %v4428
      %v4430 = vand.u32 %v4429, 4294901760
      %4431 = vmatpush1.msra.mxu0 %v4430
      %4432 = vmatprep.subr.mxu0 0.0
      %v4433 = vand.u32 %v4205, 4294901760
      %v4434 = vsub.f32 %v4205, %v4433
      %v4435 = vand.u32 %v4434, 4294901760
      %v4436 = vsub.f32 %v4434, %v4435
      %v4437 = vand.u32 %v4436, 4294901760
      %4438 = vmatpush1.msra.mxu0 %v4437
      %4439 = vmatprep.subr.mxu0 0.0
      %4440 = vmatpush1.msra.mxu0 0.0
      %4441 = vmatprep.subr.mxu0 0.0
      %4442 = vmatpush1.msra.mxu0 0.0
      %4443 = vmatprep.subr.mxu0 0.0
      %4444 = vmatpush1.msra.mxu0 0.0
      %4445 = vmatprep.subr.mxu0 0.0
      %4446 = vmatpush1.msra.mxu0 0.0
      %4447 = vmatprep.subr.mxu0 0.0
      %4448 = vmatpush1.msra.mxu0 0.0
      %4449 = vmatprep.subr.mxu0 0.0
      %4450 = vmatpush1.msra.mxu0 0.0
      %4451 = vmatprep.subr.mxu0 0.0
      %4452 = vmatpush1.msra.mxu0 0.0
      %4453 = vmatprep.subr.mxu0 0.0
      %4454 = vmatpush1.msra.mxu0 0.0
      %4455 = vmatprep.subr.mxu0 0.0
      %4456 = vmatpush1.msra.mxu0 0.0
      %4457 = vmatprep.subr.mxu0 0.0
      %4458 = vmatpush1.msra.mxu0 0.0
      %4459 = vmatprep.subr.mxu0 0.0
      %4460 = vmatpush1.msra.mxu0 0.0
      %4461 = vmatprep.subr.mxu0 0.0
      %4462 = vmatpush1.msra.mxu0 0.0
      %4463 = vmatprep.subr.mxu0 0.0
      %4464 = vmatpush1.msra.mxu0 0.0
      %4465 = vmatprep.subr.mxu0 0.0
      %4466 = vmatpush1.msra.mxu0 0.0
      %4467 = vmatprep.subr.mxu0 0.0
      %4468 = vmatpush1.msra.mxu0 0.0
      %4469 = vmatprep.subr.mxu0 0.0
      %4470 = vmatpush1.msra.mxu0 0.0
      %4471 = vmatprep.mubr.f32.mxu0 0.0
      %v4472 = vand.u32 %v4186, 4294901760
      %4473 = vmatmul.mubr.f32.gmra.mrb[0].mxu0 %v4472
      %v4474 = vpop.f32.mrb[0].mxu0
      %v4475 = vadd.f32 %v4294, %v4474
      %v4476 = vpop.f32.mrb[0].mxu0
      %4477 = vmatprep.mubr.f32.mxu0 0.0
      %v4478 = vand.u32 %v4187, 4294901760
      %4479 = vmatmul.mubr.f32.gmra.mrb[0].mxu0 %v4478
      %v4480 = vpop.f32.mrb[0].mxu0
      %v4481 = vadd.f32 %v4304, %v4480
      %v4482 = vpop.f32.mrb[0].mxu0
      %4483 = vmatprep.mubr.f32.mxu0 0.0
      %v4484 = vand.u32 %v4188, 4294901760
      %4485 = vmatmul.mubr.f32.gmra.mrb[0].mxu0 %v4484
      %v4486 = vpop.f32.mrb[0].mxu0
      %v4487 = vadd.f32 %v4314, %v4486
      %v4488 = vpop.f32.mrb[0].mxu0
      %4489 = vmatprep.mubr.f32.mxu0 0.0
      %v4490 = vand.u32 %v4189, 4294901760
      %4491 = vmatmul.mubr.f32.gmra.mrb[0].mxu0 %v4490
      %v4492 = vpop.f32.mrb[0].mxu0
      %v4493 = vadd.f32 %v4324, %v4492
      %v4494 = vpop.f32.mrb[0].mxu0
      %4495 = vdwg.mxu0
      %4496 = vmatprep.subr.mxu0 0.0
      %v4497 = vand.u32 %v4190, 4294901760
      %v4498 = vsub.f32 %v4190, %v4497
      %4499 = vmatpush1.msra.mxu0 %v4498
      %4500 = vmatprep.subr.mxu0 0.0
      %v4501 = vand.u32 %v4191, 4294901760
      %v4502 = vsub.f32 %v4191, %v4501
      %4503 = vmatpush1.msra.mxu0 %v4502
      %4504 = vmatprep.subr.mxu0 0.0
      %v4505 = vand.u32 %v4192, 4294901760
      %v4506 = vsub.f32 %v4192, %v4505
      %4507 = vmatpush1.msra.mxu0 %v4506
      %4508 = vmatprep.subr.mxu0 0.0
      %v4509 = vand.u32 %v4193, 4294901760
      %v4510 = vsub.f32 %v4193, %v4509
      %4511 = vmatpush1.msra.mxu0 %v4510
      %4512 = vmatprep.subr.mxu0 0.0
      %v4513 = vand.u32 %v4194, 4294901760
      %v4514 = vsub.f32 %v4194, %v4513
      %4515 = vmatpush1.msra.mxu0 %v4514
      %4516 = vmatprep.subr.mxu0 0.0
      %v4517 = vand.u32 %v4195, 4294901760
      %v4518 = vsub.f32 %v4195, %v4517
      %4519 = vmatpush1.msra.mxu0 %v4518
      %4520 = vmatprep.subr.mxu0 0.0
      %v4521 = vand.u32 %v4196, 4294901760
      %v4522 = vsub.f32 %v4196, %v4521
      %4523 = vmatpush1.msra.mxu0 %v4522
      %4524 = vmatprep.subr.mxu0 0.0
      %v4525 = vand.u32 %v4197, 4294901760
      %v4526 = vsub.f32 %v4197, %v4525
      %4527 = vmatpush1.msra.mxu0 %v4526
      %4528 = vmatprep.subr.mxu0 0.0
      %v4529 = vand.u32 %v4198, 4294901760
      %v4530 = vsub.f32 %v4198, %v4529
      %4531 = vmatpush1.msra.mxu0 %v4530
      %4532 = vmatprep.subr.mxu0 0.0
      %v4533 = vand.u32 %v4199, 4294901760
      %v4534 = vsub.f32 %v4199, %v4533
      %4535 = vmatpush1.msra.mxu0 %v4534
      %4536 = vmatprep.subr.mxu0 0.0
      %v4537 = vand.u32 %v4200, 4294901760
      %v4538 = vsub.f32 %v4200, %v4537
      %4539 = vmatpush1.msra.mxu0 %v4538
      %4540 = vmatprep.subr.mxu0 0.0
      %v4541 = vand.u32 %v4201, 4294901760
      %v4542 = vsub.f32 %v4201, %v4541
      %4543 = vmatpush1.msra.mxu0 %v4542
      %4544 = vmatprep.subr.mxu0 0.0
      %v4545 = vand.u32 %v4202, 4294901760
      %v4546 = vsub.f32 %v4202, %v4545
      %4547 = vmatpush1.msra.mxu0 %v4546
      %4548 = vmatprep.subr.mxu0 0.0
      %v4549 = vand.u32 %v4203, 4294901760
      %v4550 = vsub.f32 %v4203, %v4549
      %4551 = vmatpush1.msra.mxu0 %v4550
      %4552 = vmatprep.subr.mxu0 0.0
      %v4553 = vand.u32 %v4204, 4294901760
      %v4554 = vsub.f32 %v4204, %v4553
      %4555 = vmatpush1.msra.mxu0 %v4554
      %4556 = vmatprep.subr.mxu0 0.0
      %v4557 = vand.u32 %v4205, 4294901760
      %v4558 = vsub.f32 %v4205, %v4557
      %4559 = vmatpush1.msra.mxu0 %v4558
      %4560 = vmatprep.subr.mxu0 0.0
      %4561 = vmatpush1.msra.mxu0 0.0
      %4562 = vmatprep.subr.mxu0 0.0
      %4563 = vmatpush1.msra.mxu0 0.0
      %4564 = vmatprep.subr.mxu0 0.0
      %4565 = vmatpush1.msra.mxu0 0.0
      %4566 = vmatprep.subr.mxu0 0.0
      %4567 = vmatpush1.msra.mxu0 0.0
      %4568 = vmatprep.subr.mxu0 0.0
      %4569 = vmatpush1.msra.mxu0 0.0
      %4570 = vmatprep.subr.mxu0 0.0
      %4571 = vmatpush1.msra.mxu0 0.0
      %4572 = vmatprep.subr.mxu0 0.0
      %4573 = vmatpush1.msra.mxu0 0.0
      %4574 = vmatprep.subr.mxu0 0.0
      %4575 = vmatpush1.msra.mxu0 0.0
      %4576 = vmatprep.subr.mxu0 0.0
      %4577 = vmatpush1.msra.mxu0 0.0
      %4578 = vmatprep.subr.mxu0 0.0
      %4579 = vmatpush1.msra.mxu0 0.0
      %4580 = vmatprep.subr.mxu0 0.0
      %4581 = vmatpush1.msra.mxu0 0.0
      %4582 = vmatprep.subr.mxu0 0.0
      %4583 = vmatpush1.msra.mxu0 0.0
      %4584 = vmatprep.subr.mxu0 0.0
      %4585 = vmatpush1.msra.mxu0 0.0
      %4586 = vmatprep.subr.mxu0 0.0
      %4587 = vmatpush1.msra.mxu0 0.0
      %4588 = vmatprep.subr.mxu0 0.0
      %4589 = vmatpush1.msra.mxu0 0.0
      %4590 = vmatprep.subr.mxu0 0.0
      %4591 = vmatpush1.msra.mxu0 0.0
      %4592 = vmatprep.mubr.f32.mxu0 0.0
      %v4593 = vand.u32 %v4186, 4294901760
      %v4594 = vsub.f32 %v4186, %v4593
      %4595 = vmatmul.mubr.f32.gmra.mrb[0].mxu0 %v4594
      %v4596 = vpop.f32.mrb[0].mxu0
      %v4597 = vadd.f32 %v4475, %v4596
      %v4598 = vpop.f32.mrb[0].mxu0
      %4599 = vmatprep.mubr.f32.mxu0 0.0
      %v4600 = vand.u32 %v4187, 4294901760
      %v4601 = vsub.f32 %v4187, %v4600
      %4602 = vmatmul.mubr.f32.gmra.mrb[0].mxu0 %v4601
      %v4603 = vpop.f32.mrb[0].mxu0
      %v4604 = vadd.f32 %v4481, %v4603
      %v4605 = vpop.f32.mrb[0].mxu0
      %4606 = vmatprep.mubr.f32.mxu0 0.0
      %v4607 = vand.u32 %v4188, 4294901760
      %v4608 = vsub.f32 %v4188, %v4607
      %4609 = vmatmul.mubr.f32.gmra.mrb[0].mxu0 %v4608
      %v4610 = vpop.f32.mrb[0].mxu0
      %v4611 = vadd.f32 %v4487, %v4610
      %v4612 = vpop.f32.mrb[0].mxu0
      %4613 = vmatprep.mubr.f32.mxu0 0.0
      %v4614 = vand.u32 %v4189, 4294901760
      %v4615 = vsub.f32 %v4189, %v4614
      %4616 = vmatmul.mubr.f32.gmra.mrb[0].mxu0 %v4615
      %v4617 = vpop.f32.mrb[0].mxu0
      %v4618 = vadd.f32 %v4493, %v4617
      %v4619 = vpop.f32.mrb[0].mxu0
      %4620 = vdwg.mxu0
      %4621 = vmatprep.subr.mxu0 0.0
      %v4622 = vand.u32 %v4190, 4294901760
      %4623 = vmatpush1.msra.mxu0 %v4622
      %4624 = vmatprep.subr.mxu0 0.0
      %v4625 = vand.u32 %v4191, 4294901760
      %4626 = vmatpush1.msra.mxu0 %v4625
      %4627 = vmatprep.subr.mxu0 0.0
      %v4628 = vand.u32 %v4192, 4294901760
      %4629 = vmatpush1.msra.mxu0 %v4628
      %4630 = vmatprep.subr.mxu0 0.0
      %v4631 = vand.u32 %v4193, 4294901760
      %4632 = vmatpush1.msra.mxu0 %v4631
      %4633 = vmatprep.subr.mxu0 0.0
      %v4634 = vand.u32 %v4194, 4294901760
      %4635 = vmatpush1.msra.mxu0 %v4634
      %4636 = vmatprep.subr.mxu0 0.0
      %v4637 = vand.u32 %v4195, 4294901760
      %4638 = vmatpush1.msra.mxu0 %v4637
      %4639 = vmatprep.subr.mxu0 0.0
      %v4640 = vand.u32 %v4196, 4294901760
      %4641 = vmatpush1.msra.mxu0 %v4640
      %4642 = vmatprep.subr.mxu0 0.0
      %v4643 = vand.u32 %v4197, 4294901760
      %4644 = vmatpush1.msra.mxu0 %v4643
      %4645 = vmatprep.subr.mxu0 0.0
      %v4646 = vand.u32 %v4198, 4294901760
      %4647 = vmatpush1.msra.mxu0 %v4646
      %4648 = vmatprep.subr.mxu0 0.0
      %v4649 = vand.u32 %v4199, 4294901760
      %4650 = vmatpush1.msra.mxu0 %v4649
      %4651 = vmatprep.subr.mxu0 0.0
      %v4652 = vand.u32 %v4200, 4294901760
      %4653 = vmatpush1.msra.mxu0 %v4652
      %4654 = vmatprep.subr.mxu0 0.0
      %v4655 = vand.u32 %v4201, 4294901760
      %4656 = vmatpush1.msra.mxu0 %v4655
      %4657 = vmatprep.subr.mxu0 0.0
      %v4658 = vand.u32 %v4202, 4294901760
      %4659 = vmatpush1.msra.mxu0 %v4658
      %4660 = vmatprep.subr.mxu0 0.0
      %v4661 = vand.u32 %v4203, 4294901760
      %4662 = vmatpush1.msra.mxu0 %v4661
      %4663 = vmatprep.subr.mxu0 0.0
      %v4664 = vand.u32 %v4204, 4294901760
      %4665 = vmatpush1.msra.mxu0 %v4664
      %4666 = vmatprep.subr.mxu0 0.0
      %v4667 = vand.u32 %v4205, 4294901760
      %4668 = vmatpush1.msra.mxu0 %v4667
      %4669 = vmatprep.subr.mxu0 0.0
      %4670 = vmatpush1.msra.mxu0 0.0
      %4671 = vmatprep.subr.mxu0 0.0
      %4672 = vmatpush1.msra.mxu0 0.0
      %4673 = vmatprep.subr.mxu0 0.0
      %4674 = vmatpush1.msra.mxu0 0.0
      %4675 = vmatprep.subr.mxu0 0.0
      %4676 = vmatpush1.msra.mxu0 0.0
      %4677 = vmatprep.subr.mxu0 0.0
      %4678 = vmatpush1.msra.mxu0 0.0
      %4679 = vmatprep.subr.mxu0 0.0
      %4680 = vmatpush1.msra.mxu0 0.0
      %4681 = vmatprep.subr.mxu0 0.0
      %4682 = vmatpush1.msra.mxu0 0.0
      %4683 = vmatprep.subr.mxu0 0.0
      %4684 = vmatpush1.msra.mxu0 0.0
      %4685 = vmatprep.subr.mxu0 0.0
      %4686 = vmatpush1.msra.mxu0 0.0
      %4687 = vmatprep.subr.mxu0 0.0
      %4688 = vmatpush1.msra.mxu0 0.0
      %4689 = vmatprep.subr.mxu0 0.0
      %4690 = vmatpush1.msra.mxu0 0.0
      %4691 = vmatprep.subr.mxu0 0.0
      %4692 = vmatpush1.msra.mxu0 0.0
      %4693 = vmatprep.subr.mxu0 0.0
      %4694 = vmatpush1.msra.mxu0 0.0
      %4695 = vmatprep.subr.mxu0 0.0
      %4696 = vmatpush1.msra.mxu0 0.0
      %4697 = vmatprep.subr.mxu0 0.0
      %4698 = vmatpush1.msra.mxu0 0.0
      %4699 = vmatprep.subr.mxu0 0.0
      %4700 = vmatpush1.msra.mxu0 0.0
      %4701 = vmatprep.mubr.f32.mxu0 0.0
      %v4702 = vand.u32 %v4186, 4294901760
      %v4703 = vsub.f32 %v4186, %v4702
      %v4704 = vand.u32 %v4703, 4294901760
      %4705 = vmatmul.mubr.f32.gmra.mrb[0].mxu0 %v4704
      %v4706 = vpop.f32.mrb[0].mxu0
      %v4707 = vadd.f32 %v4597, %v4706
      %v4708 = vpop.f32.mrb[0].mxu0
      %4709 = vmatprep.mubr.f32.mxu0 0.0
      %v4710 = vand.u32 %v4187, 4294901760
      %v4711 = vsub.f32 %v4187, %v4710
      %v4712 = vand.u32 %v4711, 4294901760
      %4713 = vmatmul.mubr.f32.gmra.mrb[0].mxu0 %v4712
      %v4714 = vpop.f32.mrb[0].mxu0
      %v4715 = vadd.f32 %v4604, %v4714
      %v4716 = vpop.f32.mrb[0].mxu0
      %4717 = vmatprep.mubr.f32.mxu0 0.0
      %v4718 = vand.u32 %v4188, 4294901760
      %v4719 = vsub.f32 %v4188, %v4718
      %v4720 = vand.u32 %v4719, 4294901760
      %4721 = vmatmul.mubr.f32.gmra.mrb[0].mxu0 %v4720
      %v4722 = vpop.f32.mrb[0].mxu0
      %v4723 = vadd.f32 %v4611, %v4722
      %v4724 = vpop.f32.mrb[0].mxu0
      %4725 = vmatprep.mubr.f32.mxu0 0.0
      %v4726 = vand.u32 %v4189, 4294901760
      %v4727 = vsub.f32 %v4189, %v4726
      %v4728 = vand.u32 %v4727, 4294901760
      %4729 = vmatmul.mubr.f32.gmra.mrb[0].mxu0 %v4728
      %v4730 = vpop.f32.mrb[0].mxu0
      %v4731 = vadd.f32 %v4618, %v4730
      %v4732 = vpop.f32.mrb[0].mxu0
      %4733 = vdwg.mxu0
      %4734 = vmatprep.subr.mxu0 0.0
      %v4735 = vand.u32 %v4190, 4294901760
      %v4736 = vsub.f32 %v4190, %v4735
      %v4737 = vand.u32 %v4736, 4294901760
      %4738 = vmatpush1.msra.mxu0 %v4737
      %4739 = vmatprep.subr.mxu0 0.0
      %v4740 = vand.u32 %v4191, 4294901760
      %v4741 = vsub.f32 %v4191, %v4740
      %v4742 = vand.u32 %v4741, 4294901760
      %4743 = vmatpush1.msra.mxu0 %v4742
      %4744 = vmatprep.subr.mxu0 0.0
      %v4745 = vand.u32 %v4192, 4294901760
      %v4746 = vsub.f32 %v4192, %v4745
      %v4747 = vand.u32 %v4746, 4294901760
      %4748 = vmatpush1.msra.mxu0 %v4747
      %4749 = vmatprep.subr.mxu0 0.0
      %v4750 = vand.u32 %v4193, 4294901760
      %v4751 = vsub.f32 %v4193, %v4750
      %v4752 = vand.u32 %v4751, 4294901760
      %4753 = vmatpush1.msra.mxu0 %v4752
      %4754 = vmatprep.subr.mxu0 0.0
      %v4755 = vand.u32 %v4194, 4294901760
      %v4756 = vsub.f32 %v4194, %v4755
      %v4757 = vand.u32 %v4756, 4294901760
      %4758 = vmatpush1.msra.mxu0 %v4757
      %4759 = vmatprep.subr.mxu0 0.0
      %v4760 = vand.u32 %v4195, 4294901760
      %v4761 = vsub.f32 %v4195, %v4760
      %v4762 = vand.u32 %v4761, 4294901760
      %4763 = vmatpush1.msra.mxu0 %v4762
      %4764 = vmatprep.subr.mxu0 0.0
      %v4765 = vand.u32 %v4196, 4294901760
      %v4766 = vsub.f32 %v4196, %v4765
      %v4767 = vand.u32 %v4766, 4294901760
      %4768 = vmatpush1.msra.mxu0 %v4767
      %4769 = vmatprep.subr.mxu0 0.0
      %v4770 = vand.u32 %v4197, 4294901760
      %v4771 = vsub.f32 %v4197, %v4770
      %v4772 = vand.u32 %v4771, 4294901760
      %4773 = vmatpush1.msra.mxu0 %v4772
      %4774 = vmatprep.subr.mxu0 0.0
      %v4775 = vand.u32 %v4198, 4294901760
      %v4776 = vsub.f32 %v4198, %v4775
      %v4777 = vand.u32 %v4776, 4294901760
      %4778 = vmatpush1.msra.mxu0 %v4777
      %4779 = vmatprep.subr.mxu0 0.0
      %v4780 = vand.u32 %v4199, 4294901760
      %v4781 = vsub.f32 %v4199, %v4780
      %v4782 = vand.u32 %v4781, 4294901760
      %4783 = vmatpush1.msra.mxu0 %v4782
      %4784 = vmatprep.subr.mxu0 0.0
      %v4785 = vand.u32 %v4200, 4294901760
      %v4786 = vsub.f32 %v4200, %v4785
      %v4787 = vand.u32 %v4786, 4294901760
      %4788 = vmatpush1.msra.mxu0 %v4787
      %4789 = vmatprep.subr.mxu0 0.0
      %v4790 = vand.u32 %v4201, 4294901760
      %v4791 = vsub.f32 %v4201, %v4790
      %v4792 = vand.u32 %v4791, 4294901760
      %4793 = vmatpush1.msra.mxu0 %v4792
      %4794 = vmatprep.subr.mxu0 0.0
      %v4795 = vand.u32 %v4202, 4294901760
      %v4796 = vsub.f32 %v4202, %v4795
      %v4797 = vand.u32 %v4796, 4294901760
      %4798 = vmatpush1.msra.mxu0 %v4797
      %4799 = vmatprep.subr.mxu0 0.0
      %v4800 = vand.u32 %v4203, 4294901760
      %v4801 = vsub.f32 %v4203, %v4800
      %v4802 = vand.u32 %v4801, 4294901760
      %4803 = vmatpush1.msra.mxu0 %v4802
      %4804 = vmatprep.subr.mxu0 0.0
      %v4805 = vand.u32 %v4204, 4294901760
      %v4806 = vsub.f32 %v4204, %v4805
      %v4807 = vand.u32 %v4806, 4294901760
      %4808 = vmatpush1.msra.mxu0 %v4807
      %4809 = vmatprep.subr.mxu0 0.0
      %v4810 = vand.u32 %v4205, 4294901760
      %v4811 = vsub.f32 %v4205, %v4810
      %v4812 = vand.u32 %v4811, 4294901760
      %4813 = vmatpush1.msra.mxu0 %v4812
      %4814 = vmatprep.subr.mxu0 0.0
      %4815 = vmatpush1.msra.mxu0 0.0
      %4816 = vmatprep.subr.mxu0 0.0
      %4817 = vmatpush1.msra.mxu0 0.0
      %4818 = vmatprep.subr.mxu0 0.0
      %4819 = vmatpush1.msra.mxu0 0.0
      %4820 = vmatprep.subr.mxu0 0.0
      %4821 = vmatpush1.msra.mxu0 0.0
      %4822 = vmatprep.subr.mxu0 0.0
      %4823 = vmatpush1.msra.mxu0 0.0
      %4824 = vmatprep.subr.mxu0 0.0
      %4825 = vmatpush1.msra.mxu0 0.0
      %4826 = vmatprep.subr.mxu0 0.0
      %4827 = vmatpush1.msra.mxu0 0.0
      %4828 = vmatprep.subr.mxu0 0.0
      %4829 = vmatpush1.msra.mxu0 0.0
      %4830 = vmatprep.subr.mxu0 0.0
      %4831 = vmatpush1.msra.mxu0 0.0
      %4832 = vmatprep.subr.mxu0 0.0
      %4833 = vmatpush1.msra.mxu0 0.0
      %4834 = vmatprep.subr.mxu0 0.0
      %4835 = vmatpush1.msra.mxu0 0.0
      %4836 = vmatprep.subr.mxu0 0.0
      %4837 = vmatpush1.msra.mxu0 0.0
      %4838 = vmatprep.subr.mxu0 0.0
      %4839 = vmatpush1.msra.mxu0 0.0
      %4840 = vmatprep.subr.mxu0 0.0
      %4841 = vmatpush1.msra.mxu0 0.0
      %4842 = vmatprep.subr.mxu0 0.0
      %4843 = vmatpush1.msra.mxu0 0.0
      %4844 = vmatprep.subr.mxu0 0.0
      %4845 = vmatpush1.msra.mxu0 0.0
      %4846 = vmatprep.mubr.f32.mxu0 0.0
      %v4847 = vand.u32 %v4186, 4294901760
      %4848 = vmatmul.mubr.f32.gmra.mrb[0].mxu0 %v4847
      %v4849 = vpop.f32.mrb[0].mxu0
      %v4850 = vadd.f32 %v4707, %v4849
      %v4851 = vpop.f32.mrb[0].mxu0
      %4852 = vmatprep.mubr.f32.mxu0 0.0
      %v4853 = vand.u32 %v4187, 4294901760
      %4854 = vmatmul.mubr.f32.gmra.mrb[0].mxu0 %v4853
      %v4855 = vpop.f32.mrb[0].mxu0
      %v4856 = vadd.f32 %v4715, %v4855
      %v4857 = vpop.f32.mrb[0].mxu0
      %4858 = vmatprep.mubr.f32.mxu0 0.0
      %v4859 = vand.u32 %v4188, 4294901760
      %4860 = vmatmul.mubr.f32.gmra.mrb[0].mxu0 %v4859
      %v4861 = vpop.f32.mrb[0].mxu0
      %v4862 = vadd.f32 %v4723, %v4861
      %v4863 = vpop.f32.mrb[0].mxu0
      %4864 = vmatprep.mubr.f32.mxu0 0.0
      %v4865 = vand.u32 %v4189, 4294901760
      %4866 = vmatmul.mubr.f32.gmra.mrb[0].mxu0 %v4865
      %v4867 = vpop.f32.mrb[0].mxu0
      %v4868 = vadd.f32 %v4731, %v4867
      %v4869 = vpop.f32.mrb[0].mxu0
      %4870 = vdwg.mxu0
      %4871 = vmatprep.subr.mxu0 0.0
      %v4872 = vand.u32 %v4190, 4294901760
      %4873 = vmatpush1.msra.mxu0 %v4872
      %4874 = vmatprep.subr.mxu0 0.0
      %v4875 = vand.u32 %v4191, 4294901760
      %4876 = vmatpush1.msra.mxu0 %v4875
      %4877 = vmatprep.subr.mxu0 0.0
      %v4878 = vand.u32 %v4192, 4294901760
      %4879 = vmatpush1.msra.mxu0 %v4878
      %4880 = vmatprep.subr.mxu0 0.0
      %v4881 = vand.u32 %v4193, 4294901760
      %4882 = vmatpush1.msra.mxu0 %v4881
      %4883 = vmatprep.subr.mxu0 0.0
      %v4884 = vand.u32 %v4194, 4294901760
      %4885 = vmatpush1.msra.mxu0 %v4884
      %4886 = vmatprep.subr.mxu0 0.0
      %v4887 = vand.u32 %v4195, 4294901760
      %4888 = vmatpush1.msra.mxu0 %v4887
      %4889 = vmatprep.subr.mxu0 0.0
      %v4890 = vand.u32 %v4196, 4294901760
      %4891 = vmatpush1.msra.mxu0 %v4890
      %4892 = vmatprep.subr.mxu0 0.0
      %v4893 = vand.u32 %v4197, 4294901760
      %4894 = vmatpush1.msra.mxu0 %v4893
      %4895 = vmatprep.subr.mxu0 0.0
      %v4896 = vand.u32 %v4198, 4294901760
      %4897 = vmatpush1.msra.mxu0 %v4896
      %4898 = vmatprep.subr.mxu0 0.0
      %v4899 = vand.u32 %v4199, 4294901760
      %4900 = vmatpush1.msra.mxu0 %v4899
      %4901 = vmatprep.subr.mxu0 0.0
      %v4902 = vand.u32 %v4200, 4294901760
      %4903 = vmatpush1.msra.mxu0 %v4902
      %4904 = vmatprep.subr.mxu0 0.0
      %v4905 = vand.u32 %v4201, 4294901760
      %4906 = vmatpush1.msra.mxu0 %v4905
      %4907 = vmatprep.subr.mxu0 0.0
      %v4908 = vand.u32 %v4202, 4294901760
      %4909 = vmatpush1.msra.mxu0 %v4908
      %4910 = vmatprep.subr.mxu0 0.0
      %v4911 = vand.u32 %v4203, 4294901760
      %4912 = vmatpush1.msra.mxu0 %v4911
      %4913 = vmatprep.subr.mxu0 0.0
      %v4914 = vand.u32 %v4204, 4294901760
      %4915 = vmatpush1.msra.mxu0 %v4914
      %4916 = vmatprep.subr.mxu0 0.0
      %v4917 = vand.u32 %v4205, 4294901760
      %4918 = vmatpush1.msra.mxu0 %v4917
      %4919 = vmatprep.subr.mxu0 0.0
      %4920 = vmatpush1.msra.mxu0 0.0
      %4921 = vmatprep.subr.mxu0 0.0
      %4922 = vmatpush1.msra.mxu0 0.0
      %4923 = vmatprep.subr.mxu0 0.0
      %4924 = vmatpush1.msra.mxu0 0.0
      %4925 = vmatprep.subr.mxu0 0.0
      %4926 = vmatpush1.msra.mxu0 0.0
      %4927 = vmatprep.subr.mxu0 0.0
      %4928 = vmatpush1.msra.mxu0 0.0
      %4929 = vmatprep.subr.mxu0 0.0
      %4930 = vmatpush1.msra.mxu0 0.0
      %4931 = vmatprep.subr.mxu0 0.0
      %4932 = vmatpush1.msra.mxu0 0.0
      %4933 = vmatprep.subr.mxu0 0.0
      %4934 = vmatpush1.msra.mxu0 0.0
      %4935 = vmatprep.subr.mxu0 0.0
      %4936 = vmatpush1.msra.mxu0 0.0
      %4937 = vmatprep.subr.mxu0 0.0
      %4938 = vmatpush1.msra.mxu0 0.0
      %4939 = vmatprep.subr.mxu0 0.0
      %4940 = vmatpush1.msra.mxu0 0.0
      %4941 = vmatprep.subr.mxu0 0.0
      %4942 = vmatpush1.msra.mxu0 0.0
      %4943 = vmatprep.subr.mxu0 0.0
      %4944 = vmatpush1.msra.mxu0 0.0
      %4945 = vmatprep.subr.mxu0 0.0
      %4946 = vmatpush1.msra.mxu0 0.0
      %4947 = vmatprep.subr.mxu0 0.0
      %4948 = vmatpush1.msra.mxu0 0.0
      %4949 = vmatprep.subr.mxu0 0.0
      %4950 = vmatpush1.msra.mxu0 0.0
      %4951 = vmatprep.mubr.f32.mxu0 0.0
      %v4952 = vand.u32 %v4186, 4294901760
      %4953 = vmatmul.mubr.f32.gmra.mrb[0].mxu0 %v4952
      %v4954 = vpop.f32.mrb[0].mxu0
      %v4955 = vadd.f32 %v4850, %v4954
      %v4956 = vpop.f32.mrb[0].mxu0
      %4957 = vmatprep.mubr.f32.mxu0 0.0
      %v4958 = vand.u32 %v4187, 4294901760
      %4959 = vmatmul.mubr.f32.gmra.mrb[0].mxu0 %v4958
      %v4960 = vpop.f32.mrb[0].mxu0
      %v4961 = vadd.f32 %v4856, %v4960
      %v4962 = vpop.f32.mrb[0].mxu0
      %4963 = vmatprep.mubr.f32.mxu0 0.0
      %v4964 = vand.u32 %v4188, 4294901760
      %4965 = vmatmul.mubr.f32.gmra.mrb[0].mxu0 %v4964
      %v4966 = vpop.f32.mrb[0].mxu0
      %v4967 = vadd.f32 %v4862, %v4966
      %v4968 = vpop.f32.mrb[0].mxu0
      %4969 = vmatprep.mubr.f32.mxu0 0.0
      %v4970 = vand.u32 %v4189, 4294901760
      %4971 = vmatmul.mubr.f32.gmra.mrb[0].mxu0 %v4970
      %v4972 = vpop.f32.mrb[0].mxu0
      %v4973 = vadd.f32 %v4868, %v4972
      %v4974 = vpop.f32.mrb[0].mxu0
      %4975 = vdwg.mxu0
      %v4976 = vadd.f32 %v4176, %v4955
      %v4977 = vadd.f32 %v4176, %v4961
      %v4978 = vadd.f32 %v4176, %v4967
      %v4979 = vadd.f32 %v4176, %v4973
      %s4980 = scalar_lea.vmem %s3, 128
      %v4981 = vld [vmem:[%s4980] sm:$0xff]
      %v4982 = vld [vmem:[%s4980 + $0x8] sm:$0xff]
      %v4983 = vld [vmem:[%s4980 + $0x10] sm:$0xff]
      %v4984 = vld [vmem:[%s4980 + $0x18] sm:$0xff]
      %v4985 = vld [vmem:[%s4980 + $0x20] sm:$0xff]
      %v4986 = vld [vmem:[%s4980 + $0x28] sm:$0xff]
      %v4987 = vld [vmem:[%s4980 + $0x30] sm:$0xff]
      %v4988 = vld [vmem:[%s4980 + $0x38] sm:$0xff]
      %v4989 = vld [vmem:[%s4980 + $0x40] sm:$0xff]
      %v4990 = vld [vmem:[%s4980 + $0x48] sm:$0xff]
      %v4991 = vld [vmem:[%s4980 + $0x50] sm:$0xff]
      %v4992 = vld [vmem:[%s4980 + $0x58] sm:$0xff]
      %v4993 = vld [vmem:[%s4980 + $0x60] sm:$0xff]
      %v4994 = vld [vmem:[%s4980 + $0x68] sm:$0xff]
      %v4995 = vld [vmem:[%s4980 + $0x70] sm:$0xff]
      %v4996 = vld [vmem:[%s4980 + $0x78] sm:$0xff]
      %4997 = vmatprep.subr.mxu0 0.0
      %v4998 = vand.u32 %v4981, 4294901760
      %4999 = vmatpush1.msra.mxu0 %v4998
      %5000 = vmatprep.subr.mxu0 0.0
      %v5001 = vand.u32 %v4982, 4294901760
      %5002 = vmatpush1.msra.mxu0 %v5001
      %5003 = vmatprep.subr.mxu0 0.0
      %v5004 = vand.u32 %v4983, 4294901760
      %5005 = vmatpush1.msra.mxu0 %v5004
      %5006 = vmatprep.subr.mxu0 0.0
      %v5007 = vand.u32 %v4984, 4294901760
      %5008 = vmatpush1.msra.mxu0 %v5007
      %5009 = vmatprep.subr.mxu0 0.0
      %v5010 = vand.u32 %v4985, 4294901760
      %5011 = vmatpush1.msra.mxu0 %v5010
      %5012 = vmatprep.subr.mxu0 0.0
      %v5013 = vand.u32 %v4986, 4294901760
      %5014 = vmatpush1.msra.mxu0 %v5013
      %5015 = vmatprep.subr.mxu0 0.0
      %v5016 = vand.u32 %v4987, 4294901760
      %5017 = vmatpush1.msra.mxu0 %v5016
      %5018 = vmatprep.subr.mxu0 0.0
      %v5019 = vand.u32 %v4988, 4294901760
      %5020 = vmatpush1.msra.mxu0 %v5019
      %5021 = vmatprep.subr.mxu0 0.0
      %v5022 = vand.u32 %v4989, 4294901760
      %5023 = vmatpush1.msra.mxu0 %v5022
      %5024 = vmatprep.subr.mxu0 0.0
      %v5025 = vand.u32 %v4990, 4294901760
      %5026 = vmatpush1.msra.mxu0 %v5025
      %5027 = vmatprep.subr.mxu0 0.0
      %v5028 = vand.u32 %v4991, 4294901760
      %5029 = vmatpush1.msra.mxu0 %v5028
      %5030 = vmatprep.subr.mxu0 0.0
      %v5031 = vand.u32 %v4992, 4294901760
      %5032 = vmatpush1.msra.mxu0 %v5031
      %5033 = vmatprep.subr.mxu0 0.0
      %v5034 = vand.u32 %v4993, 4294901760
      %5035 = vmatpush1.msra.mxu0 %v5034
      %5036 = vmatprep.subr.mxu0 0.0
      %v5037 = vand.u32 %v4994, 4294901760
      %5038 = vmatpush1.msra.mxu0 %v5037
      %5039 = vmatprep.subr.mxu0 0.0
      %v5040 = vand.u32 %v4995, 4294901760
      %5041 = vmatpush1.msra.mxu0 %v5040
      %5042 = vmatprep.subr.mxu0 0.0
      %v5043 = vand.u32 %v4996, 4294901760
      %5044 = vmatpush1.msra.mxu0 %v5043
      %5045 = vmatprep.subr.mxu0 0.0
      %5046 = vmatpush1.msra.mxu0 0.0
      %5047 = vmatprep.subr.mxu0 0.0
      %5048 = vmatpush1.msra.mxu0 0.0
      %5049 = vmatprep.subr.mxu0 0.0
      %5050 = vmatpush1.msra.mxu0 0.0
      %5051 = vmatprep.subr.mxu0 0.0
      %5052 = vmatpush1.msra.mxu0 0.0
      %5053 = vmatprep.subr.mxu0 0.0
      %5054 = vmatpush1.msra.mxu0 0.0
      %5055 = vmatprep.subr.mxu0 0.0
      %5056 = vmatpush1.msra.mxu0 0.0
      %5057 = vmatprep.subr.mxu0 0.0
      %5058 = vmatpush1.msra.mxu0 0.0
      %5059 = vmatprep.subr.mxu0 0.0
      %5060 = vmatpush1.msra.mxu0 0.0
      %5061 = vmatprep.subr.mxu0 0.0
      %5062 = vmatpush1.msra.mxu0 0.0
      %5063 = vmatprep.subr.mxu0 0.0
      %5064 = vmatpush1.msra.mxu0 0.0
      %5065 = vmatprep.subr.mxu0 0.0
      %5066 = vmatpush1.msra.mxu0 0.0
      %5067 = vmatprep.subr.mxu0 0.0
      %5068 = vmatpush1.msra.mxu0 0.0
      %5069 = vmatprep.subr.mxu0 0.0
      %5070 = vmatpush1.msra.mxu0 0.0
      %5071 = vmatprep.subr.mxu0 0.0
      %5072 = vmatpush1.msra.mxu0 0.0
      %5073 = vmatprep.subr.mxu0 0.0
      %5074 = vmatpush1.msra.mxu0 0.0
      %5075 = vmatprep.subr.mxu0 0.0
      %5076 = vmatpush1.msra.mxu0 0.0
      %5077 = vmatprep.mubr.f32.mxu0 0.0
      %v5078 = vand.u32 %v4168, 4294901760
      %v5079 = vsub.f32 %v4168, %v5078
      %v5080 = vand.u32 %v5079, 4294901760
      %v5081 = vsub.f32 %v5079, %v5080
      %v5082 = vand.u32 %v5081, 4294901760
      %5083 = vmatmul.mubr.f32.gmra.mrb[0].mxu0 %v5082
      %v5084 = vpop.f32.mrb[0].mxu0
      %v5085 = vadd.f32 0.0, %v5084
      %v5086 = vpop.f32.mrb[0].mxu0
      %5087 = vmatprep.mubr.f32.mxu0 0.0
      %v5088 = vand.u32 %v4169, 4294901760
      %v5089 = vsub.f32 %v4169, %v5088
      %v5090 = vand.u32 %v5089, 4294901760
      %v5091 = vsub.f32 %v5089, %v5090
      %v5092 = vand.u32 %v5091, 4294901760
      %5093 = vmatmul.mubr.f32.gmra.mrb[0].mxu0 %v5092
      %v5094 = vpop.f32.mrb[0].mxu0
      %v5095 = vadd.f32 0.0, %v5094
      %v5096 = vpop.f32.mrb[0].mxu0
      %5097 = vmatprep.mubr.f32.mxu0 0.0
      %v5098 = vand.u32 %v4170, 4294901760
      %v5099 = vsub.f32 %v4170, %v5098
      %v5100 = vand.u32 %v5099, 4294901760
      %v5101 = vsub.f32 %v5099, %v5100
      %v5102 = vand.u32 %v5101, 4294901760
      %5103 = vmatmul.mubr.f32.gmra.mrb[0].mxu0 %v5102
      %v5104 = vpop.f32.mrb[0].mxu0
      %v5105 = vadd.f32 0.0, %v5104
      %v5106 = vpop.f32.mrb[0].mxu0
      %5107 = vmatprep.mubr.f32.mxu0 0.0
      %v5108 = vand.u32 %v4171, 4294901760
      %v5109 = vsub.f32 %v4171, %v5108
      %v5110 = vand.u32 %v5109, 4294901760
      %v5111 = vsub.f32 %v5109, %v5110
      %v5112 = vand.u32 %v5111, 4294901760
      %5113 = vmatmul.mubr.f32.gmra.mrb[0].mxu0 %v5112
      %v5114 = vpop.f32.mrb[0].mxu0
      %v5115 = vadd.f32 0.0, %v5114
      %v5116 = vpop.f32.mrb[0].mxu0
      %5117 = vdwg.mxu0
      %5118 = vmatprep.subr.mxu0 0.0
      %v5119 = vand.u32 %v4981, 4294901760
      %v5120 = vsub.f32 %v4981, %v5119
      %v5121 = vand.u32 %v5120, 4294901760
      %v5122 = vsub.f32 %v5120, %v5121
      %v5123 = vand.u32 %v5122, 4294901760
      %5124 = vmatpush1.msra.mxu0 %v5123
      %5125 = vmatprep.subr.mxu0 0.0
      %v5126 = vand.u32 %v4982, 4294901760
      %v5127 = vsub.f32 %v4982, %v5126
      %v5128 = vand.u32 %v5127, 4294901760
      %v5129 = vsub.f32 %v5127, %v5128
      %v5130 = vand.u32 %v5129, 4294901760
      %5131 = vmatpush1.msra.mxu0 %v5130
      %5132 = vmatprep.subr.mxu0 0.0
      %v5133 = vand.u32 %v4983, 4294901760
      %v5134 = vsub.f32 %v4983, %v5133
      %v5135 = vand.u32 %v5134, 4294901760
      %v5136 = vsub.f32 %v5134, %v5135
      %v5137 = vand.u32 %v5136, 4294901760
      %5138 = vmatpush1.msra.mxu0 %v5137
      %5139 = vmatprep.subr.mxu0 0.0
      %v5140 = vand.u32 %v4984, 4294901760
      %v5141 = vsub.f32 %v4984, %v5140
      %v5142 = vand.u32 %v5141, 4294901760
      %v5143 = vsub.f32 %v5141, %v5142
      %v5144 = vand.u32 %v5143, 4294901760
      %5145 = vmatpush1.msra.mxu0 %v5144
      %5146 = vmatprep.subr.mxu0 0.0
      %v5147 = vand.u32 %v4985, 4294901760
      %v5148 = vsub.f32 %v4985, %v5147
      %v5149 = vand.u32 %v5148, 4294901760
      %v5150 = vsub.f32 %v5148, %v5149
      %v5151 = vand.u32 %v5150, 4294901760
      %5152 = vmatpush1.msra.mxu0 %v5151
      %5153 = vmatprep.subr.mxu0 0.0
      %v5154 = vand.u32 %v4986, 4294901760
      %v5155 = vsub.f32 %v4986, %v5154
      %v5156 = vand.u32 %v5155, 4294901760
      %v5157 = vsub.f32 %v5155, %v5156
      %v5158 = vand.u32 %v5157, 4294901760
      %5159 = vmatpush1.msra.mxu0 %v5158
      %5160 = vmatprep.subr.mxu0 0.0
      %v5161 = vand.u32 %v4987, 4294901760
      %v5162 = vsub.f32 %v4987, %v5161
      %v5163 = vand.u32 %v5162, 4294901760
      %v5164 = vsub.f32 %v5162, %v5163
      %v5165 = vand.u32 %v5164, 4294901760
      %5166 = vmatpush1.msra.mxu0 %v5165
      %5167 = vmatprep.subr.mxu0 0.0
      %v5168 = vand.u32 %v4988, 4294901760
      %v5169 = vsub.f32 %v4988, %v5168
      %v5170 = vand.u32 %v5169, 4294901760
      %v5171 = vsub.f32 %v5169, %v5170
      %v5172 = vand.u32 %v5171, 4294901760
      %5173 = vmatpush1.msra.mxu0 %v5172
      %5174 = vmatprep.subr.mxu0 0.0
      %v5175 = vand.u32 %v4989, 4294901760
      %v5176 = vsub.f32 %v4989, %v5175
      %v5177 = vand.u32 %v5176, 4294901760
      %v5178 = vsub.f32 %v5176, %v5177
      %v5179 = vand.u32 %v5178, 4294901760
      %5180 = vmatpush1.msra.mxu0 %v5179
      %5181 = vmatprep.subr.mxu0 0.0
      %v5182 = vand.u32 %v4990, 4294901760
      %v5183 = vsub.f32 %v4990, %v5182
      %v5184 = vand.u32 %v5183, 4294901760
      %v5185 = vsub.f32 %v5183, %v5184
      %v5186 = vand.u32 %v5185, 4294901760
      %5187 = vmatpush1.msra.mxu0 %v5186
      %5188 = vmatprep.subr.mxu0 0.0
      %v5189 = vand.u32 %v4991, 4294901760
      %v5190 = vsub.f32 %v4991, %v5189
      %v5191 = vand.u32 %v5190, 4294901760
      %v5192 = vsub.f32 %v5190, %v5191
      %v5193 = vand.u32 %v5192, 4294901760
      %5194 = vmatpush1.msra.mxu0 %v5193
      %5195 = vmatprep.subr.mxu0 0.0
      %v5196 = vand.u32 %v4992, 4294901760
      %v5197 = vsub.f32 %v4992, %v5196
      %v5198 = vand.u32 %v5197, 4294901760
      %v5199 = vsub.f32 %v5197, %v5198
      %v5200 = vand.u32 %v5199, 4294901760
      %5201 = vmatpush1.msra.mxu0 %v5200
      %5202 = vmatprep.subr.mxu0 0.0
      %v5203 = vand.u32 %v4993, 4294901760
      %v5204 = vsub.f32 %v4993, %v5203
      %v5205 = vand.u32 %v5204, 4294901760
      %v5206 = vsub.f32 %v5204, %v5205
      %v5207 = vand.u32 %v5206, 4294901760
      %5208 = vmatpush1.msra.mxu0 %v5207
      %5209 = vmatprep.subr.mxu0 0.0
      %v5210 = vand.u32 %v4994, 4294901760
      %v5211 = vsub.f32 %v4994, %v5210
      %v5212 = vand.u32 %v5211, 4294901760
      %v5213 = vsub.f32 %v5211, %v5212
      %v5214 = vand.u32 %v5213, 4294901760
      %5215 = vmatpush1.msra.mxu0 %v5214
      %5216 = vmatprep.subr.mxu0 0.0
      %v5217 = vand.u32 %v4995, 4294901760
      %v5218 = vsub.f32 %v4995, %v5217
      %v5219 = vand.u32 %v5218, 4294901760
      %v5220 = vsub.f32 %v5218, %v5219
      %v5221 = vand.u32 %v5220, 4294901760
      %5222 = vmatpush1.msra.mxu0 %v5221
      %5223 = vmatprep.subr.mxu0 0.0
      %v5224 = vand.u32 %v4996, 4294901760
      %v5225 = vsub.f32 %v4996, %v5224
      %v5226 = vand.u32 %v5225, 4294901760
      %v5227 = vsub.f32 %v5225, %v5226
      %v5228 = vand.u32 %v5227, 4294901760
      %5229 = vmatpush1.msra.mxu0 %v5228
      %5230 = vmatprep.subr.mxu0 0.0
      %5231 = vmatpush1.msra.mxu0 0.0
      %5232 = vmatprep.subr.mxu0 0.0
      %5233 = vmatpush1.msra.mxu0 0.0
      %5234 = vmatprep.subr.mxu0 0.0
      %5235 = vmatpush1.msra.mxu0 0.0
      %5236 = vmatprep.subr.mxu0 0.0
      %5237 = vmatpush1.msra.mxu0 0.0
      %5238 = vmatprep.subr.mxu0 0.0
      %5239 = vmatpush1.msra.mxu0 0.0
      %5240 = vmatprep.subr.mxu0 0.0
      %5241 = vmatpush1.msra.mxu0 0.0
      %5242 = vmatprep.subr.mxu0 0.0
      %5243 = vmatpush1.msra.mxu0 0.0
      %5244 = vmatprep.subr.mxu0 0.0
      %5245 = vmatpush1.msra.mxu0 0.0
      %5246 = vmatprep.subr.mxu0 0.0
      %5247 = vmatpush1.msra.mxu0 0.0
      %5248 = vmatprep.subr.mxu0 0.0
      %5249 = vmatpush1.msra.mxu0 0.0
      %5250 = vmatprep.subr.mxu0 0.0
      %5251 = vmatpush1.msra.mxu0 0.0
      %5252 = vmatprep.subr.mxu0 0.0
      %5253 = vmatpush1.msra.mxu0 0.0
      %5254 = vmatprep.subr.mxu0 0.0
      %5255 = vmatpush1.msra.mxu0 0.0
      %5256 = vmatprep.subr.mxu0 0.0
      %5257 = vmatpush1.msra.mxu0 0.0
      %5258 = vmatprep.subr.mxu0 0.0
      %5259 = vmatpush1.msra.mxu0 0.0
      %5260 = vmatprep.subr.mxu0 0.0
      %5261 = vmatpush1.msra.mxu0 0.0
      %5262 = vmatprep.mubr.f32.mxu0 0.0
      %v5263 = vand.u32 %v4168, 4294901760
      %5264 = vmatmul.mubr.f32.gmra.mrb[0].mxu0 %v5263
      %v5265 = vpop.f32.mrb[0].mxu0
      %v5266 = vadd.f32 %v5085, %v5265
      %v5267 = vpop.f32.mrb[0].mxu0
      %5268 = vmatprep.mubr.f32.mxu0 0.0
      %v5269 = vand.u32 %v4169, 4294901760
      %5270 = vmatmul.mubr.f32.gmra.mrb[0].mxu0 %v5269
      %v5271 = vpop.f32.mrb[0].mxu0
      %v5272 = vadd.f32 %v5095, %v5271
      %v5273 = vpop.f32.mrb[0].mxu0
      %5274 = vmatprep.mubr.f32.mxu0 0.0
      %v5275 = vand.u32 %v4170, 4294901760
      %5276 = vmatmul.mubr.f32.gmra.mrb[0].mxu0 %v5275
      %v5277 = vpop.f32.mrb[0].mxu0
      %v5278 = vadd.f32 %v5105, %v5277
      %v5279 = vpop.f32.mrb[0].mxu0
      %5280 = vmatprep.mubr.f32.mxu0 0.0
      %v5281 = vand.u32 %v4171, 4294901760
      %5282 = vmatmul.mubr.f32.gmra.mrb[0].mxu0 %v5281
      %v5283 = vpop.f32.mrb[0].mxu0
      %v5284 = vadd.f32 %v5115, %v5283
      %v5285 = vpop.f32.mrb[0].mxu0
      %5286 = vdwg.mxu0
      %5287 = vmatprep.subr.mxu0 0.0
      %v5288 = vand.u32 %v4981, 4294901760
      %v5289 = vsub.f32 %v4981, %v5288
      %5290 = vmatpush1.msra.mxu0 %v5289
      %5291 = vmatprep.subr.mxu0 0.0
      %v5292 = vand.u32 %v4982, 4294901760
      %v5293 = vsub.f32 %v4982, %v5292
      %5294 = vmatpush1.msra.mxu0 %v5293
      %5295 = vmatprep.subr.mxu0 0.0
      %v5296 = vand.u32 %v4983, 4294901760
      %v5297 = vsub.f32 %v4983, %v5296
      %5298 = vmatpush1.msra.mxu0 %v5297
      %5299 = vmatprep.subr.mxu0 0.0
      %v5300 = vand.u32 %v4984, 4294901760
      %v5301 = vsub.f32 %v4984, %v5300
      %5302 = vmatpush1.msra.mxu0 %v5301
      %5303 = vmatprep.subr.mxu0 0.0
      %v5304 = vand.u32 %v4985, 4294901760
      %v5305 = vsub.f32 %v4985, %v5304
      %5306 = vmatpush1.msra.mxu0 %v5305
      %5307 = vmatprep.subr.mxu0 0.0
      %v5308 = vand.u32 %v4986, 4294901760
      %v5309 = vsub.f32 %v4986, %v5308
      %5310 = vmatpush1.msra.mxu0 %v5309
      %5311 = vmatprep.subr.mxu0 0.0
      %v5312 = vand.u32 %v4987, 4294901760
      %v5313 = vsub.f32 %v4987, %v5312
      %5314 = vmatpush1.msra.mxu0 %v5313
      %5315 = vmatprep.subr.mxu0 0.0
      %v5316 = vand.u32 %v4988, 4294901760
      %v5317 = vsub.f32 %v4988, %v5316
      %5318 = vmatpush1.msra.mxu0 %v5317
      %5319 = vmatprep.subr.mxu0 0.0
      %v5320 = vand.u32 %v4989, 4294901760
      %v5321 = vsub.f32 %v4989, %v5320
      %5322 = vmatpush1.msra.mxu0 %v5321
      %5323 = vmatprep.subr.mxu0 0.0
      %v5324 = vand.u32 %v4990, 4294901760
      %v5325 = vsub.f32 %v4990, %v5324
      %5326 = vmatpush1.msra.mxu0 %v5325
      %5327 = vmatprep.subr.mxu0 0.0
      %v5328 = vand.u32 %v4991, 4294901760
      %v5329 = vsub.f32 %v4991, %v5328
      %5330 = vmatpush1.msra.mxu0 %v5329
      %5331 = vmatprep.subr.mxu0 0.0
      %v5332 = vand.u32 %v4992, 4294901760
      %v5333 = vsub.f32 %v4992, %v5332
      %5334 = vmatpush1.msra.mxu0 %v5333
      %5335 = vmatprep.subr.mxu0 0.0
      %v5336 = vand.u32 %v4993, 4294901760
      %v5337 = vsub.f32 %v4993, %v5336
      %5338 = vmatpush1.msra.mxu0 %v5337
      %5339 = vmatprep.subr.mxu0 0.0
      %v5340 = vand.u32 %v4994, 4294901760
      %v5341 = vsub.f32 %v4994, %v5340
      %5342 = vmatpush1.msra.mxu0 %v5341
      %5343 = vmatprep.subr.mxu0 0.0
      %v5344 = vand.u32 %v4995, 4294901760
      %v5345 = vsub.f32 %v4995, %v5344
      %5346 = vmatpush1.msra.mxu0 %v5345
      %5347 = vmatprep.subr.mxu0 0.0
      %v5348 = vand.u32 %v4996, 4294901760
      %v5349 = vsub.f32 %v4996, %v5348
      %5350 = vmatpush1.msra.mxu0 %v5349
      %5351 = vmatprep.subr.mxu0 0.0
      %5352 = vmatpush1.msra.mxu0 0.0
      %5353 = vmatprep.subr.mxu0 0.0
      %5354 = vmatpush1.msra.mxu0 0.0
      %5355 = vmatprep.subr.mxu0 0.0
      %5356 = vmatpush1.msra.mxu0 0.0
      %5357 = vmatprep.subr.mxu0 0.0
      %5358 = vmatpush1.msra.mxu0 0.0
      %5359 = vmatprep.subr.mxu0 0.0
      %5360 = vmatpush1.msra.mxu0 0.0
      %5361 = vmatprep.subr.mxu0 0.0
      %5362 = vmatpush1.msra.mxu0 0.0
      %5363 = vmatprep.subr.mxu0 0.0
      %5364 = vmatpush1.msra.mxu0 0.0
      %5365 = vmatprep.subr.mxu0 0.0
      %5366 = vmatpush1.msra.mxu0 0.0
      %5367 = vmatprep.subr.mxu0 0.0
      %5368 = vmatpush1.msra.mxu0 0.0
      %5369 = vmatprep.subr.mxu0 0.0
      %5370 = vmatpush1.msra.mxu0 0.0
      %5371 = vmatprep.subr.mxu0 0.0
      %5372 = vmatpush1.msra.mxu0 0.0
      %5373 = vmatprep.subr.mxu0 0.0
      %5374 = vmatpush1.msra.mxu0 0.0
      %5375 = vmatprep.subr.mxu0 0.0
      %5376 = vmatpush1.msra.mxu0 0.0
      %5377 = vmatprep.subr.mxu0 0.0
      %5378 = vmatpush1.msra.mxu0 0.0
      %5379 = vmatprep.subr.mxu0 0.0
      %5380 = vmatpush1.msra.mxu0 0.0
      %5381 = vmatprep.subr.mxu0 0.0
      %5382 = vmatpush1.msra.mxu0 0.0
      %5383 = vmatprep.mubr.f32.mxu0 0.0
      %v5384 = vand.u32 %v4168, 4294901760
      %v5385 = vsub.f32 %v4168, %v5384
      %5386 = vmatmul.mubr.f32.gmra.mrb[0].mxu0 %v5385
      %v5387 = vpop.f32.mrb[0].mxu0
      %v5388 = vadd.f32 %v5266, %v5387
      %v5389 = vpop.f32.mrb[0].mxu0
      %5390 = vmatprep.mubr.f32.mxu0 0.0
      %v5391 = vand.u32 %v4169, 4294901760
      %v5392 = vsub.f32 %v4169, %v5391
      %5393 = vmatmul.mubr.f32.gmra.mrb[0].mxu0 %v5392
      %v5394 = vpop.f32.mrb[0].mxu0
      %v5395 = vadd.f32 %v5272, %v5394
      %v5396 = vpop.f32.mrb[0].mxu0
      %5397 = vmatprep.mubr.f32.mxu0 0.0
      %v5398 = vand.u32 %v4170, 4294901760
      %v5399 = vsub.f32 %v4170, %v5398
      %5400 = vmatmul.mubr.f32.gmra.mrb[0].mxu0 %v5399
      %v5401 = vpop.f32.mrb[0].mxu0
      %v5402 = vadd.f32 %v5278, %v5401
      %v5403 = vpop.f32.mrb[0].mxu0
      %5404 = vmatprep.mubr.f32.mxu0 0.0
      %v5405 = vand.u32 %v4171, 4294901760
      %v5406 = vsub.f32 %v4171, %v5405
      %5407 = vmatmul.mubr.f32.gmra.mrb[0].mxu0 %v5406
      %v5408 = vpop.f32.mrb[0].mxu0
      %v5409 = vadd.f32 %v5284, %v5408
      %v5410 = vpop.f32.mrb[0].mxu0
      %5411 = vdwg.mxu0
      %5412 = vmatprep.subr.mxu0 0.0
      %v5413 = vand.u32 %v4981, 4294901760
      %5414 = vmatpush1.msra.mxu0 %v5413
      %5415 = vmatprep.subr.mxu0 0.0
      %v5416 = vand.u32 %v4982, 4294901760
      %5417 = vmatpush1.msra.mxu0 %v5416
      %5418 = vmatprep.subr.mxu0 0.0
      %v5419 = vand.u32 %v4983, 4294901760
      %5420 = vmatpush1.msra.mxu0 %v5419
      %5421 = vmatprep.subr.mxu0 0.0
      %v5422 = vand.u32 %v4984, 4294901760
      %5423 = vmatpush1.msra.mxu0 %v5422
      %5424 = vmatprep.subr.mxu0 0.0
      %v5425 = vand.u32 %v4985, 4294901760
      %5426 = vmatpush1.msra.mxu0 %v5425
      %5427 = vmatprep.subr.mxu0 0.0
      %v5428 = vand.u32 %v4986, 4294901760
      %5429 = vmatpush1.msra.mxu0 %v5428
      %5430 = vmatprep.subr.mxu0 0.0
      %v5431 = vand.u32 %v4987, 4294901760
      %5432 = vmatpush1.msra.mxu0 %v5431
      %5433 = vmatprep.subr.mxu0 0.0
      %v5434 = vand.u32 %v4988, 4294901760
      %5435 = vmatpush1.msra.mxu0 %v5434
      %5436 = vmatprep.subr.mxu0 0.0
      %v5437 = vand.u32 %v4989, 4294901760
      %5438 = vmatpush1.msra.mxu0 %v5437
      %5439 = vmatprep.subr.mxu0 0.0
      %v5440 = vand.u32 %v4990, 4294901760
      %5441 = vmatpush1.msra.mxu0 %v5440
      %5442 = vmatprep.subr.mxu0 0.0
      %v5443 = vand.u32 %v4991, 4294901760
      %5444 = vmatpush1.msra.mxu0 %v5443
      %5445 = vmatprep.subr.mxu0 0.0
      %v5446 = vand.u32 %v4992, 4294901760
      %5447 = vmatpush1.msra.mxu0 %v5446
      %5448 = vmatprep.subr.mxu0 0.0
      %v5449 = vand.u32 %v4993, 4294901760
      %5450 = vmatpush1.msra.mxu0 %v5449
      %5451 = vmatprep.subr.mxu0 0.0
      %v5452 = vand.u32 %v4994, 4294901760
      %5453 = vmatpush1.msra.mxu0 %v5452
      %5454 = vmatprep.subr.mxu0 0.0
      %v5455 = vand.u32 %v4995, 4294901760
      %5456 = vmatpush1.msra.mxu0 %v5455
      %5457 = vmatprep.subr.mxu0 0.0
      %v5458 = vand.u32 %v4996, 4294901760
      %5459 = vmatpush1.msra.mxu0 %v5458
      %5460 = vmatprep.subr.mxu0 0.0
      %5461 = vmatpush1.msra.mxu0 0.0
      %5462 = vmatprep.subr.mxu0 0.0
      %5463 = vmatpush1.msra.mxu0 0.0
      %5464 = vmatprep.subr.mxu0 0.0
      %5465 = vmatpush1.msra.mxu0 0.0
      %5466 = vmatprep.subr.mxu0 0.0
      %5467 = vmatpush1.msra.mxu0 0.0
      %5468 = vmatprep.subr.mxu0 0.0
      %5469 = vmatpush1.msra.mxu0 0.0
      %5470 = vmatprep.subr.mxu0 0.0
      %5471 = vmatpush1.msra.mxu0 0.0
      %5472 = vmatprep.subr.mxu0 0.0
      %5473 = vmatpush1.msra.mxu0 0.0
      %5474 = vmatprep.subr.mxu0 0.0
      %5475 = vmatpush1.msra.mxu0 0.0
      %5476 = vmatprep.subr.mxu0 0.0
      %5477 = vmatpush1.msra.mxu0 0.0
      %5478 = vmatprep.subr.mxu0 0.0
      %5479 = vmatpush1.msra.mxu0 0.0
      %5480 = vmatprep.subr.mxu0 0.0
      %5481 = vmatpush1.msra.mxu0 0.0
      %5482 = vmatprep.subr.mxu0 0.0
      %5483 = vmatpush1.msra.mxu0 0.0
      %5484 = vmatprep.subr.mxu0 0.0
      %5485 = vmatpush1.msra.mxu0 0.0
      %5486 = vmatprep.subr.mxu0 0.0
      %5487 = vmatpush1.msra.mxu0 0.0
      %5488 = vmatprep.subr.mxu0 0.0
      %5489 = vmatpush1.msra.mxu0 0.0
      %5490 = vmatprep.subr.mxu0 0.0
      %5491 = vmatpush1.msra.mxu0 0.0
      %5492 = vmatprep.mubr.f32.mxu0 0.0
      %v5493 = vand.u32 %v4168, 4294901760
      %v5494 = vsub.f32 %v4168, %v5493
      %v5495 = vand.u32 %v5494, 4294901760
      %5496 = vmatmul.mubr.f32.gmra.mrb[0].mxu0 %v5495
      %v5497 = vpop.f32.mrb[0].mxu0
      %v5498 = vadd.f32 %v5388, %v5497
      %v5499 = vpop.f32.mrb[0].mxu0
      %5500 = vmatprep.mubr.f32.mxu0 0.0
      %v5501 = vand.u32 %v4169, 4294901760
      %v5502 = vsub.f32 %v4169, %v5501
      %v5503 = vand.u32 %v5502, 4294901760
      %5504 = vmatmul.mubr.f32.gmra.mrb[0].mxu0 %v5503
      %v5505 = vpop.f32.mrb[0].mxu0
      %v5506 = vadd.f32 %v5395, %v5505
      %v5507 = vpop.f32.mrb[0].mxu0
      %5508 = vmatprep.mubr.f32.mxu0 0.0
      %v5509 = vand.u32 %v4170, 4294901760
      %v5510 = vsub.f32 %v4170, %v5509
      %v5511 = vand.u32 %v5510, 4294901760
      %5512 = vmatmul.mubr.f32.gmra.mrb[0].mxu0 %v5511
      %v5513 = vpop.f32.mrb[0].mxu0
      %v5514 = vadd.f32 %v5402, %v5513
      %v5515 = vpop.f32.mrb[0].mxu0
      %5516 = vmatprep.mubr.f32.mxu0 0.0
      %v5517 = vand.u32 %v4171, 4294901760
      %v5518 = vsub.f32 %v4171, %v5517
      %v5519 = vand.u32 %v5518, 4294901760
      %5520 = vmatmul.mubr.f32.gmra.mrb[0].mxu0 %v5519
      %v5521 = vpop.f32.mrb[0].mxu0
      %v5522 = vadd.f32 %v5409, %v5521
      %v5523 = vpop.f32.mrb[0].mxu0
      %5524 = vdwg.mxu0
      %5525 = vmatprep.subr.mxu0 0.0
      %v5526 = vand.u32 %v4981, 4294901760
      %v5527 = vsub.f32 %v4981, %v5526
      %v5528 = vand.u32 %v5527, 4294901760
      %5529 = vmatpush1.msra.mxu0 %v5528
      %5530 = vmatprep.subr.mxu0 0.0
      %v5531 = vand.u32 %v4982, 4294901760
      %v5532 = vsub.f32 %v4982, %v5531
      %v5533 = vand.u32 %v5532, 4294901760
      %5534 = vmatpush1.msra.mxu0 %v5533
      %5535 = vmatprep.subr.mxu0 0.0
      %v5536 = vand.u32 %v4983, 4294901760
      %v5537 = vsub.f32 %v4983, %v5536
      %v5538 = vand.u32 %v5537, 4294901760
      %5539 = vmatpush1.msra.mxu0 %v5538
      %5540 = vmatprep.subr.mxu0 0.0
      %v5541 = vand.u32 %v4984, 4294901760
      %v5542 = vsub.f32 %v4984, %v5541
      %v5543 = vand.u32 %v5542, 4294901760
      %5544 = vmatpush1.msra.mxu0 %v5543
      %5545 = vmatprep.subr.mxu0 0.0
      %v5546 = vand.u32 %v4985, 4294901760
      %v5547 = vsub.f32 %v4985, %v5546
      %v5548 = vand.u32 %v5547, 4294901760
      %5549 = vmatpush1.msra.mxu0 %v5548
      %5550 = vmatprep.subr.mxu0 0.0
      %v5551 = vand.u32 %v4986, 4294901760
      %v5552 = vsub.f32 %v4986, %v5551
      %v5553 = vand.u32 %v5552, 4294901760
      %5554 = vmatpush1.msra.mxu0 %v5553
      %5555 = vmatprep.subr.mxu0 0.0
      %v5556 = vand.u32 %v4987, 4294901760
      %v5557 = vsub.f32 %v4987, %v5556
      %v5558 = vand.u32 %v5557, 4294901760
      %5559 = vmatpush1.msra.mxu0 %v5558
      %5560 = vmatprep.subr.mxu0 0.0
      %v5561 = vand.u32 %v4988, 4294901760
      %v5562 = vsub.f32 %v4988, %v5561
      %v5563 = vand.u32 %v5562, 4294901760
      %5564 = vmatpush1.msra.mxu0 %v5563
      %5565 = vmatprep.subr.mxu0 0.0
      %v5566 = vand.u32 %v4989, 4294901760
      %v5567 = vsub.f32 %v4989, %v5566
      %v5568 = vand.u32 %v5567, 4294901760
      %5569 = vmatpush1.msra.mxu0 %v5568
      %5570 = vmatprep.subr.mxu0 0.0
      %v5571 = vand.u32 %v4990, 4294901760
      %v5572 = vsub.f32 %v4990, %v5571
      %v5573 = vand.u32 %v5572, 4294901760
      %5574 = vmatpush1.msra.mxu0 %v5573
      %5575 = vmatprep.subr.mxu0 0.0
      %v5576 = vand.u32 %v4991, 4294901760
      %v5577 = vsub.f32 %v4991, %v5576
      %v5578 = vand.u32 %v5577, 4294901760
      %5579 = vmatpush1.msra.mxu0 %v5578
      %5580 = vmatprep.subr.mxu0 0.0
      %v5581 = vand.u32 %v4992, 4294901760
      %v5582 = vsub.f32 %v4992, %v5581
      %v5583 = vand.u32 %v5582, 4294901760
      %5584 = vmatpush1.msra.mxu0 %v5583
      %5585 = vmatprep.subr.mxu0 0.0
      %v5586 = vand.u32 %v4993, 4294901760
      %v5587 = vsub.f32 %v4993, %v5586
      %v5588 = vand.u32 %v5587, 4294901760
      %5589 = vmatpush1.msra.mxu0 %v5588
      %5590 = vmatprep.subr.mxu0 0.0
      %v5591 = vand.u32 %v4994, 4294901760
      %v5592 = vsub.f32 %v4994, %v5591
      %v5593 = vand.u32 %v5592, 4294901760
      %5594 = vmatpush1.msra.mxu0 %v5593
      %5595 = vmatprep.subr.mxu0 0.0
      %v5596 = vand.u32 %v4995, 4294901760
      %v5597 = vsub.f32 %v4995, %v5596
      %v5598 = vand.u32 %v5597, 4294901760
      %5599 = vmatpush1.msra.mxu0 %v5598
      %5600 = vmatprep.subr.mxu0 0.0
      %v5601 = vand.u32 %v4996, 4294901760
      %v5602 = vsub.f32 %v4996, %v5601
      %v5603 = vand.u32 %v5602, 4294901760
      %5604 = vmatpush1.msra.mxu0 %v5603
      %5605 = vmatprep.subr.mxu0 0.0
      %5606 = vmatpush1.msra.mxu0 0.0
      %5607 = vmatprep.subr.mxu0 0.0
      %5608 = vmatpush1.msra.mxu0 0.0
      %5609 = vmatprep.subr.mxu0 0.0
      %5610 = vmatpush1.msra.mxu0 0.0
      %5611 = vmatprep.subr.mxu0 0.0
      %5612 = vmatpush1.msra.mxu0 0.0
      %5613 = vmatprep.subr.mxu0 0.0
      %5614 = vmatpush1.msra.mxu0 0.0
      %5615 = vmatprep.subr.mxu0 0.0
      %5616 = vmatpush1.msra.mxu0 0.0
      %5617 = vmatprep.subr.mxu0 0.0
      %5618 = vmatpush1.msra.mxu0 0.0
      %5619 = vmatprep.subr.mxu0 0.0
      %5620 = vmatpush1.msra.mxu0 0.0
      %5621 = vmatprep.subr.mxu0 0.0
      %5622 = vmatpush1.msra.mxu0 0.0
      %5623 = vmatprep.subr.mxu0 0.0
      %5624 = vmatpush1.msra.mxu0 0.0
      %5625 = vmatprep.subr.mxu0 0.0
      %5626 = vmatpush1.msra.mxu0 0.0
      %5627 = vmatprep.subr.mxu0 0.0
      %5628 = vmatpush1.msra.mxu0 0.0
      %5629 = vmatprep.subr.mxu0 0.0
      %5630 = vmatpush1.msra.mxu0 0.0
      %5631 = vmatprep.subr.mxu0 0.0
      %5632 = vmatpush1.msra.mxu0 0.0
      %5633 = vmatprep.subr.mxu0 0.0
      %5634 = vmatpush1.msra.mxu0 0.0
      %5635 = vmatprep.subr.mxu0 0.0
      %5636 = vmatpush1.msra.mxu0 0.0
      %5637 = vmatprep.mubr.f32.mxu0 0.0
      %v5638 = vand.u32 %v4168, 4294901760
      %5639 = vmatmul.mubr.f32.gmra.mrb[0].mxu0 %v5638
      %v5640 = vpop.f32.mrb[0].mxu0
      %v5641 = vadd.f32 %v5498, %v5640
      %v5642 = vpop.f32.mrb[0].mxu0
      %5643 = vmatprep.mubr.f32.mxu0 0.0
      %v5644 = vand.u32 %v4169, 4294901760
      %5645 = vmatmul.mubr.f32.gmra.mrb[0].mxu0 %v5644
      %v5646 = vpop.f32.mrb[0].mxu0
      %v5647 = vadd.f32 %v5506, %v5646
      %v5648 = vpop.f32.mrb[0].mxu0
      %5649 = vmatprep.mubr.f32.mxu0 0.0
      %v5650 = vand.u32 %v4170, 4294901760
      %5651 = vmatmul.mubr.f32.gmra.mrb[0].mxu0 %v5650
      %v5652 = vpop.f32.mrb[0].mxu0
      %v5653 = vadd.f32 %v5514, %v5652
      %v5654 = vpop.f32.mrb[0].mxu0
      %5655 = vmatprep.mubr.f32.mxu0 0.0
      %v5656 = vand.u32 %v4171, 4294901760
      %5657 = vmatmul.mubr.f32.gmra.mrb[0].mxu0 %v5656
      %v5658 = vpop.f32.mrb[0].mxu0
      %v5659 = vadd.f32 %v5522, %v5658
      %v5660 = vpop.f32.mrb[0].mxu0
      %5661 = vdwg.mxu0
      %5662 = vmatprep.subr.mxu0 0.0
      %v5663 = vand.u32 %v4981, 4294901760
      %5664 = vmatpush1.msra.mxu0 %v5663
      %5665 = vmatprep.subr.mxu0 0.0
      %v5666 = vand.u32 %v4982, 4294901760
      %5667 = vmatpush1.msra.mxu0 %v5666
      %5668 = vmatprep.subr.mxu0 0.0
      %v5669 = vand.u32 %v4983, 4294901760
      %5670 = vmatpush1.msra.mxu0 %v5669
      %5671 = vmatprep.subr.mxu0 0.0
      %v5672 = vand.u32 %v4984, 4294901760
      %5673 = vmatpush1.msra.mxu0 %v5672
      %5674 = vmatprep.subr.mxu0 0.0
      %v5675 = vand.u32 %v4985, 4294901760
      %5676 = vmatpush1.msra.mxu0 %v5675
      %5677 = vmatprep.subr.mxu0 0.0
      %v5678 = vand.u32 %v4986, 4294901760
      %5679 = vmatpush1.msra.mxu0 %v5678
      %5680 = vmatprep.subr.mxu0 0.0
      %v5681 = vand.u32 %v4987, 4294901760
      %5682 = vmatpush1.msra.mxu0 %v5681
      %5683 = vmatprep.subr.mxu0 0.0
      %v5684 = vand.u32 %v4988, 4294901760
      %5685 = vmatpush1.msra.mxu0 %v5684
      %5686 = vmatprep.subr.mxu0 0.0
      %v5687 = vand.u32 %v4989, 4294901760
      %5688 = vmatpush1.msra.mxu0 %v5687
      %5689 = vmatprep.subr.mxu0 0.0
      %v5690 = vand.u32 %v4990, 4294901760
      %5691 = vmatpush1.msra.mxu0 %v5690
      %5692 = vmatprep.subr.mxu0 0.0
      %v5693 = vand.u32 %v4991, 4294901760
      %5694 = vmatpush1.msra.mxu0 %v5693
      %5695 = vmatprep.subr.mxu0 0.0
      %v5696 = vand.u32 %v4992, 4294901760
      %5697 = vmatpush1.msra.mxu0 %v5696
      %5698 = vmatprep.subr.mxu0 0.0
      %v5699 = vand.u32 %v4993, 4294901760
      %5700 = vmatpush1.msra.mxu0 %v5699
      %5701 = vmatprep.subr.mxu0 0.0
      %v5702 = vand.u32 %v4994, 4294901760
      %5703 = vmatpush1.msra.mxu0 %v5702
      %5704 = vmatprep.subr.mxu0 0.0
      %v5705 = vand.u32 %v4995, 4294901760
      %5706 = vmatpush1.msra.mxu0 %v5705
      %5707 = vmatprep.subr.mxu0 0.0
      %v5708 = vand.u32 %v4996, 4294901760
      %5709 = vmatpush1.msra.mxu0 %v5708
      %5710 = vmatprep.subr.mxu0 0.0
      %5711 = vmatpush1.msra.mxu0 0.0
      %5712 = vmatprep.subr.mxu0 0.0
      %5713 = vmatpush1.msra.mxu0 0.0
      %5714 = vmatprep.subr.mxu0 0.0
      %5715 = vmatpush1.msra.mxu0 0.0
      %5716 = vmatprep.subr.mxu0 0.0
      %5717 = vmatpush1.msra.mxu0 0.0
      %5718 = vmatprep.subr.mxu0 0.0
      %5719 = vmatpush1.msra.mxu0 0.0
      %5720 = vmatprep.subr.mxu0 0.0
      %5721 = vmatpush1.msra.mxu0 0.0
      %5722 = vmatprep.subr.mxu0 0.0
      %5723 = vmatpush1.msra.mxu0 0.0
      %5724 = vmatprep.subr.mxu0 0.0
      %5725 = vmatpush1.msra.mxu0 0.0
      %5726 = vmatprep.subr.mxu0 0.0
      %5727 = vmatpush1.msra.mxu0 0.0
      %5728 = vmatprep.subr.mxu0 0.0
      %5729 = vmatpush1.msra.mxu0 0.0
      %5730 = vmatprep.subr.mxu0 0.0
      %5731 = vmatpush1.msra.mxu0 0.0
      %5732 = vmatprep.subr.mxu0 0.0
      %5733 = vmatpush1.msra.mxu0 0.0
      %5734 = vmatprep.subr.mxu0 0.0
      %5735 = vmatpush1.msra.mxu0 0.0
      %5736 = vmatprep.subr.mxu0 0.0
      %5737 = vmatpush1.msra.mxu0 0.0
      %5738 = vmatprep.subr.mxu0 0.0
      %5739 = vmatpush1.msra.mxu0 0.0
      %5740 = vmatprep.subr.mxu0 0.0
      %5741 = vmatpush1.msra.mxu0 0.0
      %5742 = vmatprep.mubr.f32.mxu0 0.0
      %v5743 = vand.u32 %v4168, 4294901760
      %5744 = vmatmul.mubr.f32.gmra.mrb[0].mxu0 %v5743
      %v5745 = vpop.f32.mrb[0].mxu0
      %v5746 = vadd.f32 %v5641, %v5745
      %v5747 = vpop.f32.mrb[0].mxu0
      %5748 = vmatprep.mubr.f32.mxu0 0.0
      %v5749 = vand.u32 %v4169, 4294901760
      %5750 = vmatmul.mubr.f32.gmra.mrb[0].mxu0 %v5749
      %v5751 = vpop.f32.mrb[0].mxu0
      %v5752 = vadd.f32 %v5647, %v5751
      %v5753 = vpop.f32.mrb[0].mxu0
      %5754 = vmatprep.mubr.f32.mxu0 0.0
      %v5755 = vand.u32 %v4170, 4294901760
      %5756 = vmatmul.mubr.f32.gmra.mrb[0].mxu0 %v5755
      %v5757 = vpop.f32.mrb[0].mxu0
      %v5758 = vadd.f32 %v5653, %v5757
      %v5759 = vpop.f32.mrb[0].mxu0
      %5760 = vmatprep.mubr.f32.mxu0 0.0
      %v5761 = vand.u32 %v4171, 4294901760
      %5762 = vmatmul.mubr.f32.gmra.mrb[0].mxu0 %v5761
      %v5763 = vpop.f32.mrb[0].mxu0
      %v5764 = vadd.f32 %v5659, %v5763
      %v5765 = vpop.f32.mrb[0].mxu0
      %5766 = vdwg.mxu0
      %v5767 = vadd.f32 %v4976, %v5746
      %v5768 = vadd.f32 %v4977, %v5752
      %v5769 = vadd.f32 %v4978, %v5758
      %v5770 = vadd.f32 %v4979, %v5764
      %v5771 = vrot.slane %v4168, 1
      %v5772 = vrot.slane %v4169, 1
      %v5773 = vrot.slane %v4170, 1
      %v5774 = vrot.slane %v4171, 1
      %v5775 = vsel %vm1955, %v5773, %v5774
      %v5776 = vsel %vm1955, %v5772, %v5773
      %v5777 = vsel %vm1955, %v5771, %v5772
      %v5778 = vsel %vm1955, %v5774, %v5771
      %v5779 = vsel %vm1964, %v5777, 0.0
      %v5780 = vsel %vm1965, %v5776, 0.0
      %v5781 = vsel %vm1966, %v5775, 0.0
      %v5782 = vsel %vm1967, %v5778, 0.0
      %s5783 = scalar_lea.vmem %s3, 256
      %v5784 = vld [vmem:[%s5783] sm:$0xff]
      %v5785 = vld [vmem:[%s5783 + $0x8] sm:$0xff]
      %v5786 = vld [vmem:[%s5783 + $0x10] sm:$0xff]
      %v5787 = vld [vmem:[%s5783 + $0x18] sm:$0xff]
      %v5788 = vld [vmem:[%s5783 + $0x20] sm:$0xff]
      %v5789 = vld [vmem:[%s5783 + $0x28] sm:$0xff]
      %v5790 = vld [vmem:[%s5783 + $0x30] sm:$0xff]
      %v5791 = vld [vmem:[%s5783 + $0x38] sm:$0xff]
      %v5792 = vld [vmem:[%s5783 + $0x40] sm:$0xff]
      %v5793 = vld [vmem:[%s5783 + $0x48] sm:$0xff]
      %v5794 = vld [vmem:[%s5783 + $0x50] sm:$0xff]
      %v5795 = vld [vmem:[%s5783 + $0x58] sm:$0xff]
      %v5796 = vld [vmem:[%s5783 + $0x60] sm:$0xff]
      %v5797 = vld [vmem:[%s5783 + $0x68] sm:$0xff]
      %v5798 = vld [vmem:[%s5783 + $0x70] sm:$0xff]
      %v5799 = vld [vmem:[%s5783 + $0x78] sm:$0xff]
      %5800 = vmatprep.subr.mxu0 0.0
      %v5801 = vand.u32 %v5784, 4294901760
      %5802 = vmatpush1.msra.mxu0 %v5801
      %5803 = vmatprep.subr.mxu0 0.0
      %v5804 = vand.u32 %v5785, 4294901760
      %5805 = vmatpush1.msra.mxu0 %v5804
      %5806 = vmatprep.subr.mxu0 0.0
      %v5807 = vand.u32 %v5786, 4294901760
      %5808 = vmatpush1.msra.mxu0 %v5807
      %5809 = vmatprep.subr.mxu0 0.0
      %v5810 = vand.u32 %v5787, 4294901760
      %5811 = vmatpush1.msra.mxu0 %v5810
      %5812 = vmatprep.subr.mxu0 0.0
      %v5813 = vand.u32 %v5788, 4294901760
      %5814 = vmatpush1.msra.mxu0 %v5813
      %5815 = vmatprep.subr.mxu0 0.0
      %v5816 = vand.u32 %v5789, 4294901760
      %5817 = vmatpush1.msra.mxu0 %v5816
      %5818 = vmatprep.subr.mxu0 0.0
      %v5819 = vand.u32 %v5790, 4294901760
      %5820 = vmatpush1.msra.mxu0 %v5819
      %5821 = vmatprep.subr.mxu0 0.0
      %v5822 = vand.u32 %v5791, 4294901760
      %5823 = vmatpush1.msra.mxu0 %v5822
      %5824 = vmatprep.subr.mxu0 0.0
      %v5825 = vand.u32 %v5792, 4294901760
      %5826 = vmatpush1.msra.mxu0 %v5825
      %5827 = vmatprep.subr.mxu0 0.0
      %v5828 = vand.u32 %v5793, 4294901760
      %5829 = vmatpush1.msra.mxu0 %v5828
      %5830 = vmatprep.subr.mxu0 0.0
      %v5831 = vand.u32 %v5794, 4294901760
      %5832 = vmatpush1.msra.mxu0 %v5831
      %5833 = vmatprep.subr.mxu0 0.0
      %v5834 = vand.u32 %v5795, 4294901760
      %5835 = vmatpush1.msra.mxu0 %v5834
      %5836 = vmatprep.subr.mxu0 0.0
      %v5837 = vand.u32 %v5796, 4294901760
      %5838 = vmatpush1.msra.mxu0 %v5837
      %5839 = vmatprep.subr.mxu0 0.0
      %v5840 = vand.u32 %v5797, 4294901760
      %5841 = vmatpush1.msra.mxu0 %v5840
      %5842 = vmatprep.subr.mxu0 0.0
      %v5843 = vand.u32 %v5798, 4294901760
      %5844 = vmatpush1.msra.mxu0 %v5843
      %5845 = vmatprep.subr.mxu0 0.0
      %v5846 = vand.u32 %v5799, 4294901760
      %5847 = vmatpush1.msra.mxu0 %v5846
      %5848 = vmatprep.subr.mxu0 0.0
      %5849 = vmatpush1.msra.mxu0 0.0
      %5850 = vmatprep.subr.mxu0 0.0
      %5851 = vmatpush1.msra.mxu0 0.0
      %5852 = vmatprep.subr.mxu0 0.0
      %5853 = vmatpush1.msra.mxu0 0.0
      %5854 = vmatprep.subr.mxu0 0.0
      %5855 = vmatpush1.msra.mxu0 0.0
      %5856 = vmatprep.subr.mxu0 0.0
      %5857 = vmatpush1.msra.mxu0 0.0
      %5858 = vmatprep.subr.mxu0 0.0
      %5859 = vmatpush1.msra.mxu0 0.0
      %5860 = vmatprep.subr.mxu0 0.0
      %5861 = vmatpush1.msra.mxu0 0.0
      %5862 = vmatprep.subr.mxu0 0.0
      %5863 = vmatpush1.msra.mxu0 0.0
      %5864 = vmatprep.subr.mxu0 0.0
      %5865 = vmatpush1.msra.mxu0 0.0
      %5866 = vmatprep.subr.mxu0 0.0
      %5867 = vmatpush1.msra.mxu0 0.0
      %5868 = vmatprep.subr.mxu0 0.0
      %5869 = vmatpush1.msra.mxu0 0.0
      %5870 = vmatprep.subr.mxu0 0.0
      %5871 = vmatpush1.msra.mxu0 0.0
      %5872 = vmatprep.subr.mxu0 0.0
      %5873 = vmatpush1.msra.mxu0 0.0
      %5874 = vmatprep.subr.mxu0 0.0
      %5875 = vmatpush1.msra.mxu0 0.0
      %5876 = vmatprep.subr.mxu0 0.0
      %5877 = vmatpush1.msra.mxu0 0.0
      %5878 = vmatprep.subr.mxu0 0.0
      %5879 = vmatpush1.msra.mxu0 0.0
      %5880 = vmatprep.mubr.f32.mxu0 0.0
      %v5881 = vand.u32 %v5779, 4294901760
      %v5882 = vsub.f32 %v5779, %v5881
      %v5883 = vand.u32 %v5882, 4294901760
      %v5884 = vsub.f32 %v5882, %v5883
      %v5885 = vand.u32 %v5884, 4294901760
      %5886 = vmatmul.mubr.f32.gmra.mrb[0].mxu0 %v5885
      %v5887 = vpop.f32.mrb[0].mxu0
      %v5888 = vadd.f32 0.0, %v5887
      %v5889 = vpop.f32.mrb[0].mxu0
      %5890 = vmatprep.mubr.f32.mxu0 0.0
      %v5891 = vand.u32 %v5780, 4294901760
      %v5892 = vsub.f32 %v5780, %v5891
      %v5893 = vand.u32 %v5892, 4294901760
      %v5894 = vsub.f32 %v5892, %v5893
      %v5895 = vand.u32 %v5894, 4294901760
      %5896 = vmatmul.mubr.f32.gmra.mrb[0].mxu0 %v5895
      %v5897 = vpop.f32.mrb[0].mxu0
      %v5898 = vadd.f32 0.0, %v5897
      %v5899 = vpop.f32.mrb[0].mxu0
      %5900 = vmatprep.mubr.f32.mxu0 0.0
      %v5901 = vand.u32 %v5781, 4294901760
      %v5902 = vsub.f32 %v5781, %v5901
      %v5903 = vand.u32 %v5902, 4294901760
      %v5904 = vsub.f32 %v5902, %v5903
      %v5905 = vand.u32 %v5904, 4294901760
      %5906 = vmatmul.mubr.f32.gmra.mrb[0].mxu0 %v5905
      %v5907 = vpop.f32.mrb[0].mxu0
      %v5908 = vadd.f32 0.0, %v5907
      %v5909 = vpop.f32.mrb[0].mxu0
      %5910 = vmatprep.mubr.f32.mxu0 0.0
      %v5911 = vand.u32 %v5782, 4294901760
      %v5912 = vsub.f32 %v5782, %v5911
      %v5913 = vand.u32 %v5912, 4294901760
      %v5914 = vsub.f32 %v5912, %v5913
      %v5915 = vand.u32 %v5914, 4294901760
      %5916 = vmatmul.mubr.f32.gmra.mrb[0].mxu0 %v5915
      %v5917 = vpop.f32.mrb[0].mxu0
      %v5918 = vadd.f32 0.0, %v5917
      %v5919 = vpop.f32.mrb[0].mxu0
      %5920 = vdwg.mxu0
      %5921 = vmatprep.subr.mxu0 0.0
      %v5922 = vand.u32 %v5784, 4294901760
      %v5923 = vsub.f32 %v5784, %v5922
      %v5924 = vand.u32 %v5923, 4294901760
      %v5925 = vsub.f32 %v5923, %v5924
      %v5926 = vand.u32 %v5925, 4294901760
      %5927 = vmatpush1.msra.mxu0 %v5926
      %5928 = vmatprep.subr.mxu0 0.0
      %v5929 = vand.u32 %v5785, 4294901760
      %v5930 = vsub.f32 %v5785, %v5929
      %v5931 = vand.u32 %v5930, 4294901760
      %v5932 = vsub.f32 %v5930, %v5931
      %v5933 = vand.u32 %v5932, 4294901760
      %5934 = vmatpush1.msra.mxu0 %v5933
      %5935 = vmatprep.subr.mxu0 0.0
      %v5936 = vand.u32 %v5786, 4294901760
      %v5937 = vsub.f32 %v5786, %v5936
      %v5938 = vand.u32 %v5937, 4294901760
      %v5939 = vsub.f32 %v5937, %v5938
      %v5940 = vand.u32 %v5939, 4294901760
      %5941 = vmatpush1.msra.mxu0 %v5940
      %5942 = vmatprep.subr.mxu0 0.0
      %v5943 = vand.u32 %v5787, 4294901760
      %v5944 = vsub.f32 %v5787, %v5943
      %v5945 = vand.u32 %v5944, 4294901760
      %v5946 = vsub.f32 %v5944, %v5945
      %v5947 = vand.u32 %v5946, 4294901760
      %5948 = vmatpush1.msra.mxu0 %v5947
      %5949 = vmatprep.subr.mxu0 0.0
      %v5950 = vand.u32 %v5788, 4294901760
      %v5951 = vsub.f32 %v5788, %v5950
      %v5952 = vand.u32 %v5951, 4294901760
      %v5953 = vsub.f32 %v5951, %v5952
      %v5954 = vand.u32 %v5953, 4294901760
      %5955 = vmatpush1.msra.mxu0 %v5954
      %5956 = vmatprep.subr.mxu0 0.0
      %v5957 = vand.u32 %v5789, 4294901760
      %v5958 = vsub.f32 %v5789, %v5957
      %v5959 = vand.u32 %v5958, 4294901760
      %v5960 = vsub.f32 %v5958, %v5959
      %v5961 = vand.u32 %v5960, 4294901760
      %5962 = vmatpush1.msra.mxu0 %v5961
      %5963 = vmatprep.subr.mxu0 0.0
      %v5964 = vand.u32 %v5790, 4294901760
      %v5965 = vsub.f32 %v5790, %v5964
      %v5966 = vand.u32 %v5965, 4294901760
      %v5967 = vsub.f32 %v5965, %v5966
      %v5968 = vand.u32 %v5967, 4294901760
      %5969 = vmatpush1.msra.mxu0 %v5968
      %5970 = vmatprep.subr.mxu0 0.0
      %v5971 = vand.u32 %v5791, 4294901760
      %v5972 = vsub.f32 %v5791, %v5971
      %v5973 = vand.u32 %v5972, 4294901760
      %v5974 = vsub.f32 %v5972, %v5973
      %v5975 = vand.u32 %v5974, 4294901760
      %5976 = vmatpush1.msra.mxu0 %v5975
      %5977 = vmatprep.subr.mxu0 0.0
      %v5978 = vand.u32 %v5792, 4294901760
      %v5979 = vsub.f32 %v5792, %v5978
      %v5980 = vand.u32 %v5979, 4294901760
      %v5981 = vsub.f32 %v5979, %v5980
      %v5982 = vand.u32 %v5981, 4294901760
      %5983 = vmatpush1.msra.mxu0 %v5982
      %5984 = vmatprep.subr.mxu0 0.0
      %v5985 = vand.u32 %v5793, 4294901760
      %v5986 = vsub.f32 %v5793, %v5985
      %v5987 = vand.u32 %v5986, 4294901760
      %v5988 = vsub.f32 %v5986, %v5987
      %v5989 = vand.u32 %v5988, 4294901760
      %5990 = vmatpush1.msra.mxu0 %v5989
      %5991 = vmatprep.subr.mxu0 0.0
      %v5992 = vand.u32 %v5794, 4294901760
      %v5993 = vsub.f32 %v5794, %v5992
      %v5994 = vand.u32 %v5993, 4294901760
      %v5995 = vsub.f32 %v5993, %v5994
      %v5996 = vand.u32 %v5995, 4294901760
      %5997 = vmatpush1.msra.mxu0 %v5996
      %5998 = vmatprep.subr.mxu0 0.0
      %v5999 = vand.u32 %v5795, 4294901760
      %v6000 = vsub.f32 %v5795, %v5999
      %v6001 = vand.u32 %v6000, 4294901760
      %v6002 = vsub.f32 %v6000, %v6001
      %v6003 = vand.u32 %v6002, 4294901760
      %6004 = vmatpush1.msra.mxu0 %v6003
      %6005 = vmatprep.subr.mxu0 0.0
      %v6006 = vand.u32 %v5796, 4294901760
      %v6007 = vsub.f32 %v5796, %v6006
      %v6008 = vand.u32 %v6007, 4294901760
      %v6009 = vsub.f32 %v6007, %v6008
      %v6010 = vand.u32 %v6009, 4294901760
      %6011 = vmatpush1.msra.mxu0 %v6010
      %6012 = vmatprep.subr.mxu0 0.0
      %v6013 = vand.u32 %v5797, 4294901760
      %v6014 = vsub.f32 %v5797, %v6013
      %v6015 = vand.u32 %v6014, 4294901760
      %v6016 = vsub.f32 %v6014, %v6015
      %v6017 = vand.u32 %v6016, 4294901760
      %6018 = vmatpush1.msra.mxu0 %v6017
      %6019 = vmatprep.subr.mxu0 0.0
      %v6020 = vand.u32 %v5798, 4294901760
      %v6021 = vsub.f32 %v5798, %v6020
      %v6022 = vand.u32 %v6021, 4294901760
      %v6023 = vsub.f32 %v6021, %v6022
      %v6024 = vand.u32 %v6023, 4294901760
      %6025 = vmatpush1.msra.mxu0 %v6024
      %6026 = vmatprep.subr.mxu0 0.0
      %v6027 = vand.u32 %v5799, 4294901760
      %v6028 = vsub.f32 %v5799, %v6027
      %v6029 = vand.u32 %v6028, 4294901760
      %v6030 = vsub.f32 %v6028, %v6029
      %v6031 = vand.u32 %v6030, 4294901760
      %6032 = vmatpush1.msra.mxu0 %v6031
      %6033 = vmatprep.subr.mxu0 0.0
      %6034 = vmatpush1.msra.mxu0 0.0
      %6035 = vmatprep.subr.mxu0 0.0
      %6036 = vmatpush1.msra.mxu0 0.0
      %6037 = vmatprep.subr.mxu0 0.0
      %6038 = vmatpush1.msra.mxu0 0.0
      %6039 = vmatprep.subr.mxu0 0.0
      %6040 = vmatpush1.msra.mxu0 0.0
      %6041 = vmatprep.subr.mxu0 0.0
      %6042 = vmatpush1.msra.mxu0 0.0
      %6043 = vmatprep.subr.mxu0 0.0
      %6044 = vmatpush1.msra.mxu0 0.0
      %6045 = vmatprep.subr.mxu0 0.0
      %6046 = vmatpush1.msra.mxu0 0.0
      %6047 = vmatprep.subr.mxu0 0.0
      %6048 = vmatpush1.msra.mxu0 0.0
      %6049 = vmatprep.subr.mxu0 0.0
      %6050 = vmatpush1.msra.mxu0 0.0
      %6051 = vmatprep.subr.mxu0 0.0
      %6052 = vmatpush1.msra.mxu0 0.0
      %6053 = vmatprep.subr.mxu0 0.0
      %6054 = vmatpush1.msra.mxu0 0.0
      %6055 = vmatprep.subr.mxu0 0.0
      %6056 = vmatpush1.msra.mxu0 0.0
      %6057 = vmatprep.subr.mxu0 0.0
      %6058 = vmatpush1.msra.mxu0 0.0
      %6059 = vmatprep.subr.mxu0 0.0
      %6060 = vmatpush1.msra.mxu0 0.0
      %6061 = vmatprep.subr.mxu0 0.0
      %6062 = vmatpush1.msra.mxu0 0.0
      %6063 = vmatprep.subr.mxu0 0.0
      %6064 = vmatpush1.msra.mxu0 0.0
      %6065 = vmatprep.mubr.f32.mxu0 0.0
      %v6066 = vand.u32 %v5779, 4294901760
      %6067 = vmatmul.mubr.f32.gmra.mrb[0].mxu0 %v6066
      %v6068 = vpop.f32.mrb[0].mxu0
      %v6069 = vadd.f32 %v5888, %v6068
      %v6070 = vpop.f32.mrb[0].mxu0
      %6071 = vmatprep.mubr.f32.mxu0 0.0
      %v6072 = vand.u32 %v5780, 4294901760
      %6073 = vmatmul.mubr.f32.gmra.mrb[0].mxu0 %v6072
      %v6074 = vpop.f32.mrb[0].mxu0
      %v6075 = vadd.f32 %v5898, %v6074
      %v6076 = vpop.f32.mrb[0].mxu0
      %6077 = vmatprep.mubr.f32.mxu0 0.0
      %v6078 = vand.u32 %v5781, 4294901760
      %6079 = vmatmul.mubr.f32.gmra.mrb[0].mxu0 %v6078
      %v6080 = vpop.f32.mrb[0].mxu0
      %v6081 = vadd.f32 %v5908, %v6080
      %v6082 = vpop.f32.mrb[0].mxu0
      %6083 = vmatprep.mubr.f32.mxu0 0.0
      %v6084 = vand.u32 %v5782, 4294901760
      %6085 = vmatmul.mubr.f32.gmra.mrb[0].mxu0 %v6084
      %v6086 = vpop.f32.mrb[0].mxu0
      %v6087 = vadd.f32 %v5918, %v6086
      %v6088 = vpop.f32.mrb[0].mxu0
      %6089 = vdwg.mxu0
      %6090 = vmatprep.subr.mxu0 0.0
      %v6091 = vand.u32 %v5784, 4294901760
      %v6092 = vsub.f32 %v5784, %v6091
      %6093 = vmatpush1.msra.mxu0 %v6092
      %6094 = vmatprep.subr.mxu0 0.0
      %v6095 = vand.u32 %v5785, 4294901760
      %v6096 = vsub.f32 %v5785, %v6095
      %6097 = vmatpush1.msra.mxu0 %v6096
      %6098 = vmatprep.subr.mxu0 0.0
      %v6099 = vand.u32 %v5786, 4294901760
      %v6100 = vsub.f32 %v5786, %v6099
      %6101 = vmatpush1.msra.mxu0 %v6100
      %6102 = vmatprep.subr.mxu0 0.0
      %v6103 = vand.u32 %v5787, 4294901760
      %v6104 = vsub.f32 %v5787, %v6103
      %6105 = vmatpush1.msra.mxu0 %v6104
      %6106 = vmatprep.subr.mxu0 0.0
      %v6107 = vand.u32 %v5788, 4294901760
      %v6108 = vsub.f32 %v5788, %v6107
      %6109 = vmatpush1.msra.mxu0 %v6108
      %6110 = vmatprep.subr.mxu0 0.0
      %v6111 = vand.u32 %v5789, 4294901760
      %v6112 = vsub.f32 %v5789, %v6111
      %6113 = vmatpush1.msra.mxu0 %v6112
      %6114 = vmatprep.subr.mxu0 0.0
      %v6115 = vand.u32 %v5790, 4294901760
      %v6116 = vsub.f32 %v5790, %v6115
      %6117 = vmatpush1.msra.mxu0 %v6116
      %6118 = vmatprep.subr.mxu0 0.0
      %v6119 = vand.u32 %v5791, 4294901760
      %v6120 = vsub.f32 %v5791, %v6119
      %6121 = vmatpush1.msra.mxu0 %v6120
      %6122 = vmatprep.subr.mxu0 0.0
      %v6123 = vand.u32 %v5792, 4294901760
      %v6124 = vsub.f32 %v5792, %v6123
      %6125 = vmatpush1.msra.mxu0 %v6124
      %6126 = vmatprep.subr.mxu0 0.0
      %v6127 = vand.u32 %v5793, 4294901760
      %v6128 = vsub.f32 %v5793, %v6127
      %6129 = vmatpush1.msra.mxu0 %v6128
      %6130 = vmatprep.subr.mxu0 0.0
      %v6131 = vand.u32 %v5794, 4294901760
      %v6132 = vsub.f32 %v5794, %v6131
      %6133 = vmatpush1.msra.mxu0 %v6132
      %6134 = vmatprep.subr.mxu0 0.0
      %v6135 = vand.u32 %v5795, 4294901760
      %v6136 = vsub.f32 %v5795, %v6135
      %6137 = vmatpush1.msra.mxu0 %v6136
      %6138 = vmatprep.subr.mxu0 0.0
      %v6139 = vand.u32 %v5796, 4294901760
      %v6140 = vsub.f32 %v5796, %v6139
      %6141 = vmatpush1.msra.mxu0 %v6140
      %6142 = vmatprep.subr.mxu0 0.0
      %v6143 = vand.u32 %v5797, 4294901760
      %v6144 = vsub.f32 %v5797, %v6143
      %6145 = vmatpush1.msra.mxu0 %v6144
      %6146 = vmatprep.subr.mxu0 0.0
      %v6147 = vand.u32 %v5798, 4294901760
      %v6148 = vsub.f32 %v5798, %v6147
      %6149 = vmatpush1.msra.mxu0 %v6148
      %6150 = vmatprep.subr.mxu0 0.0
      %v6151 = vand.u32 %v5799, 4294901760
      %v6152 = vsub.f32 %v5799, %v6151
      %6153 = vmatpush1.msra.mxu0 %v6152
      %6154 = vmatprep.subr.mxu0 0.0
      %6155 = vmatpush1.msra.mxu0 0.0
      %6156 = vmatprep.subr.mxu0 0.0
      %6157 = vmatpush1.msra.mxu0 0.0
      %6158 = vmatprep.subr.mxu0 0.0
      %6159 = vmatpush1.msra.mxu0 0.0
      %6160 = vmatprep.subr.mxu0 0.0
      %6161 = vmatpush1.msra.mxu0 0.0
      %6162 = vmatprep.subr.mxu0 0.0
      %6163 = vmatpush1.msra.mxu0 0.0
      %6164 = vmatprep.subr.mxu0 0.0
      %6165 = vmatpush1.msra.mxu0 0.0
      %6166 = vmatprep.subr.mxu0 0.0
      %6167 = vmatpush1.msra.mxu0 0.0
      %6168 = vmatprep.subr.mxu0 0.0
      %6169 = vmatpush1.msra.mxu0 0.0
      %6170 = vmatprep.subr.mxu0 0.0
      %6171 = vmatpush1.msra.mxu0 0.0
      %6172 = vmatprep.subr.mxu0 0.0
      %6173 = vmatpush1.msra.mxu0 0.0
      %6174 = vmatprep.subr.mxu0 0.0
      %6175 = vmatpush1.msra.mxu0 0.0
      %6176 = vmatprep.subr.mxu0 0.0
      %6177 = vmatpush1.msra.mxu0 0.0
      %6178 = vmatprep.subr.mxu0 0.0
      %6179 = vmatpush1.msra.mxu0 0.0
      %6180 = vmatprep.subr.mxu0 0.0
      %6181 = vmatpush1.msra.mxu0 0.0
      %6182 = vmatprep.subr.mxu0 0.0
      %6183 = vmatpush1.msra.mxu0 0.0
      %6184 = vmatprep.subr.mxu0 0.0
      %6185 = vmatpush1.msra.mxu0 0.0
      %6186 = vmatprep.mubr.f32.mxu0 0.0
      %v6187 = vand.u32 %v5779, 4294901760
      %v6188 = vsub.f32 %v5779, %v6187
      %6189 = vmatmul.mubr.f32.gmra.mrb[0].mxu0 %v6188
      %v6190 = vpop.f32.mrb[0].mxu0
      %v6191 = vadd.f32 %v6069, %v6190
      %v6192 = vpop.f32.mrb[0].mxu0
      %6193 = vmatprep.mubr.f32.mxu0 0.0
      %v6194 = vand.u32 %v5780, 4294901760
      %v6195 = vsub.f32 %v5780, %v6194
      %6196 = vmatmul.mubr.f32.gmra.mrb[0].mxu0 %v6195
      %v6197 = vpop.f32.mrb[0].mxu0
      %v6198 = vadd.f32 %v6075, %v6197
      %v6199 = vpop.f32.mrb[0].mxu0
      %6200 = vmatprep.mubr.f32.mxu0 0.0
      %v6201 = vand.u32 %v5781, 4294901760
      %v6202 = vsub.f32 %v5781, %v6201
      %6203 = vmatmul.mubr.f32.gmra.mrb[0].mxu0 %v6202
      %v6204 = vpop.f32.mrb[0].mxu0
      %v6205 = vadd.f32 %v6081, %v6204
      %v6206 = vpop.f32.mrb[0].mxu0
      %6207 = vmatprep.mubr.f32.mxu0 0.0
      %v6208 = vand.u32 %v5782, 4294901760
      %v6209 = vsub.f32 %v5782, %v6208
      %6210 = vmatmul.mubr.f32.gmra.mrb[0].mxu0 %v6209
      %v6211 = vpop.f32.mrb[0].mxu0
      %v6212 = vadd.f32 %v6087, %v6211
      %v6213 = vpop.f32.mrb[0].mxu0
      %6214 = vdwg.mxu0
      %6215 = vmatprep.subr.mxu0 0.0
      %v6216 = vand.u32 %v5784, 4294901760
      %6217 = vmatpush1.msra.mxu0 %v6216
      %6218 = vmatprep.subr.mxu0 0.0
      %v6219 = vand.u32 %v5785, 4294901760
      %6220 = vmatpush1.msra.mxu0 %v6219
      %6221 = vmatprep.subr.mxu0 0.0
      %v6222 = vand.u32 %v5786, 4294901760
      %6223 = vmatpush1.msra.mxu0 %v6222
      %6224 = vmatprep.subr.mxu0 0.0
      %v6225 = vand.u32 %v5787, 4294901760
      %6226 = vmatpush1.msra.mxu0 %v6225
      %6227 = vmatprep.subr.mxu0 0.0
      %v6228 = vand.u32 %v5788, 4294901760
      %6229 = vmatpush1.msra.mxu0 %v6228
      %6230 = vmatprep.subr.mxu0 0.0
      %v6231 = vand.u32 %v5789, 4294901760
      %6232 = vmatpush1.msra.mxu0 %v6231
      %6233 = vmatprep.subr.mxu0 0.0
      %v6234 = vand.u32 %v5790, 4294901760
      %6235 = vmatpush1.msra.mxu0 %v6234
      %6236 = vmatprep.subr.mxu0 0.0
      %v6237 = vand.u32 %v5791, 4294901760
      %6238 = vmatpush1.msra.mxu0 %v6237
      %6239 = vmatprep.subr.mxu0 0.0
      %v6240 = vand.u32 %v5792, 4294901760
      %6241 = vmatpush1.msra.mxu0 %v6240
      %6242 = vmatprep.subr.mxu0 0.0
      %v6243 = vand.u32 %v5793, 4294901760
      %6244 = vmatpush1.msra.mxu0 %v6243
      %6245 = vmatprep.subr.mxu0 0.0
      %v6246 = vand.u32 %v5794, 4294901760
      %6247 = vmatpush1.msra.mxu0 %v6246
      %6248 = vmatprep.subr.mxu0 0.0
      %v6249 = vand.u32 %v5795, 4294901760
      %6250 = vmatpush1.msra.mxu0 %v6249
      %6251 = vmatprep.subr.mxu0 0.0
      %v6252 = vand.u32 %v5796, 4294901760
      %6253 = vmatpush1.msra.mxu0 %v6252
      %6254 = vmatprep.subr.mxu0 0.0
      %v6255 = vand.u32 %v5797, 4294901760
      %6256 = vmatpush1.msra.mxu0 %v6255
      %6257 = vmatprep.subr.mxu0 0.0
      %v6258 = vand.u32 %v5798, 4294901760
      %6259 = vmatpush1.msra.mxu0 %v6258
      %6260 = vmatprep.subr.mxu0 0.0
      %v6261 = vand.u32 %v5799, 4294901760
      %6262 = vmatpush1.msra.mxu0 %v6261
      %6263 = vmatprep.subr.mxu0 0.0
      %6264 = vmatpush1.msra.mxu0 0.0
      %6265 = vmatprep.subr.mxu0 0.0
      %6266 = vmatpush1.msra.mxu0 0.0
      %6267 = vmatprep.subr.mxu0 0.0
      %6268 = vmatpush1.msra.mxu0 0.0
      %6269 = vmatprep.subr.mxu0 0.0
      %6270 = vmatpush1.msra.mxu0 0.0
      %6271 = vmatprep.subr.mxu0 0.0
      %6272 = vmatpush1.msra.mxu0 0.0
      %6273 = vmatprep.subr.mxu0 0.0
      %6274 = vmatpush1.msra.mxu0 0.0
      %6275 = vmatprep.subr.mxu0 0.0
      %6276 = vmatpush1.msra.mxu0 0.0
      %6277 = vmatprep.subr.mxu0 0.0
      %6278 = vmatpush1.msra.mxu0 0.0
      %6279 = vmatprep.subr.mxu0 0.0
      %6280 = vmatpush1.msra.mxu0 0.0
      %6281 = vmatprep.subr.mxu0 0.0
      %6282 = vmatpush1.msra.mxu0 0.0
      %6283 = vmatprep.subr.mxu0 0.0
      %6284 = vmatpush1.msra.mxu0 0.0
      %6285 = vmatprep.subr.mxu0 0.0
      %6286 = vmatpush1.msra.mxu0 0.0
      %6287 = vmatprep.subr.mxu0 0.0
      %6288 = vmatpush1.msra.mxu0 0.0
      %6289 = vmatprep.subr.mxu0 0.0
      %6290 = vmatpush1.msra.mxu0 0.0
      %6291 = vmatprep.subr.mxu0 0.0
      %6292 = vmatpush1.msra.mxu0 0.0
      %6293 = vmatprep.subr.mxu0 0.0
      %6294 = vmatpush1.msra.mxu0 0.0
      %6295 = vmatprep.mubr.f32.mxu0 0.0
      %v6296 = vand.u32 %v5779, 4294901760
      %v6297 = vsub.f32 %v5779, %v6296
      %v6298 = vand.u32 %v6297, 4294901760
      %6299 = vmatmul.mubr.f32.gmra.mrb[0].mxu0 %v6298
      %v6300 = vpop.f32.mrb[0].mxu0
      %v6301 = vadd.f32 %v6191, %v6300
      %v6302 = vpop.f32.mrb[0].mxu0
      %6303 = vmatprep.mubr.f32.mxu0 0.0
      %v6304 = vand.u32 %v5780, 4294901760
      %v6305 = vsub.f32 %v5780, %v6304
      %v6306 = vand.u32 %v6305, 4294901760
      %6307 = vmatmul.mubr.f32.gmra.mrb[0].mxu0 %v6306
      %v6308 = vpop.f32.mrb[0].mxu0
      %v6309 = vadd.f32 %v6198, %v6308
      %v6310 = vpop.f32.mrb[0].mxu0
      %6311 = vmatprep.mubr.f32.mxu0 0.0
      %v6312 = vand.u32 %v5781, 4294901760
      %v6313 = vsub.f32 %v5781, %v6312
      %v6314 = vand.u32 %v6313, 4294901760
      %6315 = vmatmul.mubr.f32.gmra.mrb[0].mxu0 %v6314
      %v6316 = vpop.f32.mrb[0].mxu0
      %v6317 = vadd.f32 %v6205, %v6316
      %v6318 = vpop.f32.mrb[0].mxu0
      %6319 = vmatprep.mubr.f32.mxu0 0.0
      %v6320 = vand.u32 %v5782, 4294901760
      %v6321 = vsub.f32 %v5782, %v6320
      %v6322 = vand.u32 %v6321, 4294901760
      %6323 = vmatmul.mubr.f32.gmra.mrb[0].mxu0 %v6322
      %v6324 = vpop.f32.mrb[0].mxu0
      %v6325 = vadd.f32 %v6212, %v6324
      %v6326 = vpop.f32.mrb[0].mxu0
      %6327 = vdwg.mxu0
      %6328 = vmatprep.subr.mxu0 0.0
      %v6329 = vand.u32 %v5784, 4294901760
      %v6330 = vsub.f32 %v5784, %v6329
      %v6331 = vand.u32 %v6330, 4294901760
      %6332 = vmatpush1.msra.mxu0 %v6331
      %6333 = vmatprep.subr.mxu0 0.0
      %v6334 = vand.u32 %v5785, 4294901760
      %v6335 = vsub.f32 %v5785, %v6334
      %v6336 = vand.u32 %v6335, 4294901760
      %6337 = vmatpush1.msra.mxu0 %v6336
      %6338 = vmatprep.subr.mxu0 0.0
      %v6339 = vand.u32 %v5786, 4294901760
      %v6340 = vsub.f32 %v5786, %v6339
      %v6341 = vand.u32 %v6340, 4294901760
      %6342 = vmatpush1.msra.mxu0 %v6341
      %6343 = vmatprep.subr.mxu0 0.0
      %v6344 = vand.u32 %v5787, 4294901760
      %v6345 = vsub.f32 %v5787, %v6344
      %v6346 = vand.u32 %v6345, 4294901760
      %6347 = vmatpush1.msra.mxu0 %v6346
      %6348 = vmatprep.subr.mxu0 0.0
      %v6349 = vand.u32 %v5788, 4294901760
      %v6350 = vsub.f32 %v5788, %v6349
      %v6351 = vand.u32 %v6350, 4294901760
      %6352 = vmatpush1.msra.mxu0 %v6351
      %6353 = vmatprep.subr.mxu0 0.0
      %v6354 = vand.u32 %v5789, 4294901760
      %v6355 = vsub.f32 %v5789, %v6354
      %v6356 = vand.u32 %v6355, 4294901760
      %6357 = vmatpush1.msra.mxu0 %v6356
      %6358 = vmatprep.subr.mxu0 0.0
      %v6359 = vand.u32 %v5790, 4294901760
      %v6360 = vsub.f32 %v5790, %v6359
      %v6361 = vand.u32 %v6360, 4294901760
      %6362 = vmatpush1.msra.mxu0 %v6361
      %6363 = vmatprep.subr.mxu0 0.0
      %v6364 = vand.u32 %v5791, 4294901760
      %v6365 = vsub.f32 %v5791, %v6364
      %v6366 = vand.u32 %v6365, 4294901760
      %6367 = vmatpush1.msra.mxu0 %v6366
      %6368 = vmatprep.subr.mxu0 0.0
      %v6369 = vand.u32 %v5792, 4294901760
      %v6370 = vsub.f32 %v5792, %v6369
      %v6371 = vand.u32 %v6370, 4294901760
      %6372 = vmatpush1.msra.mxu0 %v6371
      %6373 = vmatprep.subr.mxu0 0.0
      %v6374 = vand.u32 %v5793, 4294901760
      %v6375 = vsub.f32 %v5793, %v6374
      %v6376 = vand.u32 %v6375, 4294901760
      %6377 = vmatpush1.msra.mxu0 %v6376
      %6378 = vmatprep.subr.mxu0 0.0
      %v6379 = vand.u32 %v5794, 4294901760
      %v6380 = vsub.f32 %v5794, %v6379
      %v6381 = vand.u32 %v6380, 4294901760
      %6382 = vmatpush1.msra.mxu0 %v6381
      %6383 = vmatprep.subr.mxu0 0.0
      %v6384 = vand.u32 %v5795, 4294901760
      %v6385 = vsub.f32 %v5795, %v6384
      %v6386 = vand.u32 %v6385, 4294901760
      %6387 = vmatpush1.msra.mxu0 %v6386
      %6388 = vmatprep.subr.mxu0 0.0
      %v6389 = vand.u32 %v5796, 4294901760
      %v6390 = vsub.f32 %v5796, %v6389
      %v6391 = vand.u32 %v6390, 4294901760
      %6392 = vmatpush1.msra.mxu0 %v6391
      %6393 = vmatprep.subr.mxu0 0.0
      %v6394 = vand.u32 %v5797, 4294901760
      %v6395 = vsub.f32 %v5797, %v6394
      %v6396 = vand.u32 %v6395, 4294901760
      %6397 = vmatpush1.msra.mxu0 %v6396
      %6398 = vmatprep.subr.mxu0 0.0
      %v6399 = vand.u32 %v5798, 4294901760
      %v6400 = vsub.f32 %v5798, %v6399
      %v6401 = vand.u32 %v6400, 4294901760
      %6402 = vmatpush1.msra.mxu0 %v6401
      %6403 = vmatprep.subr.mxu0 0.0
      %v6404 = vand.u32 %v5799, 4294901760
      %v6405 = vsub.f32 %v5799, %v6404
      %v6406 = vand.u32 %v6405, 4294901760
      %6407 = vmatpush1.msra.mxu0 %v6406
      %6408 = vmatprep.subr.mxu0 0.0
      %6409 = vmatpush1.msra.mxu0 0.0
      %6410 = vmatprep.subr.mxu0 0.0
      %6411 = vmatpush1.msra.mxu0 0.0
      %6412 = vmatprep.subr.mxu0 0.0
      %6413 = vmatpush1.msra.mxu0 0.0
      %6414 = vmatprep.subr.mxu0 0.0
      %6415 = vmatpush1.msra.mxu0 0.0
      %6416 = vmatprep.subr.mxu0 0.0
      %6417 = vmatpush1.msra.mxu0 0.0
      %6418 = vmatprep.subr.mxu0 0.0
      %6419 = vmatpush1.msra.mxu0 0.0
      %6420 = vmatprep.subr.mxu0 0.0
      %6421 = vmatpush1.msra.mxu0 0.0
      %6422 = vmatprep.subr.mxu0 0.0
      %6423 = vmatpush1.msra.mxu0 0.0
      %6424 = vmatprep.subr.mxu0 0.0
      %6425 = vmatpush1.msra.mxu0 0.0
      %6426 = vmatprep.subr.mxu0 0.0
      %6427 = vmatpush1.msra.mxu0 0.0
      %6428 = vmatprep.subr.mxu0 0.0
      %6429 = vmatpush1.msra.mxu0 0.0
      %6430 = vmatprep.subr.mxu0 0.0
      %6431 = vmatpush1.msra.mxu0 0.0
      %6432 = vmatprep.subr.mxu0 0.0
      %6433 = vmatpush1.msra.mxu0 0.0
      %6434 = vmatprep.subr.mxu0 0.0
      %6435 = vmatpush1.msra.mxu0 0.0
      %6436 = vmatprep.subr.mxu0 0.0
      %6437 = vmatpush1.msra.mxu0 0.0
      %6438 = vmatprep.subr.mxu0 0.0
      %6439 = vmatpush1.msra.mxu0 0.0
      %6440 = vmatprep.mubr.f32.mxu0 0.0
      %v6441 = vand.u32 %v5779, 4294901760
      %6442 = vmatmul.mubr.f32.gmra.mrb[0].mxu0 %v6441
      %v6443 = vpop.f32.mrb[0].mxu0
      %v6444 = vadd.f32 %v6301, %v6443
      %v6445 = vpop.f32.mrb[0].mxu0
      %6446 = vmatprep.mubr.f32.mxu0 0.0
      %v6447 = vand.u32 %v5780, 4294901760
      %6448 = vmatmul.mubr.f32.gmra.mrb[0].mxu0 %v6447
      %v6449 = vpop.f32.mrb[0].mxu0
      %v6450 = vadd.f32 %v6309, %v6449
      %v6451 = vpop.f32.mrb[0].mxu0
      %6452 = vmatprep.mubr.f32.mxu0 0.0
      %v6453 = vand.u32 %v5781, 4294901760
      %6454 = vmatmul.mubr.f32.gmra.mrb[0].mxu0 %v6453
      %v6455 = vpop.f32.mrb[0].mxu0
      %v6456 = vadd.f32 %v6317, %v6455
      %v6457 = vpop.f32.mrb[0].mxu0
      %6458 = vmatprep.mubr.f32.mxu0 0.0
      %v6459 = vand.u32 %v5782, 4294901760
      %6460 = vmatmul.mubr.f32.gmra.mrb[0].mxu0 %v6459
      %v6461 = vpop.f32.mrb[0].mxu0
      %v6462 = vadd.f32 %v6325, %v6461
      %v6463 = vpop.f32.mrb[0].mxu0
      %6464 = vdwg.mxu0
      %6465 = vmatprep.subr.mxu0 0.0
      %v6466 = vand.u32 %v5784, 4294901760
      %6467 = vmatpush1.msra.mxu0 %v6466
      %6468 = vmatprep.subr.mxu0 0.0
      %v6469 = vand.u32 %v5785, 4294901760
      %6470 = vmatpush1.msra.mxu0 %v6469
      %6471 = vmatprep.subr.mxu0 0.0
      %v6472 = vand.u32 %v5786, 4294901760
      %6473 = vmatpush1.msra.mxu0 %v6472
      %6474 = vmatprep.subr.mxu0 0.0
      %v6475 = vand.u32 %v5787, 4294901760
      %6476 = vmatpush1.msra.mxu0 %v6475
      %6477 = vmatprep.subr.mxu0 0.0
      %v6478 = vand.u32 %v5788, 4294901760
      %6479 = vmatpush1.msra.mxu0 %v6478
      %6480 = vmatprep.subr.mxu0 0.0
      %v6481 = vand.u32 %v5789, 4294901760
      %6482 = vmatpush1.msra.mxu0 %v6481
      %6483 = vmatprep.subr.mxu0 0.0
      %v6484 = vand.u32 %v5790, 4294901760
      %6485 = vmatpush1.msra.mxu0 %v6484
      %6486 = vmatprep.subr.mxu0 0.0
      %v6487 = vand.u32 %v5791, 4294901760
      %6488 = vmatpush1.msra.mxu0 %v6487
      %6489 = vmatprep.subr.mxu0 0.0
      %v6490 = vand.u32 %v5792, 4294901760
      %6491 = vmatpush1.msra.mxu0 %v6490
      %6492 = vmatprep.subr.mxu0 0.0
      %v6493 = vand.u32 %v5793, 4294901760
      %6494 = vmatpush1.msra.mxu0 %v6493
      %6495 = vmatprep.subr.mxu0 0.0
      %v6496 = vand.u32 %v5794, 4294901760
      %6497 = vmatpush1.msra.mxu0 %v6496
      %6498 = vmatprep.subr.mxu0 0.0
      %v6499 = vand.u32 %v5795, 4294901760
      %6500 = vmatpush1.msra.mxu0 %v6499
      %6501 = vmatprep.subr.mxu0 0.0
      %v6502 = vand.u32 %v5796, 4294901760
      %6503 = vmatpush1.msra.mxu0 %v6502
      %6504 = vmatprep.subr.mxu0 0.0
      %v6505 = vand.u32 %v5797, 4294901760
      %6506 = vmatpush1.msra.mxu0 %v6505
      %6507 = vmatprep.subr.mxu0 0.0
      %v6508 = vand.u32 %v5798, 4294901760
      %6509 = vmatpush1.msra.mxu0 %v6508
      %6510 = vmatprep.subr.mxu0 0.0
      %v6511 = vand.u32 %v5799, 4294901760
      %6512 = vmatpush1.msra.mxu0 %v6511
      %6513 = vmatprep.subr.mxu0 0.0
      %6514 = vmatpush1.msra.mxu0 0.0
      %6515 = vmatprep.subr.mxu0 0.0
      %6516 = vmatpush1.msra.mxu0 0.0
      %6517 = vmatprep.subr.mxu0 0.0
      %6518 = vmatpush1.msra.mxu0 0.0
      %6519 = vmatprep.subr.mxu0 0.0
      %6520 = vmatpush1.msra.mxu0 0.0
      %6521 = vmatprep.subr.mxu0 0.0
      %6522 = vmatpush1.msra.mxu0 0.0
      %6523 = vmatprep.subr.mxu0 0.0
      %6524 = vmatpush1.msra.mxu0 0.0
      %6525 = vmatprep.subr.mxu0 0.0
      %6526 = vmatpush1.msra.mxu0 0.0
      %6527 = vmatprep.subr.mxu0 0.0
      %6528 = vmatpush1.msra.mxu0 0.0
      %6529 = vmatprep.subr.mxu0 0.0
      %6530 = vmatpush1.msra.mxu0 0.0
      %6531 = vmatprep.subr.mxu0 0.0
      %6532 = vmatpush1.msra.mxu0 0.0
      %6533 = vmatprep.subr.mxu0 0.0
      %6534 = vmatpush1.msra.mxu0 0.0
      %6535 = vmatprep.subr.mxu0 0.0
      %6536 = vmatpush1.msra.mxu0 0.0
      %6537 = vmatprep.subr.mxu0 0.0
      %6538 = vmatpush1.msra.mxu0 0.0
      %6539 = vmatprep.subr.mxu0 0.0
      %6540 = vmatpush1.msra.mxu0 0.0
      %6541 = vmatprep.subr.mxu0 0.0
      %6542 = vmatpush1.msra.mxu0 0.0
      %6543 = vmatprep.subr.mxu0 0.0
      %6544 = vmatpush1.msra.mxu0 0.0
      %6545 = vmatprep.mubr.f32.mxu0 0.0
      %v6546 = vand.u32 %v5779, 4294901760
      %6547 = vmatmul.mubr.f32.gmra.mrb[0].mxu0 %v6546
      %v6548 = vpop.f32.mrb[0].mxu0
      %v6549 = vadd.f32 %v6444, %v6548
      %v6550 = vpop.f32.mrb[0].mxu0
      %6551 = vmatprep.mubr.f32.mxu0 0.0
      %v6552 = vand.u32 %v5780, 4294901760
      %6553 = vmatmul.mubr.f32.gmra.mrb[0].mxu0 %v6552
      %v6554 = vpop.f32.mrb[0].mxu0
      %v6555 = vadd.f32 %v6450, %v6554
      %v6556 = vpop.f32.mrb[0].mxu0
      %6557 = vmatprep.mubr.f32.mxu0 0.0
      %v6558 = vand.u32 %v5781, 4294901760
      %6559 = vmatmul.mubr.f32.gmra.mrb[0].mxu0 %v6558
      %v6560 = vpop.f32.mrb[0].mxu0
      %v6561 = vadd.f32 %v6456, %v6560
      %v6562 = vpop.f32.mrb[0].mxu0
      %6563 = vmatprep.mubr.f32.mxu0 0.0
      %v6564 = vand.u32 %v5782, 4294901760
      %6565 = vmatmul.mubr.f32.gmra.mrb[0].mxu0 %v6564
      %v6566 = vpop.f32.mrb[0].mxu0
      %v6567 = vadd.f32 %v6462, %v6566
      %v6568 = vpop.f32.mrb[0].mxu0
      %6569 = vdwg.mxu0
      %v6570 = vadd.f32 %v5767, %v6549
      %v6571 = vadd.f32 %v5768, %v6555
      %v6572 = vadd.f32 %v5769, %v6561
      %v6573 = vadd.f32 %v5770, %v6567
      %v6574 = vadd.f32 %v6570, %v339
      %v6575 = vadd.f32 %v6571, %v340
      %v6576 = vadd.f32 %v6572, %v341
      %v6577 = vadd.f32 %v6573, %v342
      %v6578 = vadd.f32 %v6574, %v6575
      %v6579 = vrot.slane %v6578, 4
      %v6580 = vadd.f32 %v6578, %v6579
      %v6581 = vrot.slane %v6580, 2
      %v6582 = vadd.f32 %v6580, %v6581
      %v6583 = vrot.slane %v6582, 1
      %v6584 = vadd.f32 %v6582, %v6583
      %v6585 = vadd.f32 %v6576, %v6577
      %v6586 = vrot.slane %v6585, 4
      %v6587 = vadd.f32 %v6585, %v6586
      %v6588 = vrot.slane %v6587, 2
      %v6589 = vadd.f32 %v6587, %v6588
      %v6590 = vrot.slane %v6589, 1
      %v6591 = vadd.f32 %v6589, %v6590
      %v6592 = vmul.f32 %v6574, %v6574
      %v6593 = vmul.f32 %v6575, %v6575
      %v6594 = vmul.f32 %v6576, %v6576
      %v6595 = vmul.f32 %v6577, %v6577
      %v6596 = vadd.f32 %v6592, %v6593
      %v6597 = vrot.slane %v6596, 4
      %v6598 = vadd.f32 %v6596, %v6597
      %v6599 = vrot.slane %v6598, 2
      %v6600 = vadd.f32 %v6598, %v6599
      %v6601 = vrot.slane %v6600, 1
      %v6602 = vadd.f32 %v6600, %v6601
      %v6603 = vadd.f32 %v6594, %v6595
      %v6604 = vrot.slane %v6603, 4
      %v6605 = vadd.f32 %v6603, %v6604
      %v6606 = vrot.slane %v6605, 2
      %v6607 = vadd.f32 %v6605, %v6606
      %v6608 = vrot.slane %v6607, 1
      %v6609 = vadd.f32 %v6607, %v6608
      %v6612 = vsel %vm2797, %v6591, %v6584
      %6614 = vmatprep.subr.mxu0 0.0
      %v6615 = vand.u32 %v321, 4294901760
      %6616 = vmatpush1.msra.mxu0 %v6615
      %6617 = vmatprep.subr.mxu0 0.0
      %v6618 = vand.u32 %v322, 4294901760
      %6619 = vmatpush1.msra.mxu0 %v6618
      %6620 = vmatprep.subr.mxu0 0.0
      %v6621 = vand.u32 %v323, 4294901760
      %6622 = vmatpush1.msra.mxu0 %v6621
      %6623 = vmatprep.subr.mxu0 0.0
      %v6624 = vand.u32 %v324, 4294901760
      %6625 = vmatpush1.msra.mxu0 %v6624
      %6626 = vmatprep.subr.mxu0 0.0
      %v6627 = vand.u32 %v325, 4294901760
      %6628 = vmatpush1.msra.mxu0 %v6627
      %6629 = vmatprep.subr.mxu0 0.0
      %v6630 = vand.u32 %v326, 4294901760
      %6631 = vmatpush1.msra.mxu0 %v6630
      %6632 = vmatprep.subr.mxu0 0.0
      %v6633 = vand.u32 %v327, 4294901760
      %6634 = vmatpush1.msra.mxu0 %v6633
      %6635 = vmatprep.subr.mxu0 0.0
      %v6636 = vand.u32 %v328, 4294901760
      %6637 = vmatpush1.msra.mxu0 %v6636
      %6638 = vmatprep.subr.mxu0 0.0
      %v6639 = vand.u32 %v329, 4294901760
      %6640 = vmatpush1.msra.mxu0 %v6639
      %6641 = vmatprep.subr.mxu0 0.0
      %v6642 = vand.u32 %v330, 4294901760
      %6643 = vmatpush1.msra.mxu0 %v6642
      %6644 = vmatprep.subr.mxu0 0.0
      %v6645 = vand.u32 %v331, 4294901760
      %6646 = vmatpush1.msra.mxu0 %v6645
      %6647 = vmatprep.subr.mxu0 0.0
      %v6648 = vand.u32 %v332, 4294901760
      %6649 = vmatpush1.msra.mxu0 %v6648
      %6650 = vmatprep.subr.mxu0 0.0
      %v6651 = vand.u32 %v333, 4294901760
      %6652 = vmatpush1.msra.mxu0 %v6651
      %6653 = vmatprep.subr.mxu0 0.0
      %v6654 = vand.u32 %v334, 4294901760
      %6655 = vmatpush1.msra.mxu0 %v6654
      %6656 = vmatprep.subr.mxu0 0.0
      %v6657 = vand.u32 %v335, 4294901760
      %6658 = vmatpush1.msra.mxu0 %v6657
      %6659 = vmatprep.subr.mxu0 0.0
      %v6660 = vand.u32 %v336, 4294901760
      %6661 = vmatpush1.msra.mxu0 %v6660
      %6662 = vmatprep.subr.mxu0 0.0
      %6663 = vmatpush1.msra.mxu0 0.0
      %6664 = vmatprep.subr.mxu0 0.0
      %6665 = vmatpush1.msra.mxu0 0.0
      %6666 = vmatprep.subr.mxu0 0.0
      %6667 = vmatpush1.msra.mxu0 0.0
      %6668 = vmatprep.subr.mxu0 0.0
      %6669 = vmatpush1.msra.mxu0 0.0
      %6670 = vmatprep.subr.mxu0 0.0
      %6671 = vmatpush1.msra.mxu0 0.0
      %6672 = vmatprep.subr.mxu0 0.0
      %6673 = vmatpush1.msra.mxu0 0.0
      %6674 = vmatprep.subr.mxu0 0.0
      %6675 = vmatpush1.msra.mxu0 0.0
      %6676 = vmatprep.subr.mxu0 0.0
      %6677 = vmatpush1.msra.mxu0 0.0
      %6678 = vmatprep.subr.mxu0 0.0
      %6679 = vmatpush1.msra.mxu0 0.0
      %6680 = vmatprep.subr.mxu0 0.0
      %6681 = vmatpush1.msra.mxu0 0.0
      %6682 = vmatprep.subr.mxu0 0.0
      %6683 = vmatpush1.msra.mxu0 0.0
      %6684 = vmatprep.subr.mxu0 0.0
      %6685 = vmatpush1.msra.mxu0 0.0
      %6686 = vmatprep.subr.mxu0 0.0
      %6687 = vmatpush1.msra.mxu0 0.0
      %6688 = vmatprep.subr.mxu0 0.0
      %6689 = vmatpush1.msra.mxu0 0.0
      %6690 = vmatprep.subr.mxu0 0.0
      %6691 = vmatpush1.msra.mxu0 0.0
      %6692 = vmatprep.subr.mxu0 0.0
      %6693 = vmatpush1.msra.mxu0 0.0
      %6694 = vmatprep.mubr.f32.mxu0 0.0
      %v6695 = vand.u32 %v6612, 4294901760
      %v6696 = vsub.f32 %v6612, %v6695
      %v6697 = vand.u32 %v6696, 4294901760
      %v6698 = vsub.f32 %v6696, %v6697
      %v6699 = vand.u32 %v6698, 4294901760
      %6700 = vmatmul.mubr.f32.gmra.mrb[0].mxu0 %v6699
      %v6701 = vpop.f32.mrb[0].mxu0
      %v6702 = vadd.f32 0.0, %v6701
      %v6703 = vpop.f32.mrb[0].mxu0
      %6704 = vdwg.mxu0
      %6705 = vmatprep.subr.mxu0 0.0
      %v6706 = vand.u32 %v321, 4294901760
      %v6707 = vsub.f32 %v321, %v6706
      %v6708 = vand.u32 %v6707, 4294901760
      %v6709 = vsub.f32 %v6707, %v6708
      %v6710 = vand.u32 %v6709, 4294901760
      %6711 = vmatpush1.msra.mxu0 %v6710
      %6712 = vmatprep.subr.mxu0 0.0
      %v6713 = vand.u32 %v322, 4294901760
      %v6714 = vsub.f32 %v322, %v6713
      %v6715 = vand.u32 %v6714, 4294901760
      %v6716 = vsub.f32 %v6714, %v6715
      %v6717 = vand.u32 %v6716, 4294901760
      %6718 = vmatpush1.msra.mxu0 %v6717
      %6719 = vmatprep.subr.mxu0 0.0
      %v6720 = vand.u32 %v323, 4294901760
      %v6721 = vsub.f32 %v323, %v6720
      %v6722 = vand.u32 %v6721, 4294901760
      %v6723 = vsub.f32 %v6721, %v6722
      %v6724 = vand.u32 %v6723, 4294901760
      %6725 = vmatpush1.msra.mxu0 %v6724
      %6726 = vmatprep.subr.mxu0 0.0
      %v6727 = vand.u32 %v324, 4294901760
      %v6728 = vsub.f32 %v324, %v6727
      %v6729 = vand.u32 %v6728, 4294901760
      %v6730 = vsub.f32 %v6728, %v6729
      %v6731 = vand.u32 %v6730, 4294901760
      %6732 = vmatpush1.msra.mxu0 %v6731
      %6733 = vmatprep.subr.mxu0 0.0
      %v6734 = vand.u32 %v325, 4294901760
      %v6735 = vsub.f32 %v325, %v6734
      %v6736 = vand.u32 %v6735, 4294901760
      %v6737 = vsub.f32 %v6735, %v6736
      %v6738 = vand.u32 %v6737, 4294901760
      %6739 = vmatpush1.msra.mxu0 %v6738
      %6740 = vmatprep.subr.mxu0 0.0
      %v6741 = vand.u32 %v326, 4294901760
      %v6742 = vsub.f32 %v326, %v6741
      %v6743 = vand.u32 %v6742, 4294901760
      %v6744 = vsub.f32 %v6742, %v6743
      %v6745 = vand.u32 %v6744, 4294901760
      %6746 = vmatpush1.msra.mxu0 %v6745
      %6747 = vmatprep.subr.mxu0 0.0
      %v6748 = vand.u32 %v327, 4294901760
      %v6749 = vsub.f32 %v327, %v6748
      %v6750 = vand.u32 %v6749, 4294901760
      %v6751 = vsub.f32 %v6749, %v6750
      %v6752 = vand.u32 %v6751, 4294901760
      %6753 = vmatpush1.msra.mxu0 %v6752
      %6754 = vmatprep.subr.mxu0 0.0
      %v6755 = vand.u32 %v328, 4294901760
      %v6756 = vsub.f32 %v328, %v6755
      %v6757 = vand.u32 %v6756, 4294901760
      %v6758 = vsub.f32 %v6756, %v6757
      %v6759 = vand.u32 %v6758, 4294901760
      %6760 = vmatpush1.msra.mxu0 %v6759
      %6761 = vmatprep.subr.mxu0 0.0
      %v6762 = vand.u32 %v329, 4294901760
      %v6763 = vsub.f32 %v329, %v6762
      %v6764 = vand.u32 %v6763, 4294901760
      %v6765 = vsub.f32 %v6763, %v6764
      %v6766 = vand.u32 %v6765, 4294901760
      %6767 = vmatpush1.msra.mxu0 %v6766
      %6768 = vmatprep.subr.mxu0 0.0
      %v6769 = vand.u32 %v330, 4294901760
      %v6770 = vsub.f32 %v330, %v6769
      %v6771 = vand.u32 %v6770, 4294901760
      %v6772 = vsub.f32 %v6770, %v6771
      %v6773 = vand.u32 %v6772, 4294901760
      %6774 = vmatpush1.msra.mxu0 %v6773
      %6775 = vmatprep.subr.mxu0 0.0
      %v6776 = vand.u32 %v331, 4294901760
      %v6777 = vsub.f32 %v331, %v6776
      %v6778 = vand.u32 %v6777, 4294901760
      %v6779 = vsub.f32 %v6777, %v6778
      %v6780 = vand.u32 %v6779, 4294901760
      %6781 = vmatpush1.msra.mxu0 %v6780
      %6782 = vmatprep.subr.mxu0 0.0
      %v6783 = vand.u32 %v332, 4294901760
      %v6784 = vsub.f32 %v332, %v6783
      %v6785 = vand.u32 %v6784, 4294901760
      %v6786 = vsub.f32 %v6784, %v6785
      %v6787 = vand.u32 %v6786, 4294901760
      %6788 = vmatpush1.msra.mxu0 %v6787
      %6789 = vmatprep.subr.mxu0 0.0
      %v6790 = vand.u32 %v333, 4294901760
      %v6791 = vsub.f32 %v333, %v6790
      %v6792 = vand.u32 %v6791, 4294901760
      %v6793 = vsub.f32 %v6791, %v6792
      %v6794 = vand.u32 %v6793, 4294901760
      %6795 = vmatpush1.msra.mxu0 %v6794
      %6796 = vmatprep.subr.mxu0 0.0
      %v6797 = vand.u32 %v334, 4294901760
      %v6798 = vsub.f32 %v334, %v6797
      %v6799 = vand.u32 %v6798, 4294901760
      %v6800 = vsub.f32 %v6798, %v6799
      %v6801 = vand.u32 %v6800, 4294901760
      %6802 = vmatpush1.msra.mxu0 %v6801
      %6803 = vmatprep.subr.mxu0 0.0
      %v6804 = vand.u32 %v335, 4294901760
      %v6805 = vsub.f32 %v335, %v6804
      %v6806 = vand.u32 %v6805, 4294901760
      %v6807 = vsub.f32 %v6805, %v6806
      %v6808 = vand.u32 %v6807, 4294901760
      %6809 = vmatpush1.msra.mxu0 %v6808
      %6810 = vmatprep.subr.mxu0 0.0
      %v6811 = vand.u32 %v336, 4294901760
      %v6812 = vsub.f32 %v336, %v6811
      %v6813 = vand.u32 %v6812, 4294901760
      %v6814 = vsub.f32 %v6812, %v6813
      %v6815 = vand.u32 %v6814, 4294901760
      %6816 = vmatpush1.msra.mxu0 %v6815
      %6817 = vmatprep.subr.mxu0 0.0
      %6818 = vmatpush1.msra.mxu0 0.0
      %6819 = vmatprep.subr.mxu0 0.0
      %6820 = vmatpush1.msra.mxu0 0.0
      %6821 = vmatprep.subr.mxu0 0.0
      %6822 = vmatpush1.msra.mxu0 0.0
      %6823 = vmatprep.subr.mxu0 0.0
      %6824 = vmatpush1.msra.mxu0 0.0
      %6825 = vmatprep.subr.mxu0 0.0
      %6826 = vmatpush1.msra.mxu0 0.0
      %6827 = vmatprep.subr.mxu0 0.0
      %6828 = vmatpush1.msra.mxu0 0.0
      %6829 = vmatprep.subr.mxu0 0.0
      %6830 = vmatpush1.msra.mxu0 0.0
      %6831 = vmatprep.subr.mxu0 0.0
      %6832 = vmatpush1.msra.mxu0 0.0
      %6833 = vmatprep.subr.mxu0 0.0
      %6834 = vmatpush1.msra.mxu0 0.0
      %6835 = vmatprep.subr.mxu0 0.0
      %6836 = vmatpush1.msra.mxu0 0.0
      %6837 = vmatprep.subr.mxu0 0.0
      %6838 = vmatpush1.msra.mxu0 0.0
      %6839 = vmatprep.subr.mxu0 0.0
      %6840 = vmatpush1.msra.mxu0 0.0
      %6841 = vmatprep.subr.mxu0 0.0
      %6842 = vmatpush1.msra.mxu0 0.0
      %6843 = vmatprep.subr.mxu0 0.0
      %6844 = vmatpush1.msra.mxu0 0.0
      %6845 = vmatprep.subr.mxu0 0.0
      %6846 = vmatpush1.msra.mxu0 0.0
      %6847 = vmatprep.subr.mxu0 0.0
      %6848 = vmatpush1.msra.mxu0 0.0
      %6849 = vmatprep.mubr.f32.mxu0 0.0
      %v6850 = vand.u32 %v6612, 4294901760
      %6851 = vmatmul.mubr.f32.gmra.mrb[0].mxu0 %v6850
      %v6852 = vpop.f32.mrb[0].mxu0
      %v6853 = vadd.f32 %v6702, %v6852
      %v6854 = vpop.f32.mrb[0].mxu0
      %6855 = vdwg.mxu0
      %6856 = vmatprep.subr.mxu0 0.0
      %v6857 = vand.u32 %v321, 4294901760
      %v6858 = vsub.f32 %v321, %v6857
      %6859 = vmatpush1.msra.mxu0 %v6858
      %6860 = vmatprep.subr.mxu0 0.0
      %v6861 = vand.u32 %v322, 4294901760
      %v6862 = vsub.f32 %v322, %v6861
      %6863 = vmatpush1.msra.mxu0 %v6862
      %6864 = vmatprep.subr.mxu0 0.0
      %v6865 = vand.u32 %v323, 4294901760
      %v6866 = vsub.f32 %v323, %v6865
      %6867 = vmatpush1.msra.mxu0 %v6866
      %6868 = vmatprep.subr.mxu0 0.0
      %v6869 = vand.u32 %v324, 4294901760
      %v6870 = vsub.f32 %v324, %v6869
      %6871 = vmatpush1.msra.mxu0 %v6870
      %6872 = vmatprep.subr.mxu0 0.0
      %v6873 = vand.u32 %v325, 4294901760
      %v6874 = vsub.f32 %v325, %v6873
      %6875 = vmatpush1.msra.mxu0 %v6874
      %6876 = vmatprep.subr.mxu0 0.0
      %v6877 = vand.u32 %v326, 4294901760
      %v6878 = vsub.f32 %v326, %v6877
      %6879 = vmatpush1.msra.mxu0 %v6878
      %6880 = vmatprep.subr.mxu0 0.0
      %v6881 = vand.u32 %v327, 4294901760
      %v6882 = vsub.f32 %v327, %v6881
      %6883 = vmatpush1.msra.mxu0 %v6882
      %6884 = vmatprep.subr.mxu0 0.0
      %v6885 = vand.u32 %v328, 4294901760
      %v6886 = vsub.f32 %v328, %v6885
      %6887 = vmatpush1.msra.mxu0 %v6886
      %6888 = vmatprep.subr.mxu0 0.0
      %v6889 = vand.u32 %v329, 4294901760
      %v6890 = vsub.f32 %v329, %v6889
      %6891 = vmatpush1.msra.mxu0 %v6890
      %6892 = vmatprep.subr.mxu0 0.0
      %v6893 = vand.u32 %v330, 4294901760
      %v6894 = vsub.f32 %v330, %v6893
      %6895 = vmatpush1.msra.mxu0 %v6894
      %6896 = vmatprep.subr.mxu0 0.0
      %v6897 = vand.u32 %v331, 4294901760
      %v6898 = vsub.f32 %v331, %v6897
      %6899 = vmatpush1.msra.mxu0 %v6898
      %6900 = vmatprep.subr.mxu0 0.0
      %v6901 = vand.u32 %v332, 4294901760
      %v6902 = vsub.f32 %v332, %v6901
      %6903 = vmatpush1.msra.mxu0 %v6902
      %6904 = vmatprep.subr.mxu0 0.0
      %v6905 = vand.u32 %v333, 4294901760
      %v6906 = vsub.f32 %v333, %v6905
      %6907 = vmatpush1.msra.mxu0 %v6906
      %6908 = vmatprep.subr.mxu0 0.0
      %v6909 = vand.u32 %v334, 4294901760
      %v6910 = vsub.f32 %v334, %v6909
      %6911 = vmatpush1.msra.mxu0 %v6910
      %6912 = vmatprep.subr.mxu0 0.0
      %v6913 = vand.u32 %v335, 4294901760
      %v6914 = vsub.f32 %v335, %v6913
      %6915 = vmatpush1.msra.mxu0 %v6914
      %6916 = vmatprep.subr.mxu0 0.0
      %v6917 = vand.u32 %v336, 4294901760
      %v6918 = vsub.f32 %v336, %v6917
      %6919 = vmatpush1.msra.mxu0 %v6918
      %6920 = vmatprep.subr.mxu0 0.0
      %6921 = vmatpush1.msra.mxu0 0.0
      %6922 = vmatprep.subr.mxu0 0.0
      %6923 = vmatpush1.msra.mxu0 0.0
      %6924 = vmatprep.subr.mxu0 0.0
      %6925 = vmatpush1.msra.mxu0 0.0
      %6926 = vmatprep.subr.mxu0 0.0
      %6927 = vmatpush1.msra.mxu0 0.0
      %6928 = vmatprep.subr.mxu0 0.0
      %6929 = vmatpush1.msra.mxu0 0.0
      %6930 = vmatprep.subr.mxu0 0.0
      %6931 = vmatpush1.msra.mxu0 0.0
      %6932 = vmatprep.subr.mxu0 0.0
      %6933 = vmatpush1.msra.mxu0 0.0
      %6934 = vmatprep.subr.mxu0 0.0
      %6935 = vmatpush1.msra.mxu0 0.0
      %6936 = vmatprep.subr.mxu0 0.0
      %6937 = vmatpush1.msra.mxu0 0.0
      %6938 = vmatprep.subr.mxu0 0.0
      %6939 = vmatpush1.msra.mxu0 0.0
      %6940 = vmatprep.subr.mxu0 0.0
      %6941 = vmatpush1.msra.mxu0 0.0
      %6942 = vmatprep.subr.mxu0 0.0
      %6943 = vmatpush1.msra.mxu0 0.0
      %6944 = vmatprep.subr.mxu0 0.0
      %6945 = vmatpush1.msra.mxu0 0.0
      %6946 = vmatprep.subr.mxu0 0.0
      %6947 = vmatpush1.msra.mxu0 0.0
      %6948 = vmatprep.subr.mxu0 0.0
      %6949 = vmatpush1.msra.mxu0 0.0
      %6950 = vmatprep.subr.mxu0 0.0
      %6951 = vmatpush1.msra.mxu0 0.0
      %6952 = vmatprep.mubr.f32.mxu0 0.0
      %v6953 = vand.u32 %v6612, 4294901760
      %v6954 = vsub.f32 %v6612, %v6953
      %6955 = vmatmul.mubr.f32.gmra.mrb[0].mxu0 %v6954
      %v6956 = vpop.f32.mrb[0].mxu0
      %v6957 = vadd.f32 %v6853, %v6956
      %v6958 = vpop.f32.mrb[0].mxu0
      %6959 = vdwg.mxu0
      %6960 = vmatprep.subr.mxu0 0.0
      %v6961 = vand.u32 %v321, 4294901760
      %6962 = vmatpush1.msra.mxu0 %v6961
      %6963 = vmatprep.subr.mxu0 0.0
      %v6964 = vand.u32 %v322, 4294901760
      %6965 = vmatpush1.msra.mxu0 %v6964
      %6966 = vmatprep.subr.mxu0 0.0
      %v6967 = vand.u32 %v323, 4294901760
      %6968 = vmatpush1.msra.mxu0 %v6967
      %6969 = vmatprep.subr.mxu0 0.0
      %v6970 = vand.u32 %v324, 4294901760
      %6971 = vmatpush1.msra.mxu0 %v6970
      %6972 = vmatprep.subr.mxu0 0.0
      %v6973 = vand.u32 %v325, 4294901760
      %6974 = vmatpush1.msra.mxu0 %v6973
      %6975 = vmatprep.subr.mxu0 0.0
      %v6976 = vand.u32 %v326, 4294901760
      %6977 = vmatpush1.msra.mxu0 %v6976
      %6978 = vmatprep.subr.mxu0 0.0
      %v6979 = vand.u32 %v327, 4294901760
      %6980 = vmatpush1.msra.mxu0 %v6979
      %6981 = vmatprep.subr.mxu0 0.0
      %v6982 = vand.u32 %v328, 4294901760
      %6983 = vmatpush1.msra.mxu0 %v6982
      %6984 = vmatprep.subr.mxu0 0.0
      %v6985 = vand.u32 %v329, 4294901760
      %6986 = vmatpush1.msra.mxu0 %v6985
      %6987 = vmatprep.subr.mxu0 0.0
      %v6988 = vand.u32 %v330, 4294901760
      %6989 = vmatpush1.msra.mxu0 %v6988
      %6990 = vmatprep.subr.mxu0 0.0
      %v6991 = vand.u32 %v331, 4294901760
      %6992 = vmatpush1.msra.mxu0 %v6991
      %6993 = vmatprep.subr.mxu0 0.0
      %v6994 = vand.u32 %v332, 4294901760
      %6995 = vmatpush1.msra.mxu0 %v6994
      %6996 = vmatprep.subr.mxu0 0.0
      %v6997 = vand.u32 %v333, 4294901760
      %6998 = vmatpush1.msra.mxu0 %v6997
      %6999 = vmatprep.subr.mxu0 0.0
      %v7000 = vand.u32 %v334, 4294901760
      %7001 = vmatpush1.msra.mxu0 %v7000
      %7002 = vmatprep.subr.mxu0 0.0
      %v7003 = vand.u32 %v335, 4294901760
      %7004 = vmatpush1.msra.mxu0 %v7003
      %7005 = vmatprep.subr.mxu0 0.0
      %v7006 = vand.u32 %v336, 4294901760
      %7007 = vmatpush1.msra.mxu0 %v7006
      %7008 = vmatprep.subr.mxu0 0.0
      %7009 = vmatpush1.msra.mxu0 0.0
      %7010 = vmatprep.subr.mxu0 0.0
      %7011 = vmatpush1.msra.mxu0 0.0
      %7012 = vmatprep.subr.mxu0 0.0
      %7013 = vmatpush1.msra.mxu0 0.0
      %7014 = vmatprep.subr.mxu0 0.0
      %7015 = vmatpush1.msra.mxu0 0.0
      %7016 = vmatprep.subr.mxu0 0.0
      %7017 = vmatpush1.msra.mxu0 0.0
      %7018 = vmatprep.subr.mxu0 0.0
      %7019 = vmatpush1.msra.mxu0 0.0
      %7020 = vmatprep.subr.mxu0 0.0
      %7021 = vmatpush1.msra.mxu0 0.0
      %7022 = vmatprep.subr.mxu0 0.0
      %7023 = vmatpush1.msra.mxu0 0.0
      %7024 = vmatprep.subr.mxu0 0.0
      %7025 = vmatpush1.msra.mxu0 0.0
      %7026 = vmatprep.subr.mxu0 0.0
      %7027 = vmatpush1.msra.mxu0 0.0
      %7028 = vmatprep.subr.mxu0 0.0
      %7029 = vmatpush1.msra.mxu0 0.0
      %7030 = vmatprep.subr.mxu0 0.0
      %7031 = vmatpush1.msra.mxu0 0.0
      %7032 = vmatprep.subr.mxu0 0.0
      %7033 = vmatpush1.msra.mxu0 0.0
      %7034 = vmatprep.subr.mxu0 0.0
      %7035 = vmatpush1.msra.mxu0 0.0
      %7036 = vmatprep.subr.mxu0 0.0
      %7037 = vmatpush1.msra.mxu0 0.0
      %7038 = vmatprep.subr.mxu0 0.0
      %7039 = vmatpush1.msra.mxu0 0.0
      %7040 = vmatprep.mubr.f32.mxu0 0.0
      %v7041 = vand.u32 %v6612, 4294901760
      %v7042 = vsub.f32 %v6612, %v7041
      %v7043 = vand.u32 %v7042, 4294901760
      %7044 = vmatmul.mubr.f32.gmra.mrb[0].mxu0 %v7043
      %v7045 = vpop.f32.mrb[0].mxu0
      %v7046 = vadd.f32 %v6957, %v7045
      %v7047 = vpop.f32.mrb[0].mxu0
      %7048 = vdwg.mxu0
      %7049 = vmatprep.subr.mxu0 0.0
      %v7050 = vand.u32 %v321, 4294901760
      %v7051 = vsub.f32 %v321, %v7050
      %v7052 = vand.u32 %v7051, 4294901760
      %7053 = vmatpush1.msra.mxu0 %v7052
      %7054 = vmatprep.subr.mxu0 0.0
      %v7055 = vand.u32 %v322, 4294901760
      %v7056 = vsub.f32 %v322, %v7055
      %v7057 = vand.u32 %v7056, 4294901760
      %7058 = vmatpush1.msra.mxu0 %v7057
      %7059 = vmatprep.subr.mxu0 0.0
      %v7060 = vand.u32 %v323, 4294901760
      %v7061 = vsub.f32 %v323, %v7060
      %v7062 = vand.u32 %v7061, 4294901760
      %7063 = vmatpush1.msra.mxu0 %v7062
      %7064 = vmatprep.subr.mxu0 0.0
      %v7065 = vand.u32 %v324, 4294901760
      %v7066 = vsub.f32 %v324, %v7065
      %v7067 = vand.u32 %v7066, 4294901760
      %7068 = vmatpush1.msra.mxu0 %v7067
      %7069 = vmatprep.subr.mxu0 0.0
      %v7070 = vand.u32 %v325, 4294901760
      %v7071 = vsub.f32 %v325, %v7070
      %v7072 = vand.u32 %v7071, 4294901760
      %7073 = vmatpush1.msra.mxu0 %v7072
      %7074 = vmatprep.subr.mxu0 0.0
      %v7075 = vand.u32 %v326, 4294901760
      %v7076 = vsub.f32 %v326, %v7075
      %v7077 = vand.u32 %v7076, 4294901760
      %7078 = vmatpush1.msra.mxu0 %v7077
      %7079 = vmatprep.subr.mxu0 0.0
      %v7080 = vand.u32 %v327, 4294901760
      %v7081 = vsub.f32 %v327, %v7080
      %v7082 = vand.u32 %v7081, 4294901760
      %7083 = vmatpush1.msra.mxu0 %v7082
      %7084 = vmatprep.subr.mxu0 0.0
      %v7085 = vand.u32 %v328, 4294901760
      %v7086 = vsub.f32 %v328, %v7085
      %v7087 = vand.u32 %v7086, 4294901760
      %7088 = vmatpush1.msra.mxu0 %v7087
      %7089 = vmatprep.subr.mxu0 0.0
      %v7090 = vand.u32 %v329, 4294901760
      %v7091 = vsub.f32 %v329, %v7090
      %v7092 = vand.u32 %v7091, 4294901760
      %7093 = vmatpush1.msra.mxu0 %v7092
      %7094 = vmatprep.subr.mxu0 0.0
      %v7095 = vand.u32 %v330, 4294901760
      %v7096 = vsub.f32 %v330, %v7095
      %v7097 = vand.u32 %v7096, 4294901760
      %7098 = vmatpush1.msra.mxu0 %v7097
      %7099 = vmatprep.subr.mxu0 0.0
      %v7100 = vand.u32 %v331, 4294901760
      %v7101 = vsub.f32 %v331, %v7100
      %v7102 = vand.u32 %v7101, 4294901760
      %7103 = vmatpush1.msra.mxu0 %v7102
      %7104 = vmatprep.subr.mxu0 0.0
      %v7105 = vand.u32 %v332, 4294901760
      %v7106 = vsub.f32 %v332, %v7105
      %v7107 = vand.u32 %v7106, 4294901760
      %7108 = vmatpush1.msra.mxu0 %v7107
      %7109 = vmatprep.subr.mxu0 0.0
      %v7110 = vand.u32 %v333, 4294901760
      %v7111 = vsub.f32 %v333, %v7110
      %v7112 = vand.u32 %v7111, 4294901760
      %7113 = vmatpush1.msra.mxu0 %v7112
      %7114 = vmatprep.subr.mxu0 0.0
      %v7115 = vand.u32 %v334, 4294901760
      %v7116 = vsub.f32 %v334, %v7115
      %v7117 = vand.u32 %v7116, 4294901760
      %7118 = vmatpush1.msra.mxu0 %v7117
      %7119 = vmatprep.subr.mxu0 0.0
      %v7120 = vand.u32 %v335, 4294901760
      %v7121 = vsub.f32 %v335, %v7120
      %v7122 = vand.u32 %v7121, 4294901760
      %7123 = vmatpush1.msra.mxu0 %v7122
      %7124 = vmatprep.subr.mxu0 0.0
      %v7125 = vand.u32 %v336, 4294901760
      %v7126 = vsub.f32 %v336, %v7125
      %v7127 = vand.u32 %v7126, 4294901760
      %7128 = vmatpush1.msra.mxu0 %v7127
      %7129 = vmatprep.subr.mxu0 0.0
      %7130 = vmatpush1.msra.mxu0 0.0
      %7131 = vmatprep.subr.mxu0 0.0
      %7132 = vmatpush1.msra.mxu0 0.0
      %7133 = vmatprep.subr.mxu0 0.0
      %7134 = vmatpush1.msra.mxu0 0.0
      %7135 = vmatprep.subr.mxu0 0.0
      %7136 = vmatpush1.msra.mxu0 0.0
      %7137 = vmatprep.subr.mxu0 0.0
      %7138 = vmatpush1.msra.mxu0 0.0
      %7139 = vmatprep.subr.mxu0 0.0
      %7140 = vmatpush1.msra.mxu0 0.0
      %7141 = vmatprep.subr.mxu0 0.0
      %7142 = vmatpush1.msra.mxu0 0.0
      %7143 = vmatprep.subr.mxu0 0.0
      %7144 = vmatpush1.msra.mxu0 0.0
      %7145 = vmatprep.subr.mxu0 0.0
      %7146 = vmatpush1.msra.mxu0 0.0
      %7147 = vmatprep.subr.mxu0 0.0
      %7148 = vmatpush1.msra.mxu0 0.0
      %7149 = vmatprep.subr.mxu0 0.0
      %7150 = vmatpush1.msra.mxu0 0.0
      %7151 = vmatprep.subr.mxu0 0.0
      %7152 = vmatpush1.msra.mxu0 0.0
      %7153 = vmatprep.subr.mxu0 0.0
      %7154 = vmatpush1.msra.mxu0 0.0
      %7155 = vmatprep.subr.mxu0 0.0
      %7156 = vmatpush1.msra.mxu0 0.0
      %7157 = vmatprep.subr.mxu0 0.0
      %7158 = vmatpush1.msra.mxu0 0.0
      %7159 = vmatprep.subr.mxu0 0.0
      %7160 = vmatpush1.msra.mxu0 0.0
      %7161 = vmatprep.mubr.f32.mxu0 0.0
      %v7162 = vand.u32 %v6612, 4294901760
      %7163 = vmatmul.mubr.f32.gmra.mrb[0].mxu0 %v7162
      %v7164 = vpop.f32.mrb[0].mxu0
      %v7165 = vadd.f32 %v7046, %v7164
      %v7166 = vpop.f32.mrb[0].mxu0
      %7167 = vdwg.mxu0
      %7168 = vmatprep.subr.mxu0 0.0
      %v7169 = vand.u32 %v321, 4294901760
      %7170 = vmatpush1.msra.mxu0 %v7169
      %7171 = vmatprep.subr.mxu0 0.0
      %v7172 = vand.u32 %v322, 4294901760
      %7173 = vmatpush1.msra.mxu0 %v7172
      %7174 = vmatprep.subr.mxu0 0.0
      %v7175 = vand.u32 %v323, 4294901760
      %7176 = vmatpush1.msra.mxu0 %v7175
      %7177 = vmatprep.subr.mxu0 0.0
      %v7178 = vand.u32 %v324, 4294901760
      %7179 = vmatpush1.msra.mxu0 %v7178
      %7180 = vmatprep.subr.mxu0 0.0
      %v7181 = vand.u32 %v325, 4294901760
      %7182 = vmatpush1.msra.mxu0 %v7181
      %7183 = vmatprep.subr.mxu0 0.0
      %v7184 = vand.u32 %v326, 4294901760
      %7185 = vmatpush1.msra.mxu0 %v7184
      %7186 = vmatprep.subr.mxu0 0.0
      %v7187 = vand.u32 %v327, 4294901760
      %7188 = vmatpush1.msra.mxu0 %v7187
      %7189 = vmatprep.subr.mxu0 0.0
      %v7190 = vand.u32 %v328, 4294901760
      %7191 = vmatpush1.msra.mxu0 %v7190
      %7192 = vmatprep.subr.mxu0 0.0
      %v7193 = vand.u32 %v329, 4294901760
      %7194 = vmatpush1.msra.mxu0 %v7193
      %7195 = vmatprep.subr.mxu0 0.0
      %v7196 = vand.u32 %v330, 4294901760
      %7197 = vmatpush1.msra.mxu0 %v7196
      %7198 = vmatprep.subr.mxu0 0.0
      %v7199 = vand.u32 %v331, 4294901760
      %7200 = vmatpush1.msra.mxu0 %v7199
      %7201 = vmatprep.subr.mxu0 0.0
      %v7202 = vand.u32 %v332, 4294901760
      %7203 = vmatpush1.msra.mxu0 %v7202
      %7204 = vmatprep.subr.mxu0 0.0
      %v7205 = vand.u32 %v333, 4294901760
      %7206 = vmatpush1.msra.mxu0 %v7205
      %7207 = vmatprep.subr.mxu0 0.0
      %v7208 = vand.u32 %v334, 4294901760
      %7209 = vmatpush1.msra.mxu0 %v7208
      %7210 = vmatprep.subr.mxu0 0.0
      %v7211 = vand.u32 %v335, 4294901760
      %7212 = vmatpush1.msra.mxu0 %v7211
      %7213 = vmatprep.subr.mxu0 0.0
      %v7214 = vand.u32 %v336, 4294901760
      %7215 = vmatpush1.msra.mxu0 %v7214
      %7216 = vmatprep.subr.mxu0 0.0
      %7217 = vmatpush1.msra.mxu0 0.0
      %7218 = vmatprep.subr.mxu0 0.0
      %7219 = vmatpush1.msra.mxu0 0.0
      %7220 = vmatprep.subr.mxu0 0.0
      %7221 = vmatpush1.msra.mxu0 0.0
      %7222 = vmatprep.subr.mxu0 0.0
      %7223 = vmatpush1.msra.mxu0 0.0
      %7224 = vmatprep.subr.mxu0 0.0
      %7225 = vmatpush1.msra.mxu0 0.0
      %7226 = vmatprep.subr.mxu0 0.0
      %7227 = vmatpush1.msra.mxu0 0.0
      %7228 = vmatprep.subr.mxu0 0.0
      %7229 = vmatpush1.msra.mxu0 0.0
      %7230 = vmatprep.subr.mxu0 0.0
      %7231 = vmatpush1.msra.mxu0 0.0
      %7232 = vmatprep.subr.mxu0 0.0
      %7233 = vmatpush1.msra.mxu0 0.0
      %7234 = vmatprep.subr.mxu0 0.0
      %7235 = vmatpush1.msra.mxu0 0.0
      %7236 = vmatprep.subr.mxu0 0.0
      %7237 = vmatpush1.msra.mxu0 0.0
      %7238 = vmatprep.subr.mxu0 0.0
      %7239 = vmatpush1.msra.mxu0 0.0
      %7240 = vmatprep.subr.mxu0 0.0
      %7241 = vmatpush1.msra.mxu0 0.0
      %7242 = vmatprep.subr.mxu0 0.0
      %7243 = vmatpush1.msra.mxu0 0.0
      %7244 = vmatprep.subr.mxu0 0.0
      %7245 = vmatpush1.msra.mxu0 0.0
      %7246 = vmatprep.subr.mxu0 0.0
      %7247 = vmatpush1.msra.mxu0 0.0
      %7248 = vmatprep.mubr.f32.mxu0 0.0
      %v7249 = vand.u32 %v6612, 4294901760
      %7250 = vmatmul.mubr.f32.gmra.mrb[0].mxu0 %v7249
      %v7251 = vpop.f32.mrb[0].mxu0
      %v7252 = vadd.f32 %v7165, %v7251
      %v7253 = vpop.f32.mrb[0].mxu0
      %7254 = vdwg.mxu0
      %v7255 = vmul.f32 %v7252, 0.00390625
      %v7258 = vsel %vm2797, %v6609, %v6602
      %7260 = vmatprep.subr.mxu0 0.0
      %v7261 = vand.u32 %v321, 4294901760
      %7262 = vmatpush1.msra.mxu0 %v7261
      %7263 = vmatprep.subr.mxu0 0.0
      %v7264 = vand.u32 %v322, 4294901760
      %7265 = vmatpush1.msra.mxu0 %v7264
      %7266 = vmatprep.subr.mxu0 0.0
      %v7267 = vand.u32 %v323, 4294901760
      %7268 = vmatpush1.msra.mxu0 %v7267
      %7269 = vmatprep.subr.mxu0 0.0
      %v7270 = vand.u32 %v324, 4294901760
      %7271 = vmatpush1.msra.mxu0 %v7270
      %7272 = vmatprep.subr.mxu0 0.0
      %v7273 = vand.u32 %v325, 4294901760
      %7274 = vmatpush1.msra.mxu0 %v7273
      %7275 = vmatprep.subr.mxu0 0.0
      %v7276 = vand.u32 %v326, 4294901760
      %7277 = vmatpush1.msra.mxu0 %v7276
      %7278 = vmatprep.subr.mxu0 0.0
      %v7279 = vand.u32 %v327, 4294901760
      %7280 = vmatpush1.msra.mxu0 %v7279
      %7281 = vmatprep.subr.mxu0 0.0
      %v7282 = vand.u32 %v328, 4294901760
      %7283 = vmatpush1.msra.mxu0 %v7282
      %7284 = vmatprep.subr.mxu0 0.0
      %v7285 = vand.u32 %v329, 4294901760
      %7286 = vmatpush1.msra.mxu0 %v7285
      %7287 = vmatprep.subr.mxu0 0.0
      %v7288 = vand.u32 %v330, 4294901760
      %7289 = vmatpush1.msra.mxu0 %v7288
      %7290 = vmatprep.subr.mxu0 0.0
      %v7291 = vand.u32 %v331, 4294901760
      %7292 = vmatpush1.msra.mxu0 %v7291
      %7293 = vmatprep.subr.mxu0 0.0
      %v7294 = vand.u32 %v332, 4294901760
      %7295 = vmatpush1.msra.mxu0 %v7294
      %7296 = vmatprep.subr.mxu0 0.0
      %v7297 = vand.u32 %v333, 4294901760
      %7298 = vmatpush1.msra.mxu0 %v7297
      %7299 = vmatprep.subr.mxu0 0.0
      %v7300 = vand.u32 %v334, 4294901760
      %7301 = vmatpush1.msra.mxu0 %v7300
      %7302 = vmatprep.subr.mxu0 0.0
      %v7303 = vand.u32 %v335, 4294901760
      %7304 = vmatpush1.msra.mxu0 %v7303
      %7305 = vmatprep.subr.mxu0 0.0
      %v7306 = vand.u32 %v336, 4294901760
      %7307 = vmatpush1.msra.mxu0 %v7306
      %7308 = vmatprep.subr.mxu0 0.0
      %7309 = vmatpush1.msra.mxu0 0.0
      %7310 = vmatprep.subr.mxu0 0.0
      %7311 = vmatpush1.msra.mxu0 0.0
      %7312 = vmatprep.subr.mxu0 0.0
      %7313 = vmatpush1.msra.mxu0 0.0
      %7314 = vmatprep.subr.mxu0 0.0
      %7315 = vmatpush1.msra.mxu0 0.0
      %7316 = vmatprep.subr.mxu0 0.0
      %7317 = vmatpush1.msra.mxu0 0.0
      %7318 = vmatprep.subr.mxu0 0.0
      %7319 = vmatpush1.msra.mxu0 0.0
      %7320 = vmatprep.subr.mxu0 0.0
      %7321 = vmatpush1.msra.mxu0 0.0
      %7322 = vmatprep.subr.mxu0 0.0
      %7323 = vmatpush1.msra.mxu0 0.0
      %7324 = vmatprep.subr.mxu0 0.0
      %7325 = vmatpush1.msra.mxu0 0.0
      %7326 = vmatprep.subr.mxu0 0.0
      %7327 = vmatpush1.msra.mxu0 0.0
      %7328 = vmatprep.subr.mxu0 0.0
      %7329 = vmatpush1.msra.mxu0 0.0
      %7330 = vmatprep.subr.mxu0 0.0
      %7331 = vmatpush1.msra.mxu0 0.0
      %7332 = vmatprep.subr.mxu0 0.0
      %7333 = vmatpush1.msra.mxu0 0.0
      %7334 = vmatprep.subr.mxu0 0.0
      %7335 = vmatpush1.msra.mxu0 0.0
      %7336 = vmatprep.subr.mxu0 0.0
      %7337 = vmatpush1.msra.mxu0 0.0
      %7338 = vmatprep.subr.mxu0 0.0
      %7339 = vmatpush1.msra.mxu0 0.0
      %7340 = vmatprep.mubr.f32.mxu0 0.0
      %v7341 = vand.u32 %v7258, 4294901760
      %v7342 = vsub.f32 %v7258, %v7341
      %v7343 = vand.u32 %v7342, 4294901760
      %v7344 = vsub.f32 %v7342, %v7343
      %v7345 = vand.u32 %v7344, 4294901760
      %7346 = vmatmul.mubr.f32.gmra.mrb[0].mxu0 %v7345
      %v7347 = vpop.f32.mrb[0].mxu0
      %v7348 = vadd.f32 0.0, %v7347
      %v7349 = vpop.f32.mrb[0].mxu0
      %7350 = vdwg.mxu0
      %7351 = vmatprep.subr.mxu0 0.0
      %v7352 = vand.u32 %v321, 4294901760
      %v7353 = vsub.f32 %v321, %v7352
      %v7354 = vand.u32 %v7353, 4294901760
      %v7355 = vsub.f32 %v7353, %v7354
      %v7356 = vand.u32 %v7355, 4294901760
      %7357 = vmatpush1.msra.mxu0 %v7356
      %7358 = vmatprep.subr.mxu0 0.0
      %v7359 = vand.u32 %v322, 4294901760
      %v7360 = vsub.f32 %v322, %v7359
      %v7361 = vand.u32 %v7360, 4294901760
      %v7362 = vsub.f32 %v7360, %v7361
      %v7363 = vand.u32 %v7362, 4294901760
      %7364 = vmatpush1.msra.mxu0 %v7363
      %7365 = vmatprep.subr.mxu0 0.0
      %v7366 = vand.u32 %v323, 4294901760
      %v7367 = vsub.f32 %v323, %v7366
      %v7368 = vand.u32 %v7367, 4294901760
      %v7369 = vsub.f32 %v7367, %v7368
      %v7370 = vand.u32 %v7369, 4294901760
      %7371 = vmatpush1.msra.mxu0 %v7370
      %7372 = vmatprep.subr.mxu0 0.0
      %v7373 = vand.u32 %v324, 4294901760
      %v7374 = vsub.f32 %v324, %v7373
      %v7375 = vand.u32 %v7374, 4294901760
      %v7376 = vsub.f32 %v7374, %v7375
      %v7377 = vand.u32 %v7376, 4294901760
      %7378 = vmatpush1.msra.mxu0 %v7377
      %7379 = vmatprep.subr.mxu0 0.0
      %v7380 = vand.u32 %v325, 4294901760
      %v7381 = vsub.f32 %v325, %v7380
      %v7382 = vand.u32 %v7381, 4294901760
      %v7383 = vsub.f32 %v7381, %v7382
      %v7384 = vand.u32 %v7383, 4294901760
      %7385 = vmatpush1.msra.mxu0 %v7384
      %7386 = vmatprep.subr.mxu0 0.0
      %v7387 = vand.u32 %v326, 4294901760
      %v7388 = vsub.f32 %v326, %v7387
      %v7389 = vand.u32 %v7388, 4294901760
      %v7390 = vsub.f32 %v7388, %v7389
      %v7391 = vand.u32 %v7390, 4294901760
      %7392 = vmatpush1.msra.mxu0 %v7391
      %7393 = vmatprep.subr.mxu0 0.0
      %v7394 = vand.u32 %v327, 4294901760
      %v7395 = vsub.f32 %v327, %v7394
      %v7396 = vand.u32 %v7395, 4294901760
      %v7397 = vsub.f32 %v7395, %v7396
      %v7398 = vand.u32 %v7397, 4294901760
      %7399 = vmatpush1.msra.mxu0 %v7398
      %7400 = vmatprep.subr.mxu0 0.0
      %v7401 = vand.u32 %v328, 4294901760
      %v7402 = vsub.f32 %v328, %v7401
      %v7403 = vand.u32 %v7402, 4294901760
      %v7404 = vsub.f32 %v7402, %v7403
      %v7405 = vand.u32 %v7404, 4294901760
      %7406 = vmatpush1.msra.mxu0 %v7405
      %7407 = vmatprep.subr.mxu0 0.0
      %v7408 = vand.u32 %v329, 4294901760
      %v7409 = vsub.f32 %v329, %v7408
      %v7410 = vand.u32 %v7409, 4294901760
      %v7411 = vsub.f32 %v7409, %v7410
      %v7412 = vand.u32 %v7411, 4294901760
      %7413 = vmatpush1.msra.mxu0 %v7412
      %7414 = vmatprep.subr.mxu0 0.0
      %v7415 = vand.u32 %v330, 4294901760
      %v7416 = vsub.f32 %v330, %v7415
      %v7417 = vand.u32 %v7416, 4294901760
      %v7418 = vsub.f32 %v7416, %v7417
      %v7419 = vand.u32 %v7418, 4294901760
      %7420 = vmatpush1.msra.mxu0 %v7419
      %7421 = vmatprep.subr.mxu0 0.0
      %v7422 = vand.u32 %v331, 4294901760
      %v7423 = vsub.f32 %v331, %v7422
      %v7424 = vand.u32 %v7423, 4294901760
      %v7425 = vsub.f32 %v7423, %v7424
      %v7426 = vand.u32 %v7425, 4294901760
      %7427 = vmatpush1.msra.mxu0 %v7426
      %7428 = vmatprep.subr.mxu0 0.0
      %v7429 = vand.u32 %v332, 4294901760
      %v7430 = vsub.f32 %v332, %v7429
      %v7431 = vand.u32 %v7430, 4294901760
      %v7432 = vsub.f32 %v7430, %v7431
      %v7433 = vand.u32 %v7432, 4294901760
      %7434 = vmatpush1.msra.mxu0 %v7433
      %7435 = vmatprep.subr.mxu0 0.0
      %v7436 = vand.u32 %v333, 4294901760
      %v7437 = vsub.f32 %v333, %v7436
      %v7438 = vand.u32 %v7437, 4294901760
      %v7439 = vsub.f32 %v7437, %v7438
      %v7440 = vand.u32 %v7439, 4294901760
      %7441 = vmatpush1.msra.mxu0 %v7440
      %7442 = vmatprep.subr.mxu0 0.0
      %v7443 = vand.u32 %v334, 4294901760
      %v7444 = vsub.f32 %v334, %v7443
      %v7445 = vand.u32 %v7444, 4294901760
      %v7446 = vsub.f32 %v7444, %v7445
      %v7447 = vand.u32 %v7446, 4294901760
      %7448 = vmatpush1.msra.mxu0 %v7447
      %7449 = vmatprep.subr.mxu0 0.0
      %v7450 = vand.u32 %v335, 4294901760
      %v7451 = vsub.f32 %v335, %v7450
      %v7452 = vand.u32 %v7451, 4294901760
      %v7453 = vsub.f32 %v7451, %v7452
      %v7454 = vand.u32 %v7453, 4294901760
      %7455 = vmatpush1.msra.mxu0 %v7454
      %7456 = vmatprep.subr.mxu0 0.0
      %v7457 = vand.u32 %v336, 4294901760
      %v7458 = vsub.f32 %v336, %v7457
      %v7459 = vand.u32 %v7458, 4294901760
      %v7460 = vsub.f32 %v7458, %v7459
      %v7461 = vand.u32 %v7460, 4294901760
      %7462 = vmatpush1.msra.mxu0 %v7461
      %7463 = vmatprep.subr.mxu0 0.0
      %7464 = vmatpush1.msra.mxu0 0.0
      %7465 = vmatprep.subr.mxu0 0.0
      %7466 = vmatpush1.msra.mxu0 0.0
      %7467 = vmatprep.subr.mxu0 0.0
      %7468 = vmatpush1.msra.mxu0 0.0
      %7469 = vmatprep.subr.mxu0 0.0
      %7470 = vmatpush1.msra.mxu0 0.0
      %7471 = vmatprep.subr.mxu0 0.0
      %7472 = vmatpush1.msra.mxu0 0.0
      %7473 = vmatprep.subr.mxu0 0.0
      %7474 = vmatpush1.msra.mxu0 0.0
      %7475 = vmatprep.subr.mxu0 0.0
      %7476 = vmatpush1.msra.mxu0 0.0
      %7477 = vmatprep.subr.mxu0 0.0
      %7478 = vmatpush1.msra.mxu0 0.0
      %7479 = vmatprep.subr.mxu0 0.0
      %7480 = vmatpush1.msra.mxu0 0.0
      %7481 = vmatprep.subr.mxu0 0.0
      %7482 = vmatpush1.msra.mxu0 0.0
      %7483 = vmatprep.subr.mxu0 0.0
      %7484 = vmatpush1.msra.mxu0 0.0
      %7485 = vmatprep.subr.mxu0 0.0
      %7486 = vmatpush1.msra.mxu0 0.0
      %7487 = vmatprep.subr.mxu0 0.0
      %7488 = vmatpush1.msra.mxu0 0.0
      %7489 = vmatprep.subr.mxu0 0.0
      %7490 = vmatpush1.msra.mxu0 0.0
      %7491 = vmatprep.subr.mxu0 0.0
      %7492 = vmatpush1.msra.mxu0 0.0
      %7493 = vmatprep.subr.mxu0 0.0
      %7494 = vmatpush1.msra.mxu0 0.0
      %7495 = vmatprep.mubr.f32.mxu0 0.0
      %v7496 = vand.u32 %v7258, 4294901760
      %7497 = vmatmul.mubr.f32.gmra.mrb[0].mxu0 %v7496
      %v7498 = vpop.f32.mrb[0].mxu0
      %v7499 = vadd.f32 %v7348, %v7498
      %v7500 = vpop.f32.mrb[0].mxu0
      %7501 = vdwg.mxu0
      %7502 = vmatprep.subr.mxu0 0.0
      %v7503 = vand.u32 %v321, 4294901760
      %v7504 = vsub.f32 %v321, %v7503
      %7505 = vmatpush1.msra.mxu0 %v7504
      %7506 = vmatprep.subr.mxu0 0.0
      %v7507 = vand.u32 %v322, 4294901760
      %v7508 = vsub.f32 %v322, %v7507
      %7509 = vmatpush1.msra.mxu0 %v7508
      %7510 = vmatprep.subr.mxu0 0.0
      %v7511 = vand.u32 %v323, 4294901760
      %v7512 = vsub.f32 %v323, %v7511
      %7513 = vmatpush1.msra.mxu0 %v7512
      %7514 = vmatprep.subr.mxu0 0.0
      %v7515 = vand.u32 %v324, 4294901760
      %v7516 = vsub.f32 %v324, %v7515
      %7517 = vmatpush1.msra.mxu0 %v7516
      %7518 = vmatprep.subr.mxu0 0.0
      %v7519 = vand.u32 %v325, 4294901760
      %v7520 = vsub.f32 %v325, %v7519
      %7521 = vmatpush1.msra.mxu0 %v7520
      %7522 = vmatprep.subr.mxu0 0.0
      %v7523 = vand.u32 %v326, 4294901760
      %v7524 = vsub.f32 %v326, %v7523
      %7525 = vmatpush1.msra.mxu0 %v7524
      %7526 = vmatprep.subr.mxu0 0.0
      %v7527 = vand.u32 %v327, 4294901760
      %v7528 = vsub.f32 %v327, %v7527
      %7529 = vmatpush1.msra.mxu0 %v7528
      %7530 = vmatprep.subr.mxu0 0.0
      %v7531 = vand.u32 %v328, 4294901760
      %v7532 = vsub.f32 %v328, %v7531
      %7533 = vmatpush1.msra.mxu0 %v7532
      %7534 = vmatprep.subr.mxu0 0.0
      %v7535 = vand.u32 %v329, 4294901760
      %v7536 = vsub.f32 %v329, %v7535
      %7537 = vmatpush1.msra.mxu0 %v7536
      %7538 = vmatprep.subr.mxu0 0.0
      %v7539 = vand.u32 %v330, 4294901760
      %v7540 = vsub.f32 %v330, %v7539
      %7541 = vmatpush1.msra.mxu0 %v7540
      %7542 = vmatprep.subr.mxu0 0.0
      %v7543 = vand.u32 %v331, 4294901760
      %v7544 = vsub.f32 %v331, %v7543
      %7545 = vmatpush1.msra.mxu0 %v7544
      %7546 = vmatprep.subr.mxu0 0.0
      %v7547 = vand.u32 %v332, 4294901760
      %v7548 = vsub.f32 %v332, %v7547
      %7549 = vmatpush1.msra.mxu0 %v7548
      %7550 = vmatprep.subr.mxu0 0.0
      %v7551 = vand.u32 %v333, 4294901760
      %v7552 = vsub.f32 %v333, %v7551
      %7553 = vmatpush1.msra.mxu0 %v7552
      %7554 = vmatprep.subr.mxu0 0.0
      %v7555 = vand.u32 %v334, 4294901760
      %v7556 = vsub.f32 %v334, %v7555
      %7557 = vmatpush1.msra.mxu0 %v7556
      %7558 = vmatprep.subr.mxu0 0.0
      %v7559 = vand.u32 %v335, 4294901760
      %v7560 = vsub.f32 %v335, %v7559
      %7561 = vmatpush1.msra.mxu0 %v7560
      %7562 = vmatprep.subr.mxu0 0.0
      %v7563 = vand.u32 %v336, 4294901760
      %v7564 = vsub.f32 %v336, %v7563
      %7565 = vmatpush1.msra.mxu0 %v7564
      %7566 = vmatprep.subr.mxu0 0.0
      %7567 = vmatpush1.msra.mxu0 0.0
      %7568 = vmatprep.subr.mxu0 0.0
      %7569 = vmatpush1.msra.mxu0 0.0
      %7570 = vmatprep.subr.mxu0 0.0
      %7571 = vmatpush1.msra.mxu0 0.0
      %7572 = vmatprep.subr.mxu0 0.0
      %7573 = vmatpush1.msra.mxu0 0.0
      %7574 = vmatprep.subr.mxu0 0.0
      %7575 = vmatpush1.msra.mxu0 0.0
      %7576 = vmatprep.subr.mxu0 0.0
      %7577 = vmatpush1.msra.mxu0 0.0
      %7578 = vmatprep.subr.mxu0 0.0
      %7579 = vmatpush1.msra.mxu0 0.0
      %7580 = vmatprep.subr.mxu0 0.0
      %7581 = vmatpush1.msra.mxu0 0.0
      %7582 = vmatprep.subr.mxu0 0.0
      %7583 = vmatpush1.msra.mxu0 0.0
      %7584 = vmatprep.subr.mxu0 0.0
      %7585 = vmatpush1.msra.mxu0 0.0
      %7586 = vmatprep.subr.mxu0 0.0
      %7587 = vmatpush1.msra.mxu0 0.0
      %7588 = vmatprep.subr.mxu0 0.0
      %7589 = vmatpush1.msra.mxu0 0.0
      %7590 = vmatprep.subr.mxu0 0.0
      %7591 = vmatpush1.msra.mxu0 0.0
      %7592 = vmatprep.subr.mxu0 0.0
      %7593 = vmatpush1.msra.mxu0 0.0
      %7594 = vmatprep.subr.mxu0 0.0
      %7595 = vmatpush1.msra.mxu0 0.0
      %7596 = vmatprep.subr.mxu0 0.0
      %7597 = vmatpush1.msra.mxu0 0.0
      %7598 = vmatprep.mubr.f32.mxu0 0.0
      %v7599 = vand.u32 %v7258, 4294901760
      %v7600 = vsub.f32 %v7258, %v7599
      %7601 = vmatmul.mubr.f32.gmra.mrb[0].mxu0 %v7600
      %v7602 = vpop.f32.mrb[0].mxu0
      %v7603 = vadd.f32 %v7499, %v7602
      %v7604 = vpop.f32.mrb[0].mxu0
      %7605 = vdwg.mxu0
      %7606 = vmatprep.subr.mxu0 0.0
      %v7607 = vand.u32 %v321, 4294901760
      %7608 = vmatpush1.msra.mxu0 %v7607
      %7609 = vmatprep.subr.mxu0 0.0
      %v7610 = vand.u32 %v322, 4294901760
      %7611 = vmatpush1.msra.mxu0 %v7610
      %7612 = vmatprep.subr.mxu0 0.0
      %v7613 = vand.u32 %v323, 4294901760
      %7614 = vmatpush1.msra.mxu0 %v7613
      %7615 = vmatprep.subr.mxu0 0.0
      %v7616 = vand.u32 %v324, 4294901760
      %7617 = vmatpush1.msra.mxu0 %v7616
      %7618 = vmatprep.subr.mxu0 0.0
      %v7619 = vand.u32 %v325, 4294901760
      %7620 = vmatpush1.msra.mxu0 %v7619
      %7621 = vmatprep.subr.mxu0 0.0
      %v7622 = vand.u32 %v326, 4294901760
      %7623 = vmatpush1.msra.mxu0 %v7622
      %7624 = vmatprep.subr.mxu0 0.0
      %v7625 = vand.u32 %v327, 4294901760
      %7626 = vmatpush1.msra.mxu0 %v7625
      %7627 = vmatprep.subr.mxu0 0.0
      %v7628 = vand.u32 %v328, 4294901760
      %7629 = vmatpush1.msra.mxu0 %v7628
      %7630 = vmatprep.subr.mxu0 0.0
      %v7631 = vand.u32 %v329, 4294901760
      %7632 = vmatpush1.msra.mxu0 %v7631
      %7633 = vmatprep.subr.mxu0 0.0
      %v7634 = vand.u32 %v330, 4294901760
      %7635 = vmatpush1.msra.mxu0 %v7634
      %7636 = vmatprep.subr.mxu0 0.0
      %v7637 = vand.u32 %v331, 4294901760
      %7638 = vmatpush1.msra.mxu0 %v7637
      %7639 = vmatprep.subr.mxu0 0.0
      %v7640 = vand.u32 %v332, 4294901760
      %7641 = vmatpush1.msra.mxu0 %v7640
      %7642 = vmatprep.subr.mxu0 0.0
      %v7643 = vand.u32 %v333, 4294901760
      %7644 = vmatpush1.msra.mxu0 %v7643
      %7645 = vmatprep.subr.mxu0 0.0
      %v7646 = vand.u32 %v334, 4294901760
      %7647 = vmatpush1.msra.mxu0 %v7646
      %7648 = vmatprep.subr.mxu0 0.0
      %v7649 = vand.u32 %v335, 4294901760
      %7650 = vmatpush1.msra.mxu0 %v7649
      %7651 = vmatprep.subr.mxu0 0.0
      %v7652 = vand.u32 %v336, 4294901760
      %7653 = vmatpush1.msra.mxu0 %v7652
      %7654 = vmatprep.subr.mxu0 0.0
      %7655 = vmatpush1.msra.mxu0 0.0
      %7656 = vmatprep.subr.mxu0 0.0
      %7657 = vmatpush1.msra.mxu0 0.0
      %7658 = vmatprep.subr.mxu0 0.0
      %7659 = vmatpush1.msra.mxu0 0.0
      %7660 = vmatprep.subr.mxu0 0.0
      %7661 = vmatpush1.msra.mxu0 0.0
      %7662 = vmatprep.subr.mxu0 0.0
      %7663 = vmatpush1.msra.mxu0 0.0
      %7664 = vmatprep.subr.mxu0 0.0
      %7665 = vmatpush1.msra.mxu0 0.0
      %7666 = vmatprep.subr.mxu0 0.0
      %7667 = vmatpush1.msra.mxu0 0.0
      %7668 = vmatprep.subr.mxu0 0.0
      %7669 = vmatpush1.msra.mxu0 0.0
      %7670 = vmatprep.subr.mxu0 0.0
      %7671 = vmatpush1.msra.mxu0 0.0
      %7672 = vmatprep.subr.mxu0 0.0
      %7673 = vmatpush1.msra.mxu0 0.0
      %7674 = vmatprep.subr.mxu0 0.0
      %7675 = vmatpush1.msra.mxu0 0.0
      %7676 = vmatprep.subr.mxu0 0.0
      %7677 = vmatpush1.msra.mxu0 0.0
      %7678 = vmatprep.subr.mxu0 0.0
      %7679 = vmatpush1.msra.mxu0 0.0
      %7680 = vmatprep.subr.mxu0 0.0
      %7681 = vmatpush1.msra.mxu0 0.0
      %7682 = vmatprep.subr.mxu0 0.0
      %7683 = vmatpush1.msra.mxu0 0.0
      %7684 = vmatprep.subr.mxu0 0.0
      %7685 = vmatpush1.msra.mxu0 0.0
      %7686 = vmatprep.mubr.f32.mxu0 0.0
      %v7687 = vand.u32 %v7258, 4294901760
      %v7688 = vsub.f32 %v7258, %v7687
      %v7689 = vand.u32 %v7688, 4294901760
      %7690 = vmatmul.mubr.f32.gmra.mrb[0].mxu0 %v7689
      %v7691 = vpop.f32.mrb[0].mxu0
      %v7692 = vadd.f32 %v7603, %v7691
      %v7693 = vpop.f32.mrb[0].mxu0
      %7694 = vdwg.mxu0
      %7695 = vmatprep.subr.mxu0 0.0
      %v7696 = vand.u32 %v321, 4294901760
      %v7697 = vsub.f32 %v321, %v7696
      %v7698 = vand.u32 %v7697, 4294901760
      %7699 = vmatpush1.msra.mxu0 %v7698
      %7700 = vmatprep.subr.mxu0 0.0
      %v7701 = vand.u32 %v322, 4294901760
      %v7702 = vsub.f32 %v322, %v7701
      %v7703 = vand.u32 %v7702, 4294901760
      %7704 = vmatpush1.msra.mxu0 %v7703
      %7705 = vmatprep.subr.mxu0 0.0
      %v7706 = vand.u32 %v323, 4294901760
      %v7707 = vsub.f32 %v323, %v7706
      %v7708 = vand.u32 %v7707, 4294901760
      %7709 = vmatpush1.msra.mxu0 %v7708
      %7710 = vmatprep.subr.mxu0 0.0
      %v7711 = vand.u32 %v324, 4294901760
      %v7712 = vsub.f32 %v324, %v7711
      %v7713 = vand.u32 %v7712, 4294901760
      %7714 = vmatpush1.msra.mxu0 %v7713
      %7715 = vmatprep.subr.mxu0 0.0
      %v7716 = vand.u32 %v325, 4294901760
      %v7717 = vsub.f32 %v325, %v7716
      %v7718 = vand.u32 %v7717, 4294901760
      %7719 = vmatpush1.msra.mxu0 %v7718
      %7720 = vmatprep.subr.mxu0 0.0
      %v7721 = vand.u32 %v326, 4294901760
      %v7722 = vsub.f32 %v326, %v7721
      %v7723 = vand.u32 %v7722, 4294901760
      %7724 = vmatpush1.msra.mxu0 %v7723
      %7725 = vmatprep.subr.mxu0 0.0
      %v7726 = vand.u32 %v327, 4294901760
      %v7727 = vsub.f32 %v327, %v7726
      %v7728 = vand.u32 %v7727, 4294901760
      %7729 = vmatpush1.msra.mxu0 %v7728
      %7730 = vmatprep.subr.mxu0 0.0
      %v7731 = vand.u32 %v328, 4294901760
      %v7732 = vsub.f32 %v328, %v7731
      %v7733 = vand.u32 %v7732, 4294901760
      %7734 = vmatpush1.msra.mxu0 %v7733
      %7735 = vmatprep.subr.mxu0 0.0
      %v7736 = vand.u32 %v329, 4294901760
      %v7737 = vsub.f32 %v329, %v7736
      %v7738 = vand.u32 %v7737, 4294901760
      %7739 = vmatpush1.msra.mxu0 %v7738
      %7740 = vmatprep.subr.mxu0 0.0
      %v7741 = vand.u32 %v330, 4294901760
      %v7742 = vsub.f32 %v330, %v7741
      %v7743 = vand.u32 %v7742, 4294901760
      %7744 = vmatpush1.msra.mxu0 %v7743
      %7745 = vmatprep.subr.mxu0 0.0
      %v7746 = vand.u32 %v331, 4294901760
      %v7747 = vsub.f32 %v331, %v7746
      %v7748 = vand.u32 %v7747, 4294901760
      %7749 = vmatpush1.msra.mxu0 %v7748
      %7750 = vmatprep.subr.mxu0 0.0
      %v7751 = vand.u32 %v332, 4294901760
      %v7752 = vsub.f32 %v332, %v7751
      %v7753 = vand.u32 %v7752, 4294901760
      %7754 = vmatpush1.msra.mxu0 %v7753
      %7755 = vmatprep.subr.mxu0 0.0
      %v7756 = vand.u32 %v333, 4294901760
      %v7757 = vsub.f32 %v333, %v7756
      %v7758 = vand.u32 %v7757, 4294901760
      %7759 = vmatpush1.msra.mxu0 %v7758
      %7760 = vmatprep.subr.mxu0 0.0
      %v7761 = vand.u32 %v334, 4294901760
      %v7762 = vsub.f32 %v334, %v7761
      %v7763 = vand.u32 %v7762, 4294901760
      %7764 = vmatpush1.msra.mxu0 %v7763
      %7765 = vmatprep.subr.mxu0 0.0
      %v7766 = vand.u32 %v335, 4294901760
      %v7767 = vsub.f32 %v335, %v7766
      %v7768 = vand.u32 %v7767, 4294901760
      %7769 = vmatpush1.msra.mxu0 %v7768
      %7770 = vmatprep.subr.mxu0 0.0
      %v7771 = vand.u32 %v336, 4294901760
      %v7772 = vsub.f32 %v336, %v7771
      %v7773 = vand.u32 %v7772, 4294901760
      %7774 = vmatpush1.msra.mxu0 %v7773
      %7775 = vmatprep.subr.mxu0 0.0
      %7776 = vmatpush1.msra.mxu0 0.0
      %7777 = vmatprep.subr.mxu0 0.0
      %7778 = vmatpush1.msra.mxu0 0.0
      %7779 = vmatprep.subr.mxu0 0.0
      %7780 = vmatpush1.msra.mxu0 0.0
      %7781 = vmatprep.subr.mxu0 0.0
      %7782 = vmatpush1.msra.mxu0 0.0
      %7783 = vmatprep.subr.mxu0 0.0
      %7784 = vmatpush1.msra.mxu0 0.0
      %7785 = vmatprep.subr.mxu0 0.0
      %7786 = vmatpush1.msra.mxu0 0.0
      %7787 = vmatprep.subr.mxu0 0.0
      %7788 = vmatpush1.msra.mxu0 0.0
      %7789 = vmatprep.subr.mxu0 0.0
      %7790 = vmatpush1.msra.mxu0 0.0
      %7791 = vmatprep.subr.mxu0 0.0
      %7792 = vmatpush1.msra.mxu0 0.0
      %7793 = vmatprep.subr.mxu0 0.0
      %7794 = vmatpush1.msra.mxu0 0.0
      %7795 = vmatprep.subr.mxu0 0.0
      %7796 = vmatpush1.msra.mxu0 0.0
      %7797 = vmatprep.subr.mxu0 0.0
      %7798 = vmatpush1.msra.mxu0 0.0
      %7799 = vmatprep.subr.mxu0 0.0
      %7800 = vmatpush1.msra.mxu0 0.0
      %7801 = vmatprep.subr.mxu0 0.0
      %7802 = vmatpush1.msra.mxu0 0.0
      %7803 = vmatprep.subr.mxu0 0.0
      %7804 = vmatpush1.msra.mxu0 0.0
      %7805 = vmatprep.subr.mxu0 0.0
      %7806 = vmatpush1.msra.mxu0 0.0
      %7807 = vmatprep.mubr.f32.mxu0 0.0
      %v7808 = vand.u32 %v7258, 4294901760
      %7809 = vmatmul.mubr.f32.gmra.mrb[0].mxu0 %v7808
      %v7810 = vpop.f32.mrb[0].mxu0
      %v7811 = vadd.f32 %v7692, %v7810
      %v7812 = vpop.f32.mrb[0].mxu0
      %7813 = vdwg.mxu0
      %7814 = vmatprep.subr.mxu0 0.0
      %v7815 = vand.u32 %v321, 4294901760
      %7816 = vmatpush1.msra.mxu0 %v7815
      %7817 = vmatprep.subr.mxu0 0.0
      %v7818 = vand.u32 %v322, 4294901760
      %7819 = vmatpush1.msra.mxu0 %v7818
      %7820 = vmatprep.subr.mxu0 0.0
      %v7821 = vand.u32 %v323, 4294901760
      %7822 = vmatpush1.msra.mxu0 %v7821
      %7823 = vmatprep.subr.mxu0 0.0
      %v7824 = vand.u32 %v324, 4294901760
      %7825 = vmatpush1.msra.mxu0 %v7824
      %7826 = vmatprep.subr.mxu0 0.0
      %v7827 = vand.u32 %v325, 4294901760
      %7828 = vmatpush1.msra.mxu0 %v7827
      %7829 = vmatprep.subr.mxu0 0.0
      %v7830 = vand.u32 %v326, 4294901760
      %7831 = vmatpush1.msra.mxu0 %v7830
      %7832 = vmatprep.subr.mxu0 0.0
      %v7833 = vand.u32 %v327, 4294901760
      %7834 = vmatpush1.msra.mxu0 %v7833
      %7835 = vmatprep.subr.mxu0 0.0
      %v7836 = vand.u32 %v328, 4294901760
      %7837 = vmatpush1.msra.mxu0 %v7836
      %7838 = vmatprep.subr.mxu0 0.0
      %v7839 = vand.u32 %v329, 4294901760
      %7840 = vmatpush1.msra.mxu0 %v7839
      %7841 = vmatprep.subr.mxu0 0.0
      %v7842 = vand.u32 %v330, 4294901760
      %7843 = vmatpush1.msra.mxu0 %v7842
      %7844 = vmatprep.subr.mxu0 0.0
      %v7845 = vand.u32 %v331, 4294901760
      %7846 = vmatpush1.msra.mxu0 %v7845
      %7847 = vmatprep.subr.mxu0 0.0
      %v7848 = vand.u32 %v332, 4294901760
      %7849 = vmatpush1.msra.mxu0 %v7848
      %7850 = vmatprep.subr.mxu0 0.0
      %v7851 = vand.u32 %v333, 4294901760
      %7852 = vmatpush1.msra.mxu0 %v7851
      %7853 = vmatprep.subr.mxu0 0.0
      %v7854 = vand.u32 %v334, 4294901760
      %7855 = vmatpush1.msra.mxu0 %v7854
      %7856 = vmatprep.subr.mxu0 0.0
      %v7857 = vand.u32 %v335, 4294901760
      %7858 = vmatpush1.msra.mxu0 %v7857
      %7859 = vmatprep.subr.mxu0 0.0
      %v7860 = vand.u32 %v336, 4294901760
      %7861 = vmatpush1.msra.mxu0 %v7860
      %7862 = vmatprep.subr.mxu0 0.0
      %7863 = vmatpush1.msra.mxu0 0.0
      %7864 = vmatprep.subr.mxu0 0.0
      %7865 = vmatpush1.msra.mxu0 0.0
      %7866 = vmatprep.subr.mxu0 0.0
      %7867 = vmatpush1.msra.mxu0 0.0
      %7868 = vmatprep.subr.mxu0 0.0
      %7869 = vmatpush1.msra.mxu0 0.0
      %7870 = vmatprep.subr.mxu0 0.0
      %7871 = vmatpush1.msra.mxu0 0.0
      %7872 = vmatprep.subr.mxu0 0.0
      %7873 = vmatpush1.msra.mxu0 0.0
      %7874 = vmatprep.subr.mxu0 0.0
      %7875 = vmatpush1.msra.mxu0 0.0
      %7876 = vmatprep.subr.mxu0 0.0
      %7877 = vmatpush1.msra.mxu0 0.0
      %7878 = vmatprep.subr.mxu0 0.0
      %7879 = vmatpush1.msra.mxu0 0.0
      %7880 = vmatprep.subr.mxu0 0.0
      %7881 = vmatpush1.msra.mxu0 0.0
      %7882 = vmatprep.subr.mxu0 0.0
      %7883 = vmatpush1.msra.mxu0 0.0
      %7884 = vmatprep.subr.mxu0 0.0
      %7885 = vmatpush1.msra.mxu0 0.0
      %7886 = vmatprep.subr.mxu0 0.0
      %7887 = vmatpush1.msra.mxu0 0.0
      %7888 = vmatprep.subr.mxu0 0.0
      %7889 = vmatpush1.msra.mxu0 0.0
      %7890 = vmatprep.subr.mxu0 0.0
      %7891 = vmatpush1.msra.mxu0 0.0
      %7892 = vmatprep.subr.mxu0 0.0
      %7893 = vmatpush1.msra.mxu0 0.0
      %7894 = vmatprep.mubr.f32.mxu0 0.0
      %v7895 = vand.u32 %v7258, 4294901760
      %7896 = vmatmul.mubr.f32.gmra.mrb[0].mxu0 %v7895
      %v7897 = vpop.f32.mrb[0].mxu0
      %v7898 = vadd.f32 %v7811, %v7897
      %v7899 = vpop.f32.mrb[0].mxu0
      %7900 = vdwg.mxu0
      %v7901 = vmul.f32 %v7898, 0.00390625
      %v7902 = vmul.f32 %v7255, %v7255
      %v7903 = vsub.f32 %v7901, %v7902
      %v7904 = vadd.f32 %v7903, 1e-05
      %v7905 = vrsqrt.pop %v7904
      %v7906 = vsub.f32 0.0, %v7255
      %v7907 = vmul.f32 %v7906, %v7905
      %v7910 = vunpack.c.l.s4 1966171168
      %v7911 = vunpack.c.0.s8 %v7910
      %v7912 = vlaneseq
      %v7913 = vshrl.u32 %v7912, 7
      %v7914 = vsub.s32 %v7911, %v7913
      %v7915 = vrot.slane %v7905, %v7914
      %v7916 = vcombine.high %v7915, %v7915
      %v7918 = vunpack.c.l.s4 1966171168
      %v7919 = vunpack.c.0.s8 %v7918
      %v7920 = vlaneseq
      %v7921 = vshrl.u32 %v7920, 7
      %v7922 = vsub.s32 %v7919, %v7921
      %v7923 = vrot.slane %v7915, %v7922
      %v7925 = vunpack.c.l.s4 1966171168
      %v7926 = vunpack.c.0.s8 %v7925
      %v7927 = vlaneseq
      %v7928 = vshrl.u32 %v7927, 7
      %v7929 = vsub.s32 %v7926, %v7928
      %v7930 = vrot.slane %v7916, %v7929
      %v7931 = vlaneseq
      %v7932 = vshrl.u32 %v7931, 7
      %v7933 = vsub.s32 0, %v7932
      %v7934 = vrot.slane %v7923, %v7933
      %v7935 = vlaneseq
      %v7936 = vshrl.u32 %v7935, 7
      %v7937 = vsub.s32 0, %v7936
      %v7938 = vrot.slane %v7930, %v7937
      %v7941 = vmul.f32 %v6574, %v7934
      %v7942 = vmul.f32 %v6575, %v7934
      %v7943 = vmul.f32 %v6576, %v7938
      %v7944 = vmul.f32 %v6577, %v7938
      %v7947 = vunpack.c.l.s4 1966171168
      %v7948 = vunpack.c.0.s8 %v7947
      %v7949 = vlaneseq
      %v7950 = vshrl.u32 %v7949, 7
      %v7951 = vsub.s32 %v7948, %v7950
      %v7952 = vrot.slane %v7907, %v7951
      %v7953 = vcombine.high %v7952, %v7952
      %v7955 = vunpack.c.l.s4 1966171168
      %v7956 = vunpack.c.0.s8 %v7955
      %v7957 = vlaneseq
      %v7958 = vshrl.u32 %v7957, 7
      %v7959 = vsub.s32 %v7956, %v7958
      %v7960 = vrot.slane %v7952, %v7959
      %v7962 = vunpack.c.l.s4 1966171168
      %v7963 = vunpack.c.0.s8 %v7962
      %v7964 = vlaneseq
      %v7965 = vshrl.u32 %v7964, 7
      %v7966 = vsub.s32 %v7963, %v7965
      %v7967 = vrot.slane %v7953, %v7966
      %v7968 = vlaneseq
      %v7969 = vshrl.u32 %v7968, 7
      %v7970 = vsub.s32 0, %v7969
      %v7971 = vrot.slane %v7960, %v7970
      %v7972 = vlaneseq
      %v7973 = vshrl.u32 %v7972, 7
      %v7974 = vsub.s32 0, %v7973
      %v7975 = vrot.slane %v7967, %v7974
      %v7978 = vadd.f32 %v7941, %v7971
      %v7979 = vadd.f32 %v7942, %v7971
      %v7980 = vadd.f32 %v7943, %v7975
      %v7981 = vadd.f32 %v7944, %v7975
      %v7982 = vmax.f32 %v7978, 0.0
      %v7983 = vmax.f32 %v7979, 0.0
      %v7984 = vmax.f32 %v7980, 0.0
      %v7985 = vmax.f32 %v7981, 0.0
      %7986 = vst [vmem:[%s258] sm:$0xff] %v7982
      %7987 = vst [vmem:[%s258 + $0x8] sm:$0xff] %v7983
      %7988 = vst [vmem:[%s258 + $0x10] sm:$0xff] %v7984
      %7989 = vst [vmem:[%s258 + $0x18] sm:$0xff] %v7985
      %s7990 = smul.u32 2, %s17
      %p7991 = scmp.lt.s32.totalorder %s7990, 3
      %s7992 = scalar_select %p7991, %s7990, 3
      %s7993 = smul.addr %s7992, 2
      %s7994 = smul.addr %s7993, 8
      %s7995 = scalar_lea.vmem %s6, %s7994
      // Predicated region
      $region45: #{resblock_pallas.1} parent=43 // pred_check
        %p7996 = pneg %p166
      $region46: #{resblock_pallas.1} parent=43 // pred_check_branch
        %7998 = sbr.rel (%p7996) target = $region48
      $region47: #{resblock_pallas.1} parent=43 // pred_region
        %s7999 = smul.u32 2, %s17
      $region48: #{resblock_pallas.1} parent=43 // pred_fallthru
        _
    $region44: #{resblock_pallas.1} parent=5 // pred_fallthru
      _
    %p8000 = scmp.le.s32.totalorder 2, %s12
    // Predicated region
    $region49: #{resblock_pallas.1} parent=5 // pred_check
      %p8001 = pneg %p8000
    $region50: #{resblock_pallas.1} parent=5 // pred_check_branch
      %8003 = sbr.rel (%p8001) target = $region52
    $region51: #{resblock_pallas.1} parent=5 // pred_region
      %s8004 = ssub.s32 %s12, 2
      // Predicated region
      $region53: #{resblock_pallas.1} parent=51 // pred_check
        %p8005 = pneg %p172
      $region54: #{resblock_pallas.1} parent=51 // pred_check_branch
        %8007 = sbr.rel (%p8005) target = $region56
      $region55: #{resblock_pallas.1} parent=51 // pred_region
        %s8008 = smul.u32 2, %s18
        %p8009 = scmp.lt.s32.totalorder %s8008, 3
        %s8010 = scalar_select %p8009, %s8008, 3
        %s8011 = smul.addr %s8010, 2
        %s8012 = smul.addr %s8011, 8
        %s8013 = scalar_lea.vmem %s6, %s8012
      $region56: #{resblock_pallas.1} parent=51 // pred_fallthru
        _
    $region52: #{resblock_pallas.1} parent=5 // pred_fallthru
      _
  $region6: #{resblock_pallas.1} parent=0 // loop_footer
    %s16 = sadd.s32 1, %s12
  $region7: #{resblock_pallas.1} parent=0 // loop_footer_branch
    %11 = sbr.rel target = $region3
  $region8: #{resblock_pallas.1} parent=0 // loop_exit
    _

</llo_original>
